<compile_context>
chip_gen: v7x
topology: tpu7x:2x2x1
jax: 0.10.0
libtpu: 0.0.40
codegen_flags: <defaults>
</compile_context>

<pallas_src>
from functools import partial

import jax
import jax.numpy as jnp
from jax.experimental import pallas as pl
from jax.experimental.pallas import tpu as pltpu

LANE = 128
_MXU_DTYPE = jnp.bfloat16            # MXU operand dtype (accumulation is f32)
_POOL_PAD = -1e30                    # spatial pad value for the max-pool halo
_PAR1 = pltpu.CompilerParams(dimension_semantics=("parallel",))
_PAR2 = pltpu.CompilerParams(dimension_semantics=("parallel", "arbitrary"))


# ----------------------------------------------------------------------------
# helpers
# ----------------------------------------------------------------------------
def _round_up(x, m):
    return (x + m - 1) // m * m


def _pick_row_band(h, w, cap_rows=512):
    """Largest divisor RH of h with RH*w <= cap and RH*w a multiple of 8.

    Falls back to the whole image (one band) when no such divisor exists, so
    the per-band output block always satisfies the (8,128)/full-dim rule.
    """
    best = None
    for r in range(1, h + 1):
        if h % r == 0 and r * w <= cap_rows and (r * w) % 8 == 0:
            best = r
    return best if best is not None else h


# ----------------------------------------------------------------------------
# Pallas kernels
# ----------------------------------------------------------------------------
def _stem_kernel(x_ref, wx_ref, wp_ref, cb_ref, y_ref, st_ref, *, W, RH):
    """Fused stem on one row band: 3x3 max-pool (VPU) + two full-lane matmuls
    (x @ Wx for the three 1x1 reduce branches, pool(x) @ Wp for branch4's 1x1
    conv), bias, plus partial BatchNorm sum / sum-of-squares."""
    h0 = pl.program_id(1) * RH
    bands = [x_ref[0, pl.ds(h0 + kh, RH), :, :] for kh in range(3)]  # (RH,W+2,C)
    xi = bands[1][:, 1:1 + W, :]                                      # interior
    m = xi
    for kh in range(3):
        for kw in range(3):
            if kh == 1 and kw == 1:
                continue
            m = jnp.maximum(m, bands[kh][:, kw:kw + W, :])
    cin = xi.shape[-1]
    x2 = xi.reshape(RH * W, cin).astype(_MXU_DTYPE)
    p2 = m.reshape(RH * W, cin).astype(_MXU_DTYPE)
    y = (jnp.dot(x2, wx_ref[...], preferred_element_type=jnp.float32)
         + jnp.dot(p2, wp_ref[...], preferred_element_type=jnp.float32)
         + cb_ref[...])
    y_ref[0] = y
    st_ref[0, 0, 0:1, :] = jnp.sum(y, axis=0, keepdims=True)
    st_ref[0, 0, 1:2, :] = jnp.sum(y * y, axis=0, keepdims=True)


def _conv3x3_kernel(x_ref, w_ref, cb_ref, y_ref, st_ref, acc_ref, *, W, RH):
    """Direct 3x3 conv (stride 1, input pre-padded) on one row band of one
    image; f32 accumulation in a VMEM scratch, fused partial BN stats."""
    h0 = pl.program_id(1) * RH
    first = True
    for kh in range(3):
        band = x_ref[0, pl.ds(h0 + kh, RH), :, :]          # (RH, W+2, Cin)
        for kw in range(3):
            patch = band[:, kw:kw + W, :].reshape(RH * W, -1).astype(_MXU_DTYPE)
            contrib = jnp.dot(patch, w_ref[kh * 3 + kw],
                              preferred_element_type=jnp.float32)
            if first:
                acc_ref[...] = contrib
                first = False
            else:
                acc_ref[...] += contrib
    yb = acc_ref[...] + cb_ref[...]
    y_ref[0] = yb
    st_ref[0, 0, 0:1, :] = jnp.sum(yb, axis=0, keepdims=True)
    st_ref[0, 0, 1:2, :] = jnp.sum(yb * yb, axis=0, keepdims=True)


def _bn_relu_img_kernel(y_ref, sc_ref, sh_ref, img_ref, sum_ref, *, H, W):
    """BatchNorm (precomputed scale/shift) + ReLU on one image; writes the
    activation as a zero-padded image (ready for the next 3x3 conv) and emits
    per-image channel sums for the SE global-average-pool."""
    act = jnp.maximum(y_ref[0] * sc_ref[...] + sh_ref[...], 0.0)
    sum_ref[0] = jnp.sum(act, axis=0, keepdims=True)
    img_ref[...] = jnp.zeros(img_ref.shape, img_ref.dtype)
    img_ref[0, 1:1 + H, 1:1 + W, :] = act.reshape(H, W, act.shape[-1])


def _se_fc_kernel(g_ref, w1_ref, w2_ref, o_ref):
    h = jnp.maximum(jnp.dot(g_ref[...], w1_ref[...],
                            preferred_element_type=jnp.float32), 0.0)
    s = jnp.dot(h, w2_ref[...], preferred_element_type=jnp.float32)
    o_ref[...] = jax.nn.sigmoid(s)


def _combine_scale_kernel(a_ref, b_ref, c_ref, m_ref, s_ref, o_ref, *, H, W):
    """Fused concat + SE channel scaling: branch outputs were written at their
    final channel offsets, so the concat is (stem*mask + b2 + b3) * s."""
    hw = H * W
    a = a_ref[0, 1:1 + H, 1:1 + W, :].reshape(hw, -1)
    b = b_ref[0, 1:1 + H, 1:1 + W, :].reshape(hw, -1)
    c = c_ref[0, 1:1 + H, 1:1 + W, :].reshape(hw, -1)
    o_ref[0] = (a * m_ref[...] + b + c) * s_ref[0]


# ----------------------------------------------------------------------------
# pallas_call wrappers
# ----------------------------------------------------------------------------
def _stem_conv(x_img, wx, wp, cb, n, h, w, cs_p):
    cin_p = x_img.shape[-1]
    rh = _pick_row_band(h, w)
    nb = h // rh
    y, st = pl.pallas_call(
        partial(_stem_kernel, W=w, RH=rh),
        grid=(n, nb),
        in_specs=[
            pl.BlockSpec((1, h + 2, w + 2, cin_p), lambda i, b: (i, 0, 0, 0)),
            pl.BlockSpec((cin_p, cs_p), lambda i, b: (0, 0)),
            pl.BlockSpec((cin_p, cs_p), lambda i, b: (0, 0)),
            pl.BlockSpec((1, cs_p), lambda i, b: (0, 0)),
        ],
        out_specs=[
            pl.BlockSpec((1, rh * w, cs_p), lambda i, b: (i, b, 0)),
            pl.BlockSpec((1, 1, 2, cs_p), lambda i, b: (i, b, 0, 0)),
        ],
        out_shape=[
            jax.ShapeDtypeStruct((n, h * w, cs_p), jnp.float32),
            jax.ShapeDtypeStruct((n, nb, 2, cs_p), jnp.float32),
        ],
        compiler_params=_PAR2,
    )(x_img, wx, wp, cb)
    return y, jnp.sum(st, axis=(0, 1))


def _conv3x3(x_img, wk, cb, n, h, w, cout_p):
    cin_p = x_img.shape[-1]
    rh = _pick_row_band(h, w)
    nb = h // rh
    y, st = pl.pallas_call(
        partial(_conv3x3_kernel, W=w, RH=rh),
        grid=(n, nb),
        in_specs=[
            pl.BlockSpec((1, h + 2, w + 2, cin_p), lambda i, b: (i, 0, 0, 0)),
            pl.BlockSpec((9, cin_p, cout_p), lambda i, b: (0, 0, 0)),
            pl.BlockSpec((1, cout_p), lambda i, b: (0, 0)),
        ],
        out_specs=[
            pl.BlockSpec((1, rh * w, cout_p), lambda i, b: (i, b, 0)),
            pl.BlockSpec((1, 1, 2, cout_p), lambda i, b: (i, b, 0, 0)),
        ],
        out_shape=[
            jax.ShapeDtypeStruct((n, h * w, cout_p), jnp.float32),
            jax.ShapeDtypeStruct((n, nb, 2, cout_p), jnp.float32),
        ],
        scratch_shapes=[pltpu.VMEM((rh * w, cout_p), jnp.float32)],
        compiler_params=_PAR2,
    )(x_img, wk, cb)
    return y, jnp.sum(st, axis=(0, 1))


def _bn_relu_to_image(y_slab, stats, gamma, beta, count, eps, n, h, w):
    """Training-mode BatchNorm from fused sum/sumsq (+ ReLU), written out as a
    zero-padded channels-last image.  Also returns per-image channel sums."""
    c = y_slab.shape[-1]
    mean = stats[0:1] / count
    var = jnp.maximum(stats[1:2] / count - mean * mean, 0.0)
    scale = gamma * jax.lax.rsqrt(var + eps)
    shift = beta - mean * scale
    img, sums = pl.pallas_call(
        partial(_bn_relu_img_kernel, H=h, W=w),
        grid=(n,),
        in_specs=[
            pl.BlockSpec((1, h * w, c), lambda i: (i, 0, 0)),
            pl.BlockSpec((1, c), lambda i: (0, 0)),
            pl.BlockSpec((1, c), lambda i: (0, 0)),
        ],
        out_specs=[
            pl.BlockSpec((1, h + 2, w + 2, c), lambda i: (i, 0, 0, 0)),
            pl.BlockSpec((1, 1, c), lambda i: (i, 0, 0)),
        ],
        out_shape=[
            jax.ShapeDtypeStruct((n, h + 2, w + 2, c), jnp.float32),
            jax.ShapeDtypeStruct((n, 1, c), jnp.float32),
        ],
        compiler_params=_PAR1,
    )(y_slab, scale, shift)
    return img, sums[:, 0, :]


def _se_fc(gap, w1_p, w2_p):
    n, c_p = gap.shape
    cr_p = w1_p.shape[-1]
    n_pad = max(_round_up(n, 8), 8)                 # sublane-friendly matmul M
    g2 = jnp.pad(gap, ((0, n_pad - n), (0, 0)))
    s = pl.pallas_call(
        _se_fc_kernel,
        grid=(1,),
        in_specs=[
            pl.BlockSpec((n_pad, c_p), lambda i: (0, 0)),
            pl.BlockSpec((c_p, cr_p), lambda i: (0, 0)),
            pl.BlockSpec((cr_p, c_p), lambda i: (0, 0)),
        ],
        out_specs=pl.BlockSpec((n_pad, c_p), lambda i: (0, 0)),
        out_shape=jax.ShapeDtypeStruct((n_pad, c_p), jnp.float32),
    )(g2, w1_p, w2_p)
    return s[:n]


def _combine_scale(stem_img, b2_img, b3_img, mask, s, n, h, w, c_p):
    return pl.pallas_call(
        partial(_combine_scale_kernel, H=h, W=w),
        grid=(n,),
        in_specs=[
            pl.BlockSpec((1, h + 2, w + 2, c_p), lambda i: (i, 0, 0, 0)),
            pl.BlockSpec((1, h + 2, w + 2, c_p), lambda i: (i, 0, 0, 0)),
            pl.BlockSpec((1, h + 2, w + 2, c_p), lambda i: (i, 0, 0, 0)),
            pl.BlockSpec((1, c_p), lambda i: (0, 0)),
            pl.BlockSpec((1, 1, c_p), lambda i: (i, 0, 0)),
        ],
        out_specs=pl.BlockSpec((1, h * w, c_p), lambda i: (i, 0, 0)),
        out_shape=jax.ShapeDtypeStruct((n, h * w, c_p), jnp.float32),
        compiler_params=_PAR1,
    )(stem_img, b2_img, b3_img, mask, s)


# ----------------------------------------------------------------------------
# full InceptionV3A forward
# ----------------------------------------------------------------------------
def inception_v3a_forward(x_nchw, P, eps=1e-5):
    n, cin, h, w = x_nchw.shape
    f32 = jnp.float32

    wb1, cb1, g1, bt1 = P['b1']
    wb20, cb20, g20, bt20 = P['b2_0']
    wb21, cb21, g21, bt21 = P['b2_1']
    wb30, cb30, g30, bt30 = P['b3_0']
    wb31, cb31, g31, bt31 = P['b3_1']
    wb32, cb32, g32, bt32 = P['b3_2']
    wb4, cb4, g4, bt4 = P['b4']

    ch1x1, ch3x3red = wb1.shape[0], wb20.shape[0]
    ch3x3, ch3x3redX2 = wb21.shape[0], wb30.shape[0]
    cm, ch3x3X2, pool_proj = wb31.shape[0], wb32.shape[0], wb4.shape[0]
    c_tot = ch1x1 + ch3x3 + ch3x3X2 + pool_proj

    # final concat channel offsets (branch outputs are written there directly)
    o2 = ch1x1
    o3 = ch1x1 + ch3x3
    o4 = ch1x1 + ch3x3 + ch3x3X2
    # stem-only intermediate channels (consumed by the 3x3 convs, masked out)
    ob2r = c_tot
    ob3r = c_tot + ch3x3red
    cs = ob3r + ch3x3redX2

    cin_p = _round_up(cin, LANE)
    cs_p = _round_up(cs, LANE)
    c_p = _round_up(c_tot, LANE)
    cm_p = _round_up(cm, LANE)

    def cols(width, pieces):
        out = jnp.zeros((1, width), f32)
        for off, v in pieces:
            out = out.at[0, off:off + v.shape[0]].set(v.astype(f32))
        return out

    def w1x1(width, pieces):
        out = jnp.zeros((cin_p, width), f32)
        for off, wt in pieces:
            co, ci = wt.shape[0], wt.shape[1]
            out = out.at[:ci, off:off + co].set(wt.reshape(co, ci).T.astype(f32))
        return out.astype(_MXU_DTYPE)

    def w3x3(wt, kin_p, kin_off, cout_p, cout_off):
        co, ci = wt.shape[0], wt.shape[1]
        wk = jnp.transpose(wt, (2, 3, 1, 0)).reshape(9, ci, co).astype(f32)
        out = jnp.zeros((9, kin_p, cout_p), f32)
        out = out.at[:, kin_off:kin_off + ci, cout_off:cout_off + co].set(wk)
        return out.astype(_MXU_DTYPE)

    # ---- stem: three 1x1 convs on x  +  (max-pool -> 1x1 conv), one slab ----
    wx = w1x1(cs_p, [(0, wb1), (ob2r, wb20), (ob3r, wb30)])
    wp = w1x1(cs_p, [(o4, wb4)])
    cb_stem = cols(cs_p, [(0, cb1), (ob2r, cb20), (ob3r, cb30), (o4, cb4)])
    g_stem = cols(cs_p, [(0, g1), (ob2r, g20), (ob3r, g30), (o4, g4)])
    bt_stem = cols(cs_p, [(0, bt1), (ob2r, bt20), (ob3r, bt30), (o4, bt4)])

    # ---- 3x3 conv weights: K rows at the producer's column offset, output
    #      columns at the final-concat offset ----
    w_b2 = w3x3(wb21, cs_p, ob2r, c_p, o2)
    cb_b2, g_b2, bt_b2 = cols(c_p, [(o2, cb21)]), cols(c_p, [(o2, g21)]), cols(c_p, [(o2, bt21)])
    w_b3a = w3x3(wb31, cs_p, ob3r, cm_p, 0)
    cb_b3a, g_b3a, bt_b3a = cols(cm_p, [(0, cb31)]), cols(cm_p, [(0, g31)]), cols(cm_p, [(0, bt31)])
    w_b3b = w3x3(wb32, cm_p, 0, c_p, o3)
    cb_b3b, g_b3b, bt_b3b = cols(c_p, [(o3, cb32)]), cols(c_p, [(o3, g32)]), cols(c_p, [(o3, bt32)])

    # stem channels that appear in the final output (b1 and b4)
    mask = cols(c_p, [(0, jnp.ones((ch1x1,), f32)),
                      (o4, jnp.ones((pool_proj,), f32))])

    # SE weights (zero rows/cols for padded channels)
    c_red = P['se_w1'].shape[0]
    cr_p = _round_up(c_red, LANE)
    w1_p = jnp.zeros((c_p, cr_p), f32).at[:c_tot, :c_red].set(P['se_w1'].T.astype(f32))
    w2_p = jnp.zeros((cr_p, c_p), f32).at[:c_red, :c_tot].set(P['se_w2'].T.astype(f32))

    # ---- input: channels-last, channel pad 0, spatial pad with a very
    #      negative value (max-pool identity; 1x1 convs read the interior) ----
    x_nhwc = jnp.transpose(x_nchw, (0, 2, 3, 1)).astype(f32)
    x_nhwc = jnp.pad(x_nhwc, ((0, 0), (0, 0), (0, 0), (0, cin_p - cin)))
    x_img = jnp.pad(x_nhwc, ((0, 0), (1, 1), (1, 1), (0, 0)),
                    constant_values=_POOL_PAD)

    count = n * h * w

    y_stem, st_stem = _stem_conv(x_img, wx, wp, cb_stem, n, h, w, cs_p)
    stem_img, stem_sums = _bn_relu_to_image(y_stem, st_stem, g_stem, bt_stem,
                                            count, eps, n, h, w)

    y_b2, st_b2 = _conv3x3(stem_img, w_b2, cb_b2, n, h, w, c_p)
    b2_img, b2_sums = _bn_relu_to_image(y_b2, st_b2, g_b2, bt_b2, count, eps, n, h, w)

    y_b3a, st_b3a = _conv3x3(stem_img, w_b3a, cb_b3a, n, h, w, cm_p)
    b3a_img, _ = _bn_relu_to_image(y_b3a, st_b3a, g_b3a, bt_b3a, count, eps, n, h, w)

    y_b3, st_b3 = _conv3x3(b3a_img, w_b3b, cb_b3b, n, h, w, c_p)
    b3_img, b3_sums = _bn_relu_to_image(y_b3, st_b3, g_b3b, bt_b3b, count, eps, n, h, w)

    # SE squeeze straight from the per-image channel sums (no pass over the
    # concatenated tensor), then excitation on a tiny padded matmul.
    gap = (stem_sums[:, :c_p] * mask[0] + b2_sums + b3_sums) * (1.0 / (h * w))
    s = _se_fc(gap, w1_p, w2_p)                                    # (n, c_p)

    out_slab = _combine_scale(stem_img, b2_img, b3_img, mask,
                              s.reshape(n, 1, c_p), n, h, w, c_p)

    out = out_slab[:, :, :c_tot].reshape(n, h, w, c_tot)
    return jnp.transpose(out, (0, 3, 1, 2))                       # back to NCHW


# ----------------------------------------------------------------------------
# pure-JAX reference (mirrors the PyTorch module, training-mode BatchNorm)
# ----------------------------------------------------------------------------
def _ref_basic_conv(x, w, cb, g, bt, stride, pad, eps):
    y = jax.lax.conv_general_dilated(
        x, w, (stride, stride), [(pad, pad), (pad, pad)],
        dimension_numbers=('NCHW', 'OIHW', 'NCHW'),
        precision=jax.lax.Precision.HIGHEST)
    y = y + cb.reshape(1, -1, 1, 1)
    m = jnp.mean(y, axis=(0, 2, 3), keepdims=True)
    v = jnp.mean(jnp.square(y - m), axis=(0, 2, 3), keepdims=True)
    y = (y - m) * jax.lax.rsqrt(v + eps) * g.reshape(1, -1, 1, 1) \
        + bt.reshape(1, -1, 1, 1)
    return jnp.maximum(y, 0.0)


def _ref_inception(x, P, eps=1e-5):
    b1 = _ref_basic_conv(x, *P['b1'], 1, 0, eps)
    t = _ref_basic_conv(x, *P['b2_0'], 1, 0, eps)
    b2 = _ref_basic_conv(t, *P['b2_1'], 1, 1, eps)
    t = _ref_basic_conv(x, *P['b3_0'], 1, 0, eps)
    t = _ref_basic_conv(t, *P['b3_1'], 1, 1, eps)
    b3 = _ref_basic_conv(t, *P['b3_2'], 1, 1, eps)
    pooled = jax.lax.reduce_window(x, -jnp.inf, jax.lax.max,
                                   (1, 1, 3, 3), (1, 1, 1, 1),
                                   ((0, 0), (0, 0), (1, 1), (1, 1)))
    b4 = _ref_basic_conv(pooled, *P['b4'], 1, 0, eps)
    out = jnp.concatenate([b1, b2, b3, b4], axis=1)
    gap = jnp.mean(out, axis=(2, 3))
    hdd = jnp.maximum(gap @ P['se_w1'].T, 0.0)
    s = jax.nn.sigmoid(hdd @ P['se_w2'].T)
    return out * s[:, :, None, None]


# ----------------------------------------------------------------------------
if __name__ == "__main__":
    # Small deterministic InceptionV3A(4, 8, 8, 16, 8, 16, 8) on 2x4x16x16.
    N, Cin, H, W = 2, 4, 16, 16
    ch1x1, ch3x3red, ch3x3 = 8, 8, 16
    ch3x3redX2, ch3x3X2, pool_proj = 8, 16, 8
    ratio = 16
    c_tot = ch1x1 + ch3x3 + ch3x3X2 + pool_proj          # 48
    c_red = max(c_tot // ratio, 1)                       # 3

    def conv_params(key, cin, cout, k):
        k1, k2, k3, k4 = jax.random.split(key, 4)
        w = jax.random.normal(k1, (cout, cin, k, k), jnp.float32) * 0.1
        cb = jax.random.normal(k2, (cout,), jnp.float32) * 0.1
        g = 1.0 + 0.1 * jax.random.normal(k3, (cout,), jnp.float32)
        b = 0.1 * jax.random.normal(k4, (cout,), jnp.float32)
        return (w, cb, g, b)

    keys = jax.random.split(jax.random.PRNGKey(0), 10)
    x = jax.random.normal(keys[0], (N, Cin, H, W), jnp.float32)
    P = {
        'b1':   conv_params(keys[1], Cin, ch1x1, 1),
        'b2_0': conv_params(keys[2], Cin, ch3x3red, 1),
        'b2_1': conv_params(keys[3], ch3x3red, ch3x3, 3),
        'b3_0': conv_params(keys[4], Cin, ch3x3redX2, 1),
        'b3_1': conv_params(keys[5], ch3x3redX2, ch3x3X2, 3),
        'b3_2': conv_params(keys[6], ch3x3X2, ch3x3X2, 3),
        'b4':   conv_params(keys[7], Cin, pool_proj, 1),
        'se_w1': jax.random.normal(keys[8], (c_red, c_tot), jnp.float32) * 0.1,
        'se_w2': jax.random.normal(keys[9], (c_tot, c_red), jnp.float32) * 0.1,
    }

    out = jax.jit(inception_v3a_forward)(x, P)
    out = jax.block_until_ready(out)

    ref = _ref_inception(x, P)
    assert out.shape == (N, c_tot, H, W), out.shape
    # bf16 MXU operands through three chained conv+BN stages -> loose check
    # against the f32 HIGHEST-precision reference.
    max_err = float(jnp.max(jnp.abs(out - ref)))
    assert jnp.allclose(out, ref, atol=1e-1, rtol=1e-1), max_err

    print("KERNEL_OK")
</pallas_src>

<mosaic_0001>
module attributes {stable_mosaic.version = 11 : i64} {
  func.func @_bn_relu_img_kernel(%arg0: i32, %arg1: memref<1x256x128xf32, #tpu.memory_space<vmem>>, %arg2: memref<1x128xf32, #tpu.memory_space<vmem>>, %arg3: memref<1x128xf32, #tpu.memory_space<vmem>>, %arg4: memref<1x18x18x128xf32, #tpu.memory_space<vmem>>, %arg5: memref<1x1x128xf32, #tpu.memory_space<vmem>>) attributes {dimension_semantics = [#tpu.dimension_semantics<parallel>], iteration_bounds = array<i64: 2>, scalar_prefetch = 0 : i64, scratch_operands = 0 : i64, tpu.core_type = #tpu.core_type<tc>, window_params = [{transform_indices = @transform_0, window_bounds = array<i64: 1, 256, 128>}, {pipeline_mode = #tpu.pipeline_mode<synchronous>, transform_indices = @transform_1, window_bounds = array<i64: 1, 128>}, {pipeline_mode = #tpu.pipeline_mode<synchronous>, transform_indices = @transform_2, window_bounds = array<i64: 1, 128>}, {transform_indices = @transform_3, window_bounds = array<i64: 1, 18, 18, 128>}, {transform_indices = @transform_4, window_bounds = array<i64: 1, 1, 128>}]} {
    %c0 = arith.constant 0 : index
    %c0_0 = arith.constant 0 : index
    %c0_1 = arith.constant 0 : index
    %0 = vector.load %arg1[%c0, %c0_0, %c0_1] : memref<1x256x128xf32, #tpu.memory_space<vmem>>, vector<1x256x128xf32>
    %1 = vector.shape_cast %0 : vector<1x256x128xf32> to vector<256x128xf32>
    %c0_2 = arith.constant 0 : index
    %c0_3 = arith.constant 0 : index
    %2 = vector.load %arg2[%c0_2, %c0_3] : memref<1x128xf32, #tpu.memory_space<vmem>>, vector<1x128xf32>
    %3 = vector.broadcast %2 : vector<1x128xf32> to vector<256x128xf32>
    %4 = arith.mulf %1, %3 : vector<256x128xf32>
    %c0_4 = arith.constant 0 : index
    %c0_5 = arith.constant 0 : index
    %5 = vector.load %arg3[%c0_4, %c0_5] : memref<1x128xf32, #tpu.memory_space<vmem>>, vector<1x128xf32>
    %6 = vector.broadcast %5 : vector<1x128xf32> to vector<256x128xf32>
    %7 = arith.addf %4, %6 : vector<256x128xf32>
    %cst = arith.constant 0.000000e+00 : f32
    %8 = vector.broadcast %cst : f32 to vector<256x128xf32>
    %9 = arith.maximumf %7, %8 : vector<256x128xf32>
    %cst_6 = arith.constant dense<0.000000e+00> : vector<128xf32>
    %10 = vector.multi_reduction <add>, %9, %cst_6 [0] : vector<256x128xf32> to vector<128xf32>
    %11 = vector.shape_cast %10 : vector<128xf32> to vector<1x128xf32>
    %c0_7 = arith.constant 0 : index
    %c0_8 = arith.constant 0 : index
    %c0_9 = arith.constant 0 : index
    %12 = vector.load %arg5[%c0_7, %c0_8, %c0_9] : memref<1x1x128xf32, #tpu.memory_space<vmem>>, vector<1x1x128xf32>
    %13 = vector.shape_cast %12 : vector<1x1x128xf32> to vector<1x128xf32>
    %14 = vector.shape_cast %11 : vector<1x128xf32> to vector<1x1x128xf32>
    tpu.vector_store %arg5[%c0_7, %c0_8, %c0_9], %14 {strides = array<i32>} : memref<1x1x128xf32, #tpu.memory_space<vmem>>, vector<1x1x128xf32>,
    %cst_10 = arith.constant 0.000000e+00 : f32
    %15 = vector.broadcast %cst_10 : f32 to vector<1x18x18x128xf32>
    %c0_11 = arith.constant 0 : index
    %c0_12 = arith.constant 0 : index
    %c0_13 = arith.constant 0 : index
    %c0_14 = arith.constant 0 : index
    %16 = vector.load %arg4[%c0_11, %c0_12, %c0_13, %c0_14] : memref<1x18x18x128xf32, #tpu.memory_space<vmem>>, vector<1x18x18x128xf32>
    tpu.vector_store %arg4[%c0_11, %c0_12, %c0_13, %c0_14], %15 {strides = array<i32>} : memref<1x18x18x128xf32, #tpu.memory_space<vmem>>, vector<1x18x18x128xf32>,
    %17 = vector.shape_cast %9 : vector<256x128xf32> to vector<16x16x128xf32>
    %c0_15 = arith.constant 0 : index
    %c1 = arith.constant 1 : index
    %c1_16 = arith.constant 1 : index
    %c0_17 = arith.constant 0 : index
    %18 = vector.load %arg4[%c0_15, %c1, %c1_16, %c0_17] : memref<1x18x18x128xf32, #tpu.memory_space<vmem>>, vector<1x16x16x128xf32>
    %19 = vector.shape_cast %18 : vector<1x16x16x128xf32> to vector<16x16x128xf32>
    %20 = vector.shape_cast %17 : vector<16x16x128xf32> to vector<1x16x16x128xf32>
    tpu.vector_store %arg4[%c0_15, %c1, %c1_16, %c0_17], %20 {strides = array<i32>} : memref<1x18x18x128xf32, #tpu.memory_space<vmem>>, vector<1x16x16x128xf32>,
    return
  }
  func.func @transform_0(%arg0: i32) -> (i32, i32, i32) {
    %c0_i32 = arith.constant 0 : i32
    %c0_i32_0 = arith.constant 0 : i32
    %c0_i32_1 = arith.constant 0 : i32
    return %arg0, %c0_i32, %c0_i32_0 : i32, i32, i32
  }
  func.func @transform_1(%arg0: i32) -> (i32, i32) {
    %c0_i32 = arith.constant 0 : i32
    %c0_i32_0 = arith.constant 0 : i32
    %c0_i32_1 = arith.constant 0 : i32
    return %c0_i32, %c0_i32_0 : i32, i32
  }
  func.func @transform_2(%arg0: i32) -> (i32, i32) {
    %c0_i32 = arith.constant 0 : i32
    %c0_i32_0 = arith.constant 0 : i32
    %c0_i32_1 = arith.constant 0 : i32
    return %c0_i32, %c0_i32_0 : i32, i32
  }
  func.func @transform_3(%arg0: i32) -> (i32, i32, i32, i32) {
    %c0_i32 = arith.constant 0 : i32
    %c0_i32_0 = arith.constant 0 : i32
    %c0_i32_1 = arith.constant 0 : i32
    %c0_i32_2 = arith.constant 0 : i32
    return %arg0, %c0_i32, %c0_i32_0, %c0_i32_1 : i32, i32, i32, i32
  }
  func.func @transform_4(%arg0: i32) -> (i32, i32, i32) {
    %c0_i32 = arith.constant 0 : i32
    %c0_i32_0 = arith.constant 0 : i32
    %c0_i32_1 = arith.constant 0 : i32
    return %arg0, %c0_i32, %c0_i32_0 : i32, i32, i32
  }
}

module attributes {stable_mosaic.version = 11 : i64} {
  func.func @_stem_kernel(%arg0: i32, %arg1: i32, %arg2: memref<1x18x18x128xf32, #tpu.memory_space<vmem>>, %arg3: memref<128x128xbf16, #tpu.memory_space<vmem>>, %arg4: memref<128x128xbf16, #tpu.memory_space<vmem>>, %arg5: memref<1x128xf32, #tpu.memory_space<vmem>>, %arg6: memref<1x256x128xf32, #tpu.memory_space<vmem>>, %arg7: memref<1x1x2x128xf32, #tpu.memory_space<vmem>>) attributes {dimension_semantics = [#tpu.dimension_semantics<parallel>, #tpu.dimension_semantics<arbitrary>], iteration_bounds = array<i64: 2, 1>, scalar_prefetch = 0 : i64, scratch_operands = 0 : i64, tpu.core_type = #tpu.core_type<tc>, window_params = [{transform_indices = @transform_0, window_bounds = array<i64: 1, 18, 18, 128>}, {pipeline_mode = #tpu.pipeline_mode<synchronous>, transform_indices = @transform_1, window_bounds = array<i64: 128, 128>}, {pipeline_mode = #tpu.pipeline_mode<synchronous>, transform_indices = @transform_2, window_bounds = array<i64: 128, 128>}, {pipeline_mode = #tpu.pipeline_mode<synchronous>, transform_indices = @transform_3, window_bounds = array<i64: 1, 128>}, {transform_indices = @transform_4, window_bounds = array<i64: 1, 256, 128>}, {transform_indices = @transform_5, window_bounds = array<i64: 1, 1, 2, 128>}]} {
    %c16_i32 = arith.constant 16 : i32
    %0 = arith.muli %arg1, %c16_i32 : i32
    %c0_i32 = arith.constant 0 : i32
    %1 = arith.addi %0, %c0_i32 : i32
    %c0 = arith.constant 0 : index
    %2 = arith.index_cast %1 : i32 to index
    %c0_0 = arith.constant 0 : index
    %c0_1 = arith.constant 0 : index
    %3 = vector.load %arg2[%c0, %2, %c0_0, %c0_1] : memref<1x18x18x128xf32, #tpu.memory_space<vmem>>, vector<1x16x18x128xf32>
    %4 = vector.shape_cast %3 : vector<1x16x18x128xf32> to vector<16x18x128xf32>
    %c1_i32 = arith.constant 1 : i32
    %5 = arith.addi %0, %c1_i32 : i32
    %c0_2 = arith.constant 0 : index
    %6 = arith.index_cast %5 : i32 to index
    %c0_3 = arith.constant 0 : index
    %c0_4 = arith.constant 0 : index
    %7 = vector.load %arg2[%c0_2, %6, %c0_3, %c0_4] : memref<1x18x18x128xf32, #tpu.memory_space<vmem>>, vector<1x16x18x128xf32>
    %8 = vector.shape_cast %7 : vector<1x16x18x128xf32> to vector<16x18x128xf32>
    %c2_i32 = arith.constant 2 : i32
    %9 = arith.addi %0, %c2_i32 : i32
    %c0_5 = arith.constant 0 : index
    %10 = arith.index_cast %9 : i32 to index
    %c0_6 = arith.constant 0 : index
    %c0_7 = arith.constant 0 : index
    %11 = vector.load %arg2[%c0_5, %10, %c0_6, %c0_7] : memref<1x18x18x128xf32, #tpu.memory_space<vmem>>, vector<1x16x18x128xf32>
    %12 = vector.shape_cast %11 : vector<1x16x18x128xf32> to vector<16x18x128xf32>
    %13 = vector.extract_strided_slice %8 {offsets = [0, 1, 0], sizes = [16, 16, 128], strides = [1, 1, 1]} : vector<16x18x128xf32> to vector<16x16x128xf32>
    %14 = vector.extract_strided_slice %4 {offsets = [0, 0, 0], sizes = [16, 16, 128], strides = [1, 1, 1]} : vector<16x18x128xf32> to vector<16x16x128xf32>
    %15 = arith.maximumf %13, %14 : vector<16x16x128xf32>
    %16 = vector.extract_strided_slice %4 {offsets = [0, 1, 0], sizes = [16, 16, 128], strides = [1, 1, 1]} : vector<16x18x128xf32> to vector<16x16x128xf32>
    %17 = arith.maximumf %15, %16 : vector<16x16x128xf32>
    %18 = vector.extract_strided_slice %4 {offsets = [0, 2, 0], sizes = [16, 16, 128], strides = [1, 1, 1]} : vector<16x18x128xf32> to vector<16x16x128xf32>
    %19 = arith.maximumf %17, %18 : vector<16x16x128xf32>
    %20 = vector.extract_strided_slice %8 {offsets = [0, 0, 0], sizes = [16, 16, 128], strides = [1, 1, 1]} : vector<16x18x128xf32> to vector<16x16x128xf32>
    %21 = arith.maximumf %19, %20 : vector<16x16x128xf32>
    %22 = vector.extract_strided_slice %8 {offsets = [0, 2, 0], sizes = [16, 16, 128], strides = [1, 1, 1]} : vector<16x18x128xf32> to vector<16x16x128xf32>
    %23 = arith.maximumf %21, %22 : vector<16x16x128xf32>
    %24 = vector.extract_strided_slice %12 {offsets = [0, 0, 0], sizes = [16, 16, 128], strides = [1, 1, 1]} : vector<16x18x128xf32> to vector<16x16x128xf32>
    %25 = arith.maximumf %23, %24 : vector<16x16x128xf32>
    %26 = vector.extract_strided_slice %12 {offsets = [0, 1, 0], sizes = [16, 16, 128], strides = [1, 1, 1]} : vector<16x18x128xf32> to vector<16x16x128xf32>
    %27 = arith.maximumf %25, %26 : vector<16x16x128xf32>
    %28 = vector.extract_strided_slice %12 {offsets = [0, 2, 0], sizes = [16, 16, 128], strides = [1, 1, 1]} : vector<16x18x128xf32> to vector<16x16x128xf32>
    %29 = arith.maximumf %27, %28 : vector<16x16x128xf32>
    %30 = vector.shape_cast %13 : vector<16x16x128xf32> to vector<256x128xf32>
    %31 = arith.truncf %30 : vector<256x128xf32> to vector<256x128xbf16>
    %32 = vector.shape_cast %29 : vector<16x16x128xf32> to vector<256x128xf32>
    %33 = arith.truncf %32 : vector<256x128xf32> to vector<256x128xbf16>
    %c0_8 = arith.constant 0 : index
    %c0_9 = arith.constant 0 : index
    %34 = vector.load %arg3[%c0_8, %c0_9] : memref<128x128xbf16, #tpu.memory_space<vmem>>, vector<128x128xbf16>
    %cst = arith.constant dense<0.000000e+00> : vector<256x128xf32>
    %35 = tpu.matmul %31, %34, %cst {dimension_numbers = #tpu.dot_dimension_numbers<[1], [0], [0], [1], [0, 0, 1, 1], [], []>} : vector<256x128xbf16>, vector<128x128xbf16>, vector<256x128xf32> -> vector<256x128xf32>
    %c0_10 = arith.constant 0 : index
    %c0_11 = arith.constant 0 : index
    %36 = vector.load %arg4[%c0_10, %c0_11] : memref<128x128xbf16, #tpu.memory_space<vmem>>, vector<128x128xbf16>
    %cst_12 = arith.constant dense<0.000000e+00> : vector<256x128xf32>
    %37 = tpu.matmul %33, %36, %cst_12 {dimension_numbers = #tpu.dot_dimension_numbers<[1], [0], [0], [1], [0, 0, 1, 1], [], []>} : vector<256x128xbf16>, vector<128x128xbf16>, vector<256x128xf32> -> vector<256x128xf32>
    %38 = arith.addf %35, %37 : vector<256x128xf32>
    %c0_13 = arith.constant 0 : index
    %c0_14 = arith.constant 0 : index
    %39 = vector.load %arg5[%c0_13, %c0_14] : memref<1x128xf32, #tpu.memory_space<vmem>>, vector<1x128xf32>
    %40 = vector.broadcast %39 : vector<1x128xf32> to vector<256x128xf32>
    %41 = arith.addf %38, %40 : vector<256x128xf32>
    %c0_15 = arith.constant 0 : index
    %c0_16 = arith.constant 0 : index
    %c0_17 = arith.constant 0 : index
    %42 = vector.load %arg6[%c0_15, %c0_16, %c0_17] : memref<1x256x128xf32, #tpu.memory_space<vmem>>, vector<1x256x128xf32>
    %43 = vector.shape_cast %42 : vector<1x256x128xf32> to vector<256x128xf32>
    %44 = vector.shape_cast %41 : vector<256x128xf32> to vector<1x256x128xf32>
    tpu.vector_store %arg6[%c0_15, %c0_16, %c0_17], %44 {strides = array<i32>} : memref<1x256x128xf32, #tpu.memory_space<vmem>>, vector<1x256x128xf32>,
    %cst_18 = arith.constant dense<0.000000e+00> : vector<128xf32>
    %45 = vector.multi_reduction <add>, %41, %cst_18 [0] : vector<256x128xf32> to vector<128xf32>
    %46 = vector.shape_cast %45 : vector<128xf32> to vector<1x128xf32>
    %c0_19 = arith.constant 0 : index
    %c0_20 = arith.constant 0 : index
    %c0_21 = arith.constant 0 : index
    %c0_22 = arith.constant 0 : index
    %47 = vector.load %arg7[%c0_19, %c0_20, %c0_21, %c0_22] : memref<1x1x2x128xf32, #tpu.memory_space<vmem>>, vector<1x1x1x128xf32>
    %48 = vector.shape_cast %47 : vector<1x1x1x128xf32> to vector<1x128xf32>
    %49 = vector.shape_cast %46 : vector<1x128xf32> to vector<1x1x1x128xf32>
    tpu.vector_store %arg7[%c0_19, %c0_20, %c0_21, %c0_22], %49 {strides = array<i32>} : memref<1x1x2x128xf32, #tpu.memory_space<vmem>>, vector<1x1x1x128xf32>,
    %50 = arith.mulf %41, %41 : vector<256x128xf32>
    %cst_23 = arith.constant dense<0.000000e+00> : vector<128xf32>
    %51 = vector.multi_reduction <add>, %50, %cst_23 [0] : vector<256x128xf32> to vector<128xf32>
    %52 = vector.shape_cast %51 : vector<128xf32> to vector<1x128xf32>
    %c0_24 = arith.constant 0 : index
    %c0_25 = arith.constant 0 : index
    %c1 = arith.constant 1 : index
    %c0_26 = arith.constant 0 : index
    %53 = vector.load %arg7[%c0_24, %c0_25, %c1, %c0_26] : memref<1x1x2x128xf32, #tpu.memory_space<vmem>>, vector<1x1x1x128xf32>
    %54 = vector.shape_cast %53 : vector<1x1x1x128xf32> to vector<1x128xf32>
    %55 = vector.shape_cast %52 : vector<1x128xf32> to vector<1x1x1x128xf32>
    tpu.vector_store %arg7[%c0_24, %c0_25, %c1, %c0_26], %55 {strides = array<i32>} : memref<1x1x2x128xf32, #tpu.memory_space<vmem>>, vector<1x1x1x128xf32>,
    return
  }
  func.func @transform_0(%arg0: i32, %arg1: i32) -> (i32, i32, i32, i32) {
    %c0_i32 = arith.constant 0 : i32
    %c0_i32_0 = arith.constant 0 : i32
    %c0_i32_1 = arith.constant 0 : i32
    %c0_i32_2 = arith.constant 0 : i32
    return %arg0, %c0_i32, %c0_i32_0, %c0_i32_1 : i32, i32, i32, i32
  }
  func.func @transform_1(%arg0: i32, %arg1: i32) -> (i32, i32) {
    %c0_i32 = arith.constant 0 : i32
    %c0_i32_0 = arith.constant 0 : i32
    %c0_i32_1 = arith.constant 0 : i32
    return %c0_i32, %c0_i32_0 : i32, i32
  }
  func.func @transform_2(%arg0: i32, %arg1: i32) -> (i32, i32) {
    %c0_i32 = arith.constant 0 : i32
    %c0_i32_0 = arith.constant 0 : i32
    %c0_i32_1 = arith.constant 0 : i32
    return %c0_i32, %c0_i32_0 : i32, i32
  }
  func.func @transform_3(%arg0: i32, %arg1: i32) -> (i32, i32) {
    %c0_i32 = arith.constant 0 : i32
    %c0_i32_0 = arith.constant 0 : i32
    %c0_i32_1 = arith.constant 0 : i32
    return %c0_i32, %c0_i32_0 : i32, i32
  }
  func.func @transform_4(%arg0: i32, %arg1: i32) -> (i32, i32, i32) {
    %c0_i32 = arith.constant 0 : i32
    %c0_i32_0 = arith.constant 0 : i32
    return %arg0, %arg1, %c0_i32 : i32, i32, i32
  }
  func.func @transform_5(%arg0: i32, %arg1: i32) -> (i32, i32, i32, i32) {
    %c0_i32 = arith.constant 0 : i32
    %c0_i32_0 = arith.constant 0 : i32
    %c0_i32_1 = arith.constant 0 : i32
    return %arg0, %arg1, %c0_i32, %c0_i32_0 : i32, i32, i32, i32
  }
}

module attributes {stable_mosaic.version = 11 : i64} {
  func.func @_bn_relu_img_kernel(%arg0: i32, %arg1: memref<1x256x128xf32, #tpu.memory_space<vmem>>, %arg2: memref<1x128xf32, #tpu.memory_space<vmem>>, %arg3: memref<1x128xf32, #tpu.memory_space<vmem>>, %arg4: memref<1x18x18x128xf32, #tpu.memory_space<vmem>>, %arg5: memref<1x1x128xf32, #tpu.memory_space<vmem>>) attributes {dimension_semantics = [#tpu.dimension_semantics<parallel>], iteration_bounds = array<i64: 2>, scalar_prefetch = 0 : i64, scratch_operands = 0 : i64, tpu.core_type = #tpu.core_type<tc>, window_params = [{transform_indices = @transform_0, window_bounds = array<i64: 1, 256, 128>}, {pipeline_mode = #tpu.pipeline_mode<synchronous>, transform_indices = @transform_1, window_bounds = array<i64: 1, 128>}, {pipeline_mode = #tpu.pipeline_mode<synchronous>, transform_indices = @transform_2, window_bounds = array<i64: 1, 128>}, {transform_indices = @transform_3, window_bounds = array<i64: 1, 18, 18, 128>}, {transform_indices = @transform_4, window_bounds = array<i64: 1, 1, 128>}]} {
    %c0 = arith.constant 0 : index
    %c0_0 = arith.constant 0 : index
    %c0_1 = arith.constant 0 : index
    %0 = vector.load %arg1[%c0, %c0_0, %c0_1] : memref<1x256x128xf32, #tpu.memory_space<vmem>>, vector<1x256x128xf32>
    %1 = vector.shape_cast %0 : vector<1x256x128xf32> to vector<256x128xf32>
    %c0_2 = arith.constant 0 : index
    %c0_3 = arith.constant 0 : index
    %2 = vector.load %arg2[%c0_2, %c0_3] : memref<1x128xf32, #tpu.memory_space<vmem>>, vector<1x128xf32>
    %3 = vector.broadcast %2 : vector<1x128xf32> to vector<256x128xf32>
    %4 = arith.mulf %1, %3 : vector<256x128xf32>
    %c0_4 = arith.constant 0 : index
    %c0_5 = arith.constant 0 : index
    %5 = vector.load %arg3[%c0_4, %c0_5] : memref<1x128xf32, #tpu.memory_space<vmem>>, vector<1x128xf32>
    %6 = vector.broadcast %5 : vector<1x128xf32> to vector<256x128xf32>
    %7 = arith.addf %4, %6 : vector<256x128xf32>
    %cst = arith.constant 0.000000e+00 : f32
    %8 = vector.broadcast %cst : f32 to vector<256x128xf32>
    %9 = arith.maximumf %7, %8 : vector<256x128xf32>
    %cst_6 = arith.constant dense<0.000000e+00> : vector<128xf32>
    %10 = vector.multi_reduction <add>, %9, %cst_6 [0] : vector<256x128xf32> to vector<128xf32>
    %11 = vector.shape_cast %10 : vector<128xf32> to vector<1x128xf32>
    %c0_7 = arith.constant 0 : index
    %c0_8 = arith.constant 0 : index
    %c0_9 = arith.constant 0 : index
    %12 = vector.load %arg5[%c0_7, %c0_8, %c0_9] : memref<1x1x128xf32, #tpu.memory_space<vmem>>, vector<1x1x128xf32>
    %13 = vector.shape_cast %12 : vector<1x1x128xf32> to vector<1x128xf32>
    %14 = vector.shape_cast %11 : vector<1x128xf32> to vector<1x1x128xf32>
    tpu.vector_store %arg5[%c0_7, %c0_8, %c0_9], %14 {strides = array<i32>} : memref<1x1x128xf32, #tpu.memory_space<vmem>>, vector<1x1x128xf32>,
    %cst_10 = arith.constant 0.000000e+00 : f32
    %15 = vector.broadcast %cst_10 : f32 to vector<1x18x18x128xf32>
    %c0_11 = arith.constant 0 : index
    %c0_12 = arith.constant 0 : index
    %c0_13 = arith.constant 0 : index
    %c0_14 = arith.constant 0 : index
    %16 = vector.load %arg4[%c0_11, %c0_12, %c0_13, %c0_14] : memref<1x18x18x128xf32, #tpu.memory_space<vmem>>, vector<1x18x18x128xf32>
    tpu.vector_store %arg4[%c0_11, %c0_12, %c0_13, %c0_14], %15 {strides = array<i32>} : memref<1x18x18x128xf32, #tpu.memory_space<vmem>>, vector<1x18x18x128xf32>,
    %17 = vector.shape_cast %9 : vector<256x128xf32> to vector<16x16x128xf32>
    %c0_15 = arith.constant 0 : index
    %c1 = arith.constant 1 : index
    %c1_16 = arith.constant 1 : index
    %c0_17 = arith.constant 0 : index
    %18 = vector.load %arg4[%c0_15, %c1, %c1_16, %c0_17] : memref<1x18x18x128xf32, #tpu.memory_space<vmem>>, vector<1x16x16x128xf32>
    %19 = vector.shape_cast %18 : vector<1x16x16x128xf32> to vector<16x16x128xf32>
    %20 = vector.shape_cast %17 : vector<16x16x128xf32> to vector<1x16x16x128xf32>
    tpu.vector_store %arg4[%c0_15, %c1, %c1_16, %c0_17], %20 {strides = array<i32>} : memref<1x18x18x128xf32, #tpu.memory_space<vmem>>, vector<1x16x16x128xf32>,
    return
  }
  func.func @transform_0(%arg0: i32) -> (i32, i32, i32) {
    %c0_i32 = arith.constant 0 : i32
    %c0_i32_0 = arith.constant 0 : i32
    %c0_i32_1 = arith.constant 0 : i32
    return %arg0, %c0_i32, %c0_i32_0 : i32, i32, i32
  }
  func.func @transform_1(%arg0: i32) -> (i32, i32) {
    %c0_i32 = arith.constant 0 : i32
    %c0_i32_0 = arith.constant 0 : i32
    %c0_i32_1 = arith.constant 0 : i32
    return %c0_i32, %c0_i32_0 : i32, i32
  }
  func.func @transform_2(%arg0: i32) -> (i32, i32) {
    %c0_i32 = arith.constant 0 : i32
    %c0_i32_0 = arith.constant 0 : i32
    %c0_i32_1 = arith.constant 0 : i32
    return %c0_i32, %c0_i32_0 : i32, i32
  }
  func.func @transform_3(%arg0: i32) -> (i32, i32, i32, i32) {
    %c0_i32 = arith.constant 0 : i32
    %c0_i32_0 = arith.constant 0 : i32
    %c0_i32_1 = arith.constant 0 : i32
    %c0_i32_2 = arith.constant 0 : i32
    return %arg0, %c0_i32, %c0_i32_0, %c0_i32_1 : i32, i32, i32, i32
  }
  func.func @transform_4(%arg0: i32) -> (i32, i32, i32) {
    %c0_i32 = arith.constant 0 : i32
    %c0_i32_0 = arith.constant 0 : i32
    %c0_i32_1 = arith.constant 0 : i32
    return %arg0, %c0_i32, %c0_i32_0 : i32, i32, i32
  }
}

module attributes {stable_mosaic.version = 11 : i64} {
  func.func @_conv3x3_kernel(%arg0: i32, %arg1: i32, %arg2: memref<1x18x18x128xf32, #tpu.memory_space<vmem>>, %arg3: memref<9x128x128xbf16, #tpu.memory_space<vmem>>, %arg4: memref<1x128xf32, #tpu.memory_space<vmem>>, %arg5: memref<1x256x128xf32, #tpu.memory_space<vmem>>, %arg6: memref<1x1x2x128xf32, #tpu.memory_space<vmem>>, %arg7: memref<256x128xf32, #tpu.memory_space<vmem>>) attributes {dimension_semantics = [#tpu.dimension_semantics<parallel>, #tpu.dimension_semantics<arbitrary>], iteration_bounds = array<i64: 2, 1>, scalar_prefetch = 0 : i64, scratch_operands = 1 : i64, tpu.core_type = #tpu.core_type<tc>, window_params = [{transform_indices = @transform_0, window_bounds = array<i64: 1, 18, 18, 128>}, {pipeline_mode = #tpu.pipeline_mode<synchronous>, transform_indices = @transform_1, window_bounds = array<i64: 9, 128, 128>}, {pipeline_mode = #tpu.pipeline_mode<synchronous>, transform_indices = @transform_2, window_bounds = array<i64: 1, 128>}, {transform_indices = @transform_3, window_bounds = array<i64: 1, 256, 128>}, {transform_indices = @transform_4, window_bounds = array<i64: 1, 1, 2, 128>}]} {
    %c16_i32 = arith.constant 16 : i32
    %0 = arith.muli %arg1, %c16_i32 : i32
    %c0_i32 = arith.constant 0 : i32
    %1 = arith.addi %0, %c0_i32 : i32
    %c0 = arith.constant 0 : index
    %2 = arith.index_cast %1 : i32 to index
    %c0_0 = arith.constant 0 : index
    %c0_1 = arith.constant 0 : index
    %3 = vector.load %arg2[%c0, %2, %c0_0, %c0_1] : memref<1x18x18x128xf32, #tpu.memory_space<vmem>>, vector<1x16x18x128xf32>
    %4 = vector.shape_cast %3 : vector<1x16x18x128xf32> to vector<16x18x128xf32>
    %5 = vector.extract_strided_slice %4 {offsets = [0, 0, 0], sizes = [16, 16, 128], strides = [1, 1, 1]} : vector<16x18x128xf32> to vector<16x16x128xf32>
    %6 = vector.shape_cast %5 : vector<16x16x128xf32> to vector<256x128xf32>
    %7 = arith.truncf %6 : vector<256x128xf32> to vector<256x128xbf16>
    %c0_2 = arith.constant 0 : index
    %c0_3 = arith.constant 0 : index
    %c0_4 = arith.constant 0 : index
    %8 = vector.load %arg3[%c0_2, %c0_3, %c0_4] : memref<9x128x128xbf16, #tpu.memory_space<vmem>>, vector<1x128x128xbf16>
    %9 = vector.shape_cast %8 : vector<1x128x128xbf16> to vector<128x128xbf16>
    %cst = arith.constant dense<0.000000e+00> : vector<256x128xf32>
    %10 = tpu.matmul %7, %9, %cst {dimension_numbers = #tpu.dot_dimension_numbers<[1], [0], [0], [1], [0, 0, 1, 1], [], []>} : vector<256x128xbf16>, vector<128x128xbf16>, vector<256x128xf32> -> vector<256x128xf32>
    %c0_5 = arith.constant 0 : index
    %c0_6 = arith.constant 0 : index
    %11 = vector.load %arg7[%c0_5, %c0_6] : memref<256x128xf32, #tpu.memory_space<vmem>>, vector<256x128xf32>
    tpu.vector_store %arg7[%c0_5, %c0_6], %10 {strides = array<i32>} : memref<256x128xf32, #tpu.memory_space<vmem>>, vector<256x128xf32>,
    %12 = vector.extract_strided_slice %4 {offsets = [0, 1, 0], sizes = [16, 16, 128], strides = [1, 1, 1]} : vector<16x18x128xf32> to vector<16x16x128xf32>
    %13 = vector.shape_cast %12 : vector<16x16x128xf32> to vector<256x128xf32>
    %14 = arith.truncf %13 : vector<256x128xf32> to vector<256x128xbf16>
    %c1 = arith.constant 1 : index
    %c0_7 = arith.constant 0 : index
    %c0_8 = arith.constant 0 : index
    %15 = vector.load %arg3[%c1, %c0_7, %c0_8] : memref<9x128x128xbf16, #tpu.memory_space<vmem>>, vector<1x128x128xbf16>
    %16 = vector.shape_cast %15 : vector<1x128x128xbf16> to vector<128x128xbf16>
    %cst_9 = arith.constant dense<0.000000e+00> : vector<256x128xf32>
    %17 = tpu.matmul %14, %16, %cst_9 {dimension_numbers = #tpu.dot_dimension_numbers<[1], [0], [0], [1], [0, 0, 1, 1], [], []>} : vector<256x128xbf16>, vector<128x128xbf16>, vector<256x128xf32> -> vector<256x128xf32>
    %c0_10 = arith.constant 0 : index
    %c0_11 = arith.constant 0 : index
    %18 = vector.load %arg7[%c0_10, %c0_11] : memref<256x128xf32, #tpu.memory_space<vmem>>, vector<256x128xf32>
    %19 = arith.addf %18, %17 : vector<256x128xf32>
    %c0_12 = arith.constant 0 : index
    %c0_13 = arith.constant 0 : index
    %20 = vector.load %arg7[%c0_12, %c0_13] : memref<256x128xf32, #tpu.memory_space<vmem>>, vector<256x128xf32>
    tpu.vector_store %arg7[%c0_12, %c0_13], %19 {strides = array<i32>} : memref<256x128xf32, #tpu.memory_space<vmem>>, vector<256x128xf32>,
    %21 = vector.extract_strided_slice %4 {offsets = [0, 2, 0], sizes = [16, 16, 128], strides = [1, 1, 1]} : vector<16x18x128xf32> to vector<16x16x128xf32>
    %22 = vector.shape_cast %21 : vector<16x16x128xf32> to vector<256x128xf32>
    %23 = arith.truncf %22 : vector<256x128xf32> to vector<256x128xbf16>
    %c2 = arith.constant 2 : index
    %c0_14 = arith.constant 0 : index
    %c0_15 = arith.constant 0 : index
    %24 = vector.load %arg3[%c2, %c0_14, %c0_15] : memref<9x128x128xbf16, #tpu.memory_space<vmem>>, vector<1x128x128xbf16>
    %25 = vector.shape_cast %24 : vector<1x128x128xbf16> to vector<128x128xbf16>
    %cst_16 = arith.constant dense<0.000000e+00> : vector<256x128xf32>
    %26 = tpu.matmul %23, %25, %cst_16 {dimension_numbers = #tpu.dot_dimension_numbers<[1], [0], [0], [1], [0, 0, 1, 1], [], []>} : vector<256x128xbf16>, vector<128x128xbf16>, vector<256x128xf32> -> vector<256x128xf32>
    %c0_17 = arith.constant 0 : index
    %c0_18 = arith.constant 0 : index
    %27 = vector.load %arg7[%c0_17, %c0_18] : memref<256x128xf32, #tpu.memory_space<vmem>>, vector<256x128xf32>
    %28 = arith.addf %27, %26 : vector<256x128xf32>
    %c0_19 = arith.constant 0 : index
    %c0_20 = arith.constant 0 : index
    %29 = vector.load %arg7[%c0_19, %c0_20] : memref<256x128xf32, #tpu.memory_space<vmem>>, vector<256x128xf32>
    tpu.vector_store %arg7[%c0_19, %c0_20], %28 {strides = array<i32>} : memref<256x128xf32, #tpu.memory_space<vmem>>, vector<256x128xf32>,
    %c1_i32 = arith.constant 1 : i32
    %30 = arith.addi %0, %c1_i32 : i32
    %c0_21 = arith.constant 0 : index
    %31 = arith.index_cast %30 : i32 to index
    %c0_22 = arith.constant 0 : index
    %c0_23 = arith.constant 0 : index
    %32 = vector.load %arg2[%c0_21, %31, %c0_22, %c0_23] : memref<1x18x18x128xf32, #tpu.memory_space<vmem>>, vector<1x16x18x128xf32>
    %33 = vector.shape_cast %32 : vector<1x16x18x128xf32> to vector<16x18x128xf32>
    %34 = vector.extract_strided_slice %33 {offsets = [0, 0, 0], sizes = [16, 16, 128], strides = [1, 1, 1]} : vector<16x18x128xf32> to vector<16x16x128xf32>
    %35 = vector.shape_cast %34 : vector<16x16x128xf32> to vector<256x128xf32>
    %36 = arith.truncf %35 : vector<256x128xf32> to vector<256x128xbf16>
    %c3 = arith.constant 3 : index
    %c0_24 = arith.constant 0 : index
    %c0_25 = arith.constant 0 : index
    %37 = vector.load %arg3[%c3, %c0_24, %c0_25] : memref<9x128x128xbf16, #tpu.memory_space<vmem>>, vector<1x128x128xbf16>
    %38 = vector.shape_cast %37 : vector<1x128x128xbf16> to vector<128x128xbf16>
    %cst_26 = arith.constant dense<0.000000e+00> : vector<256x128xf32>
    %39 = tpu.matmul %36, %38, %cst_26 {dimension_numbers = #tpu.dot_dimension_numbers<[1], [0], [0], [1], [0, 0, 1, 1], [], []>} : vector<256x128xbf16>, vector<128x128xbf16>, vector<256x128xf32> -> vector<256x128xf32>
    %c0_27 = arith.constant 0 : index
    %c0_28 = arith.constant 0 : index
    %40 = vector.load %arg7[%c0_27, %c0_28] : memref<256x128xf32, #tpu.memory_space<vmem>>, vector<256x128xf32>
    %41 = arith.addf %40, %39 : vector<256x128xf32>
    %c0_29 = arith.constant 0 : index
    %c0_30 = arith.constant 0 : index
    %42 = vector.load %arg7[%c0_29, %c0_30] : memref<256x128xf32, #tpu.memory_space<vmem>>, vector<256x128xf32>
    tpu.vector_store %arg7[%c0_29, %c0_30], %41 {strides = array<i32>} : memref<256x128xf32, #tpu.memory_space<vmem>>, vector<256x128xf32>,
    %43 = vector.extract_strided_slice %33 {offsets = [0, 1, 0], sizes = [16, 16, 128], strides = [1, 1, 1]} : vector<16x18x128xf32> to vector<16x16x128xf32>
    %44 = vector.shape_cast %43 : vector<16x16x128xf32> to vector<256x128xf32>
    %45 = arith.truncf %44 : vector<256x128xf32> to vector<256x128xbf16>
    %c4 = arith.constant 4 : index
    %c0_31 = arith.constant 0 : index
    %c0_32 = arith.constant 0 : index
    %46 = vector.load %arg3[%c4, %c0_31, %c0_32] : memref<9x128x128xbf16, #tpu.memory_space<vmem>>, vector<1x128x128xbf16>
    %47 = vector.shape_cast %46 : vector<1x128x128xbf16> to vector<128x128xbf16>
    %cst_33 = arith.constant dense<0.000000e+00> : vector<256x128xf32>
    %48 = tpu.matmul %45, %47, %cst_33 {dimension_numbers = #tpu.dot_dimension_numbers<[1], [0], [0], [1], [0, 0, 1, 1], [], []>} : vector<256x128xbf16>, vector<128x128xbf16>, vector<256x128xf32> -> vector<256x128xf32>
    %c0_34 = arith.constant 0 : index
    %c0_35 = arith.constant 0 : index
    %49 = vector.load %arg7[%c0_34, %c0_35] : memref<256x128xf32, #tpu.memory_space<vmem>>, vector<256x128xf32>
    %50 = arith.addf %49, %48 : vector<256x128xf32>
    %c0_36 = arith.constant 0 : index
    %c0_37 = arith.constant 0 : index
    %51 = vector.load %arg7[%c0_36, %c0_37] : memref<256x128xf32, #tpu.memory_space<vmem>>, vector<256x128xf32>
    tpu.vector_store %arg7[%c0_36, %c0_37], %50 {strides = array<i32>} : memref<256x128xf32, #tpu.memory_space<vmem>>, vector<256x128xf32>,
    %52 = vector.extract_strided_slice %33 {offsets = [0, 2, 0], sizes = [16, 16, 128], strides = [1, 1, 1]} : vector<16x18x128xf32> to vector<16x16x128xf32>
    %53 = vector.shape_cast %52 : vector<16x16x128xf32> to vector<256x128xf32>
    %54 = arith.truncf %53 : vector<256x128xf32> to vector<256x128xbf16>
    %c5 = arith.constant 5 : index
    %c0_38 = arith.constant 0 : index
    %c0_39 = arith.constant 0 : index
    %55 = vector.load %arg3[%c5, %c0_38, %c0_39] : memref<9x128x128xbf16, #tpu.memory_space<vmem>>, vector<1x128x128xbf16>
    %56 = vector.shape_cast %55 : vector<1x128x128xbf16> to vector<128x128xbf16>
    %cst_40 = arith.constant dense<0.000000e+00> : vector<256x128xf32>
    %57 = tpu.matmul %54, %56, %cst_40 {dimension_numbers = #tpu.dot_dimension_numbers<[1], [0], [0], [1], [0, 0, 1, 1], [], []>} : vector<256x128xbf16>, vector<128x128xbf16>, vector<256x128xf32> -> vector<256x128xf32>
    %c0_41 = arith.constant 0 : index
    %c0_42 = arith.constant 0 : index
    %58 = vector.load %arg7[%c0_41, %c0_42] : memref<256x128xf32, #tpu.memory_space<vmem>>, vector<256x128xf32>
    %59 = arith.addf %58, %57 : vector<256x128xf32>
    %c0_43 = arith.constant 0 : index
    %c0_44 = arith.constant 0 : index
    %60 = vector.load %arg7[%c0_43, %c0_44] : memref<256x128xf32, #tpu.memory_space<vmem>>, vector<256x128xf32>
    tpu.vector_store %arg7[%c0_43, %c0_44], %59 {strides = array<i32>} : memref<256x128xf32, #tpu.memory_space<vmem>>, vector<256x128xf32>,
    %c2_i32 = arith.constant 2 : i32
    %61 = arith.addi %0, %c2_i32 : i32
    %c0_45 = arith.constant 0 : index
    %62 = arith.index_cast %61 : i32 to index
    %c0_46 = arith.constant 0 : index
    %c0_47 = arith.constant 0 : index
    %63 = vector.load %arg2[%c0_45, %62, %c0_46, %c0_47] : memref<1x18x18x128xf32, #tpu.memory_space<vmem>>, vector<1x16x18x128xf32>
    %64 = vector.shape_cast %63 : vector<1x16x18x128xf32> to vector<16x18x128xf32>
    %65 = vector.extract_strided_slice %64 {offsets = [0, 0, 0], sizes = [16, 16, 128], strides = [1, 1, 1]} : vector<16x18x128xf32> to vector<16x16x128xf32>
    %66 = vector.shape_cast %65 : vector<16x16x128xf32> to vector<256x128xf32>
    %67 = arith.truncf %66 : vector<256x128xf32> to vector<256x128xbf16>
    %c6 = arith.constant 6 : index
    %c0_48 = arith.constant 0 : index
    %c0_49 = arith.constant 0 : index
    %68 = vector.load %arg3[%c6, %c0_48, %c0_49] : memref<9x128x128xbf16, #tpu.memory_space<vmem>>, vector<1x128x128xbf16>
    %69 = vector.shape_cast %68 : vector<1x128x128xbf16> to vector<128x128xbf16>
    %cst_50 = arith.constant dense<0.000000e+00> : vector<256x128xf32>
    %70 = tpu.matmul %67, %69, %cst_50 {dimension_numbers = #tpu.dot_dimension_numbers<[1], [0], [0], [1], [0, 0, 1, 1], [], []>} : vector<256x128xbf16>, vector<128x128xbf16>, vector<256x128xf32> -> vector<256x128xf32>
    %c0_51 = arith.constant 0 : index
    %c0_52 = arith.constant 0 : index
    %71 = vector.load %arg7[%c0_51, %c0_52] : memref<256x128xf32, #tpu.memory_space<vmem>>, vector<256x128xf32>
    %72 = arith.addf %71, %70 : vector<256x128xf32>
    %c0_53 = arith.constant 0 : index
    %c0_54 = arith.constant 0 : index
    %73 = vector.load %arg7[%c0_53, %c0_54] : memref<256x128xf32, #tpu.memory_space<vmem>>, vector<256x128xf32>
    tpu.vector_store %arg7[%c0_53, %c0_54], %72 {strides = array<i32>} : memref<256x128xf32, #tpu.memory_space<vmem>>, vector<256x128xf32>,
    %74 = vector.extract_strided_slice %64 {offsets = [0, 1, 0], sizes = [16, 16, 128], strides = [1, 1, 1]} : vector<16x18x128xf32> to vector<16x16x128xf32>
    %75 = vector.shape_cast %74 : vector<16x16x128xf32> to vector<256x128xf32>
    %76 = arith.truncf %75 : vector<256x128xf32> to vector<256x128xbf16>
    %c7 = arith.constant 7 : index
    %c0_55 = arith.constant 0 : index
    %c0_56 = arith.constant 0 : index
    %77 = vector.load %arg3[%c7, %c0_55, %c0_56] : memref<9x128x128xbf16, #tpu.memory_space<vmem>>, vector<1x128x128xbf16>
    %78 = vector.shape_cast %77 : vector<1x128x128xbf16> to vector<128x128xbf16>
    %cst_57 = arith.constant dense<0.000000e+00> : vector<256x128xf32>
    %79 = tpu.matmul %76, %78, %cst_57 {dimension_numbers = #tpu.dot_dimension_numbers<[1], [0], [0], [1], [0, 0, 1, 1], [], []>} : vector<256x128xbf16>, vector<128x128xbf16>, vector<256x128xf32> -> vector<256x128xf32>
    %c0_58 = arith.constant 0 : index
    %c0_59 = arith.constant 0 : index
    %80 = vector.load %arg7[%c0_58, %c0_59] : memref<256x128xf32, #tpu.memory_space<vmem>>, vector<256x128xf32>
    %81 = arith.addf %80, %79 : vector<256x128xf32>
    %c0_60 = arith.constant 0 : index
    %c0_61 = arith.constant 0 : index
    %82 = vector.load %arg7[%c0_60, %c0_61] : memref<256x128xf32, #tpu.memory_space<vmem>>, vector<256x128xf32>
    tpu.vector_store %arg7[%c0_60, %c0_61], %81 {strides = array<i32>} : memref<256x128xf32, #tpu.memory_space<vmem>>, vector<256x128xf32>,
    %83 = vector.extract_strided_slice %64 {offsets = [0, 2, 0], sizes = [16, 16, 128], strides = [1, 1, 1]} : vector<16x18x128xf32> to vector<16x16x128xf32>
    %84 = vector.shape_cast %83 : vector<16x16x128xf32> to vector<256x128xf32>
    %85 = arith.truncf %84 : vector<256x128xf32> to vector<256x128xbf16>
    %c8 = arith.constant 8 : index
    %c0_62 = arith.constant 0 : index
    %c0_63 = arith.constant 0 : index
    %86 = vector.load %arg3[%c8, %c0_62, %c0_63] : memref<9x128x128xbf16, #tpu.memory_space<vmem>>, vector<1x128x128xbf16>
    %87 = vector.shape_cast %86 : vector<1x128x128xbf16> to vector<128x128xbf16>
    %cst_64 = arith.constant dense<0.000000e+00> : vector<256x128xf32>
    %88 = tpu.matmul %85, %87, %cst_64 {dimension_numbers = #tpu.dot_dimension_numbers<[1], [0], [0], [1], [0, 0, 1, 1], [], []>} : vector<256x128xbf16>, vector<128x128xbf16>, vector<256x128xf32> -> vector<256x128xf32>
    %c0_65 = arith.constant 0 : index
    %c0_66 = arith.constant 0 : index
    %89 = vector.load %arg7[%c0_65, %c0_66] : memref<256x128xf32, #tpu.memory_space<vmem>>, vector<256x128xf32>
    %90 = arith.addf %89, %88 : vector<256x128xf32>
    %c0_67 = arith.constant 0 : index
    %c0_68 = arith.constant 0 : index
    %91 = vector.load %arg7[%c0_67, %c0_68] : memref<256x128xf32, #tpu.memory_space<vmem>>, vector<256x128xf32>
    tpu.vector_store %arg7[%c0_67, %c0_68], %90 {strides = array<i32>} : memref<256x128xf32, #tpu.memory_space<vmem>>, vector<256x128xf32>,
    %c0_69 = arith.constant 0 : index
    %c0_70 = arith.constant 0 : index
    %92 = vector.load %arg7[%c0_69, %c0_70] : memref<256x128xf32, #tpu.memory_space<vmem>>, vector<256x128xf32>
    %c0_71 = arith.constant 0 : index
    %c0_72 = arith.constant 0 : index
    %93 = vector.load %arg4[%c0_71, %c0_72] : memref<1x128xf32, #tpu.memory_space<vmem>>, vector<1x128xf32>
    %94 = vector.broadcast %93 : vector<1x128xf32> to vector<256x128xf32>
    %95 = arith.addf %92, %94 : vector<256x128xf32>
    %c0_73 = arith.constant 0 : index
    %c0_74 = arith.constant 0 : index
    %c0_75 = arith.constant 0 : index
    %96 = vector.load %arg5[%c0_73, %c0_74, %c0_75] : memref<1x256x128xf32, #tpu.memory_space<vmem>>, vector<1x256x128xf32>
    %97 = vector.shape_cast %96 : vector<1x256x128xf32> to vector<256x128xf32>
    %98 = vector.shape_cast %95 : vector<256x128xf32> to vector<1x256x128xf32>
    tpu.vector_store %arg5[%c0_73, %c0_74, %c0_75], %98 {strides = array<i32>} : memref<1x256x128xf32, #tpu.memory_space<vmem>>, vector<1x256x128xf32>,
    %cst_76 = arith.constant dense<0.000000e+00> : vector<128xf32>
    %99 = vector.multi_reduction <add>, %95, %cst_76 [0] : vector<256x128xf32> to vector<128xf32>
    %100 = vector.shape_cast %99 : vector<128xf32> to vector<1x128xf32>
    %c0_77 = arith.constant 0 : index
    %c0_78 = arith.constant 0 : index
    %c0_79 = arith.constant 0 : index
    %c0_80 = arith.constant 0 : index
    %101 = vector.load %arg6[%c0_77, %c0_78, %c0_79, %c0_80] : memref<1x1x2x128xf32, #tpu.memory_space<vmem>>, vector<1x1x1x128xf32>
    %102 = vector.shape_cast %101 : vector<1x1x1x128xf32> to vector<1x128xf32>
    %103 = vector.shape_cast %100 : vector<1x128xf32> to vector<1x1x1x128xf32>
    tpu.vector_store %arg6[%c0_77, %c0_78, %c0_79, %c0_80], %103 {strides = array<i32>} : memref<1x1x2x128xf32, #tpu.memory_space<vmem>>, vector<1x1x1x128xf32>,
    %104 = arith.mulf %95, %95 : vector<256x128xf32>
    %cst_81 = arith.constant dense<0.000000e+00> : vector<128xf32>
    %105 = vector.multi_reduction <add>, %104, %cst_81 [0] : vector<256x128xf32> to vector<128xf32>
    %106 = vector.shape_cast %105 : vector<128xf32> to vector<1x128xf32>
    %c0_82 = arith.constant 0 : index
    %c0_83 = arith.constant 0 : index
    %c1_84 = arith.constant 1 : index
    %c0_85 = arith.constant 0 : index
    %107 = vector.load %arg6[%c0_82, %c0_83, %c1_84, %c0_85] : memref<1x1x2x128xf32, #tpu.memory_space<vmem>>, vector<1x1x1x128xf32>
    %108 = vector.shape_cast %107 : vector<1x1x1x128xf32> to vector<1x128xf32>
    %109 = vector.shape_cast %106 : vector<1x128xf32> to vector<1x1x1x128xf32>
    tpu.vector_store %arg6[%c0_82, %c0_83, %c1_84, %c0_85], %109 {strides = array<i32>} : memref<1x1x2x128xf32, #tpu.memory_space<vmem>>, vector<1x1x1x128xf32>,
    return
  }
  func.func @transform_0(%arg0: i32, %arg1: i32) -> (i32, i32, i32, i32) {
    %c0_i32 = arith.constant 0 : i32
    %c0_i32_0 = arith.constant 0 : i32
    %c0_i32_1 = arith.constant 0 : i32
    %c0_i32_2 = arith.constant 0 : i32
    return %arg0, %c0_i32, %c0_i32_0, %c0_i32_1 : i32, i32, i32, i32
  }
  func.func @transform_1(%arg0: i32, %arg1: i32) -> (i32, i32, i32) {
    %c0_i32 = arith.constant 0 : i32
    %c0_i32_0 = arith.constant 0 : i32
    %c0_i32_1 = arith.constant 0 : i32
    %c0_i32_2 = arith.constant 0 : i32
    return %c0_i32, %c0_i32_0, %c0_i32_1 : i32, i32, i32
  }
  func.func @transform_2(%arg0: i32, %arg1: i32) -> (i32, i32) {
    %c0_i32 = arith.constant 0 : i32
    %c0_i32_0 = arith.constant 0 : i32
    %c0_i32_1 = arith.constant 0 : i32
    return %c0_i32, %c0_i32_0 : i32, i32
  }
  func.func @transform_3(%arg0: i32, %arg1: i32) -> (i32, i32, i32) {
    %c0_i32 = arith.constant 0 : i32
    %c0_i32_0 = arith.constant 0 : i32
    return %arg0, %arg1, %c0_i32 : i32, i32, i32
  }
  func.func @transform_4(%arg0: i32, %arg1: i32) -> (i32, i32, i32, i32) {
    %c0_i32 = arith.constant 0 : i32
    %c0_i32_0 = arith.constant 0 : i32
    %c0_i32_1 = arith.constant 0 : i32
    return %arg0, %arg1, %c0_i32, %c0_i32_0 : i32, i32, i32, i32
  }
}

module attributes {stable_mosaic.version = 11 : i64} {
  func.func @_se_fc_kernel(%arg0: i32, %arg1: memref<8x128xf32, #tpu.memory_space<vmem>>, %arg2: memref<128x128xf32, #tpu.memory_space<vmem>>, %arg3: memref<128x128xf32, #tpu.memory_space<vmem>>, %arg4: memref<8x128xf32, #tpu.memory_space<vmem>>) attributes {dimension_semantics = [#tpu.dimension_semantics<arbitrary>], iteration_bounds = array<i64: 1>, scalar_prefetch = 0 : i64, scratch_operands = 0 : i64, tpu.core_type = #tpu.core_type<tc>, window_params = [{pipeline_mode = #tpu.pipeline_mode<synchronous>, transform_indices = @transform_0, window_bounds = array<i64: 8, 128>}, {pipeline_mode = #tpu.pipeline_mode<synchronous>, transform_indices = @transform_1, window_bounds = array<i64: 128, 128>}, {pipeline_mode = #tpu.pipeline_mode<synchronous>, transform_indices = @transform_2, window_bounds = array<i64: 128, 128>}, {pipeline_mode = #tpu.pipeline_mode<synchronous>, transform_indices = @transform_3, window_bounds = array<i64: 8, 128>}]} {
    %c0 = arith.constant 0 : index
    %c0_0 = arith.constant 0 : index
    %0 = vector.load %arg1[%c0, %c0_0] : memref<8x128xf32, #tpu.memory_space<vmem>>, vector<8x128xf32>
    %c0_1 = arith.constant 0 : index
    %c0_2 = arith.constant 0 : index
    %1 = vector.load %arg2[%c0_1, %c0_2] : memref<128x128xf32, #tpu.memory_space<vmem>>, vector<128x128xf32>
    %cst = arith.constant dense<0.000000e+00> : vector<8x128xf32>
    %2 = tpu.matmul %0, %1, %cst {dimension_numbers = #tpu.dot_dimension_numbers<[1], [0], [0], [1], [0, 0, 1, 1], [], []>} : vector<8x128xf32>, vector<128x128xf32>, vector<8x128xf32> -> vector<8x128xf32>
    %cst_3 = arith.constant 0.000000e+00 : f32
    %3 = vector.broadcast %cst_3 : f32 to vector<8x128xf32>
    %4 = arith.maximumf %2, %3 : vector<8x128xf32>
    %c0_4 = arith.constant 0 : index
    %c0_5 = arith.constant 0 : index
    %5 = vector.load %arg3[%c0_4, %c0_5] : memref<128x128xf32, #tpu.memory_space<vmem>>, vector<128x128xf32>
    %cst_6 = arith.constant dense<0.000000e+00> : vector<8x128xf32>
    %6 = tpu.matmul %4, %5, %cst_6 {dimension_numbers = #tpu.dot_dimension_numbers<[1], [0], [0], [1], [0, 0, 1, 1], [], []>} : vector<8x128xf32>, vector<128x128xf32>, vector<8x128xf32> -> vector<8x128xf32>
    %7 = arith.negf %6 : vector<8x128xf32>
    %8 = math.exp %7 : vector<8x128xf32>
    %cst_7 = arith.constant 1.000000e+00 : f32
    %9 = vector.broadcast %cst_7 : f32 to vector<8x128xf32>
    %10 = arith.addf %9, %8 : vector<8x128xf32>
    %11 = arith.divf %9, %10 : vector<8x128xf32>
    %c0_8 = arith.constant 0 : index
    %c0_9 = arith.constant 0 : index
    %12 = vector.load %arg4[%c0_8, %c0_9] : memref<8x128xf32, #tpu.memory_space<vmem>>, vector<8x128xf32>
    tpu.vector_store %arg4[%c0_8, %c0_9], %11 {strides = array<i32>} : memref<8x128xf32, #tpu.memory_space<vmem>>, vector<8x128xf32>,
    return
  }
  func.func @transform_0(%arg0: i32) -> (i32, i32) {
    %c0_i32 = arith.constant 0 : i32
    %c0_i32_0 = arith.constant 0 : i32
    %c0_i32_1 = arith.constant 0 : i32
    return %c0_i32, %c0_i32_0 : i32, i32
  }
  func.func @transform_1(%arg0: i32) -> (i32, i32) {
    %c0_i32 = arith.constant 0 : i32
    %c0_i32_0 = arith.constant 0 : i32
    %c0_i32_1 = arith.constant 0 : i32
    return %c0_i32, %c0_i32_0 : i32, i32
  }
  func.func @transform_2(%arg0: i32) -> (i32, i32) {
    %c0_i32 = arith.constant 0 : i32
    %c0_i32_0 = arith.constant 0 : i32
    %c0_i32_1 = arith.constant 0 : i32
    return %c0_i32, %c0_i32_0 : i32, i32
  }
  func.func @transform_3(%arg0: i32) -> (i32, i32) {
    %c0_i32 = arith.constant 0 : i32
    %c0_i32_0 = arith.constant 0 : i32
    %c0_i32_1 = arith.constant 0 : i32
    return %c0_i32, %c0_i32_0 : i32, i32
  }
}

module attributes {stable_mosaic.version = 11 : i64} {
  func.func @_combine_scale_kernel(%arg0: i32, %arg1: memref<1x18x18x128xf32, #tpu.memory_space<vmem>>, %arg2: memref<1x18x18x128xf32, #tpu.memory_space<vmem>>, %arg3: memref<1x18x18x128xf32, #tpu.memory_space<vmem>>, %arg4: memref<1x128xf32, #tpu.memory_space<vmem>>, %arg5: memref<1x1x128xf32, #tpu.memory_space<vmem>>, %arg6: memref<1x256x128xf32, #tpu.memory_space<vmem>>) attributes {dimension_semantics = [#tpu.dimension_semantics<parallel>], iteration_bounds = array<i64: 2>, scalar_prefetch = 0 : i64, scratch_operands = 0 : i64, tpu.core_type = #tpu.core_type<tc>, window_params = [{transform_indices = @transform_0, window_bounds = array<i64: 1, 18, 18, 128>}, {transform_indices = @transform_1, window_bounds = array<i64: 1, 18, 18, 128>}, {transform_indices = @transform_2, window_bounds = array<i64: 1, 18, 18, 128>}, {pipeline_mode = #tpu.pipeline_mode<synchronous>, transform_indices = @transform_3, window_bounds = array<i64: 1, 128>}, {transform_indices = @transform_4, window_bounds = array<i64: 1, 1, 128>}, {transform_indices = @transform_5, window_bounds = array<i64: 1, 256, 128>}]} {
    %c0 = arith.constant 0 : index
    %c1 = arith.constant 1 : index
    %c1_0 = arith.constant 1 : index
    %c0_1 = arith.constant 0 : index
    %0 = vector.load %arg1[%c0, %c1, %c1_0, %c0_1] : memref<1x18x18x128xf32, #tpu.memory_space<vmem>>, vector<1x16x16x128xf32>
    %1 = vector.shape_cast %0 : vector<1x16x16x128xf32> to vector<16x16x128xf32>
    %2 = vector.shape_cast %1 : vector<16x16x128xf32> to vector<256x128xf32>
    %c0_2 = arith.constant 0 : index
    %c1_3 = arith.constant 1 : index
    %c1_4 = arith.constant 1 : index
    %c0_5 = arith.constant 0 : index
    %3 = vector.load %arg2[%c0_2, %c1_3, %c1_4, %c0_5] : memref<1x18x18x128xf32, #tpu.memory_space<vmem>>, vector<1x16x16x128xf32>
    %4 = vector.shape_cast %3 : vector<1x16x16x128xf32> to vector<16x16x128xf32>
    %5 = vector.shape_cast %4 : vector<16x16x128xf32> to vector<256x128xf32>
    %c0_6 = arith.constant 0 : index
    %c1_7 = arith.constant 1 : index
    %c1_8 = arith.constant 1 : index
    %c0_9 = arith.constant 0 : index
    %6 = vector.load %arg3[%c0_6, %c1_7, %c1_8, %c0_9] : memref<1x18x18x128xf32, #tpu.memory_space<vmem>>, vector<1x16x16x128xf32>
    %7 = vector.shape_cast %6 : vector<1x16x16x128xf32> to vector<16x16x128xf32>
    %8 = vector.shape_cast %7 : vector<16x16x128xf32> to vector<256x128xf32>
    %c0_10 = arith.constant 0 : index
    %c0_11 = arith.constant 0 : index
    %9 = vector.load %arg4[%c0_10, %c0_11] : memref<1x128xf32, #tpu.memory_space<vmem>>, vector<1x128xf32>
    %10 = vector.broadcast %9 : vector<1x128xf32> to vector<256x128xf32>
    %11 = arith.mulf %2, %10 : vector<256x128xf32>
    %12 = arith.addf %11, %5 : vector<256x128xf32>
    %13 = arith.addf %12, %8 : vector<256x128xf32>
    %c0_12 = arith.constant 0 : index
    %c0_13 = arith.constant 0 : index
    %c0_14 = arith.constant 0 : index
    %14 = vector.load %arg5[%c0_12, %c0_13, %c0_14] : memref<1x1x128xf32, #tpu.memory_space<vmem>>, vector<1x1x128xf32>
    %15 = vector.shape_cast %14 : vector<1x1x128xf32> to vector<1x128xf32>
    %16 = vector.broadcast %15 : vector<1x128xf32> to vector<256x128xf32>
    %17 = arith.mulf %13, %16 : vector<256x128xf32>
    %c0_15 = arith.constant 0 : index
    %c0_16 = arith.constant 0 : index
    %c0_17 = arith.constant 0 : index
    %18 = vector.load %arg6[%c0_15, %c0_16, %c0_17] : memref<1x256x128xf32, #tpu.memory_space<vmem>>, vector<1x256x128xf32>
    %19 = vector.shape_cast %18 : vector<1x256x128xf32> to vector<256x128xf32>
    %20 = vector.shape_cast %17 : vector<256x128xf32> to vector<1x256x128xf32>
    tpu.vector_store %arg6[%c0_15, %c0_16, %c0_17], %20 {strides = array<i32>} : memref<1x256x128xf32, #tpu.memory_space<vmem>>, vector<1x256x128xf32>,
    return
  }
  func.func @transform_0(%arg0: i32) -> (i32, i32, i32, i32) {
    %c0_i32 = arith.constant 0 : i32
    %c0_i32_0 = arith.constant 0 : i32
    %c0_i32_1 = arith.constant 0 : i32
    %c0_i32_2 = arith.constant 0 : i32
    return %arg0, %c0_i32, %c0_i32_0, %c0_i32_1 : i32, i32, i32, i32
  }
  func.func @transform_1(%arg0: i32) -> (i32, i32, i32, i32) {
    %c0_i32 = arith.constant 0 : i32
    %c0_i32_0 = arith.constant 0 : i32
    %c0_i32_1 = arith.constant 0 : i32
    %c0_i32_2 = arith.constant 0 : i32
    return %arg0, %c0_i32, %c0_i32_0, %c0_i32_1 : i32, i32, i32, i32
  }
  func.func @transform_2(%arg0: i32) -> (i32, i32, i32, i32) {
    %c0_i32 = arith.constant 0 : i32
    %c0_i32_0 = arith.constant 0 : i32
    %c0_i32_1 = arith.constant 0 : i32
    %c0_i32_2 = arith.constant 0 : i32
    return %arg0, %c0_i32, %c0_i32_0, %c0_i32_1 : i32, i32, i32, i32
  }
  func.func @transform_3(%arg0: i32) -> (i32, i32) {
    %c0_i32 = arith.constant 0 : i32
    %c0_i32_0 = arith.constant 0 : i32
    %c0_i32_1 = arith.constant 0 : i32
    return %c0_i32, %c0_i32_0 : i32, i32
  }
  func.func @transform_4(%arg0: i32) -> (i32, i32, i32) {
    %c0_i32 = arith.constant 0 : i32
    %c0_i32_0 = arith.constant 0 : i32
    %c0_i32_1 = arith.constant 0 : i32
    return %arg0, %c0_i32, %c0_i32_0 : i32, i32, i32
  }
  func.func @transform_5(%arg0: i32) -> (i32, i32, i32) {
    %c0_i32 = arith.constant 0 : i32
    %c0_i32_0 = arith.constant 0 : i32
    %c0_i32_1 = arith.constant 0 : i32
    return %arg0, %c0_i32, %c0_i32_0 : i32, i32, i32
  }
}

</mosaic_0001>

<llo_original>
// kernel: inception_v3a_forward.11
$region0: #{inception_v3a_forward.11}
  #allocation0 [shape = 'u32[]', space=smem, size = 0x4, offset = 0x4, fixed_abs, tag = 'smem constant byte address 0x4 - core index']
  #allocation1 [shape = 'u32[144,128]{1,0:T(1,128)}', space=vmem, size = 0x12000, scoped, tag = 'internal scratch']
  %s0 = inlined_call_operand.vmem [shape: f32[2,256,128], index: 0, kind: input, shape index: {}]
  %s1 = inlined_call_operand.vmem [shape: f32[1,128], index: 1, kind: input, shape index: {}]
  %s2 = inlined_call_operand.vmem [shape: f32[1,128], index: 2, kind: input, shape index: {}]
  %s3 = inlined_call_operand.vmem [shape: f32[2,18,18,128], index: 3, kind: output, shape index: {0}]
  %s4 = inlined_call_operand.vmem [shape: f32[2,1,128], index: 4, kind: output, shape index: {1}]
  %5 = xla_tuple %s3, %s4
  %s6 = sld [smem:[#allocation0]]
  $region53: #{inception_v3a_forward.11} parent=0
    _
  %s8 = ssub.s32 1, %s6
  %s9 = scalar_select 0, %s8, %s6
  loop: start=0, step=1, limit=4
  $region2: #{inception_v3a_forward.11} parent=0 // loop_pre_header
    _
  $region3: #{inception_v3a_forward.11} parent=0 // loop_header
    %s11 = sphi 0, %s15
    %p12 = scmp.ge.s32.totalorder %s11, 4
    %s21 = sphi 0, %s23
    %s24 = sphi 0, %s21
    %s25 = sphi 0, %s24
    %s41 = sphi 0, %s25
    %s45 = sphi 0, %s45
    %s47 = sphi 0, %s45
    %s48 = sphi 0, %s47
    %s62 = sphi 0, %s48
    %s66 = sphi 0, %s66
    %s68 = sphi 0, %s66
    %s69 = sphi 0, %s68
    %s83 = sphi 0, %s69
    %s89 = sphi 0, %s91
    %s92 = sphi 0, %s89
    %s93 = sphi 0, %s92
    %s109 = sphi 0, %s93
    %s115 = sphi 0, %s117
    %s118 = sphi 0, %s115
    %s119 = sphi 0, %s118
    %s135 = sphi 0, %s119
  $region4: #{inception_v3a_forward.11} parent=0 // loop_header_branch
    %14 = sbr.rel (%p12) target = $region8
  $region5: #{inception_v3a_forward.11} parent=0 // loop_body
    %s16 = ssub.s32 %s11, 1
    %s17 = ssub.s32 %s11, 2
    %s18 = sadd.s32 %s11, 1
    %s19 = ssub.s32 %s11, %s18
    %p20 = scmp.eq.s32.totalorder %s19, 0
    %s22 = sadd.s32 %s21, 1
    %s23 = scalar_select %p20, %s21, %s22
    %p26 = pneg %p20
    %p27 = scmp.eq.s32.totalorder %s11, 1
    %p28 = por %p26, %p27
    %p29 = scmp.ne.s32.totalorder %s21, %s24
    %p30 = scmp.eq.s32.totalorder %s11, 0
    %p31 = por %p29, %p30
    %p32 = scmp.ne.s32.totalorder %s21, %s24
    %p33 = scmp.eq.s32.totalorder %s16, 1
    %p34 = por %p32, %p33
    %p35 = scmp.ne.s32.totalorder %s24, %s25
    %p36 = scmp.eq.s32.totalorder %s16, 0
    %p37 = por %p35, %p36
    %p38 = scmp.ne.s32.totalorder %s24, %s25
    %p39 = scmp.eq.s32.totalorder %s17, 1
    %p40 = por %p38, %p39
    %p42 = scmp.ne.s32.totalorder %s25, %s41
    %p43 = scmp.eq.s32.totalorder %s17, 0
    %p44 = por %p42, %p43
    %s46 = sadd.s32 %s45, 1
    %p49 = scmp.eq.s32.totalorder %s11, 1
    %p50 = scmp.ne.s32.totalorder %s45, %s47
    %p51 = scmp.eq.s32.totalorder %s11, 0
    %p52 = por %p50, %p51
    %p53 = scmp.ne.s32.totalorder %s45, %s47
    %p54 = scmp.eq.s32.totalorder %s16, 1
    %p55 = por %p53, %p54
    %p56 = scmp.ne.s32.totalorder %s47, %s48
    %p57 = scmp.eq.s32.totalorder %s16, 0
    %p58 = por %p56, %p57
    %p59 = scmp.ne.s32.totalorder %s47, %s48
    %p60 = scmp.eq.s32.totalorder %s17, 1
    %p61 = por %p59, %p60
    %p63 = scmp.ne.s32.totalorder %s48, %s62
    %p64 = scmp.eq.s32.totalorder %s17, 0
    %p65 = por %p63, %p64
    %s67 = sadd.s32 %s66, 1
    %p70 = scmp.eq.s32.totalorder %s11, 1
    %p71 = scmp.ne.s32.totalorder %s66, %s68
    %p72 = scmp.eq.s32.totalorder %s11, 0
    %p73 = por %p71, %p72
    %p74 = scmp.ne.s32.totalorder %s66, %s68
    %p75 = scmp.eq.s32.totalorder %s16, 1
    %p76 = por %p74, %p75
    %p77 = scmp.ne.s32.totalorder %s68, %s69
    %p78 = scmp.eq.s32.totalorder %s16, 0
    %p79 = por %p77, %p78
    %p80 = scmp.ne.s32.totalorder %s68, %s69
    %p81 = scmp.eq.s32.totalorder %s17, 1
    %p82 = por %p80, %p81
    %p84 = scmp.ne.s32.totalorder %s69, %s83
    %p85 = scmp.eq.s32.totalorder %s17, 0
    %p86 = por %p84, %p85
    %s87 = ssub.s32 %s11, %s18
    %p88 = scmp.eq.s32.totalorder %s87, 0
    %s90 = sadd.s32 %s89, 1
    %s91 = scalar_select %p88, %s89, %s90
    %p94 = pneg %p88
    %p95 = scmp.eq.s32.totalorder %s11, 1
    %p96 = por %p94, %p95
    %p97 = scmp.ne.s32.totalorder %s89, %s92
    %p98 = scmp.eq.s32.totalorder %s11, 0
    %p99 = por %p97, %p98
    %p100 = scmp.ne.s32.totalorder %s89, %s92
    %p101 = scmp.eq.s32.totalorder %s16, 1
    %p102 = por %p100, %p101
    %p103 = scmp.ne.s32.totalorder %s92, %s93
    %p104 = scmp.eq.s32.totalorder %s16, 0
    %p105 = por %p103, %p104
    %p106 = scmp.ne.s32.totalorder %s92, %s93
    %p107 = scmp.eq.s32.totalorder %s17, 1
    %p108 = por %p106, %p107
    %p110 = scmp.ne.s32.totalorder %s93, %s109
    %p111 = scmp.eq.s32.totalorder %s17, 0
    %p112 = por %p110, %p111
    %s113 = ssub.s32 %s11, %s18
    %p114 = scmp.eq.s32.totalorder %s113, 0
    %s116 = sadd.s32 %s115, 1
    %s117 = scalar_select %p114, %s115, %s116
    %p120 = pneg %p114
    %p121 = scmp.eq.s32.totalorder %s11, 1
    %p122 = por %p120, %p121
    %p123 = scmp.ne.s32.totalorder %s115, %s118
    %p124 = scmp.eq.s32.totalorder %s11, 0
    %p125 = por %p123, %p124
    %p126 = scmp.ne.s32.totalorder %s115, %s118
    %p127 = scmp.eq.s32.totalorder %s16, 1
    %p128 = por %p126, %p127
    %p129 = scmp.ne.s32.totalorder %s118, %s119
    %p130 = scmp.eq.s32.totalorder %s16, 0
    %p131 = por %p129, %p130
    %p132 = scmp.ne.s32.totalorder %s118, %s119
    %p133 = scmp.eq.s32.totalorder %s17, 1
    %p134 = por %p132, %p133
    %p136 = scmp.ne.s32.totalorder %s119, %s135
    %p137 = scmp.eq.s32.totalorder %s17, 0
    %p138 = por %p136, %p137
    %p139 = scmp.le.s32.totalorder 1, %s11
    %p140 = scmp.lt.s32.totalorder %s11, 3
    %p141 = pnand %p139, %p140
    %p142 = pneg %p141
    // Predicated region
    $region9: #{inception_v3a_forward.11} parent=5 // pred_check
      _
    $region10: #{inception_v3a_forward.11} parent=5 // pred_check_branch
      %144 = sbr.rel (%p141) target = $region12
    $region11: #{inception_v3a_forward.11} parent=5 // pred_region
      %s145 = ssub.s32 %s11, 1
      // Predicated region
      $region13: #{inception_v3a_forward.11} parent=11 // pred_check
        %p146 = pneg %p58
      $region14: #{inception_v3a_forward.11} parent=11 // pred_check_branch
        %148 = sbr.rel (%p146) target = $region16
      $region15: #{inception_v3a_forward.11} parent=11 // pred_region
        _
      $region16: #{inception_v3a_forward.11} parent=11 // pred_fallthru
        _
      // Predicated region
      $region17: #{inception_v3a_forward.11} parent=11 // pred_check
        %p149 = pneg %p79
      $region18: #{inception_v3a_forward.11} parent=11 // pred_check_branch
        %151 = sbr.rel (%p149) target = $region20
      $region19: #{inception_v3a_forward.11} parent=11 // pred_region
        _
      $region20: #{inception_v3a_forward.11} parent=11 // pred_fallthru
        _
    $region12: #{inception_v3a_forward.11} parent=5 // pred_fallthru
      _
    %p152 = scmp.lt.s32.totalorder %s11, 2
    // Predicated region
    $region21: #{inception_v3a_forward.11} parent=5 // pred_check
      %p153 = pneg %p152
    $region22: #{inception_v3a_forward.11} parent=5 // pred_check_branch
      %155 = sbr.rel (%p153) target = $region24
    $region23: #{inception_v3a_forward.11} parent=5 // pred_region
      // Predicated region
      $region25: #{inception_v3a_forward.11} parent=23 // pred_check
        %p156 = pneg %p31
      $region26: #{inception_v3a_forward.11} parent=23 // pred_check_branch
        %158 = sbr.rel (%p156) target = $region28
      $region27: #{inception_v3a_forward.11} parent=23 // pred_region
        %p159 = scmp.lt.s32.totalorder %s11, 1
        %s160 = scalar_select %p159, %s11, 1
        %s161 = smul.addr %s160, 32
        %s162 = smul.addr %s161, 8
        %s163 = scalar_lea.vmem %s0, %s162
      $region28: #{inception_v3a_forward.11} parent=23 // pred_fallthru
        _
    $region24: #{inception_v3a_forward.11} parent=5 // pred_fallthru
      _
    %p164 = scmp.le.s32.totalorder 1, %s11
    %p165 = scmp.lt.s32.totalorder %s11, 3
    %p166 = pnand %p164, %p165
    %p167 = pneg %p166
    // Predicated region
    $region29: #{inception_v3a_forward.11} parent=5 // pred_check
      _
    $region30: #{inception_v3a_forward.11} parent=5 // pred_check_branch
      %169 = sbr.rel (%p166) target = $region32
    $region31: #{inception_v3a_forward.11} parent=5 // pred_region
      %s170 = ssub.s32 %s11, 1
      %p171 = scmp.lt.s32.totalorder %s16, 1
      %s172 = scalar_select %p171, %s16, 1
      %s173 = smul.addr %s172, 32
      %s174 = smul.addr %s173, 8
      %s175 = scalar_lea.vmem %s0, %s174
      %p176 = pneg %p37
      %p177 = pneg %p34
      %p178 = pneg %p58
      %p179 = pneg %p55
      %p180 = pneg %p79
      %p181 = pneg %p76
      %p182 = pneg %p105
      %p183 = pneg %p102
      %p184 = scmp.lt.s32.totalorder %s16, 1
      %s185 = scalar_select %p184, %s16, 1
      %s186 = smul.addr %s185, 54
      %s187 = smul.addr %s186, 8
      %s188 = scalar_lea.vmem %s3, %s187
      %p189 = pneg %p131
      %p190 = pneg %p128
      %p191 = scmp.lt.s32.totalorder %s16, 1
      %s192 = scalar_select %p191, %s16, 1
      %s193 = scalar_lea.vmem %s4, %s192
      %p194 = scmp.lt.s32.totalorder %s16, 1
      %s195 = scalar_select %p194, %s16, 1
      %s196 = smul.addr %s195, 32
      %s197 = smul.addr %s196, 8
      %s198 = scalar_lea.vmem %s0, %s197
      %p199 = scmp.lt.s32.totalorder %s16, 1
      %s200 = scalar_select %p199, %s16, 1
      %s201 = smul.addr %s200, 54
      %s202 = smul.addr %s201, 8
      %s203 = scalar_lea.vmem %s3, %s202
      %p204 = scmp.lt.s32.totalorder %s16, 1
      %s205 = scalar_select %p204, %s16, 1
      %s206 = scalar_lea.vmem %s4, %s205
      %v207 = vld [vmem:[%s198] sm:$0xff]
      %v208 = vld [vmem:[%s198 + $0x8] sm:$0xff]
      %v209 = vld [vmem:[%s198 + $0x10] sm:$0xff]
      %v210 = vld [vmem:[%s198 + $0x18] sm:$0xff]
      %v211 = vld [vmem:[%s198 + $0x20] sm:$0xff]
      %v212 = vld [vmem:[%s198 + $0x28] sm:$0xff]
      %v213 = vld [vmem:[%s198 + $0x30] sm:$0xff]
      %v214 = vld [vmem:[%s198 + $0x38] sm:$0xff]
      %v215 = vld [vmem:[%s198 + $0x40] sm:$0xff]
      %v216 = vld [vmem:[%s198 + $0x48] sm:$0xff]
      %v217 = vld [vmem:[%s198 + $0x50] sm:$0xff]
      %v218 = vld [vmem:[%s198 + $0x58] sm:$0xff]
      %v219 = vld [vmem:[%s198 + $0x60] sm:$0xff]
      %v220 = vld [vmem:[%s198 + $0x68] sm:$0xff]
      %v221 = vld [vmem:[%s198 + $0x70] sm:$0xff]
      %v222 = vld [vmem:[%s198 + $0x78] sm:$0xff]
      %v223 = vld [vmem:[%s198 + $0x80] sm:$0xff]
      %v224 = vld [vmem:[%s198 + $0x88] sm:$0xff]
      %v225 = vld [vmem:[%s198 + $0x90] sm:$0xff]
      %v226 = vld [vmem:[%s198 + $0x98] sm:$0xff]
      %v227 = vld [vmem:[%s198 + $0xa0] sm:$0xff]
      %v228 = vld [vmem:[%s198 + $0xa8] sm:$0xff]
      %v229 = vld [vmem:[%s198 + $0xb0] sm:$0xff]
      %v230 = vld [vmem:[%s198 + $0xb8] sm:$0xff]
      %v231 = vld [vmem:[%s198 + $0xc0] sm:$0xff]
      %v232 = vld [vmem:[%s198 + $0xc8] sm:$0xff]
      %v233 = vld [vmem:[%s198 + $0xd0] sm:$0xff]
      %v234 = vld [vmem:[%s198 + $0xd8] sm:$0xff]
      %v235 = vld [vmem:[%s198 + $0xe0] sm:$0xff]
      %v236 = vld [vmem:[%s198 + $0xe8] sm:$0xff]
      %v237 = vld [vmem:[%s198 + $0xf0] sm:$0xff]
      %v238 = vld [vmem:[%s198 + $0xf8] sm:$0xff]
      %v239 = vld [vmem:[%s1] sm:$0x1]
      %v241 = vlaneseq
      %v242 = vshrl.u32 %v241, 7
      %v243 = vsub.s32 0, %v242
      %v244 = vrot.slane %v239, %v243
      %v246 = vmul.f32 %v207, %v244
      %v247 = vmul.f32 %v208, %v244
      %v248 = vmul.f32 %v209, %v244
      %v249 = vmul.f32 %v210, %v244
      %v250 = vmul.f32 %v211, %v244
      %v251 = vmul.f32 %v212, %v244
      %v252 = vmul.f32 %v213, %v244
      %v253 = vmul.f32 %v214, %v244
      %v254 = vmul.f32 %v215, %v244
      %v255 = vmul.f32 %v216, %v244
      %v256 = vmul.f32 %v217, %v244
      %v257 = vmul.f32 %v218, %v244
      %v258 = vmul.f32 %v219, %v244
      %v259 = vmul.f32 %v220, %v244
      %v260 = vmul.f32 %v221, %v244
      %v261 = vmul.f32 %v222, %v244
      %v262 = vmul.f32 %v223, %v244
      %v263 = vmul.f32 %v224, %v244
      %v264 = vmul.f32 %v225, %v244
      %v265 = vmul.f32 %v226, %v244
      %v266 = vmul.f32 %v227, %v244
      %v267 = vmul.f32 %v228, %v244
      %v268 = vmul.f32 %v229, %v244
      %v269 = vmul.f32 %v230, %v244
      %v270 = vmul.f32 %v231, %v244
      %v271 = vmul.f32 %v232, %v244
      %v272 = vmul.f32 %v233, %v244
      %v273 = vmul.f32 %v234, %v244
      %v274 = vmul.f32 %v235, %v244
      %v275 = vmul.f32 %v236, %v244
      %v276 = vmul.f32 %v237, %v244
      %v277 = vmul.f32 %v238, %v244
      %v278 = vld [vmem:[%s2] sm:$0x1]
      %v280 = vlaneseq
      %v281 = vshrl.u32 %v280, 7
      %v282 = vsub.s32 0, %v281
      %v283 = vrot.slane %v278, %v282
      %v285 = vadd.f32 %v246, %v283
      %v286 = vadd.f32 %v247, %v283
      %v287 = vadd.f32 %v248, %v283
      %v288 = vadd.f32 %v249, %v283
      %v289 = vadd.f32 %v250, %v283
      %v290 = vadd.f32 %v251, %v283
      %v291 = vadd.f32 %v252, %v283
      %v292 = vadd.f32 %v253, %v283
      %v293 = vadd.f32 %v254, %v283
      %v294 = vadd.f32 %v255, %v283
      %v295 = vadd.f32 %v256, %v283
      %v296 = vadd.f32 %v257, %v283
      %v297 = vadd.f32 %v258, %v283
      %v298 = vadd.f32 %v259, %v283
      %v299 = vadd.f32 %v260, %v283
      %v300 = vadd.f32 %v261, %v283
      %v301 = vadd.f32 %v262, %v283
      %v302 = vadd.f32 %v263, %v283
      %v303 = vadd.f32 %v264, %v283
      %v304 = vadd.f32 %v265, %v283
      %v305 = vadd.f32 %v266, %v283
      %v306 = vadd.f32 %v267, %v283
      %v307 = vadd.f32 %v268, %v283
      %v308 = vadd.f32 %v269, %v283
      %v309 = vadd.f32 %v270, %v283
      %v310 = vadd.f32 %v271, %v283
      %v311 = vadd.f32 %v272, %v283
      %v312 = vadd.f32 %v273, %v283
      %v313 = vadd.f32 %v274, %v283
      %v314 = vadd.f32 %v275, %v283
      %v315 = vadd.f32 %v276, %v283
      %v316 = vadd.f32 %v277, %v283
      %v317 = vmax.f32 %v285, 0.0
      %v318 = vmax.f32 %v286, 0.0
      %v319 = vmax.f32 %v287, 0.0
      %v320 = vmax.f32 %v288, 0.0
      %v321 = vmax.f32 %v289, 0.0
      %v322 = vmax.f32 %v290, 0.0
      %v323 = vmax.f32 %v291, 0.0
      %v324 = vmax.f32 %v292, 0.0
      %v325 = vmax.f32 %v293, 0.0
      %v326 = vmax.f32 %v294, 0.0
      %v327 = vmax.f32 %v295, 0.0
      %v328 = vmax.f32 %v296, 0.0
      %v329 = vmax.f32 %v297, 0.0
      %v330 = vmax.f32 %v298, 0.0
      %v331 = vmax.f32 %v299, 0.0
      %v332 = vmax.f32 %v300, 0.0
      %v333 = vmax.f32 %v301, 0.0
      %v334 = vmax.f32 %v302, 0.0
      %v335 = vmax.f32 %v303, 0.0
      %v336 = vmax.f32 %v304, 0.0
      %v337 = vmax.f32 %v305, 0.0
      %v338 = vmax.f32 %v306, 0.0
      %v339 = vmax.f32 %v307, 0.0
      %v340 = vmax.f32 %v308, 0.0
      %v341 = vmax.f32 %v309, 0.0
      %v342 = vmax.f32 %v310, 0.0
      %v343 = vmax.f32 %v311, 0.0
      %v344 = vmax.f32 %v312, 0.0
      %v345 = vmax.f32 %v313, 0.0
      %v346 = vmax.f32 %v314, 0.0
      %v347 = vmax.f32 %v315, 0.0
      %v348 = vmax.f32 %v316, 0.0
      %v349 = vadd.f32 %v317, %v318
      %v350 = vadd.f32 %v349, %v319
      %v351 = vadd.f32 %v350, %v320
      %v352 = vadd.f32 %v351, %v321
      %v353 = vadd.f32 %v352, %v322
      %v354 = vadd.f32 %v353, %v323
      %v355 = vadd.f32 %v354, %v324
      %v356 = vadd.f32 %v355, %v325
      %v357 = vadd.f32 %v356, %v326
      %v358 = vadd.f32 %v357, %v327
      %v359 = vadd.f32 %v358, %v328
      %v360 = vadd.f32 %v359, %v329
      %v361 = vadd.f32 %v360, %v330
      %v362 = vadd.f32 %v361, %v331
      %v363 = vadd.f32 %v362, %v332
      %v364 = vadd.f32 %v363, %v333
      %v365 = vadd.f32 %v364, %v334
      %v366 = vadd.f32 %v365, %v335
      %v367 = vadd.f32 %v366, %v336
      %v368 = vadd.f32 %v367, %v337
      %v369 = vadd.f32 %v368, %v338
      %v370 = vadd.f32 %v369, %v339
      %v371 = vadd.f32 %v370, %v340
      %v372 = vadd.f32 %v371, %v341
      %v373 = vadd.f32 %v372, %v342
      %v374 = vadd.f32 %v373, %v343
      %v375 = vadd.f32 %v374, %v344
      %v376 = vadd.f32 %v375, %v345
      %v377 = vadd.f32 %v376, %v346
      %v378 = vadd.f32 %v377, %v347
      %v379 = vadd.f32 %v378, %v348
      %v380 = vrot.slane %v379, 4
      %v381 = vadd.f32 %v379, %v380
      %v382 = vrot.slane %v381, 2
      %v383 = vadd.f32 %v381, %v382
      %v384 = vrot.slane %v383, 1
      %v385 = vadd.f32 %v383, %v384
      %386 = vst [vmem:[%s206] sm:$0x1] %v385
      %387 = vst [vmem:[%s203] sm:$0xff] 0.0
      %388 = vst [vmem:[%s203 + $0x8] sm:$0xff] 0.0
      %389 = vst [vmem:[%s203 + $0x10] sm:$0x3] 0.0
      %390 = vst [vmem:[%s203 + $0x18] sm:$0xff] 0.0
      %391 = vst [vmem:[%s203 + $0x20] sm:$0xff] 0.0
      %392 = vst [vmem:[%s203 + $0x28] sm:$0x3] 0.0
      %393 = vst [vmem:[%s203 + $0x30] sm:$0xff] 0.0
      %394 = vst [vmem:[%s203 + $0x38] sm:$0xff] 0.0
      %395 = vst [vmem:[%s203 + $0x40] sm:$0x3] 0.0
      %396 = vst [vmem:[%s203 + $0x48] sm:$0xff] 0.0
      %397 = vst [vmem:[%s203 + $0x50] sm:$0xff] 0.0
      %398 = vst [vmem:[%s203 + $0x58] sm:$0x3] 0.0
      %399 = vst [vmem:[%s203 + $0x60] sm:$0xff] 0.0
      %400 = vst [vmem:[%s203 + $0x68] sm:$0xff] 0.0
      %401 = vst [vmem:[%s203 + $0x70] sm:$0x3] 0.0
      %402 = vst [vmem:[%s203 + $0x78] sm:$0xff] 0.0
      %403 = vst [vmem:[%s203 + $0x80] sm:$0xff] 0.0
      %404 = vst [vmem:[%s203 + $0x88] sm:$0x3] 0.0
      %405 = vst [vmem:[%s203 + $0x90] sm:$0xff] 0.0
      %406 = vst [vmem:[%s203 + $0x98] sm:$0xff] 0.0
      %407 = vst [vmem:[%s203 + $0xa0] sm:$0x3] 0.0
      %408 = vst [vmem:[%s203 + $0xa8] sm:$0xff] 0.0
      %409 = vst [vmem:[%s203 + $0xb0] sm:$0xff] 0.0
      %410 = vst [vmem:[%s203 + $0xb8] sm:$0x3] 0.0
      %411 = vst [vmem:[%s203 + $0xc0] sm:$0xff] 0.0
      %412 = vst [vmem:[%s203 + $0xc8] sm:$0xff] 0.0
      %413 = vst [vmem:[%s203 + $0xd0] sm:$0x3] 0.0
      %414 = vst [vmem:[%s203 + $0xd8] sm:$0xff] 0.0
      %415 = vst [vmem:[%s203 + $0xe0] sm:$0xff] 0.0
      %416 = vst [vmem:[%s203 + $0xe8] sm:$0x3] 0.0
      %417 = vst [vmem:[%s203 + $0xf0] sm:$0xff] 0.0
      %418 = vst [vmem:[%s203 + $0xf8] sm:$0xff] 0.0
      %419 = vst [vmem:[%s203 + $0x100] sm:$0x3] 0.0
      %420 = vst [vmem:[%s203 + $0x108] sm:$0xff] 0.0
      %421 = vst [vmem:[%s203 + $0x110] sm:$0xff] 0.0
      %422 = vst [vmem:[%s203 + $0x118] sm:$0x3] 0.0
      %423 = vst [vmem:[%s203 + $0x120] sm:$0xff] 0.0
      %424 = vst [vmem:[%s203 + $0x128] sm:$0xff] 0.0
      %425 = vst [vmem:[%s203 + $0x130] sm:$0x3] 0.0
      %426 = vst [vmem:[%s203 + $0x138] sm:$0xff] 0.0
      %427 = vst [vmem:[%s203 + $0x140] sm:$0xff] 0.0
      %428 = vst [vmem:[%s203 + $0x148] sm:$0x3] 0.0
      %429 = vst [vmem:[%s203 + $0x150] sm:$0xff] 0.0
      %430 = vst [vmem:[%s203 + $0x158] sm:$0xff] 0.0
      %431 = vst [vmem:[%s203 + $0x160] sm:$0x3] 0.0
      %432 = vst [vmem:[%s203 + $0x168] sm:$0xff] 0.0
      %433 = vst [vmem:[%s203 + $0x170] sm:$0xff] 0.0
      %434 = vst [vmem:[%s203 + $0x178] sm:$0x3] 0.0
      %435 = vst [vmem:[%s203 + $0x180] sm:$0xff] 0.0
      %436 = vst [vmem:[%s203 + $0x188] sm:$0xff] 0.0
      %437 = vst [vmem:[%s203 + $0x190] sm:$0x3] 0.0
      %438 = vst [vmem:[%s203 + $0x198] sm:$0xff] 0.0
      %439 = vst [vmem:[%s203 + $0x1a0] sm:$0xff] 0.0
      %440 = vst [vmem:[%s203 + $0x1a8] sm:$0x3] 0.0
      %s441 = scalar_lea.vmem %s203, 24
      %442 = vst [vmem:[%s441 + $0x1] sm:$0xff] %v317
      %443 = vst [vmem:[%s441 + $0x9] sm:$0xff] %v318
      %444 = vst [vmem:[%s441 + $0x19] sm:$0xff] %v319
      %445 = vst [vmem:[%s441 + $0x21] sm:$0xff] %v320
      %446 = vst [vmem:[%s441 + $0x31] sm:$0xff] %v321
      %447 = vst [vmem:[%s441 + $0x39] sm:$0xff] %v322
      %448 = vst [vmem:[%s441 + $0x49] sm:$0xff] %v323
      %449 = vst [vmem:[%s441 + $0x51] sm:$0xff] %v324
      %450 = vst [vmem:[%s441 + $0x61] sm:$0xff] %v325
      %451 = vst [vmem:[%s441 + $0x69] sm:$0xff] %v326
      %452 = vst [vmem:[%s441 + $0x79] sm:$0xff] %v327
      %453 = vst [vmem:[%s441 + $0x81] sm:$0xff] %v328
      %454 = vst [vmem:[%s441 + $0x91] sm:$0xff] %v329
      %455 = vst [vmem:[%s441 + $0x99] sm:$0xff] %v330
      %456 = vst [vmem:[%s441 + $0xa9] sm:$0xff] %v331
      %457 = vst [vmem:[%s441 + $0xb1] sm:$0xff] %v332
      %458 = vst [vmem:[%s441 + $0xc1] sm:$0xff] %v333
      %459 = vst [vmem:[%s441 + $0xc9] sm:$0xff] %v334
      %460 = vst [vmem:[%s441 + $0xd9] sm:$0xff] %v335
      %461 = vst [vmem:[%s441 + $0xe1] sm:$0xff] %v336
      %462 = vst [vmem:[%s441 + $0xf1] sm:$0xff] %v337
      %463 = vst [vmem:[%s441 + $0xf9] sm:$0xff] %v338
      %464 = vst [vmem:[%s441 + $0x109] sm:$0xff] %v339
      %465 = vst [vmem:[%s441 + $0x111] sm:$0xff] %v340
      %466 = vst [vmem:[%s441 + $0x121] sm:$0xff] %v341
      %467 = vst [vmem:[%s441 + $0x129] sm:$0xff] %v342
      %468 = vst [vmem:[%s441 + $0x139] sm:$0xff] %v343
      %469 = vst [vmem:[%s441 + $0x141] sm:$0xff] %v344
      %470 = vst [vmem:[%s441 + $0x151] sm:$0xff] %v345
      %471 = vst [vmem:[%s441 + $0x159] sm:$0xff] %v346
      %472 = vst [vmem:[%s441 + $0x169] sm:$0xff] %v347
      %473 = vst [vmem:[%s441 + $0x171] sm:$0xff] %v348
      %p474 = scmp.lt.s32.totalorder %s16, 1
      %s475 = scalar_select %p474, %s16, 1
      %s476 = smul.addr %s475, 54
      %s477 = smul.addr %s476, 8
      %s478 = scalar_lea.vmem %s3, %s477
      %p479 = scmp.lt.s32.totalorder %s16, 1
      %s480 = scalar_select %p479, %s16, 1
      %s481 = scalar_lea.vmem %s4, %s480
      // Predicated region
      $region33: #{inception_v3a_forward.11} parent=31 // pred_check
        %p482 = pneg %p102
      $region34: #{inception_v3a_forward.11} parent=31 // pred_check_branch
        %484 = sbr.rel (%p482) target = $region36
      $region35: #{inception_v3a_forward.11} parent=31 // pred_region
        _
      $region36: #{inception_v3a_forward.11} parent=31 // pred_fallthru
        _
      // Predicated region
      $region37: #{inception_v3a_forward.11} parent=31 // pred_check
        %p485 = pneg %p128
      $region38: #{inception_v3a_forward.11} parent=31 // pred_check_branch
        %487 = sbr.rel (%p485) target = $region40
      $region39: #{inception_v3a_forward.11} parent=31 // pred_region
        _
      $region40: #{inception_v3a_forward.11} parent=31 // pred_fallthru
        _
    $region32: #{inception_v3a_forward.11} parent=5 // pred_fallthru
      _
    %p488 = scmp.le.s32.totalorder 2, %s11
    // Predicated region
    $region41: #{inception_v3a_forward.11} parent=5 // pred_check
      %p489 = pneg %p488
    $region42: #{inception_v3a_forward.11} parent=5 // pred_check_branch
      %491 = sbr.rel (%p489) target = $region44
    $region43: #{inception_v3a_forward.11} parent=5 // pred_region
      %s492 = ssub.s32 %s11, 2
      // Predicated region
      $region45: #{inception_v3a_forward.11} parent=43 // pred_check
        %p493 = pneg %p108
      $region46: #{inception_v3a_forward.11} parent=43 // pred_check_branch
        %495 = sbr.rel (%p493) target = $region48
      $region47: #{inception_v3a_forward.11} parent=43 // pred_region
        %p496 = scmp.lt.s32.totalorder %s17, 1
        %s497 = scalar_select %p496, %s17, 1
        %s498 = smul.addr %s497, 54
        %s499 = smul.addr %s498, 8
        %s500 = scalar_lea.vmem %s3, %s499
      $region48: #{inception_v3a_forward.11} parent=43 // pred_fallthru
        _
      // Predicated region
      $region49: #{inception_v3a_forward.11} parent=43 // pred_check
        %p501 = pneg %p134
      $region50: #{inception_v3a_forward.11} parent=43 // pred_check_branch
        %503 = sbr.rel (%p501) target = $region52
      $region51: #{inception_v3a_forward.11} parent=43 // pred_region
        %p504 = scmp.lt.s32.totalorder %s17, 1
        %s505 = scalar_select %p504, %s17, 1
        %s506 = scalar_lea.vmem %s4, %s505
      $region52: #{inception_v3a_forward.11} parent=43 // pred_fallthru
        _
    $region44: #{inception_v3a_forward.11} parent=5 // pred_fallthru
      _
  $region6: #{inception_v3a_forward.11} parent=0 // loop_footer
    %s15 = sadd.s32 1, %s11
  $region7: #{inception_v3a_forward.11} parent=0 // loop_footer_branch
    %10 = sbr.rel target = $region3
  $region8: #{inception_v3a_forward.11} parent=0 // loop_exit
    _

// kernel: inception_v3a_forward.15
$region0: #{inception_v3a_forward.15}
  #allocation0 [shape = 'u32[]', space=smem, size = 0x4, offset = 0x4, fixed_abs, tag = 'smem constant byte address 0x4 - core index']
  #allocation1 [shape = 'u32[144,128]{1,0:T(1,128)}', space=vmem, size = 0x12000, scoped, tag = 'internal scratch']
  %s0 = inlined_call_operand.vmem [shape: f32[2,256,128], index: 0, kind: input, shape index: {}]
  %s1 = inlined_call_operand.vmem [shape: f32[1,128], index: 1, kind: input, shape index: {}]
  %s2 = inlined_call_operand.vmem [shape: f32[1,128], index: 2, kind: input, shape index: {}]
  %s3 = inlined_call_operand.vmem [shape: f32[2,18,18,128], index: 3, kind: output, shape index: {0}]
  %s4 = inlined_call_operand.hbm [shape: f32[2,1,128], index: 4, kind: output, shape index: {1}]
  %5 = xla_tuple %s3, %s4
  %s6 = sld [smem:[#allocation0]]
  $region53: #{inception_v3a_forward.15} parent=0
    _
  %s8 = ssub.s32 1, %s6
  %s9 = scalar_select 0, %s8, %s6
  $region1: #{inception_v3a_forward.15} parent=0
    #allocation2 [shape = 'u8[1024]{0}', space=vmem, size = 0x400, scoped, tag = 'output window, operand 1']
    #allocation3 [shape = 's32[2]{0}', space=sflag, size = 0x8, scoped, tag = 'scoped memory for inception_v3a_forward.15']
    %10 = vsyncpa [#allocation3], 0
    %s11 = scalar_lea.sflag [#allocation3], 1
    %12 = vsyncpa %s11, 0
    loop: start=0, step=1, limit=4
    $region2: #{inception_v3a_forward.15} parent=1 // loop_pre_header
      _
    $region3: #{inception_v3a_forward.15} parent=1 // loop_header
      %s14 = sphi 0, %s18
      %p15 = scmp.ge.s32.totalorder %s14, 4
      %s24 = sphi 0, %s26
      %s27 = sphi 0, %s24
      %s28 = sphi 0, %s27
      %s44 = sphi 0, %s28
      %s48 = sphi 0, %s48
      %s50 = sphi 0, %s48
      %s51 = sphi 0, %s50
      %s65 = sphi 0, %s51
      %s69 = sphi 0, %s69
      %s71 = sphi 0, %s69
      %s72 = sphi 0, %s71
      %s86 = sphi 0, %s72
      %s92 = sphi 0, %s94
      %s95 = sphi 0, %s92
      %s96 = sphi 0, %s95
      %s112 = sphi 0, %s96
      %s118 = sphi 0, %s120
      %s121 = sphi 0, %s118
      %s122 = sphi 0, %s121
      %s138 = sphi 0, %s122
    $region4: #{inception_v3a_forward.15} parent=1 // loop_header_branch
      %17 = sbr.rel (%p15) target = $region8
    $region5: #{inception_v3a_forward.15} parent=1 // loop_body
      %s19 = ssub.s32 %s14, 1
      %s20 = ssub.s32 %s14, 2
      %s21 = sadd.s32 %s14, 1
      %s22 = ssub.s32 %s14, %s21
      %p23 = scmp.eq.s32.totalorder %s22, 0
      %s25 = sadd.s32 %s24, 1
      %s26 = scalar_select %p23, %s24, %s25
      %p29 = pneg %p23
      %p30 = scmp.eq.s32.totalorder %s14, 1
      %p31 = por %p29, %p30
      %p32 = scmp.ne.s32.totalorder %s24, %s27
      %p33 = scmp.eq.s32.totalorder %s14, 0
      %p34 = por %p32, %p33
      %p35 = scmp.ne.s32.totalorder %s24, %s27
      %p36 = scmp.eq.s32.totalorder %s19, 1
      %p37 = por %p35, %p36
      %p38 = scmp.ne.s32.totalorder %s27, %s28
      %p39 = scmp.eq.s32.totalorder %s19, 0
      %p40 = por %p38, %p39
      %p41 = scmp.ne.s32.totalorder %s27, %s28
      %p42 = scmp.eq.s32.totalorder %s20, 1
      %p43 = por %p41, %p42
      %p45 = scmp.ne.s32.totalorder %s28, %s44
      %p46 = scmp.eq.s32.totalorder %s20, 0
      %p47 = por %p45, %p46
      %s49 = sadd.s32 %s48, 1
      %p52 = scmp.eq.s32.totalorder %s14, 1
      %p53 = scmp.ne.s32.totalorder %s48, %s50
      %p54 = scmp.eq.s32.totalorder %s14, 0
      %p55 = por %p53, %p54
      %p56 = scmp.ne.s32.totalorder %s48, %s50
      %p57 = scmp.eq.s32.totalorder %s19, 1
      %p58 = por %p56, %p57
      %p59 = scmp.ne.s32.totalorder %s50, %s51
      %p60 = scmp.eq.s32.totalorder %s19, 0
      %p61 = por %p59, %p60
      %p62 = scmp.ne.s32.totalorder %s50, %s51
      %p63 = scmp.eq.s32.totalorder %s20, 1
      %p64 = por %p62, %p63
      %p66 = scmp.ne.s32.totalorder %s51, %s65
      %p67 = scmp.eq.s32.totalorder %s20, 0
      %p68 = por %p66, %p67
      %s70 = sadd.s32 %s69, 1
      %p73 = scmp.eq.s32.totalorder %s14, 1
      %p74 = scmp.ne.s32.totalorder %s69, %s71
      %p75 = scmp.eq.s32.totalorder %s14, 0
      %p76 = por %p74, %p75
      %p77 = scmp.ne.s32.totalorder %s69, %s71
      %p78 = scmp.eq.s32.totalorder %s19, 1
      %p79 = por %p77, %p78
      %p80 = scmp.ne.s32.totalorder %s71, %s72
      %p81 = scmp.eq.s32.totalorder %s19, 0
      %p82 = por %p80, %p81
      %p83 = scmp.ne.s32.totalorder %s71, %s72
      %p84 = scmp.eq.s32.totalorder %s20, 1
      %p85 = por %p83, %p84
      %p87 = scmp.ne.s32.totalorder %s72, %s86
      %p88 = scmp.eq.s32.totalorder %s20, 0
      %p89 = por %p87, %p88
      %s90 = ssub.s32 %s14, %s21
      %p91 = scmp.eq.s32.totalorder %s90, 0
      %s93 = sadd.s32 %s92, 1
      %s94 = scalar_select %p91, %s92, %s93
      %p97 = pneg %p91
      %p98 = scmp.eq.s32.totalorder %s14, 1
      %p99 = por %p97, %p98
      %p100 = scmp.ne.s32.totalorder %s92, %s95
      %p101 = scmp.eq.s32.totalorder %s14, 0
      %p102 = por %p100, %p101
      %p103 = scmp.ne.s32.totalorder %s92, %s95
      %p104 = scmp.eq.s32.totalorder %s19, 1
      %p105 = por %p103, %p104
      %p106 = scmp.ne.s32.totalorder %s95, %s96
      %p107 = scmp.eq.s32.totalorder %s19, 0
      %p108 = por %p106, %p107
      %p109 = scmp.ne.s32.totalorder %s95, %s96
      %p110 = scmp.eq.s32.totalorder %s20, 1
      %p111 = por %p109, %p110
      %p113 = scmp.ne.s32.totalorder %s96, %s112
      %p114 = scmp.eq.s32.totalorder %s20, 0
      %p115 = por %p113, %p114
      %s116 = ssub.s32 %s14, %s21
      %p117 = scmp.eq.s32.totalorder %s116, 0
      %s119 = sadd.s32 %s118, 1
      %s120 = scalar_select %p117, %s118, %s119
      %p123 = pneg %p117
      %p124 = scmp.eq.s32.totalorder %s14, 1
      %p125 = por %p123, %p124
      %p126 = scmp.ne.s32.totalorder %s118, %s121
      %p127 = scmp.eq.s32.totalorder %s14, 0
      %p128 = por %p126, %p127
      %p129 = scmp.ne.s32.totalorder %s118, %s121
      %p130 = scmp.eq.s32.totalorder %s19, 1
      %p131 = por %p129, %p130
      %p132 = scmp.ne.s32.totalorder %s121, %s122
      %p133 = scmp.eq.s32.totalorder %s19, 0
      %p134 = por %p132, %p133
      %p135 = scmp.ne.s32.totalorder %s121, %s122
      %p136 = scmp.eq.s32.totalorder %s20, 1
      %p137 = por %p135, %p136
      %p139 = scmp.ne.s32.totalorder %s122, %s138
      %p140 = scmp.eq.s32.totalorder %s20, 0
      %p141 = por %p139, %p140
      %p142 = scmp.le.s32.totalorder 1, %s14
      %p143 = scmp.lt.s32.totalorder %s14, 3
      %p144 = pnand %p142, %p143
      %p145 = pneg %p144
      // Predicated region
      $region9: #{inception_v3a_forward.15} parent=5 // pred_check
        _
      $region10: #{inception_v3a_forward.15} parent=5 // pred_check_branch
        %147 = sbr.rel (%p144) target = $region12
      $region11: #{inception_v3a_forward.15} parent=5 // pred_region
        %s148 = ssub.s32 %s14, 1
        // Predicated region
        $region13: #{inception_v3a_forward.15} parent=11 // pred_check
          %p149 = pneg %p61
        $region14: #{inception_v3a_forward.15} parent=11 // pred_check_branch
          %151 = sbr.rel (%p149) target = $region16
        $region15: #{inception_v3a_forward.15} parent=11 // pred_region
          _
        $region16: #{inception_v3a_forward.15} parent=11 // pred_fallthru
          _
        // Predicated region
        $region17: #{inception_v3a_forward.15} parent=11 // pred_check
          %p152 = pneg %p82
        $region18: #{inception_v3a_forward.15} parent=11 // pred_check_branch
          %154 = sbr.rel (%p152) target = $region20
        $region19: #{inception_v3a_forward.15} parent=11 // pred_region
          _
        $region20: #{inception_v3a_forward.15} parent=11 // pred_fallthru
          _
      $region12: #{inception_v3a_forward.15} parent=5 // pred_fallthru
        _
      %p155 = scmp.lt.s32.totalorder %s14, 2
      // Predicated region
      $region21: #{inception_v3a_forward.15} parent=5 // pred_check
        %p156 = pneg %p155
      $region22: #{inception_v3a_forward.15} parent=5 // pred_check_branch
        %158 = sbr.rel (%p156) target = $region24
      $region23: #{inception_v3a_forward.15} parent=5 // pred_region
        // Predicated region
        $region25: #{inception_v3a_forward.15} parent=23 // pred_check
          %p159 = pneg %p34
        $region26: #{inception_v3a_forward.15} parent=23 // pred_check_branch
          %161 = sbr.rel (%p159) target = $region28
        $region27: #{inception_v3a_forward.15} parent=23 // pred_region
          %p162 = scmp.lt.s32.totalorder %s14, 1
          %s163 = scalar_select %p162, %s14, 1
          %s164 = smul.addr %s163, 32
          %s165 = smul.addr %s164, 8
          %s166 = scalar_lea.vmem %s0, %s165
        $region28: #{inception_v3a_forward.15} parent=23 // pred_fallthru
          _
      $region24: #{inception_v3a_forward.15} parent=5 // pred_fallthru
        _
      %p167 = scmp.le.s32.totalorder 1, %s14
      %p168 = scmp.lt.s32.totalorder %s14, 3
      %p169 = pnand %p167, %p168
      %p170 = pneg %p169
      // Predicated region
      $region29: #{inception_v3a_forward.15} parent=5 // pred_check
        _
      $region30: #{inception_v3a_forward.15} parent=5 // pred_check_branch
        %172 = sbr.rel (%p169) target = $region32
      $region31: #{inception_v3a_forward.15} parent=5 // pred_region
        %s173 = ssub.s32 %s14, 1
        %p174 = scmp.lt.s32.totalorder %s19, 1
        %s175 = scalar_select %p174, %s19, 1
        %s176 = smul.addr %s175, 32
        %s177 = smul.addr %s176, 8
        %s178 = scalar_lea.vmem %s0, %s177
        %p179 = pneg %p40
        %p180 = pneg %p37
        %p181 = pneg %p61
        %p182 = pneg %p58
        %p183 = pneg %p82
        %p184 = pneg %p79
        %p185 = pneg %p108
        %p186 = pneg %p105
        %p187 = scmp.lt.s32.totalorder %s19, 1
        %s188 = scalar_select %p187, %s19, 1
        %s189 = smul.addr %s188, 54
        %s190 = smul.addr %s189, 8
        %s191 = scalar_lea.vmem %s3, %s190
        %p192 = pneg %p134
        %p193 = pneg %p131
        %s194 = sand.u32 %s121, 1
        %s195 = scalar_lea.sflag [#allocation3], %s194
        %s196 = sand.u32 %s121, 1
        %s197 = scalar_lea.vmem [#allocation2], %s196
        %p198 = scmp.lt.s32.totalorder %s19, 1
        %s199 = scalar_select %p198, %s19, 1
        %s200 = smul.addr %s199, 32
        %s201 = smul.addr %s200, 8
        %s202 = scalar_lea.vmem %s0, %s201
        %p203 = scmp.lt.s32.totalorder %s19, 1
        %s204 = scalar_select %p203, %s19, 1
        %s205 = smul.addr %s204, 54
        %s206 = smul.addr %s205, 8
        %s207 = scalar_lea.vmem %s3, %s206
        %v208 = vld [vmem:[%s202] sm:$0xff]
        %v209 = vld [vmem:[%s202 + $0x8] sm:$0xff]
        %v210 = vld [vmem:[%s202 + $0x10] sm:$0xff]
        %v211 = vld [vmem:[%s202 + $0x18] sm:$0xff]
        %v212 = vld [vmem:[%s202 + $0x20] sm:$0xff]
        %v213 = vld [vmem:[%s202 + $0x28] sm:$0xff]
        %v214 = vld [vmem:[%s202 + $0x30] sm:$0xff]
        %v215 = vld [vmem:[%s202 + $0x38] sm:$0xff]
        %v216 = vld [vmem:[%s202 + $0x40] sm:$0xff]
        %v217 = vld [vmem:[%s202 + $0x48] sm:$0xff]
        %v218 = vld [vmem:[%s202 + $0x50] sm:$0xff]
        %v219 = vld [vmem:[%s202 + $0x58] sm:$0xff]
        %v220 = vld [vmem:[%s202 + $0x60] sm:$0xff]
        %v221 = vld [vmem:[%s202 + $0x68] sm:$0xff]
        %v222 = vld [vmem:[%s202 + $0x70] sm:$0xff]
        %v223 = vld [vmem:[%s202 + $0x78] sm:$0xff]
        %v224 = vld [vmem:[%s202 + $0x80] sm:$0xff]
        %v225 = vld [vmem:[%s202 + $0x88] sm:$0xff]
        %v226 = vld [vmem:[%s202 + $0x90] sm:$0xff]
        %v227 = vld [vmem:[%s202 + $0x98] sm:$0xff]
        %v228 = vld [vmem:[%s202 + $0xa0] sm:$0xff]
        %v229 = vld [vmem:[%s202 + $0xa8] sm:$0xff]
        %v230 = vld [vmem:[%s202 + $0xb0] sm:$0xff]
        %v231 = vld [vmem:[%s202 + $0xb8] sm:$0xff]
        %v232 = vld [vmem:[%s202 + $0xc0] sm:$0xff]
        %v233 = vld [vmem:[%s202 + $0xc8] sm:$0xff]
        %v234 = vld [vmem:[%s202 + $0xd0] sm:$0xff]
        %v235 = vld [vmem:[%s202 + $0xd8] sm:$0xff]
        %v236 = vld [vmem:[%s202 + $0xe0] sm:$0xff]
        %v237 = vld [vmem:[%s202 + $0xe8] sm:$0xff]
        %v238 = vld [vmem:[%s202 + $0xf0] sm:$0xff]
        %v239 = vld [vmem:[%s202 + $0xf8] sm:$0xff]
        %v240 = vld [vmem:[%s1] sm:$0x1]
        %v242 = vlaneseq
        %v243 = vshrl.u32 %v242, 7
        %v244 = vsub.s32 0, %v243
        %v245 = vrot.slane %v240, %v244
        %v247 = vmul.f32 %v208, %v245
        %v248 = vmul.f32 %v209, %v245
        %v249 = vmul.f32 %v210, %v245
        %v250 = vmul.f32 %v211, %v245
        %v251 = vmul.f32 %v212, %v245
        %v252 = vmul.f32 %v213, %v245
        %v253 = vmul.f32 %v214, %v245
        %v254 = vmul.f32 %v215, %v245
        %v255 = vmul.f32 %v216, %v245
        %v256 = vmul.f32 %v217, %v245
        %v257 = vmul.f32 %v218, %v245
        %v258 = vmul.f32 %v219, %v245
        %v259 = vmul.f32 %v220, %v245
        %v260 = vmul.f32 %v221, %v245
        %v261 = vmul.f32 %v222, %v245
        %v262 = vmul.f32 %v223, %v245
        %v263 = vmul.f32 %v224, %v245
        %v264 = vmul.f32 %v225, %v245
        %v265 = vmul.f32 %v226, %v245
        %v266 = vmul.f32 %v227, %v245
        %v267 = vmul.f32 %v228, %v245
        %v268 = vmul.f32 %v229, %v245
        %v269 = vmul.f32 %v230, %v245
        %v270 = vmul.f32 %v231, %v245
        %v271 = vmul.f32 %v232, %v245
        %v272 = vmul.f32 %v233, %v245
        %v273 = vmul.f32 %v234, %v245
        %v274 = vmul.f32 %v235, %v245
        %v275 = vmul.f32 %v236, %v245
        %v276 = vmul.f32 %v237, %v245
        %v277 = vmul.f32 %v238, %v245
        %v278 = vmul.f32 %v239, %v245
        %v279 = vld [vmem:[%s2] sm:$0x1]
        %v281 = vlaneseq
        %v282 = vshrl.u32 %v281, 7
        %v283 = vsub.s32 0, %v282
        %v284 = vrot.slane %v279, %v283
        %v286 = vadd.f32 %v247, %v284
        %v287 = vadd.f32 %v248, %v284
        %v288 = vadd.f32 %v249, %v284
        %v289 = vadd.f32 %v250, %v284
        %v290 = vadd.f32 %v251, %v284
        %v291 = vadd.f32 %v252, %v284
        %v292 = vadd.f32 %v253, %v284
        %v293 = vadd.f32 %v254, %v284
        %v294 = vadd.f32 %v255, %v284
        %v295 = vadd.f32 %v256, %v284
        %v296 = vadd.f32 %v257, %v284
        %v297 = vadd.f32 %v258, %v284
        %v298 = vadd.f32 %v259, %v284
        %v299 = vadd.f32 %v260, %v284
        %v300 = vadd.f32 %v261, %v284
        %v301 = vadd.f32 %v262, %v284
        %v302 = vadd.f32 %v263, %v284
        %v303 = vadd.f32 %v264, %v284
        %v304 = vadd.f32 %v265, %v284
        %v305 = vadd.f32 %v266, %v284
        %v306 = vadd.f32 %v267, %v284
        %v307 = vadd.f32 %v268, %v284
        %v308 = vadd.f32 %v269, %v284
        %v309 = vadd.f32 %v270, %v284
        %v310 = vadd.f32 %v271, %v284
        %v311 = vadd.f32 %v272, %v284
        %v312 = vadd.f32 %v273, %v284
        %v313 = vadd.f32 %v274, %v284
        %v314 = vadd.f32 %v275, %v284
        %v315 = vadd.f32 %v276, %v284
        %v316 = vadd.f32 %v277, %v284
        %v317 = vadd.f32 %v278, %v284
        %v318 = vmax.f32 %v286, 0.0
        %v319 = vmax.f32 %v287, 0.0
        %v320 = vmax.f32 %v288, 0.0
        %v321 = vmax.f32 %v289, 0.0
        %v322 = vmax.f32 %v290, 0.0
        %v323 = vmax.f32 %v291, 0.0
        %v324 = vmax.f32 %v292, 0.0
        %v325 = vmax.f32 %v293, 0.0
        %v326 = vmax.f32 %v294, 0.0
        %v327 = vmax.f32 %v295, 0.0
        %v328 = vmax.f32 %v296, 0.0
        %v329 = vmax.f32 %v297, 0.0
        %v330 = vmax.f32 %v298, 0.0
        %v331 = vmax.f32 %v299, 0.0
        %v332 = vmax.f32 %v300, 0.0
        %v333 = vmax.f32 %v301, 0.0
        %v334 = vmax.f32 %v302, 0.0
        %v335 = vmax.f32 %v303, 0.0
        %v336 = vmax.f32 %v304, 0.0
        %v337 = vmax.f32 %v305, 0.0
        %v338 = vmax.f32 %v306, 0.0
        %v339 = vmax.f32 %v307, 0.0
        %v340 = vmax.f32 %v308, 0.0
        %v341 = vmax.f32 %v309, 0.0
        %v342 = vmax.f32 %v310, 0.0
        %v343 = vmax.f32 %v311, 0.0
        %v344 = vmax.f32 %v312, 0.0
        %v345 = vmax.f32 %v313, 0.0
        %v346 = vmax.f32 %v314, 0.0
        %v347 = vmax.f32 %v315, 0.0
        %v348 = vmax.f32 %v316, 0.0
        %v349 = vmax.f32 %v317, 0.0
        %v350 = vadd.f32 %v318, %v319
        %v351 = vadd.f32 %v350, %v320
        %v352 = vadd.f32 %v351, %v321
        %v353 = vadd.f32 %v352, %v322
        %v354 = vadd.f32 %v353, %v323
        %v355 = vadd.f32 %v354, %v324
        %v356 = vadd.f32 %v355, %v325
        %v357 = vadd.f32 %v356, %v326
        %v358 = vadd.f32 %v357, %v327
        %v359 = vadd.f32 %v358, %v328
        %v360 = vadd.f32 %v359, %v329
        %v361 = vadd.f32 %v360, %v330
        %v362 = vadd.f32 %v361, %v331
        %v363 = vadd.f32 %v362, %v332
        %v364 = vadd.f32 %v363, %v333
        %v365 = vadd.f32 %v364, %v334
        %v366 = vadd.f32 %v365, %v335
        %v367 = vadd.f32 %v366, %v336
        %v368 = vadd.f32 %v367, %v337
        %v369 = vadd.f32 %v368, %v338
        %v370 = vadd.f32 %v369, %v339
        %v371 = vadd.f32 %v370, %v340
        %v372 = vadd.f32 %v371, %v341
        %v373 = vadd.f32 %v372, %v342
        %v374 = vadd.f32 %v373, %v343
        %v375 = vadd.f32 %v374, %v344
        %v376 = vadd.f32 %v375, %v345
        %v377 = vadd.f32 %v376, %v346
        %v378 = vadd.f32 %v377, %v347
        %v379 = vadd.f32 %v378, %v348
        %v380 = vadd.f32 %v379, %v349
        %v381 = vrot.slane %v380, 4
        %v382 = vadd.f32 %v380, %v381
        %v383 = vrot.slane %v382, 2
        %v384 = vadd.f32 %v382, %v383
        %v385 = vrot.slane %v384, 1
        %v386 = vadd.f32 %v384, %v385
        %387 = vst [vmem:[%s197] sm:$0x1] %v386
        %388 = vst [vmem:[%s207] sm:$0xff] 0.0
        %389 = vst [vmem:[%s207 + $0x8] sm:$0xff] 0.0
        %390 = vst [vmem:[%s207 + $0x10] sm:$0x3] 0.0
        %391 = vst [vmem:[%s207 + $0x18] sm:$0xff] 0.0
        %392 = vst [vmem:[%s207 + $0x20] sm:$0xff] 0.0
        %393 = vst [vmem:[%s207 + $0x28] sm:$0x3] 0.0
        %394 = vst [vmem:[%s207 + $0x30] sm:$0xff] 0.0
        %395 = vst [vmem:[%s207 + $0x38] sm:$0xff] 0.0
        %396 = vst [vmem:[%s207 + $0x40] sm:$0x3] 0.0
        %397 = vst [vmem:[%s207 + $0x48] sm:$0xff] 0.0
        %398 = vst [vmem:[%s207 + $0x50] sm:$0xff] 0.0
        %399 = vst [vmem:[%s207 + $0x58] sm:$0x3] 0.0
        %400 = vst [vmem:[%s207 + $0x60] sm:$0xff] 0.0
        %401 = vst [vmem:[%s207 + $0x68] sm:$0xff] 0.0
        %402 = vst [vmem:[%s207 + $0x70] sm:$0x3] 0.0
        %403 = vst [vmem:[%s207 + $0x78] sm:$0xff] 0.0
        %404 = vst [vmem:[%s207 + $0x80] sm:$0xff] 0.0
        %405 = vst [vmem:[%s207 + $0x88] sm:$0x3] 0.0
        %406 = vst [vmem:[%s207 + $0x90] sm:$0xff] 0.0
        %407 = vst [vmem:[%s207 + $0x98] sm:$0xff] 0.0
        %408 = vst [vmem:[%s207 + $0xa0] sm:$0x3] 0.0
        %409 = vst [vmem:[%s207 + $0xa8] sm:$0xff] 0.0
        %410 = vst [vmem:[%s207 + $0xb0] sm:$0xff] 0.0
        %411 = vst [vmem:[%s207 + $0xb8] sm:$0x3] 0.0
        %412 = vst [vmem:[%s207 + $0xc0] sm:$0xff] 0.0
        %413 = vst [vmem:[%s207 + $0xc8] sm:$0xff] 0.0
        %414 = vst [vmem:[%s207 + $0xd0] sm:$0x3] 0.0
        %415 = vst [vmem:[%s207 + $0xd8] sm:$0xff] 0.0
        %416 = vst [vmem:[%s207 + $0xe0] sm:$0xff] 0.0
        %417 = vst [vmem:[%s207 + $0xe8] sm:$0x3] 0.0
        %418 = vst [vmem:[%s207 + $0xf0] sm:$0xff] 0.0
        %419 = vst [vmem:[%s207 + $0xf8] sm:$0xff] 0.0
        %420 = vst [vmem:[%s207 + $0x100] sm:$0x3] 0.0
        %421 = vst [vmem:[%s207 + $0x108] sm:$0xff] 0.0
        %422 = vst [vmem:[%s207 + $0x110] sm:$0xff] 0.0
        %423 = vst [vmem:[%s207 + $0x118] sm:$0x3] 0.0
        %424 = vst [vmem:[%s207 + $0x120] sm:$0xff] 0.0
        %425 = vst [vmem:[%s207 + $0x128] sm:$0xff] 0.0
        %426 = vst [vmem:[%s207 + $0x130] sm:$0x3] 0.0
        %427 = vst [vmem:[%s207 + $0x138] sm:$0xff] 0.0
        %428 = vst [vmem:[%s207 + $0x140] sm:$0xff] 0.0
        %429 = vst [vmem:[%s207 + $0x148] sm:$0x3] 0.0
        %430 = vst [vmem:[%s207 + $0x150] sm:$0xff] 0.0
        %431 = vst [vmem:[%s207 + $0x158] sm:$0xff] 0.0
        %432 = vst [vmem:[%s207 + $0x160] sm:$0x3] 0.0
        %433 = vst [vmem:[%s207 + $0x168] sm:$0xff] 0.0
        %434 = vst [vmem:[%s207 + $0x170] sm:$0xff] 0.0
        %435 = vst [vmem:[%s207 + $0x178] sm:$0x3] 0.0
        %436 = vst [vmem:[%s207 + $0x180] sm:$0xff] 0.0
        %437 = vst [vmem:[%s207 + $0x188] sm:$0xff] 0.0
        %438 = vst [vmem:[%s207 + $0x190] sm:$0x3] 0.0
        %439 = vst [vmem:[%s207 + $0x198] sm:$0xff] 0.0
        %440 = vst [vmem:[%s207 + $0x1a0] sm:$0xff] 0.0
        %441 = vst [vmem:[%s207 + $0x1a8] sm:$0x3] 0.0
        %s442 = scalar_lea.vmem %s207, 24
        %443 = vst [vmem:[%s442 + $0x1] sm:$0xff] %v318
        %444 = vst [vmem:[%s442 + $0x9] sm:$0xff] %v319
        %445 = vst [vmem:[%s442 + $0x19] sm:$0xff] %v320
        %446 = vst [vmem:[%s442 + $0x21] sm:$0xff] %v321
        %447 = vst [vmem:[%s442 + $0x31] sm:$0xff] %v322
        %448 = vst [vmem:[%s442 + $0x39] sm:$0xff] %v323
        %449 = vst [vmem:[%s442 + $0x49] sm:$0xff] %v324
        %450 = vst [vmem:[%s442 + $0x51] sm:$0xff] %v325
        %451 = vst [vmem:[%s442 + $0x61] sm:$0xff] %v326
        %452 = vst [vmem:[%s442 + $0x69] sm:$0xff] %v327
        %453 = vst [vmem:[%s442 + $0x79] sm:$0xff] %v328
        %454 = vst [vmem:[%s442 + $0x81] sm:$0xff] %v329
        %455 = vst [vmem:[%s442 + $0x91] sm:$0xff] %v330
        %456 = vst [vmem:[%s442 + $0x99] sm:$0xff] %v331
        %457 = vst [vmem:[%s442 + $0xa9] sm:$0xff] %v332
        %458 = vst [vmem:[%s442 + $0xb1] sm:$0xff] %v333
        %459 = vst [vmem:[%s442 + $0xc1] sm:$0xff] %v334
        %460 = vst [vmem:[%s442 + $0xc9] sm:$0xff] %v335
        %461 = vst [vmem:[%s442 + $0xd9] sm:$0xff] %v336
        %462 = vst [vmem:[%s442 + $0xe1] sm:$0xff] %v337
        %463 = vst [vmem:[%s442 + $0xf1] sm:$0xff] %v338
        %464 = vst [vmem:[%s442 + $0xf9] sm:$0xff] %v339
        %465 = vst [vmem:[%s442 + $0x109] sm:$0xff] %v340
        %466 = vst [vmem:[%s442 + $0x111] sm:$0xff] %v341
        %467 = vst [vmem:[%s442 + $0x121] sm:$0xff] %v342
        %468 = vst [vmem:[%s442 + $0x129] sm:$0xff] %v343
        %469 = vst [vmem:[%s442 + $0x139] sm:$0xff] %v344
        %470 = vst [vmem:[%s442 + $0x141] sm:$0xff] %v345
        %471 = vst [vmem:[%s442 + $0x151] sm:$0xff] %v346
        %472 = vst [vmem:[%s442 + $0x159] sm:$0xff] %v347
        %473 = vst [vmem:[%s442 + $0x169] sm:$0xff] %v348
        %474 = vst [vmem:[%s442 + $0x171] sm:$0xff] %v349
        %p475 = scmp.lt.s32.totalorder %s19, 1
        %s476 = scalar_select %p475, %s19, 1
        %s477 = smul.addr %s476, 54
        %s478 = smul.addr %s477, 8
        %s479 = scalar_lea.vmem %s3, %s478
        %s480 = sand.u32 %s121, 1
        %s481 = scalar_lea.sflag [#allocation3], %s480
        %s482 = sand.u32 %s121, 1
        %s483 = scalar_lea.vmem [#allocation2], %s482
        // Predicated region
        $region33: #{inception_v3a_forward.15} parent=31 // pred_check
          %p484 = pneg %p105
        $region34: #{inception_v3a_forward.15} parent=31 // pred_check_branch
          %486 = sbr.rel (%p484) target = $region36
        $region35: #{inception_v3a_forward.15} parent=31 // pred_region
          _
        $region36: #{inception_v3a_forward.15} parent=31 // pred_fallthru
          _
        // Predicated region
        $region37: #{inception_v3a_forward.15} parent=31 // pred_check
          %p487 = pneg %p131
        $region38: #{inception_v3a_forward.15} parent=31 // pred_check_branch
          %489 = sbr.rel (%p487) target = $region40
        $region39: #{inception_v3a_forward.15} parent=31 // pred_region
          %s491 = ssub.s32 16, 16
          %492 = vsyncadd %s481, %s491
          %s493 = smul.addr %s19, 16
          %s494 = scalar_lea.hbm %s4, %s493
          %s496 = sshll.u32 %s483, 4
          %s497 = int_to_ptr.vmem [resolvable:$true] %s496
          %499 = dma.vmem_to_hbm [thread:$0]  %s497, 16, %s494, %s481
        $region40: #{inception_v3a_forward.15} parent=31 // pred_fallthru
          _
      $region32: #{inception_v3a_forward.15} parent=5 // pred_fallthru
        _
      %p500 = scmp.le.s32.totalorder 2, %s14
      // Predicated region
      $region41: #{inception_v3a_forward.15} parent=5 // pred_check
        %p501 = pneg %p500
      $region42: #{inception_v3a_forward.15} parent=5 // pred_check_branch
        %503 = sbr.rel (%p501) target = $region44
      $region43: #{inception_v3a_forward.15} parent=5 // pred_region
        %s504 = ssub.s32 %s14, 2
        // Predicated region
        $region45: #{inception_v3a_forward.15} parent=43 // pred_check
          %p505 = pneg %p111
        $region46: #{inception_v3a_forward.15} parent=43 // pred_check_branch
          %507 = sbr.rel (%p505) target = $region48
        $region47: #{inception_v3a_forward.15} parent=43 // pred_region
          %p508 = scmp.lt.s32.totalorder %s20, 1
          %s509 = scalar_select %p508, %s20, 1
          %s510 = smul.addr %s509, 54
          %s511 = smul.addr %s510, 8
          %s512 = scalar_lea.vmem %s3, %s511
        $region48: #{inception_v3a_forward.15} parent=43 // pred_fallthru
          _
        // Predicated region
        $region49: #{inception_v3a_forward.15} parent=43 // pred_check
          %p513 = pneg %p137
        $region50: #{inception_v3a_forward.15} parent=43 // pred_check_branch
          %515 = sbr.rel (%p513) target = $region52
        $region51: #{inception_v3a_forward.15} parent=43 // pred_region
          %s516 = sand.u32 %s122, 1
          %s517 = scalar_lea.sflag [#allocation3], %s516
          %s518 = sand.u32 %s122, 1
          %s519 = scalar_lea.vmem [#allocation2], %s518
          %520 = dma.done %s517, 16
        $region52: #{inception_v3a_forward.15} parent=43 // pred_fallthru
          _
      $region44: #{inception_v3a_forward.15} parent=5 // pred_fallthru
        _
    $region6: #{inception_v3a_forward.15} parent=1 // loop_footer
      %s18 = sadd.s32 1, %s14
    $region7: #{inception_v3a_forward.15} parent=1 // loop_footer_branch
      %13 = sbr.rel target = $region3
    $region8: #{inception_v3a_forward.15} parent=1 // loop_exit
      _
    %521 = vsyncpa [#allocation3], 1
    %s522 = scalar_lea.sflag [#allocation3], 1
    %523 = vsyncpa %s522, 1

// kernel: inception_v3a_forward.10
$region0: #{inception_v3a_forward.10}
  #allocation0 [shape = 'u32[]', space=smem, size = 0x4, offset = 0x4, fixed_abs, tag = 'smem constant byte address 0x4 - core index']
  #allocation1 [shape = 'u32[144,128]{1,0:T(1,128)}', space=vmem, size = 0x12000, scoped, tag = 'internal scratch']
  %s0 = inlined_call_operand.vmem [shape: f32[2,18,18,128], index: 0, kind: input, shape index: {}]
  %s1 = inlined_call_operand.vmem [shape: bf16[128,128], index: 1, kind: input, shape index: {}]
  %s2 = inlined_call_operand.vmem [shape: bf16[128,128], index: 2, kind: input, shape index: {}]
  %s3 = inlined_call_operand.vmem [shape: f32[1,128], index: 3, kind: input, shape index: {}]
  %s4 = inlined_call_operand.vmem [shape: f32[2,256,128], index: 4, kind: output, shape index: {0}]
  %s5 = inlined_call_operand.vmem [shape: f32[2,1,2,128], index: 5, kind: output, shape index: {1}]
  %6 = xla_tuple %s4, %s5
  %s7 = sld [smem:[#allocation0]]
  $region57: #{inception_v3a_forward.10} parent=0
    _
  %s9 = ssub.s32 1, %s7
  %s10 = scalar_select 0, %s9, %s7
  loop: start=0, step=1, limit=4
  $region2: #{inception_v3a_forward.10} parent=0 // loop_pre_header
    _
  $region3: #{inception_v3a_forward.10} parent=0 // loop_header
    %s12 = sphi 0, %s16
    %p13 = scmp.ge.s32.totalorder %s12, 4
    %s19 = sphi 0, %s31
    %s20 = sphi 0, %s27
    %s21 = sphi 0, %s19
    %s22 = sphi 0, %s20
    %s23 = sphi 0, %s21
    %s24 = sphi 0, %s22
    %s34 = sphi 0, %s36
    %s37 = sphi 0, %s34
    %s38 = sphi 0, %s37
    %s54 = sphi 0, %s38
    %s58 = sphi 0, %s58
    %s60 = sphi 0, %s58
    %s61 = sphi 0, %s60
    %s75 = sphi 0, %s61
    %s79 = sphi 0, %s79
    %s81 = sphi 0, %s79
    %s82 = sphi 0, %s81
    %s96 = sphi 0, %s82
    %s100 = sphi 0, %s100
    %s102 = sphi 0, %s100
    %s103 = sphi 0, %s102
    %s117 = sphi 0, %s103
    %s125 = sphi 0, %s127
    %s128 = sphi 0, %s125
    %s129 = sphi 0, %s128
    %s145 = sphi 0, %s129
    %s153 = sphi 0, %s155
    %s156 = sphi 0, %s153
    %s157 = sphi 0, %s156
    %s173 = sphi 0, %s157
  $region4: #{inception_v3a_forward.10} parent=0 // loop_header_branch
    %15 = sbr.rel (%p13) target = $region8
  $region5: #{inception_v3a_forward.10} parent=0 // loop_body
    %s17 = ssub.s32 %s12, 1
    %s18 = ssub.s32 %s12, 2
    %s25 = sadd.s32 1, %s20
    %p26 = scmp.ge.s32.totalorder %s25, 1
    %s27 = scalar_select %p26, 0, %s25
    %s28 = sadd.s32 1, %s19
    %s29 = scalar_select %p26, %s28, %s19
    %p30 = scmp.ge.s32.totalorder %s29, 2
    %s31 = scalar_select %p30, 0, %s29
    %s32 = ssub.s32 %s19, %s31
    %p33 = scmp.eq.s32.totalorder %s32, 0
    %s35 = sadd.s32 %s34, 1
    %s36 = scalar_select %p33, %s34, %s35
    %p39 = pneg %p33
    %p40 = scmp.eq.s32.totalorder %s12, 1
    %p41 = por %p39, %p40
    %p42 = scmp.ne.s32.totalorder %s34, %s37
    %p43 = scmp.eq.s32.totalorder %s12, 0
    %p44 = por %p42, %p43
    %p45 = scmp.ne.s32.totalorder %s34, %s37
    %p46 = scmp.eq.s32.totalorder %s17, 1
    %p47 = por %p45, %p46
    %p48 = scmp.ne.s32.totalorder %s37, %s38
    %p49 = scmp.eq.s32.totalorder %s17, 0
    %p50 = por %p48, %p49
    %p51 = scmp.ne.s32.totalorder %s37, %s38
    %p52 = scmp.eq.s32.totalorder %s18, 1
    %p53 = por %p51, %p52
    %p55 = scmp.ne.s32.totalorder %s38, %s54
    %p56 = scmp.eq.s32.totalorder %s18, 0
    %p57 = por %p55, %p56
    %s59 = sadd.s32 %s58, 1
    %p62 = scmp.eq.s32.totalorder %s12, 1
    %p63 = scmp.ne.s32.totalorder %s58, %s60
    %p64 = scmp.eq.s32.totalorder %s12, 0
    %p65 = por %p63, %p64
    %p66 = scmp.ne.s32.totalorder %s58, %s60
    %p67 = scmp.eq.s32.totalorder %s17, 1
    %p68 = por %p66, %p67
    %p69 = scmp.ne.s32.totalorder %s60, %s61
    %p70 = scmp.eq.s32.totalorder %s17, 0
    %p71 = por %p69, %p70
    %p72 = scmp.ne.s32.totalorder %s60, %s61
    %p73 = scmp.eq.s32.totalorder %s18, 1
    %p74 = por %p72, %p73
    %p76 = scmp.ne.s32.totalorder %s61, %s75
    %p77 = scmp.eq.s32.totalorder %s18, 0
    %p78 = por %p76, %p77
    %s80 = sadd.s32 %s79, 1
    %p83 = scmp.eq.s32.totalorder %s12, 1
    %p84 = scmp.ne.s32.totalorder %s79, %s81
    %p85 = scmp.eq.s32.totalorder %s12, 0
    %p86 = por %p84, %p85
    %p87 = scmp.ne.s32.totalorder %s79, %s81
    %p88 = scmp.eq.s32.totalorder %s17, 1
    %p89 = por %p87, %p88
    %p90 = scmp.ne.s32.totalorder %s81, %s82
    %p91 = scmp.eq.s32.totalorder %s17, 0
    %p92 = por %p90, %p91
    %p93 = scmp.ne.s32.totalorder %s81, %s82
    %p94 = scmp.eq.s32.totalorder %s18, 1
    %p95 = por %p93, %p94
    %p97 = scmp.ne.s32.totalorder %s82, %s96
    %p98 = scmp.eq.s32.totalorder %s18, 0
    %p99 = por %p97, %p98
    %s101 = sadd.s32 %s100, 1
    %p104 = scmp.eq.s32.totalorder %s12, 1
    %p105 = scmp.ne.s32.totalorder %s100, %s102
    %p106 = scmp.eq.s32.totalorder %s12, 0
    %p107 = por %p105, %p106
    %p108 = scmp.ne.s32.totalorder %s100, %s102
    %p109 = scmp.eq.s32.totalorder %s17, 1
    %p110 = por %p108, %p109
    %p111 = scmp.ne.s32.totalorder %s102, %s103
    %p112 = scmp.eq.s32.totalorder %s17, 0
    %p113 = por %p111, %p112
    %p114 = scmp.ne.s32.totalorder %s102, %s103
    %p115 = scmp.eq.s32.totalorder %s18, 1
    %p116 = por %p114, %p115
    %p118 = scmp.ne.s32.totalorder %s103, %s117
    %p119 = scmp.eq.s32.totalorder %s18, 0
    %p120 = por %p118, %p119
    %s121 = ssub.s32 %s19, %s31
    %s122 = ssub.s32 %s20, %s27
    %s123 = sor.u32 %s121, %s122
    %p124 = scmp.eq.s32.totalorder %s123, 0
    %s126 = sadd.s32 %s125, 1
    %s127 = scalar_select %p124, %s125, %s126
    %p130 = pneg %p124
    %p131 = scmp.eq.s32.totalorder %s12, 1
    %p132 = por %p130, %p131
    %p133 = scmp.ne.s32.totalorder %s125, %s128
    %p134 = scmp.eq.s32.totalorder %s12, 0
    %p135 = por %p133, %p134
    %p136 = scmp.ne.s32.totalorder %s125, %s128
    %p137 = scmp.eq.s32.totalorder %s17, 1
    %p138 = por %p136, %p137
    %p139 = scmp.ne.s32.totalorder %s128, %s129
    %p140 = scmp.eq.s32.totalorder %s17, 0
    %p141 = por %p139, %p140
    %p142 = scmp.ne.s32.totalorder %s128, %s129
    %p143 = scmp.eq.s32.totalorder %s18, 1
    %p144 = por %p142, %p143
    %p146 = scmp.ne.s32.totalorder %s129, %s145
    %p147 = scmp.eq.s32.totalorder %s18, 0
    %p148 = por %p146, %p147
    %s149 = ssub.s32 %s19, %s31
    %s150 = ssub.s32 %s20, %s27
    %s151 = sor.u32 %s149, %s150
    %p152 = scmp.eq.s32.totalorder %s151, 0
    %s154 = sadd.s32 %s153, 1
    %s155 = scalar_select %p152, %s153, %s154
    %p158 = pneg %p152
    %p159 = scmp.eq.s32.totalorder %s12, 1
    %p160 = por %p158, %p159
    %p161 = scmp.ne.s32.totalorder %s153, %s156
    %p162 = scmp.eq.s32.totalorder %s12, 0
    %p163 = por %p161, %p162
    %p164 = scmp.ne.s32.totalorder %s153, %s156
    %p165 = scmp.eq.s32.totalorder %s17, 1
    %p166 = por %p164, %p165
    %p167 = scmp.ne.s32.totalorder %s156, %s157
    %p168 = scmp.eq.s32.totalorder %s17, 0
    %p169 = por %p167, %p168
    %p170 = scmp.ne.s32.totalorder %s156, %s157
    %p171 = scmp.eq.s32.totalorder %s18, 1
    %p172 = por %p170, %p171
    %p174 = scmp.ne.s32.totalorder %s157, %s173
    %p175 = scmp.eq.s32.totalorder %s18, 0
    %p176 = por %p174, %p175
    %p177 = scmp.le.s32.totalorder 1, %s12
    %p178 = scmp.lt.s32.totalorder %s12, 3
    %p179 = pnand %p177, %p178
    %p180 = pneg %p179
    // Predicated region
    $region9: #{inception_v3a_forward.10} parent=5 // pred_check
      _
    $region10: #{inception_v3a_forward.10} parent=5 // pred_check_branch
      %182 = sbr.rel (%p179) target = $region12
    $region11: #{inception_v3a_forward.10} parent=5 // pred_region
      %s183 = ssub.s32 %s12, 1
      // Predicated region
      $region13: #{inception_v3a_forward.10} parent=11 // pred_check
        %p184 = pneg %p71
      $region14: #{inception_v3a_forward.10} parent=11 // pred_check_branch
        %186 = sbr.rel (%p184) target = $region16
      $region15: #{inception_v3a_forward.10} parent=11 // pred_region
        _
      $region16: #{inception_v3a_forward.10} parent=11 // pred_fallthru
        _
      // Predicated region
      $region17: #{inception_v3a_forward.10} parent=11 // pred_check
        %p187 = pneg %p92
      $region18: #{inception_v3a_forward.10} parent=11 // pred_check_branch
        %189 = sbr.rel (%p187) target = $region20
      $region19: #{inception_v3a_forward.10} parent=11 // pred_region
        _
      $region20: #{inception_v3a_forward.10} parent=11 // pred_fallthru
        _
      // Predicated region
      $region21: #{inception_v3a_forward.10} parent=11 // pred_check
        %p190 = pneg %p113
      $region22: #{inception_v3a_forward.10} parent=11 // pred_check_branch
        %192 = sbr.rel (%p190) target = $region24
      $region23: #{inception_v3a_forward.10} parent=11 // pred_region
        _
      $region24: #{inception_v3a_forward.10} parent=11 // pred_fallthru
        _
    $region12: #{inception_v3a_forward.10} parent=5 // pred_fallthru
      _
    %p193 = scmp.lt.s32.totalorder %s12, 2
    // Predicated region
    $region25: #{inception_v3a_forward.10} parent=5 // pred_check
      %p194 = pneg %p193
    $region26: #{inception_v3a_forward.10} parent=5 // pred_check_branch
      %196 = sbr.rel (%p194) target = $region28
    $region27: #{inception_v3a_forward.10} parent=5 // pred_region
      // Predicated region
      $region29: #{inception_v3a_forward.10} parent=27 // pred_check
        %p197 = pneg %p44
      $region30: #{inception_v3a_forward.10} parent=27 // pred_check_branch
        %199 = sbr.rel (%p197) target = $region32
      $region31: #{inception_v3a_forward.10} parent=27 // pred_region
        %p200 = scmp.lt.s32.totalorder %s19, 1
        %s201 = scalar_select %p200, %s19, 1
        %s202 = smul.addr %s201, 54
        %s203 = smul.addr %s202, 8
        %s204 = scalar_lea.vmem %s0, %s203
      $region32: #{inception_v3a_forward.10} parent=27 // pred_fallthru
        _
    $region28: #{inception_v3a_forward.10} parent=5 // pred_fallthru
      _
    %p205 = scmp.le.s32.totalorder 1, %s12
    %p206 = scmp.lt.s32.totalorder %s12, 3
    %p207 = pnand %p205, %p206
    %p208 = pneg %p207
    // Predicated region
    $region33: #{inception_v3a_forward.10} parent=5 // pred_check
      _
    $region34: #{inception_v3a_forward.10} parent=5 // pred_check_branch
      %210 = sbr.rel (%p207) target = $region36
    $region35: #{inception_v3a_forward.10} parent=5 // pred_region
      %s211 = ssub.s32 %s12, 1
      %p212 = scmp.lt.s32.totalorder %s21, 1
      %s213 = scalar_select %p212, %s21, 1
      %s214 = smul.addr %s213, 54
      %s215 = smul.addr %s214, 8
      %s216 = scalar_lea.vmem %s0, %s215
      %p217 = pneg %p50
      %p218 = pneg %p47
      %p219 = pneg %p71
      %p220 = pneg %p68
      %p221 = pneg %p92
      %p222 = pneg %p89
      %p223 = pneg %p113
      %p224 = pneg %p110
      %p225 = pneg %p141
      %p226 = pneg %p138
      %s227 = smul.u32 32, %s22
      %p228 = scmp.lt.s32.totalorder %s21, 1
      %s229 = scalar_select %p228, %s21, 1
      %p230 = scmp.lt.s32.totalorder %s227, 31
      %s231 = scalar_select %p230, %s227, 31
      %s232 = smul.addr %s229, 32
      %s233 = sadd.s32 %s231, %s232
      %s234 = smul.addr %s233, 8
      %s235 = scalar_lea.vmem %s4, %s234
      %p236 = pneg %p169
      %p237 = pneg %p166
      %p238 = scmp.lt.s32.totalorder %s21, 1
      %s239 = scalar_select %p238, %s21, 1
      %p240 = scmp.lt.s32.totalorder %s22, 0
      %s241 = scalar_select %p240, %s22, 0
      %s242 = sadd.s32 %s241, %s239
      %s243 = smul.addr %s242, 2
      %s244 = scalar_lea.vmem %s5, %s243
      %p245 = scmp.lt.s32.totalorder %s21, 1
      %s246 = scalar_select %p245, %s21, 1
      %s247 = smul.addr %s246, 54
      %s248 = smul.addr %s247, 8
      %s249 = scalar_lea.vmem %s0, %s248
      %s250 = smul.u32 32, %s22
      %p251 = scmp.lt.s32.totalorder %s21, 1
      %s252 = scalar_select %p251, %s21, 1
      %p253 = scmp.lt.s32.totalorder %s250, 31
      %s254 = scalar_select %p253, %s250, 31
      %s255 = smul.addr %s252, 32
      %s256 = sadd.s32 %s254, %s255
      %s257 = smul.addr %s256, 8
      %s258 = scalar_lea.vmem %s4, %s257
      %s259 = smul.u32 32, %s22
      %p260 = scmp.lt.s32.totalorder %s21, 1
      %s261 = scalar_select %p260, %s21, 1
      %p262 = scmp.lt.s32.totalorder %s22, 0
      %s263 = scalar_select %p262, %s22, 0
      %s264 = sadd.s32 %s263, %s261
      %s265 = smul.addr %s264, 2
      %s266 = scalar_lea.vmem %s5, %s265
      %s268 = smul.u32 %s22, 16
      %s269 = smul.u32 %s268, 24
      %s270 = scalar_lea.vmem %s249, %s269
      %v271 = vld [vmem:[%s270] sm:$0xff]
      %v272 = vld [vmem:[%s270 + $0x8] sm:$0xff]
      %v273 = vld [vmem:[%s270 + $0x10] sm:$0x3]
      %v274 = vld [vmem:[%s270 + $0x18] sm:$0xff]
      %v275 = vld [vmem:[%s270 + $0x20] sm:$0xff]
      %v276 = vld [vmem:[%s270 + $0x28] sm:$0x3]
      %v277 = vld [vmem:[%s270 + $0x30] sm:$0xff]
      %v278 = vld [vmem:[%s270 + $0x38] sm:$0xff]
      %v279 = vld [vmem:[%s270 + $0x40] sm:$0x3]
      %v280 = vld [vmem:[%s270 + $0x48] sm:$0xff]
      %v281 = vld [vmem:[%s270 + $0x50] sm:$0xff]
      %v282 = vld [vmem:[%s270 + $0x58] sm:$0x3]
      %v283 = vld [vmem:[%s270 + $0x60] sm:$0xff]
      %v284 = vld [vmem:[%s270 + $0x68] sm:$0xff]
      %v285 = vld [vmem:[%s270 + $0x70] sm:$0x3]
      %v286 = vld [vmem:[%s270 + $0x78] sm:$0xff]
      %v287 = vld [vmem:[%s270 + $0x80] sm:$0xff]
      %v288 = vld [vmem:[%s270 + $0x88] sm:$0x3]
      %v289 = vld [vmem:[%s270 + $0x90] sm:$0xff]
      %v290 = vld [vmem:[%s270 + $0x98] sm:$0xff]
      %v291 = vld [vmem:[%s270 + $0xa0] sm:$0x3]
      %v292 = vld [vmem:[%s270 + $0xa8] sm:$0xff]
      %v293 = vld [vmem:[%s270 + $0xb0] sm:$0xff]
      %v294 = vld [vmem:[%s270 + $0xb8] sm:$0x3]
      %v295 = vld [vmem:[%s270 + $0xc0] sm:$0xff]
      %v296 = vld [vmem:[%s270 + $0xc8] sm:$0xff]
      %v297 = vld [vmem:[%s270 + $0xd0] sm:$0x3]
      %v298 = vld [vmem:[%s270 + $0xd8] sm:$0xff]
      %v299 = vld [vmem:[%s270 + $0xe0] sm:$0xff]
      %v300 = vld [vmem:[%s270 + $0xe8] sm:$0x3]
      %v301 = vld [vmem:[%s270 + $0xf0] sm:$0xff]
      %v302 = vld [vmem:[%s270 + $0xf8] sm:$0xff]
      %v303 = vld [vmem:[%s270 + $0x100] sm:$0x3]
      %v304 = vld [vmem:[%s270 + $0x108] sm:$0xff]
      %v305 = vld [vmem:[%s270 + $0x110] sm:$0xff]
      %v306 = vld [vmem:[%s270 + $0x118] sm:$0x3]
      %v307 = vld [vmem:[%s270 + $0x120] sm:$0xff]
      %v308 = vld [vmem:[%s270 + $0x128] sm:$0xff]
      %v309 = vld [vmem:[%s270 + $0x130] sm:$0x3]
      %v310 = vld [vmem:[%s270 + $0x138] sm:$0xff]
      %v311 = vld [vmem:[%s270 + $0x140] sm:$0xff]
      %v312 = vld [vmem:[%s270 + $0x148] sm:$0x3]
      %v313 = vld [vmem:[%s270 + $0x150] sm:$0xff]
      %v314 = vld [vmem:[%s270 + $0x158] sm:$0xff]
      %v315 = vld [vmem:[%s270 + $0x160] sm:$0x3]
      %v316 = vld [vmem:[%s270 + $0x168] sm:$0xff]
      %v317 = vld [vmem:[%s270 + $0x170] sm:$0xff]
      %v318 = vld [vmem:[%s270 + $0x178] sm:$0x3]
      %s319 = sadd.s32 %s268, 1
      %s320 = smul.u32 %s319, 24
      %s321 = scalar_lea.vmem %s249, %s320
      %v322 = vld [vmem:[%s321] sm:$0xff]
      %v323 = vld [vmem:[%s321 + $0x8] sm:$0xff]
      %v324 = vld [vmem:[%s321 + $0x10] sm:$0x3]
      %v325 = vld [vmem:[%s321 + $0x18] sm:$0xff]
      %v326 = vld [vmem:[%s321 + $0x20] sm:$0xff]
      %v327 = vld [vmem:[%s321 + $0x28] sm:$0x3]
      %v328 = vld [vmem:[%s321 + $0x30] sm:$0xff]
      %v329 = vld [vmem:[%s321 + $0x38] sm:$0xff]
      %v330 = vld [vmem:[%s321 + $0x40] sm:$0x3]
      %v331 = vld [vmem:[%s321 + $0x48] sm:$0xff]
      %v332 = vld [vmem:[%s321 + $0x50] sm:$0xff]
      %v333 = vld [vmem:[%s321 + $0x58] sm:$0x3]
      %v334 = vld [vmem:[%s321 + $0x60] sm:$0xff]
      %v335 = vld [vmem:[%s321 + $0x68] sm:$0xff]
      %v336 = vld [vmem:[%s321 + $0x70] sm:$0x3]
      %v337 = vld [vmem:[%s321 + $0x78] sm:$0xff]
      %v338 = vld [vmem:[%s321 + $0x80] sm:$0xff]
      %v339 = vld [vmem:[%s321 + $0x88] sm:$0x3]
      %v340 = vld [vmem:[%s321 + $0x90] sm:$0xff]
      %v341 = vld [vmem:[%s321 + $0x98] sm:$0xff]
      %v342 = vld [vmem:[%s321 + $0xa0] sm:$0x3]
      %v343 = vld [vmem:[%s321 + $0xa8] sm:$0xff]
      %v344 = vld [vmem:[%s321 + $0xb0] sm:$0xff]
      %v345 = vld [vmem:[%s321 + $0xb8] sm:$0x3]
      %v346 = vld [vmem:[%s321 + $0xc0] sm:$0xff]
      %v347 = vld [vmem:[%s321 + $0xc8] sm:$0xff]
      %v348 = vld [vmem:[%s321 + $0xd0] sm:$0x3]
      %v349 = vld [vmem:[%s321 + $0xd8] sm:$0xff]
      %v350 = vld [vmem:[%s321 + $0xe0] sm:$0xff]
      %v351 = vld [vmem:[%s321 + $0xe8] sm:$0x3]
      %v352 = vld [vmem:[%s321 + $0xf0] sm:$0xff]
      %v353 = vld [vmem:[%s321 + $0xf8] sm:$0xff]
      %v354 = vld [vmem:[%s321 + $0x100] sm:$0x3]
      %v355 = vld [vmem:[%s321 + $0x108] sm:$0xff]
      %v356 = vld [vmem:[%s321 + $0x110] sm:$0xff]
      %v357 = vld [vmem:[%s321 + $0x118] sm:$0x3]
      %v358 = vld [vmem:[%s321 + $0x120] sm:$0xff]
      %v359 = vld [vmem:[%s321 + $0x128] sm:$0xff]
      %v360 = vld [vmem:[%s321 + $0x130] sm:$0x3]
      %v361 = vld [vmem:[%s321 + $0x138] sm:$0xff]
      %v362 = vld [vmem:[%s321 + $0x140] sm:$0xff]
      %v363 = vld [vmem:[%s321 + $0x148] sm:$0x3]
      %v364 = vld [vmem:[%s321 + $0x150] sm:$0xff]
      %v365 = vld [vmem:[%s321 + $0x158] sm:$0xff]
      %v366 = vld [vmem:[%s321 + $0x160] sm:$0x3]
      %v367 = vld [vmem:[%s321 + $0x168] sm:$0xff]
      %v368 = vld [vmem:[%s321 + $0x170] sm:$0xff]
      %v369 = vld [vmem:[%s321 + $0x178] sm:$0x3]
      %s370 = sadd.s32 %s268, 2
      %s371 = smul.u32 %s370, 24
      %s372 = scalar_lea.vmem %s249, %s371
      %v373 = vld [vmem:[%s372] sm:$0xff]
      %v374 = vld [vmem:[%s372 + $0x8] sm:$0xff]
      %v375 = vld [vmem:[%s372 + $0x10] sm:$0x3]
      %v376 = vld [vmem:[%s372 + $0x18] sm:$0xff]
      %v377 = vld [vmem:[%s372 + $0x20] sm:$0xff]
      %v378 = vld [vmem:[%s372 + $0x28] sm:$0x3]
      %v379 = vld [vmem:[%s372 + $0x30] sm:$0xff]
      %v380 = vld [vmem:[%s372 + $0x38] sm:$0xff]
      %v381 = vld [vmem:[%s372 + $0x40] sm:$0x3]
      %v382 = vld [vmem:[%s372 + $0x48] sm:$0xff]
      %v383 = vld [vmem:[%s372 + $0x50] sm:$0xff]
      %v384 = vld [vmem:[%s372 + $0x58] sm:$0x3]
      %v385 = vld [vmem:[%s372 + $0x60] sm:$0xff]
      %v386 = vld [vmem:[%s372 + $0x68] sm:$0xff]
      %v387 = vld [vmem:[%s372 + $0x70] sm:$0x3]
      %v388 = vld [vmem:[%s372 + $0x78] sm:$0xff]
      %v389 = vld [vmem:[%s372 + $0x80] sm:$0xff]
      %v390 = vld [vmem:[%s372 + $0x88] sm:$0x3]
      %v391 = vld [vmem:[%s372 + $0x90] sm:$0xff]
      %v392 = vld [vmem:[%s372 + $0x98] sm:$0xff]
      %v393 = vld [vmem:[%s372 + $0xa0] sm:$0x3]
      %v394 = vld [vmem:[%s372 + $0xa8] sm:$0xff]
      %v395 = vld [vmem:[%s372 + $0xb0] sm:$0xff]
      %v396 = vld [vmem:[%s372 + $0xb8] sm:$0x3]
      %v397 = vld [vmem:[%s372 + $0xc0] sm:$0xff]
      %v398 = vld [vmem:[%s372 + $0xc8] sm:$0xff]
      %v399 = vld [vmem:[%s372 + $0xd0] sm:$0x3]
      %v400 = vld [vmem:[%s372 + $0xd8] sm:$0xff]
      %v401 = vld [vmem:[%s372 + $0xe0] sm:$0xff]
      %v402 = vld [vmem:[%s372 + $0xe8] sm:$0x3]
      %v403 = vld [vmem:[%s372 + $0xf0] sm:$0xff]
      %v404 = vld [vmem:[%s372 + $0xf8] sm:$0xff]
      %v405 = vld [vmem:[%s372 + $0x100] sm:$0x3]
      %v406 = vld [vmem:[%s372 + $0x108] sm:$0xff]
      %v407 = vld [vmem:[%s372 + $0x110] sm:$0xff]
      %v408 = vld [vmem:[%s372 + $0x118] sm:$0x3]
      %v409 = vld [vmem:[%s372 + $0x120] sm:$0xff]
      %v410 = vld [vmem:[%s372 + $0x128] sm:$0xff]
      %v411 = vld [vmem:[%s372 + $0x130] sm:$0x3]
      %v412 = vld [vmem:[%s372 + $0x138] sm:$0xff]
      %v413 = vld [vmem:[%s372 + $0x140] sm:$0xff]
      %v414 = vld [vmem:[%s372 + $0x148] sm:$0x3]
      %v415 = vld [vmem:[%s372 + $0x150] sm:$0xff]
      %v416 = vld [vmem:[%s372 + $0x158] sm:$0xff]
      %v417 = vld [vmem:[%s372 + $0x160] sm:$0x3]
      %v418 = vld [vmem:[%s372 + $0x168] sm:$0xff]
      %v419 = vld [vmem:[%s372 + $0x170] sm:$0xff]
      %v420 = vld [vmem:[%s372 + $0x178] sm:$0x3]
      %vm453 = vcmask 1040384
      %v454 = vrot.slane %v271, 7
      %v455 = vrot.slane %v272, 7
      %v456 = vsel %vm453, %v454, %v455
      %v457 = vrot.slane %v274, 7
      %v458 = vrot.slane %v275, 7
      %v459 = vsel %vm453, %v457, %v458
      %v460 = vrot.slane %v277, 7
      %v461 = vrot.slane %v278, 7
      %v462 = vsel %vm453, %v460, %v461
      %v463 = vrot.slane %v280, 7
      %v464 = vrot.slane %v281, 7
      %v465 = vsel %vm453, %v463, %v464
      %v466 = vrot.slane %v283, 7
      %v467 = vrot.slane %v284, 7
      %v468 = vsel %vm453, %v466, %v467
      %v469 = vrot.slane %v286, 7
      %v470 = vrot.slane %v287, 7
      %v471 = vsel %vm453, %v469, %v470
      %v472 = vrot.slane %v289, 7
      %v473 = vrot.slane %v290, 7
      %v474 = vsel %vm453, %v472, %v473
      %v475 = vrot.slane %v292, 7
      %v476 = vrot.slane %v293, 7
      %v477 = vsel %vm453, %v475, %v476
      %v478 = vrot.slane %v295, 7
      %v479 = vrot.slane %v296, 7
      %v480 = vsel %vm453, %v478, %v479
      %v481 = vrot.slane %v298, 7
      %v482 = vrot.slane %v299, 7
      %v483 = vsel %vm453, %v481, %v482
      %v484 = vrot.slane %v301, 7
      %v485 = vrot.slane %v302, 7
      %v486 = vsel %vm453, %v484, %v485
      %v487 = vrot.slane %v304, 7
      %v488 = vrot.slane %v305, 7
      %v489 = vsel %vm453, %v487, %v488
      %v490 = vrot.slane %v307, 7
      %v491 = vrot.slane %v308, 7
      %v492 = vsel %vm453, %v490, %v491
      %v493 = vrot.slane %v310, 7
      %v494 = vrot.slane %v311, 7
      %v495 = vsel %vm453, %v493, %v494
      %v496 = vrot.slane %v313, 7
      %v497 = vrot.slane %v314, 7
      %v498 = vsel %vm453, %v496, %v497
      %v499 = vrot.slane %v316, 7
      %v500 = vrot.slane %v317, 7
      %v501 = vsel %vm453, %v499, %v500
      %v550 = vmax.f32 %v322, %v454
      %v551 = vmax.f32 %v323, %v456
      %v552 = vmax.f32 %v324, %v455
      %v553 = vmax.f32 %v325, %v457
      %v554 = vmax.f32 %v326, %v459
      %v555 = vmax.f32 %v327, %v458
      %v556 = vmax.f32 %v328, %v460
      %v557 = vmax.f32 %v329, %v462
      %v558 = vmax.f32 %v330, %v461
      %v559 = vmax.f32 %v331, %v463
      %v560 = vmax.f32 %v332, %v465
      %v561 = vmax.f32 %v333, %v464
      %v562 = vmax.f32 %v334, %v466
      %v563 = vmax.f32 %v335, %v468
      %v564 = vmax.f32 %v336, %v467
      %v565 = vmax.f32 %v337, %v469
      %v566 = vmax.f32 %v338, %v471
      %v567 = vmax.f32 %v339, %v470
      %v568 = vmax.f32 %v340, %v472
      %v569 = vmax.f32 %v341, %v474
      %v570 = vmax.f32 %v342, %v473
      %v571 = vmax.f32 %v343, %v475
      %v572 = vmax.f32 %v344, %v477
      %v573 = vmax.f32 %v345, %v476
      %v574 = vmax.f32 %v346, %v478
      %v575 = vmax.f32 %v347, %v480
      %v576 = vmax.f32 %v348, %v479
      %v577 = vmax.f32 %v349, %v481
      %v578 = vmax.f32 %v350, %v483
      %v579 = vmax.f32 %v351, %v482
      %v580 = vmax.f32 %v352, %v484
      %v581 = vmax.f32 %v353, %v486
      %v582 = vmax.f32 %v354, %v485
      %v583 = vmax.f32 %v355, %v487
      %v584 = vmax.f32 %v356, %v489
      %v585 = vmax.f32 %v357, %v488
      %v586 = vmax.f32 %v358, %v490
      %v587 = vmax.f32 %v359, %v492
      %v588 = vmax.f32 %v360, %v491
      %v589 = vmax.f32 %v361, %v493
      %v590 = vmax.f32 %v362, %v495
      %v591 = vmax.f32 %v363, %v494
      %v592 = vmax.f32 %v364, %v496
      %v593 = vmax.f32 %v365, %v498
      %v594 = vmax.f32 %v366, %v497
      %v595 = vmax.f32 %v367, %v499
      %v596 = vmax.f32 %v368, %v501
      %v597 = vmax.f32 %v369, %v500
      %v598 = vmax.f32 %v550, %v271
      %v599 = vmax.f32 %v551, %v272
      %v600 = vmax.f32 %v552, %v273
      %v601 = vmax.f32 %v553, %v274
      %v602 = vmax.f32 %v554, %v275
      %v603 = vmax.f32 %v555, %v276
      %v604 = vmax.f32 %v556, %v277
      %v605 = vmax.f32 %v557, %v278
      %v606 = vmax.f32 %v558, %v279
      %v607 = vmax.f32 %v559, %v280
      %v608 = vmax.f32 %v560, %v281
      %v609 = vmax.f32 %v561, %v282
      %v610 = vmax.f32 %v562, %v283
      %v611 = vmax.f32 %v563, %v284
      %v612 = vmax.f32 %v564, %v285
      %v613 = vmax.f32 %v565, %v286
      %v614 = vmax.f32 %v566, %v287
      %v615 = vmax.f32 %v567, %v288
      %v616 = vmax.f32 %v568, %v289
      %v617 = vmax.f32 %v569, %v290
      %v618 = vmax.f32 %v570, %v291
      %v619 = vmax.f32 %v571, %v292
      %v620 = vmax.f32 %v572, %v293
      %v621 = vmax.f32 %v573, %v294
      %v622 = vmax.f32 %v574, %v295
      %v623 = vmax.f32 %v575, %v296
      %v624 = vmax.f32 %v576, %v297
      %v625 = vmax.f32 %v577, %v298
      %v626 = vmax.f32 %v578, %v299
      %v627 = vmax.f32 %v579, %v300
      %v628 = vmax.f32 %v580, %v301
      %v629 = vmax.f32 %v581, %v302
      %v630 = vmax.f32 %v582, %v303
      %v631 = vmax.f32 %v583, %v304
      %v632 = vmax.f32 %v584, %v305
      %v633 = vmax.f32 %v585, %v306
      %v634 = vmax.f32 %v586, %v307
      %v635 = vmax.f32 %v587, %v308
      %v636 = vmax.f32 %v588, %v309
      %v637 = vmax.f32 %v589, %v310
      %v638 = vmax.f32 %v590, %v311
      %v639 = vmax.f32 %v591, %v312
      %v640 = vmax.f32 %v592, %v313
      %v641 = vmax.f32 %v593, %v314
      %v642 = vmax.f32 %v594, %v315
      %v643 = vmax.f32 %v595, %v316
      %v644 = vmax.f32 %v596, %v317
      %v645 = vmax.f32 %v597, %v318
      %vm662 = vcmask 1046528
      %v663 = vrot.slane %v271, 1
      %v664 = vrot.slane %v272, 1
      %v665 = vsel %vm662, %v663, %v664
      %v666 = vrot.slane %v273, 1
      %v667 = vsel %vm662, %v664, %v666
      %v668 = vrot.slane %v274, 1
      %v669 = vrot.slane %v275, 1
      %v670 = vsel %vm662, %v668, %v669
      %v671 = vrot.slane %v276, 1
      %v672 = vsel %vm662, %v669, %v671
      %v673 = vrot.slane %v277, 1
      %v674 = vrot.slane %v278, 1
      %v675 = vsel %vm662, %v673, %v674
      %v676 = vrot.slane %v279, 1
      %v677 = vsel %vm662, %v674, %v676
      %v678 = vrot.slane %v280, 1
      %v679 = vrot.slane %v281, 1
      %v680 = vsel %vm662, %v678, %v679
      %v681 = vrot.slane %v282, 1
      %v682 = vsel %vm662, %v679, %v681
      %v683 = vrot.slane %v283, 1
      %v684 = vrot.slane %v284, 1
      %v685 = vsel %vm662, %v683, %v684
      %v686 = vrot.slane %v285, 1
      %v687 = vsel %vm662, %v684, %v686
      %v688 = vrot.slane %v286, 1
      %v689 = vrot.slane %v287, 1
      %v690 = vsel %vm662, %v688, %v689
      %v691 = vrot.slane %v288, 1
      %v692 = vsel %vm662, %v689, %v691
      %v693 = vrot.slane %v289, 1
      %v694 = vrot.slane %v290, 1
      %v695 = vsel %vm662, %v693, %v694
      %v696 = vrot.slane %v291, 1
      %v697 = vsel %vm662, %v694, %v696
      %v698 = vrot.slane %v292, 1
      %v699 = vrot.slane %v293, 1
      %v700 = vsel %vm662, %v698, %v699
      %v701 = vrot.slane %v294, 1
      %v702 = vsel %vm662, %v699, %v701
      %v703 = vrot.slane %v295, 1
      %v704 = vrot.slane %v296, 1
      %v705 = vsel %vm662, %v703, %v704
      %v706 = vrot.slane %v297, 1
      %v707 = vsel %vm662, %v704, %v706
      %v708 = vrot.slane %v298, 1
      %v709 = vrot.slane %v299, 1
      %v710 = vsel %vm662, %v708, %v709
      %v711 = vrot.slane %v300, 1
      %v712 = vsel %vm662, %v709, %v711
      %v713 = vrot.slane %v301, 1
      %v714 = vrot.slane %v302, 1
      %v715 = vsel %vm662, %v713, %v714
      %v716 = vrot.slane %v303, 1
      %v717 = vsel %vm662, %v714, %v716
      %v718 = vrot.slane %v304, 1
      %v719 = vrot.slane %v305, 1
      %v720 = vsel %vm662, %v718, %v719
      %v721 = vrot.slane %v306, 1
      %v722 = vsel %vm662, %v719, %v721
      %v723 = vrot.slane %v307, 1
      %v724 = vrot.slane %v308, 1
      %v725 = vsel %vm662, %v723, %v724
      %v726 = vrot.slane %v309, 1
      %v727 = vsel %vm662, %v724, %v726
      %v728 = vrot.slane %v310, 1
      %v729 = vrot.slane %v311, 1
      %v730 = vsel %vm662, %v728, %v729
      %v731 = vrot.slane %v312, 1
      %v732 = vsel %vm662, %v729, %v731
      %v733 = vrot.slane %v313, 1
      %v734 = vrot.slane %v314, 1
      %v735 = vsel %vm662, %v733, %v734
      %v736 = vrot.slane %v315, 1
      %v737 = vsel %vm662, %v734, %v736
      %v738 = vrot.slane %v316, 1
      %v739 = vrot.slane %v317, 1
      %v740 = vsel %vm662, %v738, %v739
      %v741 = vrot.slane %v318, 1
      %v742 = vsel %vm662, %v739, %v741
      %v791 = vmax.f32 %v598, %v665
      %v792 = vmax.f32 %v599, %v667
      %v793 = vmax.f32 %v600, %v666
      %v794 = vmax.f32 %v601, %v670
      %v795 = vmax.f32 %v602, %v672
      %v796 = vmax.f32 %v603, %v671
      %v797 = vmax.f32 %v604, %v675
      %v798 = vmax.f32 %v605, %v677
      %v799 = vmax.f32 %v606, %v676
      %v800 = vmax.f32 %v607, %v680
      %v801 = vmax.f32 %v608, %v682
      %v802 = vmax.f32 %v609, %v681
      %v803 = vmax.f32 %v610, %v685
      %v804 = vmax.f32 %v611, %v687
      %v805 = vmax.f32 %v612, %v686
      %v806 = vmax.f32 %v613, %v690
      %v807 = vmax.f32 %v614, %v692
      %v808 = vmax.f32 %v615, %v691
      %v809 = vmax.f32 %v616, %v695
      %v810 = vmax.f32 %v617, %v697
      %v811 = vmax.f32 %v618, %v696
      %v812 = vmax.f32 %v619, %v700
      %v813 = vmax.f32 %v620, %v702
      %v814 = vmax.f32 %v621, %v701
      %v815 = vmax.f32 %v622, %v705
      %v816 = vmax.f32 %v623, %v707
      %v817 = vmax.f32 %v624, %v706
      %v818 = vmax.f32 %v625, %v710
      %v819 = vmax.f32 %v626, %v712
      %v820 = vmax.f32 %v627, %v711
      %v821 = vmax.f32 %v628, %v715
      %v822 = vmax.f32 %v629, %v717
      %v823 = vmax.f32 %v630, %v716
      %v824 = vmax.f32 %v631, %v720
      %v825 = vmax.f32 %v632, %v722
      %v826 = vmax.f32 %v633, %v721
      %v827 = vmax.f32 %v634, %v725
      %v828 = vmax.f32 %v635, %v727
      %v829 = vmax.f32 %v636, %v726
      %v830 = vmax.f32 %v637, %v730
      %v831 = vmax.f32 %v638, %v732
      %v832 = vmax.f32 %v639, %v731
      %v833 = vmax.f32 %v640, %v735
      %v834 = vmax.f32 %v641, %v737
      %v835 = vmax.f32 %v642, %v736
      %v836 = vmax.f32 %v643, %v740
      %v837 = vmax.f32 %v644, %v742
      %v838 = vmax.f32 %v645, %v741
      %v871 = vrot.slane %v322, 7
      %v872 = vrot.slane %v323, 7
      %v873 = vsel %vm453, %v871, %v872
      %v874 = vrot.slane %v325, 7
      %v875 = vrot.slane %v326, 7
      %v876 = vsel %vm453, %v874, %v875
      %v877 = vrot.slane %v328, 7
      %v878 = vrot.slane %v329, 7
      %v879 = vsel %vm453, %v877, %v878
      %v880 = vrot.slane %v331, 7
      %v881 = vrot.slane %v332, 7
      %v882 = vsel %vm453, %v880, %v881
      %v883 = vrot.slane %v334, 7
      %v884 = vrot.slane %v335, 7
      %v885 = vsel %vm453, %v883, %v884
      %v886 = vrot.slane %v337, 7
      %v887 = vrot.slane %v338, 7
      %v888 = vsel %vm453, %v886, %v887
      %v889 = vrot.slane %v340, 7
      %v890 = vrot.slane %v341, 7
      %v891 = vsel %vm453, %v889, %v890
      %v892 = vrot.slane %v343, 7
      %v893 = vrot.slane %v344, 7
      %v894 = vsel %vm453, %v892, %v893
      %v895 = vrot.slane %v346, 7
      %v896 = vrot.slane %v347, 7
      %v897 = vsel %vm453, %v895, %v896
      %v898 = vrot.slane %v349, 7
      %v899 = vrot.slane %v350, 7
      %v900 = vsel %vm453, %v898, %v899
      %v901 = vrot.slane %v352, 7
      %v902 = vrot.slane %v353, 7
      %v903 = vsel %vm453, %v901, %v902
      %v904 = vrot.slane %v355, 7
      %v905 = vrot.slane %v356, 7
      %v906 = vsel %vm453, %v904, %v905
      %v907 = vrot.slane %v358, 7
      %v908 = vrot.slane %v359, 7
      %v909 = vsel %vm453, %v907, %v908
      %v910 = vrot.slane %v361, 7
      %v911 = vrot.slane %v362, 7
      %v912 = vsel %vm453, %v910, %v911
      %v913 = vrot.slane %v364, 7
      %v914 = vrot.slane %v365, 7
      %v915 = vsel %vm453, %v913, %v914
      %v916 = vrot.slane %v367, 7
      %v917 = vrot.slane %v368, 7
      %v918 = vsel %vm453, %v916, %v917
      %v967 = vmax.f32 %v791, %v871
      %v968 = vmax.f32 %v792, %v873
      %v969 = vmax.f32 %v793, %v872
      %v970 = vmax.f32 %v794, %v874
      %v971 = vmax.f32 %v795, %v876
      %v972 = vmax.f32 %v796, %v875
      %v973 = vmax.f32 %v797, %v877
      %v974 = vmax.f32 %v798, %v879
      %v975 = vmax.f32 %v799, %v878
      %v976 = vmax.f32 %v800, %v880
      %v977 = vmax.f32 %v801, %v882
      %v978 = vmax.f32 %v802, %v881
      %v979 = vmax.f32 %v803, %v883
      %v980 = vmax.f32 %v804, %v885
      %v981 = vmax.f32 %v805, %v884
      %v982 = vmax.f32 %v806, %v886
      %v983 = vmax.f32 %v807, %v888
      %v984 = vmax.f32 %v808, %v887
      %v985 = vmax.f32 %v809, %v889
      %v986 = vmax.f32 %v810, %v891
      %v987 = vmax.f32 %v811, %v890
      %v988 = vmax.f32 %v812, %v892
      %v989 = vmax.f32 %v813, %v894
      %v990 = vmax.f32 %v814, %v893
      %v991 = vmax.f32 %v815, %v895
      %v992 = vmax.f32 %v816, %v897
      %v993 = vmax.f32 %v817, %v896
      %v994 = vmax.f32 %v818, %v898
      %v995 = vmax.f32 %v819, %v900
      %v996 = vmax.f32 %v820, %v899
      %v997 = vmax.f32 %v821, %v901
      %v998 = vmax.f32 %v822, %v903
      %v999 = vmax.f32 %v823, %v902
      %v1000 = vmax.f32 %v824, %v904
      %v1001 = vmax.f32 %v825, %v906
      %v1002 = vmax.f32 %v826, %v905
      %v1003 = vmax.f32 %v827, %v907
      %v1004 = vmax.f32 %v828, %v909
      %v1005 = vmax.f32 %v829, %v908
      %v1006 = vmax.f32 %v830, %v910
      %v1007 = vmax.f32 %v831, %v912
      %v1008 = vmax.f32 %v832, %v911
      %v1009 = vmax.f32 %v833, %v913
      %v1010 = vmax.f32 %v834, %v915
      %v1011 = vmax.f32 %v835, %v914
      %v1012 = vmax.f32 %v836, %v916
      %v1013 = vmax.f32 %v837, %v918
      %v1014 = vmax.f32 %v838, %v917
      %v1031 = vrot.slane %v322, 1
      %v1032 = vrot.slane %v323, 1
      %v1033 = vsel %vm662, %v1031, %v1032
      %v1034 = vrot.slane %v324, 1
      %v1035 = vsel %vm662, %v1032, %v1034
      %v1036 = vrot.slane %v325, 1
      %v1037 = vrot.slane %v326, 1
      %v1038 = vsel %vm662, %v1036, %v1037
      %v1039 = vrot.slane %v327, 1
      %v1040 = vsel %vm662, %v1037, %v1039
      %v1041 = vrot.slane %v328, 1
      %v1042 = vrot.slane %v329, 1
      %v1043 = vsel %vm662, %v1041, %v1042
      %v1044 = vrot.slane %v330, 1
      %v1045 = vsel %vm662, %v1042, %v1044
      %v1046 = vrot.slane %v331, 1
      %v1047 = vrot.slane %v332, 1
      %v1048 = vsel %vm662, %v1046, %v1047
      %v1049 = vrot.slane %v333, 1
      %v1050 = vsel %vm662, %v1047, %v1049
      %v1051 = vrot.slane %v334, 1
      %v1052 = vrot.slane %v335, 1
      %v1053 = vsel %vm662, %v1051, %v1052
      %v1054 = vrot.slane %v336, 1
      %v1055 = vsel %vm662, %v1052, %v1054
      %v1056 = vrot.slane %v337, 1
      %v1057 = vrot.slane %v338, 1
      %v1058 = vsel %vm662, %v1056, %v1057
      %v1059 = vrot.slane %v339, 1
      %v1060 = vsel %vm662, %v1057, %v1059
      %v1061 = vrot.slane %v340, 1
      %v1062 = vrot.slane %v341, 1
      %v1063 = vsel %vm662, %v1061, %v1062
      %v1064 = vrot.slane %v342, 1
      %v1065 = vsel %vm662, %v1062, %v1064
      %v1066 = vrot.slane %v343, 1
      %v1067 = vrot.slane %v344, 1
      %v1068 = vsel %vm662, %v1066, %v1067
      %v1069 = vrot.slane %v345, 1
      %v1070 = vsel %vm662, %v1067, %v1069
      %v1071 = vrot.slane %v346, 1
      %v1072 = vrot.slane %v347, 1
      %v1073 = vsel %vm662, %v1071, %v1072
      %v1074 = vrot.slane %v348, 1
      %v1075 = vsel %vm662, %v1072, %v1074
      %v1076 = vrot.slane %v349, 1
      %v1077 = vrot.slane %v350, 1
      %v1078 = vsel %vm662, %v1076, %v1077
      %v1079 = vrot.slane %v351, 1
      %v1080 = vsel %vm662, %v1077, %v1079
      %v1081 = vrot.slane %v352, 1
      %v1082 = vrot.slane %v353, 1
      %v1083 = vsel %vm662, %v1081, %v1082
      %v1084 = vrot.slane %v354, 1
      %v1085 = vsel %vm662, %v1082, %v1084
      %v1086 = vrot.slane %v355, 1
      %v1087 = vrot.slane %v356, 1
      %v1088 = vsel %vm662, %v1086, %v1087
      %v1089 = vrot.slane %v357, 1
      %v1090 = vsel %vm662, %v1087, %v1089
      %v1091 = vrot.slane %v358, 1
      %v1092 = vrot.slane %v359, 1
      %v1093 = vsel %vm662, %v1091, %v1092
      %v1094 = vrot.slane %v360, 1
      %v1095 = vsel %vm662, %v1092, %v1094
      %v1096 = vrot.slane %v361, 1
      %v1097 = vrot.slane %v362, 1
      %v1098 = vsel %vm662, %v1096, %v1097
      %v1099 = vrot.slane %v363, 1
      %v1100 = vsel %vm662, %v1097, %v1099
      %v1101 = vrot.slane %v364, 1
      %v1102 = vrot.slane %v365, 1
      %v1103 = vsel %vm662, %v1101, %v1102
      %v1104 = vrot.slane %v366, 1
      %v1105 = vsel %vm662, %v1102, %v1104
      %v1106 = vrot.slane %v367, 1
      %v1107 = vrot.slane %v368, 1
      %v1108 = vsel %vm662, %v1106, %v1107
      %v1109 = vrot.slane %v369, 1
      %v1110 = vsel %vm662, %v1107, %v1109
      %v1159 = vmax.f32 %v967, %v1033
      %v1160 = vmax.f32 %v968, %v1035
      %v1161 = vmax.f32 %v969, %v1034
      %v1162 = vmax.f32 %v970, %v1038
      %v1163 = vmax.f32 %v971, %v1040
      %v1164 = vmax.f32 %v972, %v1039
      %v1165 = vmax.f32 %v973, %v1043
      %v1166 = vmax.f32 %v974, %v1045
      %v1167 = vmax.f32 %v975, %v1044
      %v1168 = vmax.f32 %v976, %v1048
      %v1169 = vmax.f32 %v977, %v1050
      %v1170 = vmax.f32 %v978, %v1049
      %v1171 = vmax.f32 %v979, %v1053
      %v1172 = vmax.f32 %v980, %v1055
      %v1173 = vmax.f32 %v981, %v1054
      %v1174 = vmax.f32 %v982, %v1058
      %v1175 = vmax.f32 %v983, %v1060
      %v1176 = vmax.f32 %v984, %v1059
      %v1177 = vmax.f32 %v985, %v1063
      %v1178 = vmax.f32 %v986, %v1065
      %v1179 = vmax.f32 %v987, %v1064
      %v1180 = vmax.f32 %v988, %v1068
      %v1181 = vmax.f32 %v989, %v1070
      %v1182 = vmax.f32 %v990, %v1069
      %v1183 = vmax.f32 %v991, %v1073
      %v1184 = vmax.f32 %v992, %v1075
      %v1185 = vmax.f32 %v993, %v1074
      %v1186 = vmax.f32 %v994, %v1078
      %v1187 = vmax.f32 %v995, %v1080
      %v1188 = vmax.f32 %v996, %v1079
      %v1189 = vmax.f32 %v997, %v1083
      %v1190 = vmax.f32 %v998, %v1085
      %v1191 = vmax.f32 %v999, %v1084
      %v1192 = vmax.f32 %v1000, %v1088
      %v1193 = vmax.f32 %v1001, %v1090
      %v1194 = vmax.f32 %v1002, %v1089
      %v1195 = vmax.f32 %v1003, %v1093
      %v1196 = vmax.f32 %v1004, %v1095
      %v1197 = vmax.f32 %v1005, %v1094
      %v1198 = vmax.f32 %v1006, %v1098
      %v1199 = vmax.f32 %v1007, %v1100
      %v1200 = vmax.f32 %v1008, %v1099
      %v1201 = vmax.f32 %v1009, %v1103
      %v1202 = vmax.f32 %v1010, %v1105
      %v1203 = vmax.f32 %v1011, %v1104
      %v1204 = vmax.f32 %v1012, %v1108
      %v1205 = vmax.f32 %v1013, %v1110
      %v1206 = vmax.f32 %v1014, %v1109
      %v1239 = vrot.slane %v373, 7
      %v1240 = vrot.slane %v374, 7
      %v1241 = vsel %vm453, %v1239, %v1240
      %v1242 = vrot.slane %v376, 7
      %v1243 = vrot.slane %v377, 7
      %v1244 = vsel %vm453, %v1242, %v1243
      %v1245 = vrot.slane %v379, 7
      %v1246 = vrot.slane %v380, 7
      %v1247 = vsel %vm453, %v1245, %v1246
      %v1248 = vrot.slane %v382, 7
      %v1249 = vrot.slane %v383, 7
      %v1250 = vsel %vm453, %v1248, %v1249
      %v1251 = vrot.slane %v385, 7
      %v1252 = vrot.slane %v386, 7
      %v1253 = vsel %vm453, %v1251, %v1252
      %v1254 = vrot.slane %v388, 7
      %v1255 = vrot.slane %v389, 7
      %v1256 = vsel %vm453, %v1254, %v1255
      %v1257 = vrot.slane %v391, 7
      %v1258 = vrot.slane %v392, 7
      %v1259 = vsel %vm453, %v1257, %v1258
      %v1260 = vrot.slane %v394, 7
      %v1261 = vrot.slane %v395, 7
      %v1262 = vsel %vm453, %v1260, %v1261
      %v1263 = vrot.slane %v397, 7
      %v1264 = vrot.slane %v398, 7
      %v1265 = vsel %vm453, %v1263, %v1264
      %v1266 = vrot.slane %v400, 7
      %v1267 = vrot.slane %v401, 7
      %v1268 = vsel %vm453, %v1266, %v1267
      %v1269 = vrot.slane %v403, 7
      %v1270 = vrot.slane %v404, 7
      %v1271 = vsel %vm453, %v1269, %v1270
      %v1272 = vrot.slane %v406, 7
      %v1273 = vrot.slane %v407, 7
      %v1274 = vsel %vm453, %v1272, %v1273
      %v1275 = vrot.slane %v409, 7
      %v1276 = vrot.slane %v410, 7
      %v1277 = vsel %vm453, %v1275, %v1276
      %v1278 = vrot.slane %v412, 7
      %v1279 = vrot.slane %v413, 7
      %v1280 = vsel %vm453, %v1278, %v1279
      %v1281 = vrot.slane %v415, 7
      %v1282 = vrot.slane %v416, 7
      %v1283 = vsel %vm453, %v1281, %v1282
      %v1284 = vrot.slane %v418, 7
      %v1285 = vrot.slane %v419, 7
      %v1286 = vsel %vm453, %v1284, %v1285
      %v1335 = vmax.f32 %v1159, %v1239
      %v1336 = vmax.f32 %v1160, %v1241
      %v1337 = vmax.f32 %v1161, %v1240
      %v1338 = vmax.f32 %v1162, %v1242
      %v1339 = vmax.f32 %v1163, %v1244
      %v1340 = vmax.f32 %v1164, %v1243
      %v1341 = vmax.f32 %v1165, %v1245
      %v1342 = vmax.f32 %v1166, %v1247
      %v1343 = vmax.f32 %v1167, %v1246
      %v1344 = vmax.f32 %v1168, %v1248
      %v1345 = vmax.f32 %v1169, %v1250
      %v1346 = vmax.f32 %v1170, %v1249
      %v1347 = vmax.f32 %v1171, %v1251
      %v1348 = vmax.f32 %v1172, %v1253
      %v1349 = vmax.f32 %v1173, %v1252
      %v1350 = vmax.f32 %v1174, %v1254
      %v1351 = vmax.f32 %v1175, %v1256
      %v1352 = vmax.f32 %v1176, %v1255
      %v1353 = vmax.f32 %v1177, %v1257
      %v1354 = vmax.f32 %v1178, %v1259
      %v1355 = vmax.f32 %v1179, %v1258
      %v1356 = vmax.f32 %v1180, %v1260
      %v1357 = vmax.f32 %v1181, %v1262
      %v1358 = vmax.f32 %v1182, %v1261
      %v1359 = vmax.f32 %v1183, %v1263
      %v1360 = vmax.f32 %v1184, %v1265
      %v1361 = vmax.f32 %v1185, %v1264
      %v1362 = vmax.f32 %v1186, %v1266
      %v1363 = vmax.f32 %v1187, %v1268
      %v1364 = vmax.f32 %v1188, %v1267
      %v1365 = vmax.f32 %v1189, %v1269
      %v1366 = vmax.f32 %v1190, %v1271
      %v1367 = vmax.f32 %v1191, %v1270
      %v1368 = vmax.f32 %v1192, %v1272
      %v1369 = vmax.f32 %v1193, %v1274
      %v1370 = vmax.f32 %v1194, %v1273
      %v1371 = vmax.f32 %v1195, %v1275
      %v1372 = vmax.f32 %v1196, %v1277
      %v1373 = vmax.f32 %v1197, %v1276
      %v1374 = vmax.f32 %v1198, %v1278
      %v1375 = vmax.f32 %v1199, %v1280
      %v1376 = vmax.f32 %v1200, %v1279
      %v1377 = vmax.f32 %v1201, %v1281
      %v1378 = vmax.f32 %v1202, %v1283
      %v1379 = vmax.f32 %v1203, %v1282
      %v1380 = vmax.f32 %v1204, %v1284
      %v1381 = vmax.f32 %v1205, %v1286
      %v1382 = vmax.f32 %v1206, %v1285
      %v1383 = vmax.f32 %v1335, %v373
      %v1384 = vmax.f32 %v1336, %v374
      %v1385 = vmax.f32 %v1337, %v375
      %v1386 = vmax.f32 %v1338, %v376
      %v1387 = vmax.f32 %v1339, %v377
      %v1388 = vmax.f32 %v1340, %v378
      %v1389 = vmax.f32 %v1341, %v379
      %v1390 = vmax.f32 %v1342, %v380
      %v1391 = vmax.f32 %v1343, %v381
      %v1392 = vmax.f32 %v1344, %v382
      %v1393 = vmax.f32 %v1345, %v383
      %v1394 = vmax.f32 %v1346, %v384
      %v1395 = vmax.f32 %v1347, %v385
      %v1396 = vmax.f32 %v1348, %v386
      %v1397 = vmax.f32 %v1349, %v387
      %v1398 = vmax.f32 %v1350, %v388
      %v1399 = vmax.f32 %v1351, %v389
      %v1400 = vmax.f32 %v1352, %v390
      %v1401 = vmax.f32 %v1353, %v391
      %v1402 = vmax.f32 %v1354, %v392
      %v1403 = vmax.f32 %v1355, %v393
      %v1404 = vmax.f32 %v1356, %v394
      %v1405 = vmax.f32 %v1357, %v395
      %v1406 = vmax.f32 %v1358, %v396
      %v1407 = vmax.f32 %v1359, %v397
      %v1408 = vmax.f32 %v1360, %v398
      %v1409 = vmax.f32 %v1361, %v399
      %v1410 = vmax.f32 %v1362, %v400
      %v1411 = vmax.f32 %v1363, %v401
      %v1412 = vmax.f32 %v1364, %v402
      %v1413 = vmax.f32 %v1365, %v403
      %v1414 = vmax.f32 %v1366, %v404
      %v1415 = vmax.f32 %v1367, %v405
      %v1416 = vmax.f32 %v1368, %v406
      %v1417 = vmax.f32 %v1369, %v407
      %v1418 = vmax.f32 %v1370, %v408
      %v1419 = vmax.f32 %v1371, %v409
      %v1420 = vmax.f32 %v1372, %v410
      %v1421 = vmax.f32 %v1373, %v411
      %v1422 = vmax.f32 %v1374, %v412
      %v1423 = vmax.f32 %v1375, %v413
      %v1424 = vmax.f32 %v1376, %v414
      %v1425 = vmax.f32 %v1377, %v415
      %v1426 = vmax.f32 %v1378, %v416
      %v1427 = vmax.f32 %v1379, %v417
      %v1428 = vmax.f32 %v1380, %v418
      %v1429 = vmax.f32 %v1381, %v419
      %v1430 = vmax.f32 %v1382, %v420
      %v1447 = vrot.slane %v373, 1
      %v1448 = vrot.slane %v374, 1
      %v1449 = vsel %vm662, %v1447, %v1448
      %v1450 = vrot.slane %v375, 1
      %v1451 = vsel %vm662, %v1448, %v1450
      %v1452 = vrot.slane %v376, 1
      %v1453 = vrot.slane %v377, 1
      %v1454 = vsel %vm662, %v1452, %v1453
      %v1455 = vrot.slane %v378, 1
      %v1456 = vsel %vm662, %v1453, %v1455
      %v1457 = vrot.slane %v379, 1
      %v1458 = vrot.slane %v380, 1
      %v1459 = vsel %vm662, %v1457, %v1458
      %v1460 = vrot.slane %v381, 1
      %v1461 = vsel %vm662, %v1458, %v1460
      %v1462 = vrot.slane %v382, 1
      %v1463 = vrot.slane %v383, 1
      %v1464 = vsel %vm662, %v1462, %v1463
      %v1465 = vrot.slane %v384, 1
      %v1466 = vsel %vm662, %v1463, %v1465
      %v1467 = vrot.slane %v385, 1
      %v1468 = vrot.slane %v386, 1
      %v1469 = vsel %vm662, %v1467, %v1468
      %v1470 = vrot.slane %v387, 1
      %v1471 = vsel %vm662, %v1468, %v1470
      %v1472 = vrot.slane %v388, 1
      %v1473 = vrot.slane %v389, 1
      %v1474 = vsel %vm662, %v1472, %v1473
      %v1475 = vrot.slane %v390, 1
      %v1476 = vsel %vm662, %v1473, %v1475
      %v1477 = vrot.slane %v391, 1
      %v1478 = vrot.slane %v392, 1
      %v1479 = vsel %vm662, %v1477, %v1478
      %v1480 = vrot.slane %v393, 1
      %v1481 = vsel %vm662, %v1478, %v1480
      %v1482 = vrot.slane %v394, 1
      %v1483 = vrot.slane %v395, 1
      %v1484 = vsel %vm662, %v1482, %v1483
      %v1485 = vrot.slane %v396, 1
      %v1486 = vsel %vm662, %v1483, %v1485
      %v1487 = vrot.slane %v397, 1
      %v1488 = vrot.slane %v398, 1
      %v1489 = vsel %vm662, %v1487, %v1488
      %v1490 = vrot.slane %v399, 1
      %v1491 = vsel %vm662, %v1488, %v1490
      %v1492 = vrot.slane %v400, 1
      %v1493 = vrot.slane %v401, 1
      %v1494 = vsel %vm662, %v1492, %v1493
      %v1495 = vrot.slane %v402, 1
      %v1496 = vsel %vm662, %v1493, %v1495
      %v1497 = vrot.slane %v403, 1
      %v1498 = vrot.slane %v404, 1
      %v1499 = vsel %vm662, %v1497, %v1498
      %v1500 = vrot.slane %v405, 1
      %v1501 = vsel %vm662, %v1498, %v1500
      %v1502 = vrot.slane %v406, 1
      %v1503 = vrot.slane %v407, 1
      %v1504 = vsel %vm662, %v1502, %v1503
      %v1505 = vrot.slane %v408, 1
      %v1506 = vsel %vm662, %v1503, %v1505
      %v1507 = vrot.slane %v409, 1
      %v1508 = vrot.slane %v410, 1
      %v1509 = vsel %vm662, %v1507, %v1508
      %v1510 = vrot.slane %v411, 1
      %v1511 = vsel %vm662, %v1508, %v1510
      %v1512 = vrot.slane %v412, 1
      %v1513 = vrot.slane %v413, 1
      %v1514 = vsel %vm662, %v1512, %v1513
      %v1515 = vrot.slane %v414, 1
      %v1516 = vsel %vm662, %v1513, %v1515
      %v1517 = vrot.slane %v415, 1
      %v1518 = vrot.slane %v416, 1
      %v1519 = vsel %vm662, %v1517, %v1518
      %v1520 = vrot.slane %v417, 1
      %v1521 = vsel %vm662, %v1518, %v1520
      %v1522 = vrot.slane %v418, 1
      %v1523 = vrot.slane %v419, 1
      %v1524 = vsel %vm662, %v1522, %v1523
      %v1525 = vrot.slane %v420, 1
      %v1526 = vsel %vm662, %v1523, %v1525
      %v1575 = vmax.f32 %v1383, %v1449
      %v1576 = vmax.f32 %v1384, %v1451
      %v1577 = vmax.f32 %v1385, %v1450
      %v1578 = vmax.f32 %v1386, %v1454
      %v1579 = vmax.f32 %v1387, %v1456
      %v1580 = vmax.f32 %v1388, %v1455
      %v1581 = vmax.f32 %v1389, %v1459
      %v1582 = vmax.f32 %v1390, %v1461
      %v1583 = vmax.f32 %v1391, %v1460
      %v1584 = vmax.f32 %v1392, %v1464
      %v1585 = vmax.f32 %v1393, %v1466
      %v1586 = vmax.f32 %v1394, %v1465
      %v1587 = vmax.f32 %v1395, %v1469
      %v1588 = vmax.f32 %v1396, %v1471
      %v1589 = vmax.f32 %v1397, %v1470
      %v1590 = vmax.f32 %v1398, %v1474
      %v1591 = vmax.f32 %v1399, %v1476
      %v1592 = vmax.f32 %v1400, %v1475
      %v1593 = vmax.f32 %v1401, %v1479
      %v1594 = vmax.f32 %v1402, %v1481
      %v1595 = vmax.f32 %v1403, %v1480
      %v1596 = vmax.f32 %v1404, %v1484
      %v1597 = vmax.f32 %v1405, %v1486
      %v1598 = vmax.f32 %v1406, %v1485
      %v1599 = vmax.f32 %v1407, %v1489
      %v1600 = vmax.f32 %v1408, %v1491
      %v1601 = vmax.f32 %v1409, %v1490
      %v1602 = vmax.f32 %v1410, %v1494
      %v1603 = vmax.f32 %v1411, %v1496
      %v1604 = vmax.f32 %v1412, %v1495
      %v1605 = vmax.f32 %v1413, %v1499
      %v1606 = vmax.f32 %v1414, %v1501
      %v1607 = vmax.f32 %v1415, %v1500
      %v1608 = vmax.f32 %v1416, %v1504
      %v1609 = vmax.f32 %v1417, %v1506
      %v1610 = vmax.f32 %v1418, %v1505
      %v1611 = vmax.f32 %v1419, %v1509
      %v1612 = vmax.f32 %v1420, %v1511
      %v1613 = vmax.f32 %v1421, %v1510
      %v1614 = vmax.f32 %v1422, %v1514
      %v1615 = vmax.f32 %v1423, %v1516
      %v1616 = vmax.f32 %v1424, %v1515
      %v1617 = vmax.f32 %v1425, %v1519
      %v1618 = vmax.f32 %v1426, %v1521
      %v1619 = vmax.f32 %v1427, %v1520
      %v1620 = vmax.f32 %v1428, %v1524
      %v1621 = vmax.f32 %v1429, %v1526
      %v1622 = vmax.f32 %v1430, %v1525
      %v1623 = vpack.c.bf16 %v1035, %v1033
      %v1624 = vpack.c.bf16 %v1040, %v1038
      %v1625 = vpack.c.bf16 %v1045, %v1043
      %v1626 = vpack.c.bf16 %v1050, %v1048
      %v1627 = vpack.c.bf16 %v1055, %v1053
      %v1628 = vpack.c.bf16 %v1060, %v1058
      %v1629 = vpack.c.bf16 %v1065, %v1063
      %v1630 = vpack.c.bf16 %v1070, %v1068
      %v1631 = vpack.c.bf16 %v1075, %v1073
      %v1632 = vpack.c.bf16 %v1080, %v1078
      %v1633 = vpack.c.bf16 %v1085, %v1083
      %v1634 = vpack.c.bf16 %v1090, %v1088
      %v1635 = vpack.c.bf16 %v1095, %v1093
      %v1636 = vpack.c.bf16 %v1100, %v1098
      %v1637 = vpack.c.bf16 %v1105, %v1103
      %v1638 = vpack.c.bf16 %v1110, %v1108
      %v1687 = vrot.slane %v1575, 1
      %v1688 = vrot.slane %v1576, 1
      %v1689 = vsel %vm662, %v1687, %v1688
      %v1690 = vrot.slane %v1577, 1
      %v1691 = vsel %vm662, %v1688, %v1690
      %v1692 = vrot.slane %v1578, 1
      %v1693 = vrot.slane %v1579, 1
      %v1694 = vsel %vm662, %v1692, %v1693
      %v1695 = vrot.slane %v1580, 1
      %v1696 = vsel %vm662, %v1693, %v1695
      %v1697 = vrot.slane %v1581, 1
      %v1698 = vrot.slane %v1582, 1
      %v1699 = vsel %vm662, %v1697, %v1698
      %v1700 = vrot.slane %v1583, 1
      %v1701 = vsel %vm662, %v1698, %v1700
      %v1702 = vrot.slane %v1584, 1
      %v1703 = vrot.slane %v1585, 1
      %v1704 = vsel %vm662, %v1702, %v1703
      %v1705 = vrot.slane %v1586, 1
      %v1706 = vsel %vm662, %v1703, %v1705
      %v1707 = vrot.slane %v1587, 1
      %v1708 = vrot.slane %v1588, 1
      %v1709 = vsel %vm662, %v1707, %v1708
      %v1710 = vrot.slane %v1589, 1
      %v1711 = vsel %vm662, %v1708, %v1710
      %v1712 = vrot.slane %v1590, 1
      %v1713 = vrot.slane %v1591, 1
      %v1714 = vsel %vm662, %v1712, %v1713
      %v1715 = vrot.slane %v1592, 1
      %v1716 = vsel %vm662, %v1713, %v1715
      %v1717 = vrot.slane %v1593, 1
      %v1718 = vrot.slane %v1594, 1
      %v1719 = vsel %vm662, %v1717, %v1718
      %v1720 = vrot.slane %v1595, 1
      %v1721 = vsel %vm662, %v1718, %v1720
      %v1722 = vrot.slane %v1596, 1
      %v1723 = vrot.slane %v1597, 1
      %v1724 = vsel %vm662, %v1722, %v1723
      %v1725 = vrot.slane %v1598, 1
      %v1726 = vsel %vm662, %v1723, %v1725
      %v1727 = vrot.slane %v1599, 1
      %v1728 = vrot.slane %v1600, 1
      %v1729 = vsel %vm662, %v1727, %v1728
      %v1730 = vrot.slane %v1601, 1
      %v1731 = vsel %vm662, %v1728, %v1730
      %v1732 = vrot.slane %v1602, 1
      %v1733 = vrot.slane %v1603, 1
      %v1734 = vsel %vm662, %v1732, %v1733
      %v1735 = vrot.slane %v1604, 1
      %v1736 = vsel %vm662, %v1733, %v1735
      %v1737 = vrot.slane %v1605, 1
      %v1738 = vrot.slane %v1606, 1
      %v1739 = vsel %vm662, %v1737, %v1738
      %v1740 = vrot.slane %v1607, 1
      %v1741 = vsel %vm662, %v1738, %v1740
      %v1742 = vrot.slane %v1608, 1
      %v1743 = vrot.slane %v1609, 1
      %v1744 = vsel %vm662, %v1742, %v1743
      %v1745 = vrot.slane %v1610, 1
      %v1746 = vsel %vm662, %v1743, %v1745
      %v1747 = vrot.slane %v1611, 1
      %v1748 = vrot.slane %v1612, 1
      %v1749 = vsel %vm662, %v1747, %v1748
      %v1750 = vrot.slane %v1613, 1
      %v1751 = vsel %vm662, %v1748, %v1750
      %v1752 = vrot.slane %v1614, 1
      %v1753 = vrot.slane %v1615, 1
      %v1754 = vsel %vm662, %v1752, %v1753
      %v1755 = vrot.slane %v1616, 1
      %v1756 = vsel %vm662, %v1753, %v1755
      %v1757 = vrot.slane %v1617, 1
      %v1758 = vrot.slane %v1618, 1
      %v1759 = vsel %vm662, %v1757, %v1758
      %v1760 = vrot.slane %v1619, 1
      %v1761 = vsel %vm662, %v1758, %v1760
      %v1762 = vrot.slane %v1620, 1
      %v1763 = vrot.slane %v1621, 1
      %v1764 = vsel %vm662, %v1762, %v1763
      %v1765 = vrot.slane %v1622, 1
      %v1766 = vsel %vm662, %v1763, %v1765
      %v1799 = vpack.c.bf16 %v1691, %v1689
      %v1800 = vpack.c.bf16 %v1696, %v1694
      %v1801 = vpack.c.bf16 %v1701, %v1699
      %v1802 = vpack.c.bf16 %v1706, %v1704
      %v1803 = vpack.c.bf16 %v1711, %v1709
      %v1804 = vpack.c.bf16 %v1716, %v1714
      %v1805 = vpack.c.bf16 %v1721, %v1719
      %v1806 = vpack.c.bf16 %v1726, %v1724
      %v1807 = vpack.c.bf16 %v1731, %v1729
      %v1808 = vpack.c.bf16 %v1736, %v1734
      %v1809 = vpack.c.bf16 %v1741, %v1739
      %v1810 = vpack.c.bf16 %v1746, %v1744
      %v1811 = vpack.c.bf16 %v1751, %v1749
      %v1812 = vpack.c.bf16 %v1756, %v1754
      %v1813 = vpack.c.bf16 %v1761, %v1759
      %v1814 = vpack.c.bf16 %v1766, %v1764
      %v1815 = vld [vmem:[%s1] sm:$0xf]
      %v1816 = vld [vmem:[%s1 + $0x4] sm:$0xf]
      %v1817 = vld [vmem:[%s1 + $0x8] sm:$0xf]
      %v1818 = vld [vmem:[%s1 + $0xc] sm:$0xf]
      %v1819 = vld [vmem:[%s1 + $0x10] sm:$0xf]
      %v1820 = vld [vmem:[%s1 + $0x14] sm:$0xf]
      %v1821 = vld [vmem:[%s1 + $0x18] sm:$0xf]
      %v1822 = vld [vmem:[%s1 + $0x1c] sm:$0xf]
      %v1823 = vld [vmem:[%s1 + $0x20] sm:$0xf]
      %v1824 = vld [vmem:[%s1 + $0x24] sm:$0xf]
      %v1825 = vld [vmem:[%s1 + $0x28] sm:$0xf]
      %v1826 = vld [vmem:[%s1 + $0x2c] sm:$0xf]
      %v1827 = vld [vmem:[%s1 + $0x30] sm:$0xf]
      %v1828 = vld [vmem:[%s1 + $0x34] sm:$0xf]
      %v1829 = vld [vmem:[%s1 + $0x38] sm:$0xf]
      %v1830 = vld [vmem:[%s1 + $0x3c] sm:$0xf]
      %v1831 = vld [vmem:[%s2] sm:$0xf]
      %v1832 = vld [vmem:[%s2 + $0x4] sm:$0xf]
      %v1833 = vld [vmem:[%s2 + $0x8] sm:$0xf]
      %v1834 = vld [vmem:[%s2 + $0xc] sm:$0xf]
      %v1835 = vld [vmem:[%s2 + $0x10] sm:$0xf]
      %v1836 = vld [vmem:[%s2 + $0x14] sm:$0xf]
      %v1837 = vld [vmem:[%s2 + $0x18] sm:$0xf]
      %v1838 = vld [vmem:[%s2 + $0x1c] sm:$0xf]
      %v1839 = vld [vmem:[%s2 + $0x20] sm:$0xf]
      %v1840 = vld [vmem:[%s2 + $0x24] sm:$0xf]
      %v1841 = vld [vmem:[%s2 + $0x28] sm:$0xf]
      %v1842 = vld [vmem:[%s2 + $0x2c] sm:$0xf]
      %v1843 = vld [vmem:[%s2 + $0x30] sm:$0xf]
      %v1844 = vld [vmem:[%s2 + $0x34] sm:$0xf]
      %v1845 = vld [vmem:[%s2 + $0x38] sm:$0xf]
      %v1846 = vld [vmem:[%s2 + $0x3c] sm:$0xf]
      %v1863 = vunpack.c.l.b16 %v1831
      %v1864 = vunpack.c.l.b16 %v1832
      %v1865 = vunpack.c.l.b16 %v1833
      %v1866 = vunpack.c.l.b16 %v1834
      %v1867 = vunpack.c.l.b16 %v1835
      %v1868 = vunpack.c.l.b16 %v1836
      %v1869 = vunpack.c.l.b16 %v1837
      %v1870 = vunpack.c.l.b16 %v1838
      %v1871 = vunpack.c.l.b16 %v1839
      %v1872 = vunpack.c.l.b16 %v1840
      %v1873 = vunpack.c.l.b16 %v1841
      %v1874 = vunpack.c.l.b16 %v1842
      %v1875 = vunpack.c.l.b16 %v1843
      %v1876 = vunpack.c.l.b16 %v1844
      %v1877 = vunpack.c.l.b16 %v1845
      %v1878 = vunpack.c.l.b16 %v1846
      %v1879 = vpack.c.b16 %v1864, %v1863
      %v1880 = vpack.c.b16 %v1866, %v1865
      %v1881 = vpack.c.b16 %v1868, %v1867
      %v1882 = vpack.c.b16 %v1870, %v1869
      %v1883 = vpack.c.b16 %v1872, %v1871
      %v1884 = vpack.c.b16 %v1874, %v1873
      %v1885 = vpack.c.b16 %v1876, %v1875
      %v1886 = vpack.c.b16 %v1878, %v1877
      %1895 = vmatprep.subr.bf16.mxu0 0
      %1896 = vmatpush1.bf16.msra.mxu0 %v1879
      %1897 = vmatprep.subr.bf16.mxu0 0
      %1898 = vmatpush1.bf16.msra.mxu0 %v1880
      %1899 = vmatprep.subr.bf16.mxu0 0
      %1900 = vmatpush1.bf16.msra.mxu0 %v1881
      %1901 = vmatprep.subr.bf16.mxu0 0
      %1902 = vmatpush1.bf16.msra.mxu0 %v1882
      %1903 = vmatprep.subr.bf16.mxu0 0
      %1904 = vmatpush1.bf16.msra.mxu0 %v1883
      %1905 = vmatprep.subr.bf16.mxu0 0
      %1906 = vmatpush1.bf16.msra.mxu0 %v1884
      %1907 = vmatprep.subr.bf16.mxu0 0
      %1908 = vmatpush1.bf16.msra.mxu0 %v1885
      %1909 = vmatprep.subr.bf16.mxu0 0
      %1910 = vmatpush1.bf16.msra.mxu0 %v1886
      %1911 = vmatprep.subr.bf16.mxu0 0
      %1912 = vmatpush1.bf16.msra.mxu0 0
      %1913 = vmatprep.subr.bf16.mxu0 0
      %1914 = vmatpush1.bf16.msra.mxu0 0
      %1915 = vmatprep.subr.bf16.mxu0 0
      %1916 = vmatpush1.bf16.msra.mxu0 0
      %1917 = vmatprep.subr.bf16.mxu0 0
      %1918 = vmatpush1.bf16.msra.mxu0 0
      %1919 = vmatprep.subr.bf16.mxu0 0
      %1920 = vmatpush1.bf16.msra.mxu0 0
      %1921 = vmatprep.subr.bf16.mxu0 0
      %1922 = vmatpush1.bf16.msra.mxu0 0
      %1923 = vmatprep.subr.bf16.mxu0 0
      %1924 = vmatpush1.bf16.msra.mxu0 0
      %1925 = vmatprep.subr.bf16.mxu0 0
      %1926 = vmatpush1.bf16.msra.mxu0 0
      %1927 = vmatprep.mubr.bf16.mxu0 0
      %1928 = vmatmul.mubr.bf16.gmra.mrb[0].mxu0 %v1799
      %v1929 = vpop.f32.mrb[0].mxu0
      %v1930 = vadd.f32 0.0, %v1929
      %v1931 = vpop.f32.mrb[0].mxu0
      %v1932 = vpop.f32.mrb[0].mxu0
      %v1933 = vadd.f32 0.0, %v1932
      %v1934 = vpop.f32.mrb[0].mxu0
      %1935 = vmatprep.mubr.bf16.mxu0 0
      %1936 = vmatmul.mubr.bf16.gmra.mrb[0].mxu0 %v1800
      %v1937 = vpop.f32.mrb[0].mxu0
      %v1938 = vadd.f32 0.0, %v1937
      %v1939 = vpop.f32.mrb[0].mxu0
      %v1940 = vpop.f32.mrb[0].mxu0
      %v1941 = vadd.f32 0.0, %v1940
      %v1942 = vpop.f32.mrb[0].mxu0
      %1943 = vmatprep.mubr.bf16.mxu0 0
      %1944 = vmatmul.mubr.bf16.gmra.mrb[0].mxu0 %v1801
      %v1945 = vpop.f32.mrb[0].mxu0
      %v1946 = vadd.f32 0.0, %v1945
      %v1947 = vpop.f32.mrb[0].mxu0
      %v1948 = vpop.f32.mrb[0].mxu0
      %v1949 = vadd.f32 0.0, %v1948
      %v1950 = vpop.f32.mrb[0].mxu0
      %1951 = vmatprep.mubr.bf16.mxu0 0
      %1952 = vmatmul.mubr.bf16.gmra.mrb[0].mxu0 %v1802
      %v1953 = vpop.f32.mrb[0].mxu0
      %v1954 = vadd.f32 0.0, %v1953
      %v1955 = vpop.f32.mrb[0].mxu0
      %v1956 = vpop.f32.mrb[0].mxu0
      %v1957 = vadd.f32 0.0, %v1956
      %v1958 = vpop.f32.mrb[0].mxu0
      %1959 = vmatprep.mubr.bf16.mxu0 0
      %1960 = vmatmul.mubr.bf16.gmra.mrb[0].mxu0 %v1803
      %v1961 = vpop.f32.mrb[0].mxu0
      %v1962 = vadd.f32 0.0, %v1961
      %v1963 = vpop.f32.mrb[0].mxu0
      %v1964 = vpop.f32.mrb[0].mxu0
      %v1965 = vadd.f32 0.0, %v1964
      %v1966 = vpop.f32.mrb[0].mxu0
      %1967 = vmatprep.mubr.bf16.mxu0 0
      %1968 = vmatmul.mubr.bf16.gmra.mrb[0].mxu0 %v1804
      %v1969 = vpop.f32.mrb[0].mxu0
      %v1970 = vadd.f32 0.0, %v1969
      %v1971 = vpop.f32.mrb[0].mxu0
      %v1972 = vpop.f32.mrb[0].mxu0
      %v1973 = vadd.f32 0.0, %v1972
      %v1974 = vpop.f32.mrb[0].mxu0
      %1975 = vmatprep.mubr.bf16.mxu0 0
      %1976 = vmatmul.mubr.bf16.gmra.mrb[0].mxu0 %v1805
      %v1977 = vpop.f32.mrb[0].mxu0
      %v1978 = vadd.f32 0.0, %v1977
      %v1979 = vpop.f32.mrb[0].mxu0
      %v1980 = vpop.f32.mrb[0].mxu0
      %v1981 = vadd.f32 0.0, %v1980
      %v1982 = vpop.f32.mrb[0].mxu0
      %1983 = vmatprep.mubr.bf16.mxu0 0
      %1984 = vmatmul.mubr.bf16.gmra.mrb[0].mxu0 %v1806
      %v1985 = vpop.f32.mrb[0].mxu0
      %v1986 = vadd.f32 0.0, %v1985
      %v1987 = vpop.f32.mrb[0].mxu0
      %v1988 = vpop.f32.mrb[0].mxu0
      %v1989 = vadd.f32 0.0, %v1988
      %v1990 = vpop.f32.mrb[0].mxu0
      %1991 = vmatprep.mubr.bf16.mxu0 0
      %1992 = vmatmul.mubr.bf16.gmra.mrb[0].mxu0 %v1807
      %v1993 = vpop.f32.mrb[0].mxu0
      %v1994 = vadd.f32 0.0, %v1993
      %v1995 = vpop.f32.mrb[0].mxu0
      %v1996 = vpop.f32.mrb[0].mxu0
      %v1997 = vadd.f32 0.0, %v1996
      %v1998 = vpop.f32.mrb[0].mxu0
      %1999 = vmatprep.mubr.bf16.mxu0 0
      %2000 = vmatmul.mubr.bf16.gmra.mrb[0].mxu0 %v1808
      %v2001 = vpop.f32.mrb[0].mxu0
      %v2002 = vadd.f32 0.0, %v2001
      %v2003 = vpop.f32.mrb[0].mxu0
      %v2004 = vpop.f32.mrb[0].mxu0
      %v2005 = vadd.f32 0.0, %v2004
      %v2006 = vpop.f32.mrb[0].mxu0
      %2007 = vmatprep.mubr.bf16.mxu0 0
      %2008 = vmatmul.mubr.bf16.gmra.mrb[0].mxu0 %v1809
      %v2009 = vpop.f32.mrb[0].mxu0
      %v2010 = vadd.f32 0.0, %v2009
      %v2011 = vpop.f32.mrb[0].mxu0
      %v2012 = vpop.f32.mrb[0].mxu0
      %v2013 = vadd.f32 0.0, %v2012
      %v2014 = vpop.f32.mrb[0].mxu0
      %2015 = vmatprep.mubr.bf16.mxu0 0
      %2016 = vmatmul.mubr.bf16.gmra.mrb[0].mxu0 %v1810
      %v2017 = vpop.f32.mrb[0].mxu0
      %v2018 = vadd.f32 0.0, %v2017
      %v2019 = vpop.f32.mrb[0].mxu0
      %v2020 = vpop.f32.mrb[0].mxu0
      %v2021 = vadd.f32 0.0, %v2020
      %v2022 = vpop.f32.mrb[0].mxu0
      %2023 = vmatprep.mubr.bf16.mxu0 0
      %2024 = vmatmul.mubr.bf16.gmra.mrb[0].mxu0 %v1811
      %v2025 = vpop.f32.mrb[0].mxu0
      %v2026 = vadd.f32 0.0, %v2025
      %v2027 = vpop.f32.mrb[0].mxu0
      %v2028 = vpop.f32.mrb[0].mxu0
      %v2029 = vadd.f32 0.0, %v2028
      %v2030 = vpop.f32.mrb[0].mxu0
      %2031 = vmatprep.mubr.bf16.mxu0 0
      %2032 = vmatmul.mubr.bf16.gmra.mrb[0].mxu0 %v1812
      %v2033 = vpop.f32.mrb[0].mxu0
      %v2034 = vadd.f32 0.0, %v2033
      %v2035 = vpop.f32.mrb[0].mxu0
      %v2036 = vpop.f32.mrb[0].mxu0
      %v2037 = vadd.f32 0.0, %v2036
      %v2038 = vpop.f32.mrb[0].mxu0
      %2039 = vmatprep.mubr.bf16.mxu0 0
      %2040 = vmatmul.mubr.bf16.gmra.mrb[0].mxu0 %v1813
      %v2041 = vpop.f32.mrb[0].mxu0
      %v2042 = vadd.f32 0.0, %v2041
      %v2043 = vpop.f32.mrb[0].mxu0
      %v2044 = vpop.f32.mrb[0].mxu0
      %v2045 = vadd.f32 0.0, %v2044
      %v2046 = vpop.f32.mrb[0].mxu0
      %2047 = vmatprep.mubr.bf16.mxu0 0
      %2048 = vmatmul.mubr.bf16.gmra.mrb[0].mxu0 %v1814
      %v2049 = vpop.f32.mrb[0].mxu0
      %v2050 = vadd.f32 0.0, %v2049
      %v2051 = vpop.f32.mrb[0].mxu0
      %v2052 = vpop.f32.mrb[0].mxu0
      %v2053 = vadd.f32 0.0, %v2052
      %v2054 = vpop.f32.mrb[0].mxu0
      %2055 = vdwg.mxu0
      %v2072 = vunpack.c.l.b16 %v1815
      %v2073 = vunpack.c.l.b16 %v1816
      %v2074 = vunpack.c.l.b16 %v1817
      %v2075 = vunpack.c.l.b16 %v1818
      %v2076 = vunpack.c.l.b16 %v1819
      %v2077 = vunpack.c.l.b16 %v1820
      %v2078 = vunpack.c.l.b16 %v1821
      %v2079 = vunpack.c.l.b16 %v1822
      %v2080 = vunpack.c.l.b16 %v1823
      %v2081 = vunpack.c.l.b16 %v1824
      %v2082 = vunpack.c.l.b16 %v1825
      %v2083 = vunpack.c.l.b16 %v1826
      %v2084 = vunpack.c.l.b16 %v1827
      %v2085 = vunpack.c.l.b16 %v1828
      %v2086 = vunpack.c.l.b16 %v1829
      %v2087 = vunpack.c.l.b16 %v1830
      %v2088 = vpack.c.b16 %v2073, %v2072
      %v2089 = vpack.c.b16 %v2075, %v2074
      %v2090 = vpack.c.b16 %v2077, %v2076
      %v2091 = vpack.c.b16 %v2079, %v2078
      %v2092 = vpack.c.b16 %v2081, %v2080
      %v2093 = vpack.c.b16 %v2083, %v2082
      %v2094 = vpack.c.b16 %v2085, %v2084
      %v2095 = vpack.c.b16 %v2087, %v2086
      %2104 = vmatprep.subr.bf16.mxu0 0
      %2105 = vmatpush1.bf16.msra.mxu0 %v2088
      %2106 = vmatprep.subr.bf16.mxu0 0
      %2107 = vmatpush1.bf16.msra.mxu0 %v2089
      %2108 = vmatprep.subr.bf16.mxu0 0
      %2109 = vmatpush1.bf16.msra.mxu0 %v2090
      %2110 = vmatprep.subr.bf16.mxu0 0
      %2111 = vmatpush1.bf16.msra.mxu0 %v2091
      %2112 = vmatprep.subr.bf16.mxu0 0
      %2113 = vmatpush1.bf16.msra.mxu0 %v2092
      %2114 = vmatprep.subr.bf16.mxu0 0
      %2115 = vmatpush1.bf16.msra.mxu0 %v2093
      %2116 = vmatprep.subr.bf16.mxu0 0
      %2117 = vmatpush1.bf16.msra.mxu0 %v2094
      %2118 = vmatprep.subr.bf16.mxu0 0
      %2119 = vmatpush1.bf16.msra.mxu0 %v2095
      %2120 = vmatprep.subr.bf16.mxu0 0
      %2121 = vmatpush1.bf16.msra.mxu0 0
      %2122 = vmatprep.subr.bf16.mxu0 0
      %2123 = vmatpush1.bf16.msra.mxu0 0
      %2124 = vmatprep.subr.bf16.mxu0 0
      %2125 = vmatpush1.bf16.msra.mxu0 0
      %2126 = vmatprep.subr.bf16.mxu0 0
      %2127 = vmatpush1.bf16.msra.mxu0 0
      %2128 = vmatprep.subr.bf16.mxu0 0
      %2129 = vmatpush1.bf16.msra.mxu0 0
      %2130 = vmatprep.subr.bf16.mxu0 0
      %2131 = vmatpush1.bf16.msra.mxu0 0
      %2132 = vmatprep.subr.bf16.mxu0 0
      %2133 = vmatpush1.bf16.msra.mxu0 0
      %2134 = vmatprep.subr.bf16.mxu0 0
      %2135 = vmatpush1.bf16.msra.mxu0 0
      %2136 = vmatprep.mubr.bf16.mxu0 0
      %2137 = vmatmul.mubr.bf16.gmra.mrb[0].mxu0 %v1623
      %v2138 = vpop.f32.mrb[0].mxu0
      %v2139 = vadd.f32 %v1930, %v2138
      %v2140 = vpop.f32.mrb[0].mxu0
      %v2141 = vpop.f32.mrb[0].mxu0
      %v2142 = vadd.f32 %v1933, %v2141
      %v2143 = vpop.f32.mrb[0].mxu0
      %2144 = vmatprep.mubr.bf16.mxu0 0
      %2145 = vmatmul.mubr.bf16.gmra.mrb[0].mxu0 %v1624
      %v2146 = vpop.f32.mrb[0].mxu0
      %v2147 = vadd.f32 %v1938, %v2146
      %v2148 = vpop.f32.mrb[0].mxu0
      %v2149 = vpop.f32.mrb[0].mxu0
      %v2150 = vadd.f32 %v1941, %v2149
      %v2151 = vpop.f32.mrb[0].mxu0
      %2152 = vmatprep.mubr.bf16.mxu0 0
      %2153 = vmatmul.mubr.bf16.gmra.mrb[0].mxu0 %v1625
      %v2154 = vpop.f32.mrb[0].mxu0
      %v2155 = vadd.f32 %v1946, %v2154
      %v2156 = vpop.f32.mrb[0].mxu0
      %v2157 = vpop.f32.mrb[0].mxu0
      %v2158 = vadd.f32 %v1949, %v2157
      %v2159 = vpop.f32.mrb[0].mxu0
      %2160 = vmatprep.mubr.bf16.mxu0 0
      %2161 = vmatmul.mubr.bf16.gmra.mrb[0].mxu0 %v1626
      %v2162 = vpop.f32.mrb[0].mxu0
      %v2163 = vadd.f32 %v1954, %v2162
      %v2164 = vpop.f32.mrb[0].mxu0
      %v2165 = vpop.f32.mrb[0].mxu0
      %v2166 = vadd.f32 %v1957, %v2165
      %v2167 = vpop.f32.mrb[0].mxu0
      %2168 = vmatprep.mubr.bf16.mxu0 0
      %2169 = vmatmul.mubr.bf16.gmra.mrb[0].mxu0 %v1627
      %v2170 = vpop.f32.mrb[0].mxu0
      %v2171 = vadd.f32 %v1962, %v2170
      %v2172 = vpop.f32.mrb[0].mxu0
      %v2173 = vpop.f32.mrb[0].mxu0
      %v2174 = vadd.f32 %v1965, %v2173
      %v2175 = vpop.f32.mrb[0].mxu0
      %2176 = vmatprep.mubr.bf16.mxu0 0
      %2177 = vmatmul.mubr.bf16.gmra.mrb[0].mxu0 %v1628
      %v2178 = vpop.f32.mrb[0].mxu0
      %v2179 = vadd.f32 %v1970, %v2178
      %v2180 = vpop.f32.mrb[0].mxu0
      %v2181 = vpop.f32.mrb[0].mxu0
      %v2182 = vadd.f32 %v1973, %v2181
      %v2183 = vpop.f32.mrb[0].mxu0
      %2184 = vmatprep.mubr.bf16.mxu0 0
      %2185 = vmatmul.mubr.bf16.gmra.mrb[0].mxu0 %v1629
      %v2186 = vpop.f32.mrb[0].mxu0
      %v2187 = vadd.f32 %v1978, %v2186
      %v2188 = vpop.f32.mrb[0].mxu0
      %v2189 = vpop.f32.mrb[0].mxu0
      %v2190 = vadd.f32 %v1981, %v2189
      %v2191 = vpop.f32.mrb[0].mxu0
      %2192 = vmatprep.mubr.bf16.mxu0 0
      %2193 = vmatmul.mubr.bf16.gmra.mrb[0].mxu0 %v1630
      %v2194 = vpop.f32.mrb[0].mxu0
      %v2195 = vadd.f32 %v1986, %v2194
      %v2196 = vpop.f32.mrb[0].mxu0
      %v2197 = vpop.f32.mrb[0].mxu0
      %v2198 = vadd.f32 %v1989, %v2197
      %v2199 = vpop.f32.mrb[0].mxu0
      %2200 = vmatprep.mubr.bf16.mxu0 0
      %2201 = vmatmul.mubr.bf16.gmra.mrb[0].mxu0 %v1631
      %v2202 = vpop.f32.mrb[0].mxu0
      %v2203 = vadd.f32 %v1994, %v2202
      %v2204 = vpop.f32.mrb[0].mxu0
      %v2205 = vpop.f32.mrb[0].mxu0
      %v2206 = vadd.f32 %v1997, %v2205
      %v2207 = vpop.f32.mrb[0].mxu0
      %2208 = vmatprep.mubr.bf16.mxu0 0
      %2209 = vmatmul.mubr.bf16.gmra.mrb[0].mxu0 %v1632
      %v2210 = vpop.f32.mrb[0].mxu0
      %v2211 = vadd.f32 %v2002, %v2210
      %v2212 = vpop.f32.mrb[0].mxu0
      %v2213 = vpop.f32.mrb[0].mxu0
      %v2214 = vadd.f32 %v2005, %v2213
      %v2215 = vpop.f32.mrb[0].mxu0
      %2216 = vmatprep.mubr.bf16.mxu0 0
      %2217 = vmatmul.mubr.bf16.gmra.mrb[0].mxu0 %v1633
      %v2218 = vpop.f32.mrb[0].mxu0
      %v2219 = vadd.f32 %v2010, %v2218
      %v2220 = vpop.f32.mrb[0].mxu0
      %v2221 = vpop.f32.mrb[0].mxu0
      %v2222 = vadd.f32 %v2013, %v2221
      %v2223 = vpop.f32.mrb[0].mxu0
      %2224 = vmatprep.mubr.bf16.mxu0 0
      %2225 = vmatmul.mubr.bf16.gmra.mrb[0].mxu0 %v1634
      %v2226 = vpop.f32.mrb[0].mxu0
      %v2227 = vadd.f32 %v2018, %v2226
      %v2228 = vpop.f32.mrb[0].mxu0
      %v2229 = vpop.f32.mrb[0].mxu0
      %v2230 = vadd.f32 %v2021, %v2229
      %v2231 = vpop.f32.mrb[0].mxu0
      %2232 = vmatprep.mubr.bf16.mxu0 0
      %2233 = vmatmul.mubr.bf16.gmra.mrb[0].mxu0 %v1635
      %v2234 = vpop.f32.mrb[0].mxu0
      %v2235 = vadd.f32 %v2026, %v2234
      %v2236 = vpop.f32.mrb[0].mxu0
      %v2237 = vpop.f32.mrb[0].mxu0
      %v2238 = vadd.f32 %v2029, %v2237
      %v2239 = vpop.f32.mrb[0].mxu0
      %2240 = vmatprep.mubr.bf16.mxu0 0
      %2241 = vmatmul.mubr.bf16.gmra.mrb[0].mxu0 %v1636
      %v2242 = vpop.f32.mrb[0].mxu0
      %v2243 = vadd.f32 %v2034, %v2242
      %v2244 = vpop.f32.mrb[0].mxu0
      %v2245 = vpop.f32.mrb[0].mxu0
      %v2246 = vadd.f32 %v2037, %v2245
      %v2247 = vpop.f32.mrb[0].mxu0
      %2248 = vmatprep.mubr.bf16.mxu0 0
      %2249 = vmatmul.mubr.bf16.gmra.mrb[0].mxu0 %v1637
      %v2250 = vpop.f32.mrb[0].mxu0
      %v2251 = vadd.f32 %v2042, %v2250
      %v2252 = vpop.f32.mrb[0].mxu0
      %v2253 = vpop.f32.mrb[0].mxu0
      %v2254 = vadd.f32 %v2045, %v2253
      %v2255 = vpop.f32.mrb[0].mxu0
      %2256 = vmatprep.mubr.bf16.mxu0 0
      %2257 = vmatmul.mubr.bf16.gmra.mrb[0].mxu0 %v1638
      %v2258 = vpop.f32.mrb[0].mxu0
      %v2259 = vadd.f32 %v2050, %v2258
      %v2260 = vpop.f32.mrb[0].mxu0
      %v2261 = vpop.f32.mrb[0].mxu0
      %v2262 = vadd.f32 %v2053, %v2261
      %v2263 = vpop.f32.mrb[0].mxu0
      %2264 = vdwg.mxu0
      %v2265 = vld [vmem:[%s3] sm:$0x1]
      %v2267 = vlaneseq
      %v2268 = vshrl.u32 %v2267, 7
      %v2269 = vsub.s32 0, %v2268
      %v2270 = vrot.slane %v2265, %v2269
      %v2272 = vadd.f32 %v2139, %v2270
      %v2273 = vadd.f32 %v2142, %v2270
      %v2274 = vadd.f32 %v2147, %v2270
      %v2275 = vadd.f32 %v2150, %v2270
      %v2276 = vadd.f32 %v2155, %v2270
      %v2277 = vadd.f32 %v2158, %v2270
      %v2278 = vadd.f32 %v2163, %v2270
      %v2279 = vadd.f32 %v2166, %v2270
      %v2280 = vadd.f32 %v2171, %v2270
      %v2281 = vadd.f32 %v2174, %v2270
      %v2282 = vadd.f32 %v2179, %v2270
      %v2283 = vadd.f32 %v2182, %v2270
      %v2284 = vadd.f32 %v2187, %v2270
      %v2285 = vadd.f32 %v2190, %v2270
      %v2286 = vadd.f32 %v2195, %v2270
      %v2287 = vadd.f32 %v2198, %v2270
      %v2288 = vadd.f32 %v2203, %v2270
      %v2289 = vadd.f32 %v2206, %v2270
      %v2290 = vadd.f32 %v2211, %v2270
      %v2291 = vadd.f32 %v2214, %v2270
      %v2292 = vadd.f32 %v2219, %v2270
      %v2293 = vadd.f32 %v2222, %v2270
      %v2294 = vadd.f32 %v2227, %v2270
      %v2295 = vadd.f32 %v2230, %v2270
      %v2296 = vadd.f32 %v2235, %v2270
      %v2297 = vadd.f32 %v2238, %v2270
      %v2298 = vadd.f32 %v2243, %v2270
      %v2299 = vadd.f32 %v2246, %v2270
      %v2300 = vadd.f32 %v2251, %v2270
      %v2301 = vadd.f32 %v2254, %v2270
      %v2302 = vadd.f32 %v2259, %v2270
      %v2303 = vadd.f32 %v2262, %v2270
      %2304 = vst [vmem:[%s258] sm:$0xff] %v2272
      %2305 = vst [vmem:[%s258 + $0x8] sm:$0xff] %v2273
      %2306 = vst [vmem:[%s258 + $0x10] sm:$0xff] %v2274
      %2307 = vst [vmem:[%s258 + $0x18] sm:$0xff] %v2275
      %2308 = vst [vmem:[%s258 + $0x20] sm:$0xff] %v2276
      %2309 = vst [vmem:[%s258 + $0x28] sm:$0xff] %v2277
      %2310 = vst [vmem:[%s258 + $0x30] sm:$0xff] %v2278
      %2311 = vst [vmem:[%s258 + $0x38] sm:$0xff] %v2279
      %2312 = vst [vmem:[%s258 + $0x40] sm:$0xff] %v2280
      %2313 = vst [vmem:[%s258 + $0x48] sm:$0xff] %v2281
      %2314 = vst [vmem:[%s258 + $0x50] sm:$0xff] %v2282
      %2315 = vst [vmem:[%s258 + $0x58] sm:$0xff] %v2283
      %2316 = vst [vmem:[%s258 + $0x60] sm:$0xff] %v2284
      %2317 = vst [vmem:[%s258 + $0x68] sm:$0xff] %v2285
      %2318 = vst [vmem:[%s258 + $0x70] sm:$0xff] %v2286
      %2319 = vst [vmem:[%s258 + $0x78] sm:$0xff] %v2287
      %2320 = vst [vmem:[%s258 + $0x80] sm:$0xff] %v2288
      %2321 = vst [vmem:[%s258 + $0x88] sm:$0xff] %v2289
      %2322 = vst [vmem:[%s258 + $0x90] sm:$0xff] %v2290
      %2323 = vst [vmem:[%s258 + $0x98] sm:$0xff] %v2291
      %2324 = vst [vmem:[%s258 + $0xa0] sm:$0xff] %v2292
      %2325 = vst [vmem:[%s258 + $0xa8] sm:$0xff] %v2293
      %2326 = vst [vmem:[%s258 + $0xb0] sm:$0xff] %v2294
      %2327 = vst [vmem:[%s258 + $0xb8] sm:$0xff] %v2295
      %2328 = vst [vmem:[%s258 + $0xc0] sm:$0xff] %v2296
      %2329 = vst [vmem:[%s258 + $0xc8] sm:$0xff] %v2297
      %2330 = vst [vmem:[%s258 + $0xd0] sm:$0xff] %v2298
      %2331 = vst [vmem:[%s258 + $0xd8] sm:$0xff] %v2299
      %2332 = vst [vmem:[%s258 + $0xe0] sm:$0xff] %v2300
      %2333 = vst [vmem:[%s258 + $0xe8] sm:$0xff] %v2301
      %2334 = vst [vmem:[%s258 + $0xf0] sm:$0xff] %v2302
      %2335 = vst [vmem:[%s258 + $0xf8] sm:$0xff] %v2303
      %v2336 = vadd.f32 %v2272, %v2273
      %v2337 = vadd.f32 %v2336, %v2274
      %v2338 = vadd.f32 %v2337, %v2275
      %v2339 = vadd.f32 %v2338, %v2276
      %v2340 = vadd.f32 %v2339, %v2277
      %v2341 = vadd.f32 %v2340, %v2278
      %v2342 = vadd.f32 %v2341, %v2279
      %v2343 = vadd.f32 %v2342, %v2280
      %v2344 = vadd.f32 %v2343, %v2281
      %v2345 = vadd.f32 %v2344, %v2282
      %v2346 = vadd.f32 %v2345, %v2283
      %v2347 = vadd.f32 %v2346, %v2284
      %v2348 = vadd.f32 %v2347, %v2285
      %v2349 = vadd.f32 %v2348, %v2286
      %v2350 = vadd.f32 %v2349, %v2287
      %v2351 = vadd.f32 %v2350, %v2288
      %v2352 = vadd.f32 %v2351, %v2289
      %v2353 = vadd.f32 %v2352, %v2290
      %v2354 = vadd.f32 %v2353, %v2291
      %v2355 = vadd.f32 %v2354, %v2292
      %v2356 = vadd.f32 %v2355, %v2293
      %v2357 = vadd.f32 %v2356, %v2294
      %v2358 = vadd.f32 %v2357, %v2295
      %v2359 = vadd.f32 %v2358, %v2296
      %v2360 = vadd.f32 %v2359, %v2297
      %v2361 = vadd.f32 %v2360, %v2298
      %v2362 = vadd.f32 %v2361, %v2299
      %v2363 = vadd.f32 %v2362, %v2300
      %v2364 = vadd.f32 %v2363, %v2301
      %v2365 = vadd.f32 %v2364, %v2302
      %v2366 = vadd.f32 %v2365, %v2303
      %v2367 = vrot.slane %v2366, 4
      %v2368 = vadd.f32 %v2366, %v2367
      %v2369 = vrot.slane %v2368, 2
      %v2370 = vadd.f32 %v2368, %v2369
      %v2371 = vrot.slane %v2370, 1
      %v2372 = vadd.f32 %v2370, %v2371
      %2373 = vst [vmem:[%s266] sm:$0x1] %v2372
      %v2374 = vmul.f32 %v2272, %v2272
      %v2375 = vmul.f32 %v2273, %v2273
      %v2376 = vmul.f32 %v2274, %v2274
      %v2377 = vmul.f32 %v2275, %v2275
      %v2378 = vmul.f32 %v2276, %v2276
      %v2379 = vmul.f32 %v2277, %v2277
      %v2380 = vmul.f32 %v2278, %v2278
      %v2381 = vmul.f32 %v2279, %v2279
      %v2382 = vmul.f32 %v2280, %v2280
      %v2383 = vmul.f32 %v2281, %v2281
      %v2384 = vmul.f32 %v2282, %v2282
      %v2385 = vmul.f32 %v2283, %v2283
      %v2386 = vmul.f32 %v2284, %v2284
      %v2387 = vmul.f32 %v2285, %v2285
      %v2388 = vmul.f32 %v2286, %v2286
      %v2389 = vmul.f32 %v2287, %v2287
      %v2390 = vmul.f32 %v2288, %v2288
      %v2391 = vmul.f32 %v2289, %v2289
      %v2392 = vmul.f32 %v2290, %v2290
      %v2393 = vmul.f32 %v2291, %v2291
      %v2394 = vmul.f32 %v2292, %v2292
      %v2395 = vmul.f32 %v2293, %v2293
      %v2396 = vmul.f32 %v2294, %v2294
      %v2397 = vmul.f32 %v2295, %v2295
      %v2398 = vmul.f32 %v2296, %v2296
      %v2399 = vmul.f32 %v2297, %v2297
      %v2400 = vmul.f32 %v2298, %v2298
      %v2401 = vmul.f32 %v2299, %v2299
      %v2402 = vmul.f32 %v2300, %v2300
      %v2403 = vmul.f32 %v2301, %v2301
      %v2404 = vmul.f32 %v2302, %v2302
      %v2405 = vmul.f32 %v2303, %v2303
      %v2406 = vadd.f32 %v2374, %v2375
      %v2407 = vadd.f32 %v2406, %v2376
      %v2408 = vadd.f32 %v2407, %v2377
      %v2409 = vadd.f32 %v2408, %v2378
      %v2410 = vadd.f32 %v2409, %v2379
      %v2411 = vadd.f32 %v2410, %v2380
      %v2412 = vadd.f32 %v2411, %v2381
      %v2413 = vadd.f32 %v2412, %v2382
      %v2414 = vadd.f32 %v2413, %v2383
      %v2415 = vadd.f32 %v2414, %v2384
      %v2416 = vadd.f32 %v2415, %v2385
      %v2417 = vadd.f32 %v2416, %v2386
      %v2418 = vadd.f32 %v2417, %v2387
      %v2419 = vadd.f32 %v2418, %v2388
      %v2420 = vadd.f32 %v2419, %v2389
      %v2421 = vadd.f32 %v2420, %v2390
      %v2422 = vadd.f32 %v2421, %v2391
      %v2423 = vadd.f32 %v2422, %v2392
      %v2424 = vadd.f32 %v2423, %v2393
      %v2425 = vadd.f32 %v2424, %v2394
      %v2426 = vadd.f32 %v2425, %v2395
      %v2427 = vadd.f32 %v2426, %v2396
      %v2428 = vadd.f32 %v2427, %v2397
      %v2429 = vadd.f32 %v2428, %v2398
      %v2430 = vadd.f32 %v2429, %v2399
      %v2431 = vadd.f32 %v2430, %v2400
      %v2432 = vadd.f32 %v2431, %v2401
      %v2433 = vadd.f32 %v2432, %v2402
      %v2434 = vadd.f32 %v2433, %v2403
      %v2435 = vadd.f32 %v2434, %v2404
      %v2436 = vadd.f32 %v2435, %v2405
      %v2437 = vrot.slane %v2436, 4
      %v2438 = vadd.f32 %v2436, %v2437
      %v2439 = vrot.slane %v2438, 2
      %v2440 = vadd.f32 %v2438, %v2439
      %v2441 = vrot.slane %v2440, 1
      %v2442 = vadd.f32 %v2440, %v2441
      %2443 = vst [vmem:[%s266 + $0x1] sm:$0x1] %v2442
      %s2444 = smul.u32 32, %s22
      %p2445 = scmp.lt.s32.totalorder %s21, 1
      %s2446 = scalar_select %p2445, %s21, 1
      %p2447 = scmp.lt.s32.totalorder %s2444, 31
      %s2448 = scalar_select %p2447, %s2444, 31
      %s2449 = smul.addr %s2446, 32
      %s2450 = sadd.s32 %s2448, %s2449
      %s2451 = smul.addr %s2450, 8
      %s2452 = scalar_lea.vmem %s4, %s2451
      %p2453 = scmp.lt.s32.totalorder %s21, 1
      %s2454 = scalar_select %p2453, %s21, 1
      %p2455 = scmp.lt.s32.totalorder %s22, 0
      %s2456 = scalar_select %p2455, %s22, 0
      %s2457 = sadd.s32 %s2456, %s2454
      %s2458 = smul.addr %s2457, 2
      %s2459 = scalar_lea.vmem %s5, %s2458
      // Predicated region
      $region37: #{inception_v3a_forward.10} parent=35 // pred_check
        %p2460 = pneg %p138
      $region38: #{inception_v3a_forward.10} parent=35 // pred_check_branch
        %2462 = sbr.rel (%p2460) target = $region40
      $region39: #{inception_v3a_forward.10} parent=35 // pred_region
        %s2463 = smul.u32 32, %s22
      $region40: #{inception_v3a_forward.10} parent=35 // pred_fallthru
        _
      // Predicated region
      $region41: #{inception_v3a_forward.10} parent=35 // pred_check
        %p2464 = pneg %p166
      $region42: #{inception_v3a_forward.10} parent=35 // pred_check_branch
        %2466 = sbr.rel (%p2464) target = $region44
      $region43: #{inception_v3a_forward.10} parent=35 // pred_region
        _
      $region44: #{inception_v3a_forward.10} parent=35 // pred_fallthru
        _
    $region36: #{inception_v3a_forward.10} parent=5 // pred_fallthru
      _
    %p2467 = scmp.le.s32.totalorder 2, %s12
    // Predicated region
    $region45: #{inception_v3a_forward.10} parent=5 // pred_check
      %p2468 = pneg %p2467
    $region46: #{inception_v3a_forward.10} parent=5 // pred_check_branch
      %2470 = sbr.rel (%p2468) target = $region48
    $region47: #{inception_v3a_forward.10} parent=5 // pred_region
      %s2471 = ssub.s32 %s12, 2
      // Predicated region
      $region49: #{inception_v3a_forward.10} parent=47 // pred_check
        %p2472 = pneg %p144
      $region50: #{inception_v3a_forward.10} parent=47 // pred_check_branch
        %2474 = sbr.rel (%p2472) target = $region52
      $region51: #{inception_v3a_forward.10} parent=47 // pred_region
        %s2475 = smul.u32 32, %s24
        %p2476 = scmp.lt.s32.totalorder %s23, 1
        %s2477 = scalar_select %p2476, %s23, 1
        %p2478 = scmp.lt.s32.totalorder %s2475, 31
        %s2479 = scalar_select %p2478, %s2475, 31
        %s2480 = smul.addr %s2477, 32
        %s2481 = sadd.s32 %s2479, %s2480
        %s2482 = smul.addr %s2481, 8
        %s2483 = scalar_lea.vmem %s4, %s2482
      $region52: #{inception_v3a_forward.10} parent=47 // pred_fallthru
        _
      // Predicated region
      $region53: #{inception_v3a_forward.10} parent=47 // pred_check
        %p2484 = pneg %p172
      $region54: #{inception_v3a_forward.10} parent=47 // pred_check_branch
        %2486 = sbr.rel (%p2484) target = $region56
      $region55: #{inception_v3a_forward.10} parent=47 // pred_region
        %p2487 = scmp.lt.s32.totalorder %s23, 1
        %s2488 = scalar_select %p2487, %s23, 1
        %p2489 = scmp.lt.s32.totalorder %s24, 0
        %s2490 = scalar_select %p2489, %s24, 0
        %s2491 = sadd.s32 %s2490, %s2488
        %s2492 = smul.addr %s2491, 2
        %s2493 = scalar_lea.vmem %s5, %s2492
      $region56: #{inception_v3a_forward.10} parent=47 // pred_fallthru
        _
    $region48: #{inception_v3a_forward.10} parent=5 // pred_fallthru
      _
  $region6: #{inception_v3a_forward.10} parent=0 // loop_footer
    %s16 = sadd.s32 1, %s12
  $region7: #{inception_v3a_forward.10} parent=0 // loop_footer_branch
    %11 = sbr.rel target = $region3
  $region8: #{inception_v3a_forward.10} parent=0 // loop_exit
    _

// kernel: inception_v3a_forward.18
$region0: #{inception_v3a_forward.18}
  #allocation0 [shape = 'u32[]', space=smem, size = 0x4, offset = 0x4, fixed_abs, tag = 'smem constant byte address 0x4 - core index']
  #allocation1 [shape = 'u32[144,128]{1,0:T(1,128)}', space=vmem, size = 0x12000, scoped, tag = 'internal scratch']
  %s0 = inlined_call_operand.vmem [shape: f32[8,128], index: 0, kind: input, shape index: {}]
  %s1 = inlined_call_operand.vmem [shape: f32[128,128], index: 1, kind: input, shape index: {}]
  %s2 = inlined_call_operand.vmem [shape: f32[128,128], index: 2, kind: input, shape index: {}]
  %s3 = inlined_call_operand.vmem [shape: f32[8,128], index: 3, kind: output, shape index: {}]
  %s4 = sld [smem:[#allocation0]]
  $region22: #{inception_v3a_forward.18} parent=0
    _
  %s6 = ssub.s32 1, %s4
  %s7 = scalar_select 0, %s6, %s4
  // Predicated region
  $region2: #{inception_v3a_forward.18} parent=0 // pred_check
    _
  $region3: #{inception_v3a_forward.18} parent=0 // pred_check_branch
    %9 = sbr.rel (0) target = $region5
  $region4: #{inception_v3a_forward.18} parent=0 // pred_region
    _
  $region5: #{inception_v3a_forward.18} parent=0 // pred_fallthru
    _
  // Predicated region
  $region6: #{inception_v3a_forward.18} parent=0 // pred_check
    _
  $region7: #{inception_v3a_forward.18} parent=0 // pred_check_branch
    %11 = sbr.rel (0) target = $region9
  $region8: #{inception_v3a_forward.18} parent=0 // pred_region
    _
  $region9: #{inception_v3a_forward.18} parent=0 // pred_fallthru
    _
  // Predicated region
  $region10: #{inception_v3a_forward.18} parent=0 // pred_check
    _
  $region11: #{inception_v3a_forward.18} parent=0 // pred_check_branch
    %13 = sbr.rel (0) target = $region13
  $region12: #{inception_v3a_forward.18} parent=0 // pred_region
    _
  $region13: #{inception_v3a_forward.18} parent=0 // pred_fallthru
    _
  %v14 = vld [vmem:[%s0] sm:$0xff]
  %v15 = vld [vmem:[%s1] sm:$0xff]
  %v16 = vld [vmem:[%s1 + $0x8] sm:$0xff]
  %v17 = vld [vmem:[%s1 + $0x10] sm:$0xff]
  %v18 = vld [vmem:[%s1 + $0x18] sm:$0xff]
  %v19 = vld [vmem:[%s1 + $0x20] sm:$0xff]
  %v20 = vld [vmem:[%s1 + $0x28] sm:$0xff]
  %v21 = vld [vmem:[%s1 + $0x30] sm:$0xff]
  %v22 = vld [vmem:[%s1 + $0x38] sm:$0xff]
  %v23 = vld [vmem:[%s1 + $0x40] sm:$0xff]
  %v24 = vld [vmem:[%s1 + $0x48] sm:$0xff]
  %v25 = vld [vmem:[%s1 + $0x50] sm:$0xff]
  %v26 = vld [vmem:[%s1 + $0x58] sm:$0xff]
  %v27 = vld [vmem:[%s1 + $0x60] sm:$0xff]
  %v28 = vld [vmem:[%s1 + $0x68] sm:$0xff]
  %v29 = vld [vmem:[%s1 + $0x70] sm:$0xff]
  %v30 = vld [vmem:[%s1 + $0x78] sm:$0xff]
  %31 = vmatprep.subr.mxu0 0.0
  %32 = vmatpush1.msra.mxu0 %v15
  %33 = vmatprep.subr.mxu0 0.0
  %34 = vmatpush1.msra.mxu0 %v16
  %35 = vmatprep.subr.mxu0 0.0
  %36 = vmatpush1.msra.mxu0 %v17
  %37 = vmatprep.subr.mxu0 0.0
  %38 = vmatpush1.msra.mxu0 %v18
  %39 = vmatprep.subr.mxu0 0.0
  %40 = vmatpush1.msra.mxu0 %v19
  %41 = vmatprep.subr.mxu0 0.0
  %42 = vmatpush1.msra.mxu0 %v20
  %43 = vmatprep.subr.mxu0 0.0
  %44 = vmatpush1.msra.mxu0 %v21
  %45 = vmatprep.subr.mxu0 0.0
  %46 = vmatpush1.msra.mxu0 %v22
  %47 = vmatprep.subr.mxu0 0.0
  %48 = vmatpush1.msra.mxu0 %v23
  %49 = vmatprep.subr.mxu0 0.0
  %50 = vmatpush1.msra.mxu0 %v24
  %51 = vmatprep.subr.mxu0 0.0
  %52 = vmatpush1.msra.mxu0 %v25
  %53 = vmatprep.subr.mxu0 0.0
  %54 = vmatpush1.msra.mxu0 %v26
  %55 = vmatprep.subr.mxu0 0.0
  %56 = vmatpush1.msra.mxu0 %v27
  %57 = vmatprep.subr.mxu0 0.0
  %58 = vmatpush1.msra.mxu0 %v28
  %59 = vmatprep.subr.mxu0 0.0
  %60 = vmatpush1.msra.mxu0 %v29
  %61 = vmatprep.subr.mxu0 0.0
  %62 = vmatpush1.msra.mxu0 %v30
  %63 = vmatprep.subr.mxu0 0.0
  %64 = vmatpush1.msra.mxu0 0.0
  %65 = vmatprep.subr.mxu0 0.0
  %66 = vmatpush1.msra.mxu0 0.0
  %67 = vmatprep.subr.mxu0 0.0
  %68 = vmatpush1.msra.mxu0 0.0
  %69 = vmatprep.subr.mxu0 0.0
  %70 = vmatpush1.msra.mxu0 0.0
  %71 = vmatprep.subr.mxu0 0.0
  %72 = vmatpush1.msra.mxu0 0.0
  %73 = vmatprep.subr.mxu0 0.0
  %74 = vmatpush1.msra.mxu0 0.0
  %75 = vmatprep.subr.mxu0 0.0
  %76 = vmatpush1.msra.mxu0 0.0
  %77 = vmatprep.subr.mxu0 0.0
  %78 = vmatpush1.msra.mxu0 0.0
  %79 = vmatprep.subr.mxu0 0.0
  %80 = vmatpush1.msra.mxu0 0.0
  %81 = vmatprep.subr.mxu0 0.0
  %82 = vmatpush1.msra.mxu0 0.0
  %83 = vmatprep.subr.mxu0 0.0
  %84 = vmatpush1.msra.mxu0 0.0
  %85 = vmatprep.subr.mxu0 0.0
  %86 = vmatpush1.msra.mxu0 0.0
  %87 = vmatprep.subr.mxu0 0.0
  %88 = vmatpush1.msra.mxu0 0.0
  %89 = vmatprep.subr.mxu0 0.0
  %90 = vmatpush1.msra.mxu0 0.0
  %91 = vmatprep.subr.mxu0 0.0
  %92 = vmatpush1.msra.mxu0 0.0
  %93 = vmatprep.subr.mxu0 0.0
  %94 = vmatpush1.msra.mxu0 0.0
  %95 = vmatprep.mubr.f32.mxu0 0.0
  %96 = vmatmul.mubr.f32.gmra.mrb[0].mxu0 %v14
  %v97 = vpop.f32.mrb[0].mxu0
  %v98 = vadd.f32 0.0, %v97
  %v99 = vpop.f32.mrb[0].mxu0
  %100 = vdwg.mxu0
  %v101 = vmax.f32 %v98, 0.0
  %v102 = vld [vmem:[%s2] sm:$0xff]
  %v103 = vld [vmem:[%s2 + $0x8] sm:$0xff]
  %v104 = vld [vmem:[%s2 + $0x10] sm:$0xff]
  %v105 = vld [vmem:[%s2 + $0x18] sm:$0xff]
  %v106 = vld [vmem:[%s2 + $0x20] sm:$0xff]
  %v107 = vld [vmem:[%s2 + $0x28] sm:$0xff]
  %v108 = vld [vmem:[%s2 + $0x30] sm:$0xff]
  %v109 = vld [vmem:[%s2 + $0x38] sm:$0xff]
  %v110 = vld [vmem:[%s2 + $0x40] sm:$0xff]
  %v111 = vld [vmem:[%s2 + $0x48] sm:$0xff]
  %v112 = vld [vmem:[%s2 + $0x50] sm:$0xff]
  %v113 = vld [vmem:[%s2 + $0x58] sm:$0xff]
  %v114 = vld [vmem:[%s2 + $0x60] sm:$0xff]
  %v115 = vld [vmem:[%s2 + $0x68] sm:$0xff]
  %v116 = vld [vmem:[%s2 + $0x70] sm:$0xff]
  %v117 = vld [vmem:[%s2 + $0x78] sm:$0xff]
  %118 = vmatprep.subr.mxu0 0.0
  %119 = vmatpush1.msra.mxu0 %v102
  %120 = vmatprep.subr.mxu0 0.0
  %121 = vmatpush1.msra.mxu0 %v103
  %122 = vmatprep.subr.mxu0 0.0
  %123 = vmatpush1.msra.mxu0 %v104
  %124 = vmatprep.subr.mxu0 0.0
  %125 = vmatpush1.msra.mxu0 %v105
  %126 = vmatprep.subr.mxu0 0.0
  %127 = vmatpush1.msra.mxu0 %v106
  %128 = vmatprep.subr.mxu0 0.0
  %129 = vmatpush1.msra.mxu0 %v107
  %130 = vmatprep.subr.mxu0 0.0
  %131 = vmatpush1.msra.mxu0 %v108
  %132 = vmatprep.subr.mxu0 0.0
  %133 = vmatpush1.msra.mxu0 %v109
  %134 = vmatprep.subr.mxu0 0.0
  %135 = vmatpush1.msra.mxu0 %v110
  %136 = vmatprep.subr.mxu0 0.0
  %137 = vmatpush1.msra.mxu0 %v111
  %138 = vmatprep.subr.mxu0 0.0
  %139 = vmatpush1.msra.mxu0 %v112
  %140 = vmatprep.subr.mxu0 0.0
  %141 = vmatpush1.msra.mxu0 %v113
  %142 = vmatprep.subr.mxu0 0.0
  %143 = vmatpush1.msra.mxu0 %v114
  %144 = vmatprep.subr.mxu0 0.0
  %145 = vmatpush1.msra.mxu0 %v115
  %146 = vmatprep.subr.mxu0 0.0
  %147 = vmatpush1.msra.mxu0 %v116
  %148 = vmatprep.subr.mxu0 0.0
  %149 = vmatpush1.msra.mxu0 %v117
  %150 = vmatprep.subr.mxu0 0.0
  %151 = vmatpush1.msra.mxu0 0.0
  %152 = vmatprep.subr.mxu0 0.0
  %153 = vmatpush1.msra.mxu0 0.0
  %154 = vmatprep.subr.mxu0 0.0
  %155 = vmatpush1.msra.mxu0 0.0
  %156 = vmatprep.subr.mxu0 0.0
  %157 = vmatpush1.msra.mxu0 0.0
  %158 = vmatprep.subr.mxu0 0.0
  %159 = vmatpush1.msra.mxu0 0.0
  %160 = vmatprep.subr.mxu0 0.0
  %161 = vmatpush1.msra.mxu0 0.0
  %162 = vmatprep.subr.mxu0 0.0
  %163 = vmatpush1.msra.mxu0 0.0
  %164 = vmatprep.subr.mxu0 0.0
  %165 = vmatpush1.msra.mxu0 0.0
  %166 = vmatprep.subr.mxu0 0.0
  %167 = vmatpush1.msra.mxu0 0.0
  %168 = vmatprep.subr.mxu0 0.0
  %169 = vmatpush1.msra.mxu0 0.0
  %170 = vmatprep.subr.mxu0 0.0
  %171 = vmatpush1.msra.mxu0 0.0
  %172 = vmatprep.subr.mxu0 0.0
  %173 = vmatpush1.msra.mxu0 0.0
  %174 = vmatprep.subr.mxu0 0.0
  %175 = vmatpush1.msra.mxu0 0.0
  %176 = vmatprep.subr.mxu0 0.0
  %177 = vmatpush1.msra.mxu0 0.0
  %178 = vmatprep.subr.mxu0 0.0
  %179 = vmatpush1.msra.mxu0 0.0
  %180 = vmatprep.subr.mxu0 0.0
  %181 = vmatpush1.msra.mxu0 0.0
  %182 = vmatprep.mubr.f32.mxu0 0.0
  %183 = vmatmul.mubr.f32.gmra.mrb[0].mxu0 %v101
  %v184 = vpop.f32.mrb[0].mxu0
  %v185 = vadd.f32 0.0, %v184
  %v186 = vpop.f32.mrb[0].mxu0
  %187 = vdwg.mxu0
  %v188 = vxor.u32 %v185, 2147483648
  %v189 = vmul.f32 %v188, 1.442695
  %v190 = vpow.pop %v189
  %v191 = vadd.f32 %v190, 1.0
  %v192 = vrcp.pop %v191
  %v193 = vmul.f32 1.0, %v192
  %194 = vst [vmem:[%s3] sm:$0xff] %v193
  // Predicated region
  $region14: #{inception_v3a_forward.18} parent=0 // pred_check
    _
  $region15: #{inception_v3a_forward.18} parent=0 // pred_check_branch
    %196 = sbr.rel (0) target = $region17
  $region16: #{inception_v3a_forward.18} parent=0 // pred_region
    _
  $region17: #{inception_v3a_forward.18} parent=0 // pred_fallthru
    _
  // Predicated region
  $region18: #{inception_v3a_forward.18} parent=0 // pred_check
    _
  $region19: #{inception_v3a_forward.18} parent=0 // pred_check_branch
    %198 = sbr.rel (0) target = $region21
  $region20: #{inception_v3a_forward.18} parent=0 // pred_region
    _
  $region21: #{inception_v3a_forward.18} parent=0 // pred_fallthru
    _

// kernel: inception_v3a_forward.19
$region0: #{inception_v3a_forward.19}
  #allocation0 [shape = 'u32[]', space=smem, size = 0x4, offset = 0x4, fixed_abs, tag = 'smem constant byte address 0x4 - core index']
  #allocation1 [shape = 'u32[144,128]{1,0:T(1,128)}', space=vmem, size = 0x12000, scoped, tag = 'internal scratch']
  %s0 = inlined_call_operand.vmem [shape: f32[2,18,18,128], index: 0, kind: input, shape index: {}]
  %s1 = inlined_call_operand.vmem [shape: f32[2,18,18,128], index: 1, kind: input, shape index: {}]
  %s2 = inlined_call_operand.vmem [shape: f32[2,18,18,128], index: 2, kind: input, shape index: {}]
  %s3 = inlined_call_operand.vmem [shape: f32[1,128], index: 3, kind: input, shape index: {}]
  %s4 = inlined_call_operand.vmem [shape: f32[2,1,128], index: 4, kind: input, shape index: {}]
  %s5 = inlined_call_operand.hbm [shape: f32[2,256,128], index: 5, kind: output, shape index: {}]
  %s6 = sld [smem:[#allocation0]]
  $region53: #{inception_v3a_forward.19} parent=0
    _
  %s8 = ssub.s32 1, %s6
  %s9 = scalar_select 0, %s8, %s6
  $region1: #{inception_v3a_forward.19} parent=0
    #allocation2 [shape = 'u8[262144]{0}', space=vmem, size = 0x40000, scoped, tag = 'output window, operand 0']
    #allocation3 [shape = 's32[2]{0}', space=sflag, size = 0x8, scoped, tag = 'scoped memory for inception_v3a_forward.19']
    %10 = vsyncpa [#allocation3], 0
    %s11 = scalar_lea.sflag [#allocation3], 1
    %12 = vsyncpa %s11, 0
    loop: start=0, step=1, limit=4
    $region2: #{inception_v3a_forward.19} parent=1 // loop_pre_header
      _
    $region3: #{inception_v3a_forward.19} parent=1 // loop_header
      %s14 = sphi 0, %s18
      %p15 = scmp.ge.s32.totalorder %s14, 4
      %s24 = sphi 0, %s26
      %s27 = sphi 0, %s24
      %s28 = sphi 0, %s27
      %s44 = sphi 0, %s28
      %s50 = sphi 0, %s52
      %s53 = sphi 0, %s50
      %s54 = sphi 0, %s53
      %s70 = sphi 0, %s54
      %s76 = sphi 0, %s78
      %s79 = sphi 0, %s76
      %s80 = sphi 0, %s79
      %s96 = sphi 0, %s80
      %s100 = sphi 0, %s100
      %s102 = sphi 0, %s100
      %s103 = sphi 0, %s102
      %s117 = sphi 0, %s103
      %s123 = sphi 0, %s125
      %s126 = sphi 0, %s123
      %s127 = sphi 0, %s126
      %s143 = sphi 0, %s127
      %s149 = sphi 0, %s151
      %s152 = sphi 0, %s149
      %s153 = sphi 0, %s152
      %s169 = sphi 0, %s153
    $region4: #{inception_v3a_forward.19} parent=1 // loop_header_branch
      %17 = sbr.rel (%p15) target = $region8
    $region5: #{inception_v3a_forward.19} parent=1 // loop_body
      %s19 = ssub.s32 %s14, 1
      %s20 = ssub.s32 %s14, 2
      %s21 = sadd.s32 %s14, 1
      %s22 = ssub.s32 %s14, %s21
      %p23 = scmp.eq.s32.totalorder %s22, 0
      %s25 = sadd.s32 %s24, 1
      %s26 = scalar_select %p23, %s24, %s25
      %p29 = pneg %p23
      %p30 = scmp.eq.s32.totalorder %s14, 1
      %p31 = por %p29, %p30
      %p32 = scmp.ne.s32.totalorder %s24, %s27
      %p33 = scmp.eq.s32.totalorder %s14, 0
      %p34 = por %p32, %p33
      %p35 = scmp.ne.s32.totalorder %s24, %s27
      %p36 = scmp.eq.s32.totalorder %s19, 1
      %p37 = por %p35, %p36
      %p38 = scmp.ne.s32.totalorder %s27, %s28
      %p39 = scmp.eq.s32.totalorder %s19, 0
      %p40 = por %p38, %p39
      %p41 = scmp.ne.s32.totalorder %s27, %s28
      %p42 = scmp.eq.s32.totalorder %s20, 1
      %p43 = por %p41, %p42
      %p45 = scmp.ne.s32.totalorder %s28, %s44
      %p46 = scmp.eq.s32.totalorder %s20, 0
      %p47 = por %p45, %p46
      %s48 = ssub.s32 %s14, %s21
      %p49 = scmp.eq.s32.totalorder %s48, 0
      %s51 = sadd.s32 %s50, 1
      %s52 = scalar_select %p49, %s50, %s51
      %p55 = pneg %p49
      %p56 = scmp.eq.s32.totalorder %s14, 1
      %p57 = por %p55, %p56
      %p58 = scmp.ne.s32.totalorder %s50, %s53
      %p59 = scmp.eq.s32.totalorder %s14, 0
      %p60 = por %p58, %p59
      %p61 = scmp.ne.s32.totalorder %s50, %s53
      %p62 = scmp.eq.s32.totalorder %s19, 1
      %p63 = por %p61, %p62
      %p64 = scmp.ne.s32.totalorder %s53, %s54
      %p65 = scmp.eq.s32.totalorder %s19, 0
      %p66 = por %p64, %p65
      %p67 = scmp.ne.s32.totalorder %s53, %s54
      %p68 = scmp.eq.s32.totalorder %s20, 1
      %p69 = por %p67, %p68
      %p71 = scmp.ne.s32.totalorder %s54, %s70
      %p72 = scmp.eq.s32.totalorder %s20, 0
      %p73 = por %p71, %p72
      %s74 = ssub.s32 %s14, %s21
      %p75 = scmp.eq.s32.totalorder %s74, 0
      %s77 = sadd.s32 %s76, 1
      %s78 = scalar_select %p75, %s76, %s77
      %p81 = pneg %p75
      %p82 = scmp.eq.s32.totalorder %s14, 1
      %p83 = por %p81, %p82
      %p84 = scmp.ne.s32.totalorder %s76, %s79
      %p85 = scmp.eq.s32.totalorder %s14, 0
      %p86 = por %p84, %p85
      %p87 = scmp.ne.s32.totalorder %s76, %s79
      %p88 = scmp.eq.s32.totalorder %s19, 1
      %p89 = por %p87, %p88
      %p90 = scmp.ne.s32.totalorder %s79, %s80
      %p91 = scmp.eq.s32.totalorder %s19, 0
      %p92 = por %p90, %p91
      %p93 = scmp.ne.s32.totalorder %s79, %s80
      %p94 = scmp.eq.s32.totalorder %s20, 1
      %p95 = por %p93, %p94
      %p97 = scmp.ne.s32.totalorder %s80, %s96
      %p98 = scmp.eq.s32.totalorder %s20, 0
      %p99 = por %p97, %p98
      %s101 = sadd.s32 %s100, 1
      %p104 = scmp.eq.s32.totalorder %s14, 1
      %p105 = scmp.ne.s32.totalorder %s100, %s102
      %p106 = scmp.eq.s32.totalorder %s14, 0
      %p107 = por %p105, %p106
      %p108 = scmp.ne.s32.totalorder %s100, %s102
      %p109 = scmp.eq.s32.totalorder %s19, 1
      %p110 = por %p108, %p109
      %p111 = scmp.ne.s32.totalorder %s102, %s103
      %p112 = scmp.eq.s32.totalorder %s19, 0
      %p113 = por %p111, %p112
      %p114 = scmp.ne.s32.totalorder %s102, %s103
      %p115 = scmp.eq.s32.totalorder %s20, 1
      %p116 = por %p114, %p115
      %p118 = scmp.ne.s32.totalorder %s103, %s117
      %p119 = scmp.eq.s32.totalorder %s20, 0
      %p120 = por %p118, %p119
      %s121 = ssub.s32 %s14, %s21
      %p122 = scmp.eq.s32.totalorder %s121, 0
      %s124 = sadd.s32 %s123, 1
      %s125 = scalar_select %p122, %s123, %s124
      %p128 = pneg %p122
      %p129 = scmp.eq.s32.totalorder %s14, 1
      %p130 = por %p128, %p129
      %p131 = scmp.ne.s32.totalorder %s123, %s126
      %p132 = scmp.eq.s32.totalorder %s14, 0
      %p133 = por %p131, %p132
      %p134 = scmp.ne.s32.totalorder %s123, %s126
      %p135 = scmp.eq.s32.totalorder %s19, 1
      %p136 = por %p134, %p135
      %p137 = scmp.ne.s32.totalorder %s126, %s127
      %p138 = scmp.eq.s32.totalorder %s19, 0
      %p139 = por %p137, %p138
      %p140 = scmp.ne.s32.totalorder %s126, %s127
      %p141 = scmp.eq.s32.totalorder %s20, 1
      %p142 = por %p140, %p141
      %p144 = scmp.ne.s32.totalorder %s127, %s143
      %p145 = scmp.eq.s32.totalorder %s20, 0
      %p146 = por %p144, %p145
      %s147 = ssub.s32 %s14, %s21
      %p148 = scmp.eq.s32.totalorder %s147, 0
      %s150 = sadd.s32 %s149, 1
      %s151 = scalar_select %p148, %s149, %s150
      %p154 = pneg %p148
      %p155 = scmp.eq.s32.totalorder %s14, 1
      %p156 = por %p154, %p155
      %p157 = scmp.ne.s32.totalorder %s149, %s152
      %p158 = scmp.eq.s32.totalorder %s14, 0
      %p159 = por %p157, %p158
      %p160 = scmp.ne.s32.totalorder %s149, %s152
      %p161 = scmp.eq.s32.totalorder %s19, 1
      %p162 = por %p160, %p161
      %p163 = scmp.ne.s32.totalorder %s152, %s153
      %p164 = scmp.eq.s32.totalorder %s19, 0
      %p165 = por %p163, %p164
      %p166 = scmp.ne.s32.totalorder %s152, %s153
      %p167 = scmp.eq.s32.totalorder %s20, 1
      %p168 = por %p166, %p167
      %p170 = scmp.ne.s32.totalorder %s153, %s169
      %p171 = scmp.eq.s32.totalorder %s20, 0
      %p172 = por %p170, %p171
      %p173 = scmp.le.s32.totalorder 1, %s14
      %p174 = scmp.lt.s32.totalorder %s14, 3
      %p175 = pnand %p173, %p174
      %p176 = pneg %p175
      // Predicated region
      $region9: #{inception_v3a_forward.19} parent=5 // pred_check
        _
      $region10: #{inception_v3a_forward.19} parent=5 // pred_check_branch
        %178 = sbr.rel (%p175) target = $region12
      $region11: #{inception_v3a_forward.19} parent=5 // pred_region
        %s179 = ssub.s32 %s14, 1
        // Predicated region
        $region13: #{inception_v3a_forward.19} parent=11 // pred_check
          %p180 = pneg %p113
        $region14: #{inception_v3a_forward.19} parent=11 // pred_check_branch
          %182 = sbr.rel (%p180) target = $region16
        $region15: #{inception_v3a_forward.19} parent=11 // pred_region
          _
        $region16: #{inception_v3a_forward.19} parent=11 // pred_fallthru
          _
      $region12: #{inception_v3a_forward.19} parent=5 // pred_fallthru
        _
      %p183 = scmp.lt.s32.totalorder %s14, 2
      // Predicated region
      $region17: #{inception_v3a_forward.19} parent=5 // pred_check
        %p184 = pneg %p183
      $region18: #{inception_v3a_forward.19} parent=5 // pred_check_branch
        %186 = sbr.rel (%p184) target = $region20
      $region19: #{inception_v3a_forward.19} parent=5 // pred_region
        // Predicated region
        $region21: #{inception_v3a_forward.19} parent=19 // pred_check
          %p187 = pneg %p34
        $region22: #{inception_v3a_forward.19} parent=19 // pred_check_branch
          %189 = sbr.rel (%p187) target = $region24
        $region23: #{inception_v3a_forward.19} parent=19 // pred_region
          %p190 = scmp.lt.s32.totalorder %s14, 1
          %s191 = scalar_select %p190, %s14, 1
          %s192 = smul.addr %s191, 54
          %s193 = smul.addr %s192, 8
          %s194 = scalar_lea.vmem %s0, %s193
        $region24: #{inception_v3a_forward.19} parent=19 // pred_fallthru
          _
        // Predicated region
        $region25: #{inception_v3a_forward.19} parent=19 // pred_check
          %p195 = pneg %p60
        $region26: #{inception_v3a_forward.19} parent=19 // pred_check_branch
          %197 = sbr.rel (%p195) target = $region28
        $region27: #{inception_v3a_forward.19} parent=19 // pred_region
          %p198 = scmp.lt.s32.totalorder %s14, 1
          %s199 = scalar_select %p198, %s14, 1
          %s200 = smul.addr %s199, 54
          %s201 = smul.addr %s200, 8
          %s202 = scalar_lea.vmem %s1, %s201
        $region28: #{inception_v3a_forward.19} parent=19 // pred_fallthru
          _
        // Predicated region
        $region29: #{inception_v3a_forward.19} parent=19 // pred_check
          %p203 = pneg %p86
        $region30: #{inception_v3a_forward.19} parent=19 // pred_check_branch
          %205 = sbr.rel (%p203) target = $region32
        $region31: #{inception_v3a_forward.19} parent=19 // pred_region
          %p206 = scmp.lt.s32.totalorder %s14, 1
          %s207 = scalar_select %p206, %s14, 1
          %s208 = smul.addr %s207, 54
          %s209 = smul.addr %s208, 8
          %s210 = scalar_lea.vmem %s2, %s209
        $region32: #{inception_v3a_forward.19} parent=19 // pred_fallthru
          _
        // Predicated region
        $region33: #{inception_v3a_forward.19} parent=19 // pred_check
          %p211 = pneg %p133
        $region34: #{inception_v3a_forward.19} parent=19 // pred_check_branch
          %213 = sbr.rel (%p211) target = $region36
        $region35: #{inception_v3a_forward.19} parent=19 // pred_region
          %p214 = scmp.lt.s32.totalorder %s14, 1
          %s215 = scalar_select %p214, %s14, 1
          %s216 = scalar_lea.vmem %s4, %s215
        $region36: #{inception_v3a_forward.19} parent=19 // pred_fallthru
          _
      $region20: #{inception_v3a_forward.19} parent=5 // pred_fallthru
        _
      %p217 = scmp.le.s32.totalorder 1, %s14
      %p218 = scmp.lt.s32.totalorder %s14, 3
      %p219 = pnand %p217, %p218
      %p220 = pneg %p219
      // Predicated region
      $region37: #{inception_v3a_forward.19} parent=5 // pred_check
        _
      $region38: #{inception_v3a_forward.19} parent=5 // pred_check_branch
        %222 = sbr.rel (%p219) target = $region40
      $region39: #{inception_v3a_forward.19} parent=5 // pred_region
        %s223 = ssub.s32 %s14, 1
        %p224 = scmp.lt.s32.totalorder %s19, 1
        %s225 = scalar_select %p224, %s19, 1
        %s226 = smul.addr %s225, 54
        %s227 = smul.addr %s226, 8
        %s228 = scalar_lea.vmem %s0, %s227
        %p229 = pneg %p40
        %p230 = pneg %p37
        %p231 = scmp.lt.s32.totalorder %s19, 1
        %s232 = scalar_select %p231, %s19, 1
        %s233 = smul.addr %s232, 54
        %s234 = smul.addr %s233, 8
        %s235 = scalar_lea.vmem %s1, %s234
        %p236 = pneg %p66
        %p237 = pneg %p63
        %p238 = scmp.lt.s32.totalorder %s19, 1
        %s239 = scalar_select %p238, %s19, 1
        %s240 = smul.addr %s239, 54
        %s241 = smul.addr %s240, 8
        %s242 = scalar_lea.vmem %s2, %s241
        %p243 = pneg %p92
        %p244 = pneg %p89
        %p245 = pneg %p113
        %p246 = pneg %p110
        %p247 = scmp.lt.s32.totalorder %s19, 1
        %s248 = scalar_select %p247, %s19, 1
        %s249 = scalar_lea.vmem %s4, %s248
        %p250 = pneg %p139
        %p251 = pneg %p136
        %p252 = pneg %p165
        %p253 = pneg %p162
        %s254 = sand.u32 %s152, 1
        %s255 = scalar_lea.sflag [#allocation3], %s254
        %s256 = sand.u32 %s152, 1
        %s257 = smul.addr %s256, 256
        %s258 = scalar_lea.vmem [#allocation2], %s257
        %p259 = scmp.lt.s32.totalorder %s19, 1
        %s260 = scalar_select %p259, %s19, 1
        %s261 = smul.addr %s260, 54
        %s262 = smul.addr %s261, 8
        %s263 = scalar_lea.vmem %s0, %s262
        %p264 = scmp.lt.s32.totalorder %s19, 1
        %s265 = scalar_select %p264, %s19, 1
        %s266 = smul.addr %s265, 54
        %s267 = smul.addr %s266, 8
        %s268 = scalar_lea.vmem %s1, %s267
        %p269 = scmp.lt.s32.totalorder %s19, 1
        %s270 = scalar_select %p269, %s19, 1
        %s271 = smul.addr %s270, 54
        %s272 = smul.addr %s271, 8
        %s273 = scalar_lea.vmem %s2, %s272
        %p274 = scmp.lt.s32.totalorder %s19, 1
        %s275 = scalar_select %p274, %s19, 1
        %s276 = scalar_lea.vmem %s4, %s275
        %s277 = scalar_lea.vmem %s263, 24
        %v278 = vld [vmem:[%s277 + $0x1] sm:$0xff]
        %v279 = vld [vmem:[%s277 + $0x9] sm:$0xff]
        %v280 = vld [vmem:[%s277 + $0x19] sm:$0xff]
        %v281 = vld [vmem:[%s277 + $0x21] sm:$0xff]
        %v282 = vld [vmem:[%s277 + $0x31] sm:$0xff]
        %v283 = vld [vmem:[%s277 + $0x39] sm:$0xff]
        %v284 = vld [vmem:[%s277 + $0x49] sm:$0xff]
        %v285 = vld [vmem:[%s277 + $0x51] sm:$0xff]
        %v286 = vld [vmem:[%s277 + $0x61] sm:$0xff]
        %v287 = vld [vmem:[%s277 + $0x69] sm:$0xff]
        %v288 = vld [vmem:[%s277 + $0x79] sm:$0xff]
        %v289 = vld [vmem:[%s277 + $0x81] sm:$0xff]
        %v290 = vld [vmem:[%s277 + $0x91] sm:$0xff]
        %v291 = vld [vmem:[%s277 + $0x99] sm:$0xff]
        %v292 = vld [vmem:[%s277 + $0xa9] sm:$0xff]
        %v293 = vld [vmem:[%s277 + $0xb1] sm:$0xff]
        %v294 = vld [vmem:[%s277 + $0xc1] sm:$0xff]
        %v295 = vld [vmem:[%s277 + $0xc9] sm:$0xff]
        %v296 = vld [vmem:[%s277 + $0xd9] sm:$0xff]
        %v297 = vld [vmem:[%s277 + $0xe1] sm:$0xff]
        %v298 = vld [vmem:[%s277 + $0xf1] sm:$0xff]
        %v299 = vld [vmem:[%s277 + $0xf9] sm:$0xff]
        %v300 = vld [vmem:[%s277 + $0x109] sm:$0xff]
        %v301 = vld [vmem:[%s277 + $0x111] sm:$0xff]
        %v302 = vld [vmem:[%s277 + $0x121] sm:$0xff]
        %v303 = vld [vmem:[%s277 + $0x129] sm:$0xff]
        %v304 = vld [vmem:[%s277 + $0x139] sm:$0xff]
        %v305 = vld [vmem:[%s277 + $0x141] sm:$0xff]
        %v306 = vld [vmem:[%s277 + $0x151] sm:$0xff]
        %v307 = vld [vmem:[%s277 + $0x159] sm:$0xff]
        %v308 = vld [vmem:[%s277 + $0x169] sm:$0xff]
        %v309 = vld [vmem:[%s277 + $0x171] sm:$0xff]
        %s310 = scalar_lea.vmem %s268, 24
        %v311 = vld [vmem:[%s310 + $0x1] sm:$0xff]
        %v312 = vld [vmem:[%s310 + $0x9] sm:$0xff]
        %v313 = vld [vmem:[%s310 + $0x19] sm:$0xff]
        %v314 = vld [vmem:[%s310 + $0x21] sm:$0xff]
        %v315 = vld [vmem:[%s310 + $0x31] sm:$0xff]
        %v316 = vld [vmem:[%s310 + $0x39] sm:$0xff]
        %v317 = vld [vmem:[%s310 + $0x49] sm:$0xff]
        %v318 = vld [vmem:[%s310 + $0x51] sm:$0xff]
        %v319 = vld [vmem:[%s310 + $0x61] sm:$0xff]
        %v320 = vld [vmem:[%s310 + $0x69] sm:$0xff]
        %v321 = vld [vmem:[%s310 + $0x79] sm:$0xff]
        %v322 = vld [vmem:[%s310 + $0x81] sm:$0xff]
        %v323 = vld [vmem:[%s310 + $0x91] sm:$0xff]
        %v324 = vld [vmem:[%s310 + $0x99] sm:$0xff]
        %v325 = vld [vmem:[%s310 + $0xa9] sm:$0xff]
        %v326 = vld [vmem:[%s310 + $0xb1] sm:$0xff]
        %v327 = vld [vmem:[%s310 + $0xc1] sm:$0xff]
        %v328 = vld [vmem:[%s310 + $0xc9] sm:$0xff]
        %v329 = vld [vmem:[%s310 + $0xd9] sm:$0xff]
        %v330 = vld [vmem:[%s310 + $0xe1] sm:$0xff]
        %v331 = vld [vmem:[%s310 + $0xf1] sm:$0xff]
        %v332 = vld [vmem:[%s310 + $0xf9] sm:$0xff]
        %v333 = vld [vmem:[%s310 + $0x109] sm:$0xff]
        %v334 = vld [vmem:[%s310 + $0x111] sm:$0xff]
        %v335 = vld [vmem:[%s310 + $0x121] sm:$0xff]
        %v336 = vld [vmem:[%s310 + $0x129] sm:$0xff]
        %v337 = vld [vmem:[%s310 + $0x139] sm:$0xff]
        %v338 = vld [vmem:[%s310 + $0x141] sm:$0xff]
        %v339 = vld [vmem:[%s310 + $0x151] sm:$0xff]
        %v340 = vld [vmem:[%s310 + $0x159] sm:$0xff]
        %v341 = vld [vmem:[%s310 + $0x169] sm:$0xff]
        %v342 = vld [vmem:[%s310 + $0x171] sm:$0xff]
        %s343 = scalar_lea.vmem %s273, 24
        %v344 = vld [vmem:[%s343 + $0x1] sm:$0xff]
        %v345 = vld [vmem:[%s343 + $0x9] sm:$0xff]
        %v346 = vld [vmem:[%s343 + $0x19] sm:$0xff]
        %v347 = vld [vmem:[%s343 + $0x21] sm:$0xff]
        %v348 = vld [vmem:[%s343 + $0x31] sm:$0xff]
        %v349 = vld [vmem:[%s343 + $0x39] sm:$0xff]
        %v350 = vld [vmem:[%s343 + $0x49] sm:$0xff]
        %v351 = vld [vmem:[%s343 + $0x51] sm:$0xff]
        %v352 = vld [vmem:[%s343 + $0x61] sm:$0xff]
        %v353 = vld [vmem:[%s343 + $0x69] sm:$0xff]
        %v354 = vld [vmem:[%s343 + $0x79] sm:$0xff]
        %v355 = vld [vmem:[%s343 + $0x81] sm:$0xff]
        %v356 = vld [vmem:[%s343 + $0x91] sm:$0xff]
        %v357 = vld [vmem:[%s343 + $0x99] sm:$0xff]
        %v358 = vld [vmem:[%s343 + $0xa9] sm:$0xff]
        %v359 = vld [vmem:[%s343 + $0xb1] sm:$0xff]
        %v360 = vld [vmem:[%s343 + $0xc1] sm:$0xff]
        %v361 = vld [vmem:[%s343 + $0xc9] sm:$0xff]
        %v362 = vld [vmem:[%s343 + $0xd9] sm:$0xff]
        %v363 = vld [vmem:[%s343 + $0xe1] sm:$0xff]
        %v364 = vld [vmem:[%s343 + $0xf1] sm:$0xff]
        %v365 = vld [vmem:[%s343 + $0xf9] sm:$0xff]
        %v366 = vld [vmem:[%s343 + $0x109] sm:$0xff]
        %v367 = vld [vmem:[%s343 + $0x111] sm:$0xff]
        %v368 = vld [vmem:[%s343 + $0x121] sm:$0xff]
        %v369 = vld [vmem:[%s343 + $0x129] sm:$0xff]
        %v370 = vld [vmem:[%s343 + $0x139] sm:$0xff]
        %v371 = vld [vmem:[%s343 + $0x141] sm:$0xff]
        %v372 = vld [vmem:[%s343 + $0x151] sm:$0xff]
        %v373 = vld [vmem:[%s343 + $0x159] sm:$0xff]
        %v374 = vld [vmem:[%s343 + $0x169] sm:$0xff]
        %v375 = vld [vmem:[%s343 + $0x171] sm:$0xff]
        %v376 = vld [vmem:[%s3] sm:$0x1]
        %v378 = vlaneseq
        %v379 = vshrl.u32 %v378, 7
        %v380 = vsub.s32 0, %v379
        %v381 = vrot.slane %v376, %v380
        %v383 = vmul.f32 %v278, %v381
        %v384 = vmul.f32 %v279, %v381
        %v385 = vmul.f32 %v280, %v381
        %v386 = vmul.f32 %v281, %v381
        %v387 = vmul.f32 %v282, %v381
        %v388 = vmul.f32 %v283, %v381
        %v389 = vmul.f32 %v284, %v381
        %v390 = vmul.f32 %v285, %v381
        %v391 = vmul.f32 %v286, %v381
        %v392 = vmul.f32 %v287, %v381
        %v393 = vmul.f32 %v288, %v381
        %v394 = vmul.f32 %v289, %v381
        %v395 = vmul.f32 %v290, %v381
        %v396 = vmul.f32 %v291, %v381
        %v397 = vmul.f32 %v292, %v381
        %v398 = vmul.f32 %v293, %v381
        %v399 = vmul.f32 %v294, %v381
        %v400 = vmul.f32 %v295, %v381
        %v401 = vmul.f32 %v296, %v381
        %v402 = vmul.f32 %v297, %v381
        %v403 = vmul.f32 %v298, %v381
        %v404 = vmul.f32 %v299, %v381
        %v405 = vmul.f32 %v300, %v381
        %v406 = vmul.f32 %v301, %v381
        %v407 = vmul.f32 %v302, %v381
        %v408 = vmul.f32 %v303, %v381
        %v409 = vmul.f32 %v304, %v381
        %v410 = vmul.f32 %v305, %v381
        %v411 = vmul.f32 %v306, %v381
        %v412 = vmul.f32 %v307, %v381
        %v413 = vmul.f32 %v308, %v381
        %v414 = vmul.f32 %v309, %v381
        %v415 = vadd.f32 %v383, %v311
        %v416 = vadd.f32 %v384, %v312
        %v417 = vadd.f32 %v385, %v313
        %v418 = vadd.f32 %v386, %v314
        %v419 = vadd.f32 %v387, %v315
        %v420 = vadd.f32 %v388, %v316
        %v421 = vadd.f32 %v389, %v317
        %v422 = vadd.f32 %v390, %v318
        %v423 = vadd.f32 %v391, %v319
        %v424 = vadd.f32 %v392, %v320
        %v425 = vadd.f32 %v393, %v321
        %v426 = vadd.f32 %v394, %v322
        %v427 = vadd.f32 %v395, %v323
        %v428 = vadd.f32 %v396, %v324
        %v429 = vadd.f32 %v397, %v325
        %v430 = vadd.f32 %v398, %v326
        %v431 = vadd.f32 %v399, %v327
        %v432 = vadd.f32 %v400, %v328
        %v433 = vadd.f32 %v401, %v329
        %v434 = vadd.f32 %v402, %v330
        %v435 = vadd.f32 %v403, %v331
        %v436 = vadd.f32 %v404, %v332
        %v437 = vadd.f32 %v405, %v333
        %v438 = vadd.f32 %v406, %v334
        %v439 = vadd.f32 %v407, %v335
        %v440 = vadd.f32 %v408, %v336
        %v441 = vadd.f32 %v409, %v337
        %v442 = vadd.f32 %v410, %v338
        %v443 = vadd.f32 %v411, %v339
        %v444 = vadd.f32 %v412, %v340
        %v445 = vadd.f32 %v413, %v341
        %v446 = vadd.f32 %v414, %v342
        %v447 = vadd.f32 %v415, %v344
        %v448 = vadd.f32 %v416, %v345
        %v449 = vadd.f32 %v417, %v346
        %v450 = vadd.f32 %v418, %v347
        %v451 = vadd.f32 %v419, %v348
        %v452 = vadd.f32 %v420, %v349
        %v453 = vadd.f32 %v421, %v350
        %v454 = vadd.f32 %v422, %v351
        %v455 = vadd.f32 %v423, %v352
        %v456 = vadd.f32 %v424, %v353
        %v457 = vadd.f32 %v425, %v354
        %v458 = vadd.f32 %v426, %v355
        %v459 = vadd.f32 %v427, %v356
        %v460 = vadd.f32 %v428, %v357
        %v461 = vadd.f32 %v429, %v358
        %v462 = vadd.f32 %v430, %v359
        %v463 = vadd.f32 %v431, %v360
        %v464 = vadd.f32 %v432, %v361
        %v465 = vadd.f32 %v433, %v362
        %v466 = vadd.f32 %v434, %v363
        %v467 = vadd.f32 %v435, %v364
        %v468 = vadd.f32 %v436, %v365
        %v469 = vadd.f32 %v437, %v366
        %v470 = vadd.f32 %v438, %v367
        %v471 = vadd.f32 %v439, %v368
        %v472 = vadd.f32 %v440, %v369
        %v473 = vadd.f32 %v441, %v370
        %v474 = vadd.f32 %v442, %v371
        %v475 = vadd.f32 %v443, %v372
        %v476 = vadd.f32 %v444, %v373
        %v477 = vadd.f32 %v445, %v374
        %v478 = vadd.f32 %v446, %v375
        %v479 = vld [vmem:[%s276] sm:$0x1]
        %v481 = vlaneseq
        %v482 = vshrl.u32 %v481, 7
        %v483 = vsub.s32 0, %v482
        %v484 = vrot.slane %v479, %v483
        %v486 = vmul.f32 %v447, %v484
        %v487 = vmul.f32 %v448, %v484
        %v488 = vmul.f32 %v449, %v484
        %v489 = vmul.f32 %v450, %v484
        %v490 = vmul.f32 %v451, %v484
        %v491 = vmul.f32 %v452, %v484
        %v492 = vmul.f32 %v453, %v484
        %v493 = vmul.f32 %v454, %v484
        %v494 = vmul.f32 %v455, %v484
        %v495 = vmul.f32 %v456, %v484
        %v496 = vmul.f32 %v457, %v484
        %v497 = vmul.f32 %v458, %v484
        %v498 = vmul.f32 %v459, %v484
        %v499 = vmul.f32 %v460, %v484
        %v500 = vmul.f32 %v461, %v484
        %v501 = vmul.f32 %v462, %v484
        %v502 = vmul.f32 %v463, %v484
        %v503 = vmul.f32 %v464, %v484
        %v504 = vmul.f32 %v465, %v484
        %v505 = vmul.f32 %v466, %v484
        %v506 = vmul.f32 %v467, %v484
        %v507 = vmul.f32 %v468, %v484
        %v508 = vmul.f32 %v469, %v484
        %v509 = vmul.f32 %v470, %v484
        %v510 = vmul.f32 %v471, %v484
        %v511 = vmul.f32 %v472, %v484
        %v512 = vmul.f32 %v473, %v484
        %v513 = vmul.f32 %v474, %v484
        %v514 = vmul.f32 %v475, %v484
        %v515 = vmul.f32 %v476, %v484
        %v516 = vmul.f32 %v477, %v484
        %v517 = vmul.f32 %v478, %v484
        %518 = vst [vmem:[%s258] sm:$0xff] %v486
        %519 = vst [vmem:[%s258 + $0x8] sm:$0xff] %v487
        %520 = vst [vmem:[%s258 + $0x10] sm:$0xff] %v488
        %521 = vst [vmem:[%s258 + $0x18] sm:$0xff] %v489
        %522 = vst [vmem:[%s258 + $0x20] sm:$0xff] %v490
        %523 = vst [vmem:[%s258 + $0x28] sm:$0xff] %v491
        %524 = vst [vmem:[%s258 + $0x30] sm:$0xff] %v492
        %525 = vst [vmem:[%s258 + $0x38] sm:$0xff] %v493
        %526 = vst [vmem:[%s258 + $0x40] sm:$0xff] %v494
        %527 = vst [vmem:[%s258 + $0x48] sm:$0xff] %v495
        %528 = vst [vmem:[%s258 + $0x50] sm:$0xff] %v496
        %529 = vst [vmem:[%s258 + $0x58] sm:$0xff] %v497
        %530 = vst [vmem:[%s258 + $0x60] sm:$0xff] %v498
        %531 = vst [vmem:[%s258 + $0x68] sm:$0xff] %v499
        %532 = vst [vmem:[%s258 + $0x70] sm:$0xff] %v500
        %533 = vst [vmem:[%s258 + $0x78] sm:$0xff] %v501
        %534 = vst [vmem:[%s258 + $0x80] sm:$0xff] %v502
        %535 = vst [vmem:[%s258 + $0x88] sm:$0xff] %v503
        %536 = vst [vmem:[%s258 + $0x90] sm:$0xff] %v504
        %537 = vst [vmem:[%s258 + $0x98] sm:$0xff] %v505
        %538 = vst [vmem:[%s258 + $0xa0] sm:$0xff] %v506
        %539 = vst [vmem:[%s258 + $0xa8] sm:$0xff] %v507
        %540 = vst [vmem:[%s258 + $0xb0] sm:$0xff] %v508
        %541 = vst [vmem:[%s258 + $0xb8] sm:$0xff] %v509
        %542 = vst [vmem:[%s258 + $0xc0] sm:$0xff] %v510
        %543 = vst [vmem:[%s258 + $0xc8] sm:$0xff] %v511
        %544 = vst [vmem:[%s258 + $0xd0] sm:$0xff] %v512
        %545 = vst [vmem:[%s258 + $0xd8] sm:$0xff] %v513
        %546 = vst [vmem:[%s258 + $0xe0] sm:$0xff] %v514
        %547 = vst [vmem:[%s258 + $0xe8] sm:$0xff] %v515
        %548 = vst [vmem:[%s258 + $0xf0] sm:$0xff] %v516
        %549 = vst [vmem:[%s258 + $0xf8] sm:$0xff] %v517
        %s550 = sand.u32 %s152, 1
        %s551 = scalar_lea.sflag [#allocation3], %s550
        %s552 = sand.u32 %s152, 1
        %s553 = smul.addr %s552, 256
        %s554 = scalar_lea.vmem [#allocation2], %s553
        // Predicated region
        $region41: #{inception_v3a_forward.19} parent=39 // pred_check
          %p555 = pneg %p162
        $region42: #{inception_v3a_forward.19} parent=39 // pred_check_branch
          %557 = sbr.rel (%p555) target = $region44
        $region43: #{inception_v3a_forward.19} parent=39 // pred_region
          %s559 = ssub.s32 4096, 4096
          %560 = vsyncadd %s551, %s559
          %s561 = smul.addr %s19, 32
          %s562 = smul.addr %s561, 128
          %s563 = scalar_lea.hbm %s5, %s562
          %s564 = sshll.u32 %s554, 4
          %s565 = int_to_ptr.vmem [resolvable:$true] %s564
          %570 = dma.vmem_to_hbm [thread:$0]  %s565, 4096, %s563, %s551, 128, 128, 8
        $region44: #{inception_v3a_forward.19} parent=39 // pred_fallthru
          _
      $region40: #{inception_v3a_forward.19} parent=5 // pred_fallthru
        _
      %p571 = scmp.le.s32.totalorder 2, %s14
      // Predicated region
      $region45: #{inception_v3a_forward.19} parent=5 // pred_check
        %p572 = pneg %p571
      $region46: #{inception_v3a_forward.19} parent=5 // pred_check_branch
        %574 = sbr.rel (%p572) target = $region48
      $region47: #{inception_v3a_forward.19} parent=5 // pred_region
        %s575 = ssub.s32 %s14, 2
        // Predicated region
        $region49: #{inception_v3a_forward.19} parent=47 // pred_check
          %p576 = pneg %p168
        $region50: #{inception_v3a_forward.19} parent=47 // pred_check_branch
          %578 = sbr.rel (%p576) target = $region52
        $region51: #{inception_v3a_forward.19} parent=47 // pred_region
          %s579 = sand.u32 %s153, 1
          %s580 = scalar_lea.sflag [#allocation3], %s579
          %s581 = sand.u32 %s153, 1
          %s582 = smul.addr %s581, 256
          %s583 = scalar_lea.vmem [#allocation2], %s582
          %584 = dma.done %s580, 4096
        $region52: #{inception_v3a_forward.19} parent=47 // pred_fallthru
          _
      $region48: #{inception_v3a_forward.19} parent=5 // pred_fallthru
        _
    $region6: #{inception_v3a_forward.19} parent=1 // loop_footer
      %s18 = sadd.s32 1, %s14
    $region7: #{inception_v3a_forward.19} parent=1 // loop_footer_branch
      %13 = sbr.rel target = $region3
    $region8: #{inception_v3a_forward.19} parent=1 // loop_exit
      _
    %585 = vsyncpa [#allocation3], 1
    %s586 = scalar_lea.sflag [#allocation3], 1
    %587 = vsyncpa %s586, 1

// kernel: inception_v3a_forward.14
$region0: #{inception_v3a_forward.14}
  #allocation0 [shape = 'u32[]', space=smem, size = 0x4, offset = 0x4, fixed_abs, tag = 'smem constant byte address 0x4 - core index']
  #allocation1 [shape = 'u32[144,128]{1,0:T(1,128)}', space=vmem, size = 0x12000, scoped, tag = 'internal scratch']
  #allocation2 [shape = 'f32[256,128]{1,0:T(8,128)}', space=vmem, size = 0x20000, scoped, tag = 'scratch operand']
  %s0 = inlined_call_operand.vmem [shape: f32[2,18,18,128], index: 0, kind: input, shape index: {}]
  %s1 = inlined_call_operand.vmem [shape: bf16[9,128,128], index: 1, kind: input, shape index: {}]
  %s2 = inlined_call_operand.vmem [shape: f32[1,128], index: 2, kind: input, shape index: {}]
  %s3 = inlined_call_operand.vmem [shape: f32[2,256,128], index: 3, kind: output, shape index: {0}]
  %s4 = inlined_call_operand.vmem [shape: f32[2,1,2,128], index: 4, kind: output, shape index: {1}]
  %5 = xla_tuple %s3, %s4
  %s6 = sld [smem:[#allocation0]]
  $region53: #{inception_v3a_forward.14} parent=0
    _
  %s8 = ssub.s32 1, %s6
  %s9 = scalar_select 0, %s8, %s6
  loop: start=0, step=1, limit=4
  $region2: #{inception_v3a_forward.14} parent=0 // loop_pre_header
    _
  $region3: #{inception_v3a_forward.14} parent=0 // loop_header
    %s11 = sphi 0, %s15
    %p12 = scmp.ge.s32.totalorder %s11, 4
    %s18 = sphi 0, %s30
    %s19 = sphi 0, %s26
    %s20 = sphi 0, %s18
    %s21 = sphi 0, %s19
    %s22 = sphi 0, %s20
    %s23 = sphi 0, %s21
    %s33 = sphi 0, %s35
    %s36 = sphi 0, %s33
    %s37 = sphi 0, %s36
    %s53 = sphi 0, %s37
    %s57 = sphi 0, %s57
    %s59 = sphi 0, %s57
    %s60 = sphi 0, %s59
    %s74 = sphi 0, %s60
    %s78 = sphi 0, %s78
    %s80 = sphi 0, %s78
    %s81 = sphi 0, %s80
    %s95 = sphi 0, %s81
    %s103 = sphi 0, %s105
    %s106 = sphi 0, %s103
    %s107 = sphi 0, %s106
    %s123 = sphi 0, %s107
    %s131 = sphi 0, %s133
    %s134 = sphi 0, %s131
    %s135 = sphi 0, %s134
    %s151 = sphi 0, %s135
  $region4: #{inception_v3a_forward.14} parent=0 // loop_header_branch
    %14 = sbr.rel (%p12) target = $region8
  $region5: #{inception_v3a_forward.14} parent=0 // loop_body
    %s16 = ssub.s32 %s11, 1
    %s17 = ssub.s32 %s11, 2
    %s24 = sadd.s32 1, %s19
    %p25 = scmp.ge.s32.totalorder %s24, 1
    %s26 = scalar_select %p25, 0, %s24
    %s27 = sadd.s32 1, %s18
    %s28 = scalar_select %p25, %s27, %s18
    %p29 = scmp.ge.s32.totalorder %s28, 2
    %s30 = scalar_select %p29, 0, %s28
    %s31 = ssub.s32 %s18, %s30
    %p32 = scmp.eq.s32.totalorder %s31, 0
    %s34 = sadd.s32 %s33, 1
    %s35 = scalar_select %p32, %s33, %s34
    %p38 = pneg %p32
    %p39 = scmp.eq.s32.totalorder %s11, 1
    %p40 = por %p38, %p39
    %p41 = scmp.ne.s32.totalorder %s33, %s36
    %p42 = scmp.eq.s32.totalorder %s11, 0
    %p43 = por %p41, %p42
    %p44 = scmp.ne.s32.totalorder %s33, %s36
    %p45 = scmp.eq.s32.totalorder %s16, 1
    %p46 = por %p44, %p45
    %p47 = scmp.ne.s32.totalorder %s36, %s37
    %p48 = scmp.eq.s32.totalorder %s16, 0
    %p49 = por %p47, %p48
    %p50 = scmp.ne.s32.totalorder %s36, %s37
    %p51 = scmp.eq.s32.totalorder %s17, 1
    %p52 = por %p50, %p51
    %p54 = scmp.ne.s32.totalorder %s37, %s53
    %p55 = scmp.eq.s32.totalorder %s17, 0
    %p56 = por %p54, %p55
    %s58 = sadd.s32 %s57, 1
    %p61 = scmp.eq.s32.totalorder %s11, 1
    %p62 = scmp.ne.s32.totalorder %s57, %s59
    %p63 = scmp.eq.s32.totalorder %s11, 0
    %p64 = por %p62, %p63
    %p65 = scmp.ne.s32.totalorder %s57, %s59
    %p66 = scmp.eq.s32.totalorder %s16, 1
    %p67 = por %p65, %p66
    %p68 = scmp.ne.s32.totalorder %s59, %s60
    %p69 = scmp.eq.s32.totalorder %s16, 0
    %p70 = por %p68, %p69
    %p71 = scmp.ne.s32.totalorder %s59, %s60
    %p72 = scmp.eq.s32.totalorder %s17, 1
    %p73 = por %p71, %p72
    %p75 = scmp.ne.s32.totalorder %s60, %s74
    %p76 = scmp.eq.s32.totalorder %s17, 0
    %p77 = por %p75, %p76
    %s79 = sadd.s32 %s78, 1
    %p82 = scmp.eq.s32.totalorder %s11, 1
    %p83 = scmp.ne.s32.totalorder %s78, %s80
    %p84 = scmp.eq.s32.totalorder %s11, 0
    %p85 = por %p83, %p84
    %p86 = scmp.ne.s32.totalorder %s78, %s80
    %p87 = scmp.eq.s32.totalorder %s16, 1
    %p88 = por %p86, %p87
    %p89 = scmp.ne.s32.totalorder %s80, %s81
    %p90 = scmp.eq.s32.totalorder %s16, 0
    %p91 = por %p89, %p90
    %p92 = scmp.ne.s32.totalorder %s80, %s81
    %p93 = scmp.eq.s32.totalorder %s17, 1
    %p94 = por %p92, %p93
    %p96 = scmp.ne.s32.totalorder %s81, %s95
    %p97 = scmp.eq.s32.totalorder %s17, 0
    %p98 = por %p96, %p97
    %s99 = ssub.s32 %s18, %s30
    %s100 = ssub.s32 %s19, %s26
    %s101 = sor.u32 %s99, %s100
    %p102 = scmp.eq.s32.totalorder %s101, 0
    %s104 = sadd.s32 %s103, 1
    %s105 = scalar_select %p102, %s103, %s104
    %p108 = pneg %p102
    %p109 = scmp.eq.s32.totalorder %s11, 1
    %p110 = por %p108, %p109
    %p111 = scmp.ne.s32.totalorder %s103, %s106
    %p112 = scmp.eq.s32.totalorder %s11, 0
    %p113 = por %p111, %p112
    %p114 = scmp.ne.s32.totalorder %s103, %s106
    %p115 = scmp.eq.s32.totalorder %s16, 1
    %p116 = por %p114, %p115
    %p117 = scmp.ne.s32.totalorder %s106, %s107
    %p118 = scmp.eq.s32.totalorder %s16, 0
    %p119 = por %p117, %p118
    %p120 = scmp.ne.s32.totalorder %s106, %s107
    %p121 = scmp.eq.s32.totalorder %s17, 1
    %p122 = por %p120, %p121
    %p124 = scmp.ne.s32.totalorder %s107, %s123
    %p125 = scmp.eq.s32.totalorder %s17, 0
    %p126 = por %p124, %p125
    %s127 = ssub.s32 %s18, %s30
    %s128 = ssub.s32 %s19, %s26
    %s129 = sor.u32 %s127, %s128
    %p130 = scmp.eq.s32.totalorder %s129, 0
    %s132 = sadd.s32 %s131, 1
    %s133 = scalar_select %p130, %s131, %s132
    %p136 = pneg %p130
    %p137 = scmp.eq.s32.totalorder %s11, 1
    %p138 = por %p136, %p137
    %p139 = scmp.ne.s32.totalorder %s131, %s134
    %p140 = scmp.eq.s32.totalorder %s11, 0
    %p141 = por %p139, %p140
    %p142 = scmp.ne.s32.totalorder %s131, %s134
    %p143 = scmp.eq.s32.totalorder %s16, 1
    %p144 = por %p142, %p143
    %p145 = scmp.ne.s32.totalorder %s134, %s135
    %p146 = scmp.eq.s32.totalorder %s16, 0
    %p147 = por %p145, %p146
    %p148 = scmp.ne.s32.totalorder %s134, %s135
    %p149 = scmp.eq.s32.totalorder %s17, 1
    %p150 = por %p148, %p149
    %p152 = scmp.ne.s32.totalorder %s135, %s151
    %p153 = scmp.eq.s32.totalorder %s17, 0
    %p154 = por %p152, %p153
    %p155 = scmp.le.s32.totalorder 1, %s11
    %p156 = scmp.lt.s32.totalorder %s11, 3
    %p157 = pnand %p155, %p156
    %p158 = pneg %p157
    // Predicated region
    $region9: #{inception_v3a_forward.14} parent=5 // pred_check
      _
    $region10: #{inception_v3a_forward.14} parent=5 // pred_check_branch
      %160 = sbr.rel (%p157) target = $region12
    $region11: #{inception_v3a_forward.14} parent=5 // pred_region
      %s161 = ssub.s32 %s11, 1
      // Predicated region
      $region13: #{inception_v3a_forward.14} parent=11 // pred_check
        %p162 = pneg %p70
      $region14: #{inception_v3a_forward.14} parent=11 // pred_check_branch
        %164 = sbr.rel (%p162) target = $region16
      $region15: #{inception_v3a_forward.14} parent=11 // pred_region
        _
      $region16: #{inception_v3a_forward.14} parent=11 // pred_fallthru
        _
      // Predicated region
      $region17: #{inception_v3a_forward.14} parent=11 // pred_check
        %p165 = pneg %p91
      $region18: #{inception_v3a_forward.14} parent=11 // pred_check_branch
        %167 = sbr.rel (%p165) target = $region20
      $region19: #{inception_v3a_forward.14} parent=11 // pred_region
        _
      $region20: #{inception_v3a_forward.14} parent=11 // pred_fallthru
        _
    $region12: #{inception_v3a_forward.14} parent=5 // pred_fallthru
      _
    %p168 = scmp.lt.s32.totalorder %s11, 2
    // Predicated region
    $region21: #{inception_v3a_forward.14} parent=5 // pred_check
      %p169 = pneg %p168
    $region22: #{inception_v3a_forward.14} parent=5 // pred_check_branch
      %171 = sbr.rel (%p169) target = $region24
    $region23: #{inception_v3a_forward.14} parent=5 // pred_region
      // Predicated region
      $region25: #{inception_v3a_forward.14} parent=23 // pred_check
        %p172 = pneg %p43
      $region26: #{inception_v3a_forward.14} parent=23 // pred_check_branch
        %174 = sbr.rel (%p172) target = $region28
      $region27: #{inception_v3a_forward.14} parent=23 // pred_region
        %p175 = scmp.lt.s32.totalorder %s18, 1
        %s176 = scalar_select %p175, %s18, 1
        %s177 = smul.addr %s176, 54
        %s178 = smul.addr %s177, 8
        %s179 = scalar_lea.vmem %s0, %s178
      $region28: #{inception_v3a_forward.14} parent=23 // pred_fallthru
        _
    $region24: #{inception_v3a_forward.14} parent=5 // pred_fallthru
      _
    %p180 = scmp.le.s32.totalorder 1, %s11
    %p181 = scmp.lt.s32.totalorder %s11, 3
    %p182 = pnand %p180, %p181
    %p183 = pneg %p182
    // Predicated region
    $region29: #{inception_v3a_forward.14} parent=5 // pred_check
      _
    $region30: #{inception_v3a_forward.14} parent=5 // pred_check_branch
      %185 = sbr.rel (%p182) target = $region32
    $region31: #{inception_v3a_forward.14} parent=5 // pred_region
      %s186 = ssub.s32 %s11, 1
      %p187 = scmp.lt.s32.totalorder %s20, 1
      %s188 = scalar_select %p187, %s20, 1
      %s189 = smul.addr %s188, 54
      %s190 = smul.addr %s189, 8
      %s191 = scalar_lea.vmem %s0, %s190
      %p192 = pneg %p49
      %p193 = pneg %p46
      %p194 = pneg %p70
      %p195 = pneg %p67
      %p196 = pneg %p91
      %p197 = pneg %p88
      %p198 = pneg %p119
      %p199 = pneg %p116
      %s200 = smul.u32 32, %s21
      %p201 = scmp.lt.s32.totalorder %s20, 1
      %s202 = scalar_select %p201, %s20, 1
      %p203 = scmp.lt.s32.totalorder %s200, 31
      %s204 = scalar_select %p203, %s200, 31
      %s205 = smul.addr %s202, 32
      %s206 = sadd.s32 %s204, %s205
      %s207 = smul.addr %s206, 8
      %s208 = scalar_lea.vmem %s3, %s207
      %p209 = pneg %p147
      %p210 = pneg %p144
      %p211 = scmp.lt.s32.totalorder %s20, 1
      %s212 = scalar_select %p211, %s20, 1
      %p213 = scmp.lt.s32.totalorder %s21, 0
      %s214 = scalar_select %p213, %s21, 0
      %s215 = sadd.s32 %s214, %s212
      %s216 = smul.addr %s215, 2
      %s217 = scalar_lea.vmem %s4, %s216
      %p218 = scmp.lt.s32.totalorder %s20, 1
      %s219 = scalar_select %p218, %s20, 1
      %s220 = smul.addr %s219, 54
      %s221 = smul.addr %s220, 8
      %s222 = scalar_lea.vmem %s0, %s221
      %s223 = smul.u32 32, %s21
      %p224 = scmp.lt.s32.totalorder %s20, 1
      %s225 = scalar_select %p224, %s20, 1
      %p226 = scmp.lt.s32.totalorder %s223, 31
      %s227 = scalar_select %p226, %s223, 31
      %s228 = smul.addr %s225, 32
      %s229 = sadd.s32 %s227, %s228
      %s230 = smul.addr %s229, 8
      %s231 = scalar_lea.vmem %s3, %s230
      %s232 = smul.u32 32, %s21
      %p233 = scmp.lt.s32.totalorder %s20, 1
      %s234 = scalar_select %p233, %s20, 1
      %p235 = scmp.lt.s32.totalorder %s21, 0
      %s236 = scalar_select %p235, %s21, 0
      %s237 = sadd.s32 %s236, %s234
      %s238 = smul.addr %s237, 2
      %s239 = scalar_lea.vmem %s4, %s238
      %s241 = smul.u32 %s21, 16
      %s242 = smul.u32 %s241, 24
      %s243 = scalar_lea.vmem %s222, %s242
      %v244 = vld [vmem:[%s243] sm:$0xff]
      %v245 = vld [vmem:[%s243 + $0x8] sm:$0xff]
      %v246 = vld [vmem:[%s243 + $0x10] sm:$0x3]
      %v247 = vld [vmem:[%s243 + $0x18] sm:$0xff]
      %v248 = vld [vmem:[%s243 + $0x20] sm:$0xff]
      %v249 = vld [vmem:[%s243 + $0x28] sm:$0x3]
      %v250 = vld [vmem:[%s243 + $0x30] sm:$0xff]
      %v251 = vld [vmem:[%s243 + $0x38] sm:$0xff]
      %v252 = vld [vmem:[%s243 + $0x40] sm:$0x3]
      %v253 = vld [vmem:[%s243 + $0x48] sm:$0xff]
      %v254 = vld [vmem:[%s243 + $0x50] sm:$0xff]
      %v255 = vld [vmem:[%s243 + $0x58] sm:$0x3]
      %v256 = vld [vmem:[%s243 + $0x60] sm:$0xff]
      %v257 = vld [vmem:[%s243 + $0x68] sm:$0xff]
      %v258 = vld [vmem:[%s243 + $0x70] sm:$0x3]
      %v259 = vld [vmem:[%s243 + $0x78] sm:$0xff]
      %v260 = vld [vmem:[%s243 + $0x80] sm:$0xff]
      %v261 = vld [vmem:[%s243 + $0x88] sm:$0x3]
      %v262 = vld [vmem:[%s243 + $0x90] sm:$0xff]
      %v263 = vld [vmem:[%s243 + $0x98] sm:$0xff]
      %v264 = vld [vmem:[%s243 + $0xa0] sm:$0x3]
      %v265 = vld [vmem:[%s243 + $0xa8] sm:$0xff]
      %v266 = vld [vmem:[%s243 + $0xb0] sm:$0xff]
      %v267 = vld [vmem:[%s243 + $0xb8] sm:$0x3]
      %v268 = vld [vmem:[%s243 + $0xc0] sm:$0xff]
      %v269 = vld [vmem:[%s243 + $0xc8] sm:$0xff]
      %v270 = vld [vmem:[%s243 + $0xd0] sm:$0x3]
      %v271 = vld [vmem:[%s243 + $0xd8] sm:$0xff]
      %v272 = vld [vmem:[%s243 + $0xe0] sm:$0xff]
      %v273 = vld [vmem:[%s243 + $0xe8] sm:$0x3]
      %v274 = vld [vmem:[%s243 + $0xf0] sm:$0xff]
      %v275 = vld [vmem:[%s243 + $0xf8] sm:$0xff]
      %v276 = vld [vmem:[%s243 + $0x100] sm:$0x3]
      %v277 = vld [vmem:[%s243 + $0x108] sm:$0xff]
      %v278 = vld [vmem:[%s243 + $0x110] sm:$0xff]
      %v279 = vld [vmem:[%s243 + $0x118] sm:$0x3]
      %v280 = vld [vmem:[%s243 + $0x120] sm:$0xff]
      %v281 = vld [vmem:[%s243 + $0x128] sm:$0xff]
      %v282 = vld [vmem:[%s243 + $0x130] sm:$0x3]
      %v283 = vld [vmem:[%s243 + $0x138] sm:$0xff]
      %v284 = vld [vmem:[%s243 + $0x140] sm:$0xff]
      %v285 = vld [vmem:[%s243 + $0x148] sm:$0x3]
      %v286 = vld [vmem:[%s243 + $0x150] sm:$0xff]
      %v287 = vld [vmem:[%s243 + $0x158] sm:$0xff]
      %v288 = vld [vmem:[%s243 + $0x160] sm:$0x3]
      %v289 = vld [vmem:[%s243 + $0x168] sm:$0xff]
      %v290 = vld [vmem:[%s243 + $0x170] sm:$0xff]
      %v291 = vld [vmem:[%s243 + $0x178] sm:$0x3]
      %v292 = vpack.c.bf16 %v245, %v244
      %v293 = vpack.c.bf16 %v248, %v247
      %v294 = vpack.c.bf16 %v251, %v250
      %v295 = vpack.c.bf16 %v254, %v253
      %v296 = vpack.c.bf16 %v257, %v256
      %v297 = vpack.c.bf16 %v260, %v259
      %v298 = vpack.c.bf16 %v263, %v262
      %v299 = vpack.c.bf16 %v266, %v265
      %v300 = vpack.c.bf16 %v269, %v268
      %v301 = vpack.c.bf16 %v272, %v271
      %v302 = vpack.c.bf16 %v275, %v274
      %v303 = vpack.c.bf16 %v278, %v277
      %v304 = vpack.c.bf16 %v281, %v280
      %v305 = vpack.c.bf16 %v284, %v283
      %v306 = vpack.c.bf16 %v287, %v286
      %v307 = vpack.c.bf16 %v290, %v289
      %v308 = vld [vmem:[%s1] sm:$0xf]
      %v309 = vld [vmem:[%s1 + $0x4] sm:$0xf]
      %v310 = vld [vmem:[%s1 + $0x8] sm:$0xf]
      %v311 = vld [vmem:[%s1 + $0xc] sm:$0xf]
      %v312 = vld [vmem:[%s1 + $0x10] sm:$0xf]
      %v313 = vld [vmem:[%s1 + $0x14] sm:$0xf]
      %v314 = vld [vmem:[%s1 + $0x18] sm:$0xf]
      %v315 = vld [vmem:[%s1 + $0x1c] sm:$0xf]
      %v316 = vld [vmem:[%s1 + $0x20] sm:$0xf]
      %v317 = vld [vmem:[%s1 + $0x24] sm:$0xf]
      %v318 = vld [vmem:[%s1 + $0x28] sm:$0xf]
      %v319 = vld [vmem:[%s1 + $0x2c] sm:$0xf]
      %v320 = vld [vmem:[%s1 + $0x30] sm:$0xf]
      %v321 = vld [vmem:[%s1 + $0x34] sm:$0xf]
      %v322 = vld [vmem:[%s1 + $0x38] sm:$0xf]
      %v323 = vld [vmem:[%s1 + $0x3c] sm:$0xf]
      %v340 = vunpack.c.l.b16 %v308
      %v341 = vunpack.c.l.b16 %v309
      %v342 = vunpack.c.l.b16 %v310
      %v343 = vunpack.c.l.b16 %v311
      %v344 = vunpack.c.l.b16 %v312
      %v345 = vunpack.c.l.b16 %v313
      %v346 = vunpack.c.l.b16 %v314
      %v347 = vunpack.c.l.b16 %v315
      %v348 = vunpack.c.l.b16 %v316
      %v349 = vunpack.c.l.b16 %v317
      %v350 = vunpack.c.l.b16 %v318
      %v351 = vunpack.c.l.b16 %v319
      %v352 = vunpack.c.l.b16 %v320
      %v353 = vunpack.c.l.b16 %v321
      %v354 = vunpack.c.l.b16 %v322
      %v355 = vunpack.c.l.b16 %v323
      %v356 = vpack.c.b16 %v341, %v340
      %v357 = vpack.c.b16 %v343, %v342
      %v358 = vpack.c.b16 %v345, %v344
      %v359 = vpack.c.b16 %v347, %v346
      %v360 = vpack.c.b16 %v349, %v348
      %v361 = vpack.c.b16 %v351, %v350
      %v362 = vpack.c.b16 %v353, %v352
      %v363 = vpack.c.b16 %v355, %v354
      %372 = vmatprep.subr.bf16.mxu0 0
      %373 = vmatpush1.bf16.msra.mxu0 %v356
      %374 = vmatprep.subr.bf16.mxu0 0
      %375 = vmatpush1.bf16.msra.mxu0 %v357
      %376 = vmatprep.subr.bf16.mxu0 0
      %377 = vmatpush1.bf16.msra.mxu0 %v358
      %378 = vmatprep.subr.bf16.mxu0 0
      %379 = vmatpush1.bf16.msra.mxu0 %v359
      %380 = vmatprep.subr.bf16.mxu0 0
      %381 = vmatpush1.bf16.msra.mxu0 %v360
      %382 = vmatprep.subr.bf16.mxu0 0
      %383 = vmatpush1.bf16.msra.mxu0 %v361
      %384 = vmatprep.subr.bf16.mxu0 0
      %385 = vmatpush1.bf16.msra.mxu0 %v362
      %386 = vmatprep.subr.bf16.mxu0 0
      %387 = vmatpush1.bf16.msra.mxu0 %v363
      %388 = vmatprep.subr.bf16.mxu0 0
      %389 = vmatpush1.bf16.msra.mxu0 0
      %390 = vmatprep.subr.bf16.mxu0 0
      %391 = vmatpush1.bf16.msra.mxu0 0
      %392 = vmatprep.subr.bf16.mxu0 0
      %393 = vmatpush1.bf16.msra.mxu0 0
      %394 = vmatprep.subr.bf16.mxu0 0
      %395 = vmatpush1.bf16.msra.mxu0 0
      %396 = vmatprep.subr.bf16.mxu0 0
      %397 = vmatpush1.bf16.msra.mxu0 0
      %398 = vmatprep.subr.bf16.mxu0 0
      %399 = vmatpush1.bf16.msra.mxu0 0
      %400 = vmatprep.subr.bf16.mxu0 0
      %401 = vmatpush1.bf16.msra.mxu0 0
      %402 = vmatprep.subr.bf16.mxu0 0
      %403 = vmatpush1.bf16.msra.mxu0 0
      %404 = vmatprep.mubr.bf16.mxu0 0
      %405 = vmatmul.mubr.bf16.gmra.mrb[0].mxu0 %v292
      %v406 = vpop.f32.mrb[0].mxu0
      %v407 = vadd.f32 0.0, %v406
      %v408 = vpop.f32.mrb[0].mxu0
      %v409 = vpop.f32.mrb[0].mxu0
      %v410 = vadd.f32 0.0, %v409
      %v411 = vpop.f32.mrb[0].mxu0
      %412 = vmatprep.mubr.bf16.mxu0 0
      %413 = vmatmul.mubr.bf16.gmra.mrb[0].mxu0 %v293
      %v414 = vpop.f32.mrb[0].mxu0
      %v415 = vadd.f32 0.0, %v414
      %v416 = vpop.f32.mrb[0].mxu0
      %v417 = vpop.f32.mrb[0].mxu0
      %v418 = vadd.f32 0.0, %v417
      %v419 = vpop.f32.mrb[0].mxu0
      %420 = vmatprep.mubr.bf16.mxu0 0
      %421 = vmatmul.mubr.bf16.gmra.mrb[0].mxu0 %v294
      %v422 = vpop.f32.mrb[0].mxu0
      %v423 = vadd.f32 0.0, %v422
      %v424 = vpop.f32.mrb[0].mxu0
      %v425 = vpop.f32.mrb[0].mxu0
      %v426 = vadd.f32 0.0, %v425
      %v427 = vpop.f32.mrb[0].mxu0
      %428 = vmatprep.mubr.bf16.mxu0 0
      %429 = vmatmul.mubr.bf16.gmra.mrb[0].mxu0 %v295
      %v430 = vpop.f32.mrb[0].mxu0
      %v431 = vadd.f32 0.0, %v430
      %v432 = vpop.f32.mrb[0].mxu0
      %v433 = vpop.f32.mrb[0].mxu0
      %v434 = vadd.f32 0.0, %v433
      %v435 = vpop.f32.mrb[0].mxu0
      %436 = vmatprep.mubr.bf16.mxu0 0
      %437 = vmatmul.mubr.bf16.gmra.mrb[0].mxu0 %v296
      %v438 = vpop.f32.mrb[0].mxu0
      %v439 = vadd.f32 0.0, %v438
      %v440 = vpop.f32.mrb[0].mxu0
      %v441 = vpop.f32.mrb[0].mxu0
      %v442 = vadd.f32 0.0, %v441
      %v443 = vpop.f32.mrb[0].mxu0
      %444 = vmatprep.mubr.bf16.mxu0 0
      %445 = vmatmul.mubr.bf16.gmra.mrb[0].mxu0 %v297
      %v446 = vpop.f32.mrb[0].mxu0
      %v447 = vadd.f32 0.0, %v446
      %v448 = vpop.f32.mrb[0].mxu0
      %v449 = vpop.f32.mrb[0].mxu0
      %v450 = vadd.f32 0.0, %v449
      %v451 = vpop.f32.mrb[0].mxu0
      %452 = vmatprep.mubr.bf16.mxu0 0
      %453 = vmatmul.mubr.bf16.gmra.mrb[0].mxu0 %v298
      %v454 = vpop.f32.mrb[0].mxu0
      %v455 = vadd.f32 0.0, %v454
      %v456 = vpop.f32.mrb[0].mxu0
      %v457 = vpop.f32.mrb[0].mxu0
      %v458 = vadd.f32 0.0, %v457
      %v459 = vpop.f32.mrb[0].mxu0
      %460 = vmatprep.mubr.bf16.mxu0 0
      %461 = vmatmul.mubr.bf16.gmra.mrb[0].mxu0 %v299
      %v462 = vpop.f32.mrb[0].mxu0
      %v463 = vadd.f32 0.0, %v462
      %v464 = vpop.f32.mrb[0].mxu0
      %v465 = vpop.f32.mrb[0].mxu0
      %v466 = vadd.f32 0.0, %v465
      %v467 = vpop.f32.mrb[0].mxu0
      %468 = vmatprep.mubr.bf16.mxu0 0
      %469 = vmatmul.mubr.bf16.gmra.mrb[0].mxu0 %v300
      %v470 = vpop.f32.mrb[0].mxu0
      %v471 = vadd.f32 0.0, %v470
      %v472 = vpop.f32.mrb[0].mxu0
      %v473 = vpop.f32.mrb[0].mxu0
      %v474 = vadd.f32 0.0, %v473
      %v475 = vpop.f32.mrb[0].mxu0
      %476 = vmatprep.mubr.bf16.mxu0 0
      %477 = vmatmul.mubr.bf16.gmra.mrb[0].mxu0 %v301
      %v478 = vpop.f32.mrb[0].mxu0
      %v479 = vadd.f32 0.0, %v478
      %v480 = vpop.f32.mrb[0].mxu0
      %v481 = vpop.f32.mrb[0].mxu0
      %v482 = vadd.f32 0.0, %v481
      %v483 = vpop.f32.mrb[0].mxu0
      %484 = vmatprep.mubr.bf16.mxu0 0
      %485 = vmatmul.mubr.bf16.gmra.mrb[0].mxu0 %v302
      %v486 = vpop.f32.mrb[0].mxu0
      %v487 = vadd.f32 0.0, %v486
      %v488 = vpop.f32.mrb[0].mxu0
      %v489 = vpop.f32.mrb[0].mxu0
      %v490 = vadd.f32 0.0, %v489
      %v491 = vpop.f32.mrb[0].mxu0
      %492 = vmatprep.mubr.bf16.mxu0 0
      %493 = vmatmul.mubr.bf16.gmra.mrb[0].mxu0 %v303
      %v494 = vpop.f32.mrb[0].mxu0
      %v495 = vadd.f32 0.0, %v494
      %v496 = vpop.f32.mrb[0].mxu0
      %v497 = vpop.f32.mrb[0].mxu0
      %v498 = vadd.f32 0.0, %v497
      %v499 = vpop.f32.mrb[0].mxu0
      %500 = vmatprep.mubr.bf16.mxu0 0
      %501 = vmatmul.mubr.bf16.gmra.mrb[0].mxu0 %v304
      %v502 = vpop.f32.mrb[0].mxu0
      %v503 = vadd.f32 0.0, %v502
      %v504 = vpop.f32.mrb[0].mxu0
      %v505 = vpop.f32.mrb[0].mxu0
      %v506 = vadd.f32 0.0, %v505
      %v507 = vpop.f32.mrb[0].mxu0
      %508 = vmatprep.mubr.bf16.mxu0 0
      %509 = vmatmul.mubr.bf16.gmra.mrb[0].mxu0 %v305
      %v510 = vpop.f32.mrb[0].mxu0
      %v511 = vadd.f32 0.0, %v510
      %v512 = vpop.f32.mrb[0].mxu0
      %v513 = vpop.f32.mrb[0].mxu0
      %v514 = vadd.f32 0.0, %v513
      %v515 = vpop.f32.mrb[0].mxu0
      %516 = vmatprep.mubr.bf16.mxu0 0
      %517 = vmatmul.mubr.bf16.gmra.mrb[0].mxu0 %v306
      %v518 = vpop.f32.mrb[0].mxu0
      %v519 = vadd.f32 0.0, %v518
      %v520 = vpop.f32.mrb[0].mxu0
      %v521 = vpop.f32.mrb[0].mxu0
      %v522 = vadd.f32 0.0, %v521
      %v523 = vpop.f32.mrb[0].mxu0
      %524 = vmatprep.mubr.bf16.mxu0 0
      %525 = vmatmul.mubr.bf16.gmra.mrb[0].mxu0 %v307
      %v526 = vpop.f32.mrb[0].mxu0
      %v527 = vadd.f32 0.0, %v526
      %v528 = vpop.f32.mrb[0].mxu0
      %v529 = vpop.f32.mrb[0].mxu0
      %v530 = vadd.f32 0.0, %v529
      %v531 = vpop.f32.mrb[0].mxu0
      %532 = vdwg.mxu0
      %533 = vst [vmem:[#allocation2] sm:$0xff] %v407
      %534 = vst [vmem:[#allocation2 + $0x8] sm:$0xff] %v410
      %535 = vst [vmem:[#allocation2 + $0x10] sm:$0xff] %v415
      %536 = vst [vmem:[#allocation2 + $0x18] sm:$0xff] %v418
      %537 = vst [vmem:[#allocation2 + $0x20] sm:$0xff] %v423
      %538 = vst [vmem:[#allocation2 + $0x28] sm:$0xff] %v426
      %539 = vst [vmem:[#allocation2 + $0x30] sm:$0xff] %v431
      %540 = vst [vmem:[#allocation2 + $0x38] sm:$0xff] %v434
      %541 = vst [vmem:[#allocation2 + $0x40] sm:$0xff] %v439
      %542 = vst [vmem:[#allocation2 + $0x48] sm:$0xff] %v442
      %543 = vst [vmem:[#allocation2 + $0x50] sm:$0xff] %v447
      %544 = vst [vmem:[#allocation2 + $0x58] sm:$0xff] %v450
      %545 = vst [vmem:[#allocation2 + $0x60] sm:$0xff] %v455
      %546 = vst [vmem:[#allocation2 + $0x68] sm:$0xff] %v458
      %547 = vst [vmem:[#allocation2 + $0x70] sm:$0xff] %v463
      %548 = vst [vmem:[#allocation2 + $0x78] sm:$0xff] %v466
      %549 = vst [vmem:[#allocation2 + $0x80] sm:$0xff] %v471
      %550 = vst [vmem:[#allocation2 + $0x88] sm:$0xff] %v474
      %551 = vst [vmem:[#allocation2 + $0x90] sm:$0xff] %v479
      %552 = vst [vmem:[#allocation2 + $0x98] sm:$0xff] %v482
      %553 = vst [vmem:[#allocation2 + $0xa0] sm:$0xff] %v487
      %554 = vst [vmem:[#allocation2 + $0xa8] sm:$0xff] %v490
      %555 = vst [vmem:[#allocation2 + $0xb0] sm:$0xff] %v495
      %556 = vst [vmem:[#allocation2 + $0xb8] sm:$0xff] %v498
      %557 = vst [vmem:[#allocation2 + $0xc0] sm:$0xff] %v503
      %558 = vst [vmem:[#allocation2 + $0xc8] sm:$0xff] %v506
      %559 = vst [vmem:[#allocation2 + $0xd0] sm:$0xff] %v511
      %560 = vst [vmem:[#allocation2 + $0xd8] sm:$0xff] %v514
      %561 = vst [vmem:[#allocation2 + $0xe0] sm:$0xff] %v519
      %562 = vst [vmem:[#allocation2 + $0xe8] sm:$0xff] %v522
      %563 = vst [vmem:[#allocation2 + $0xf0] sm:$0xff] %v527
      %564 = vst [vmem:[#allocation2 + $0xf8] sm:$0xff] %v530
      %vm613 = vcmask 1046528
      %v614 = vrot.slane %v244, 1
      %v615 = vrot.slane %v245, 1
      %v616 = vsel %vm613, %v614, %v615
      %v617 = vrot.slane %v246, 1
      %v618 = vsel %vm613, %v615, %v617
      %v619 = vrot.slane %v247, 1
      %v620 = vrot.slane %v248, 1
      %v621 = vsel %vm613, %v619, %v620
      %v622 = vrot.slane %v249, 1
      %v623 = vsel %vm613, %v620, %v622
      %v624 = vrot.slane %v250, 1
      %v625 = vrot.slane %v251, 1
      %v626 = vsel %vm613, %v624, %v625
      %v627 = vrot.slane %v252, 1
      %v628 = vsel %vm613, %v625, %v627
      %v629 = vrot.slane %v253, 1
      %v630 = vrot.slane %v254, 1
      %v631 = vsel %vm613, %v629, %v630
      %v632 = vrot.slane %v255, 1
      %v633 = vsel %vm613, %v630, %v632
      %v634 = vrot.slane %v256, 1
      %v635 = vrot.slane %v257, 1
      %v636 = vsel %vm613, %v634, %v635
      %v637 = vrot.slane %v258, 1
      %v638 = vsel %vm613, %v635, %v637
      %v639 = vrot.slane %v259, 1
      %v640 = vrot.slane %v260, 1
      %v641 = vsel %vm613, %v639, %v640
      %v642 = vrot.slane %v261, 1
      %v643 = vsel %vm613, %v640, %v642
      %v644 = vrot.slane %v262, 1
      %v645 = vrot.slane %v263, 1
      %v646 = vsel %vm613, %v644, %v645
      %v647 = vrot.slane %v264, 1
      %v648 = vsel %vm613, %v645, %v647
      %v649 = vrot.slane %v265, 1
      %v650 = vrot.slane %v266, 1
      %v651 = vsel %vm613, %v649, %v650
      %v652 = vrot.slane %v267, 1
      %v653 = vsel %vm613, %v650, %v652
      %v654 = vrot.slane %v268, 1
      %v655 = vrot.slane %v269, 1
      %v656 = vsel %vm613, %v654, %v655
      %v657 = vrot.slane %v270, 1
      %v658 = vsel %vm613, %v655, %v657
      %v659 = vrot.slane %v271, 1
      %v660 = vrot.slane %v272, 1
      %v661 = vsel %vm613, %v659, %v660
      %v662 = vrot.slane %v273, 1
      %v663 = vsel %vm613, %v660, %v662
      %v664 = vrot.slane %v274, 1
      %v665 = vrot.slane %v275, 1
      %v666 = vsel %vm613, %v664, %v665
      %v667 = vrot.slane %v276, 1
      %v668 = vsel %vm613, %v665, %v667
      %v669 = vrot.slane %v277, 1
      %v670 = vrot.slane %v278, 1
      %v671 = vsel %vm613, %v669, %v670
      %v672 = vrot.slane %v279, 1
      %v673 = vsel %vm613, %v670, %v672
      %v674 = vrot.slane %v280, 1
      %v675 = vrot.slane %v281, 1
      %v676 = vsel %vm613, %v674, %v675
      %v677 = vrot.slane %v282, 1
      %v678 = vsel %vm613, %v675, %v677
      %v679 = vrot.slane %v283, 1
      %v680 = vrot.slane %v284, 1
      %v681 = vsel %vm613, %v679, %v680
      %v682 = vrot.slane %v285, 1
      %v683 = vsel %vm613, %v680, %v682
      %v684 = vrot.slane %v286, 1
      %v685 = vrot.slane %v287, 1
      %v686 = vsel %vm613, %v684, %v685
      %v687 = vrot.slane %v288, 1
      %v688 = vsel %vm613, %v685, %v687
      %v689 = vrot.slane %v289, 1
      %v690 = vrot.slane %v290, 1
      %v691 = vsel %vm613, %v689, %v690
      %v692 = vrot.slane %v291, 1
      %v693 = vsel %vm613, %v690, %v692
      %v726 = vpack.c.bf16 %v618, %v616
      %v727 = vpack.c.bf16 %v623, %v621
      %v728 = vpack.c.bf16 %v628, %v626
      %v729 = vpack.c.bf16 %v633, %v631
      %v730 = vpack.c.bf16 %v638, %v636
      %v731 = vpack.c.bf16 %v643, %v641
      %v732 = vpack.c.bf16 %v648, %v646
      %v733 = vpack.c.bf16 %v653, %v651
      %v734 = vpack.c.bf16 %v658, %v656
      %v735 = vpack.c.bf16 %v663, %v661
      %v736 = vpack.c.bf16 %v668, %v666
      %v737 = vpack.c.bf16 %v673, %v671
      %v738 = vpack.c.bf16 %v678, %v676
      %v739 = vpack.c.bf16 %v683, %v681
      %v740 = vpack.c.bf16 %v688, %v686
      %v741 = vpack.c.bf16 %v693, %v691
      %s742 = scalar_lea.vmem %s1, 64
      %v743 = vld [vmem:[%s742] sm:$0xf]
      %v744 = vld [vmem:[%s742 + $0x4] sm:$0xf]
      %v745 = vld [vmem:[%s742 + $0x8] sm:$0xf]
      %v746 = vld [vmem:[%s742 + $0xc] sm:$0xf]
      %v747 = vld [vmem:[%s742 + $0x10] sm:$0xf]
      %v748 = vld [vmem:[%s742 + $0x14] sm:$0xf]
      %v749 = vld [vmem:[%s742 + $0x18] sm:$0xf]
      %v750 = vld [vmem:[%s742 + $0x1c] sm:$0xf]
      %v751 = vld [vmem:[%s742 + $0x20] sm:$0xf]
      %v752 = vld [vmem:[%s742 + $0x24] sm:$0xf]
      %v753 = vld [vmem:[%s742 + $0x28] sm:$0xf]
      %v754 = vld [vmem:[%s742 + $0x2c] sm:$0xf]
      %v755 = vld [vmem:[%s742 + $0x30] sm:$0xf]
      %v756 = vld [vmem:[%s742 + $0x34] sm:$0xf]
      %v757 = vld [vmem:[%s742 + $0x38] sm:$0xf]
      %v758 = vld [vmem:[%s742 + $0x3c] sm:$0xf]
      %v775 = vunpack.c.l.b16 %v743
      %v776 = vunpack.c.l.b16 %v744
      %v777 = vunpack.c.l.b16 %v745
      %v778 = vunpack.c.l.b16 %v746
      %v779 = vunpack.c.l.b16 %v747
      %v780 = vunpack.c.l.b16 %v748
      %v781 = vunpack.c.l.b16 %v749
      %v782 = vunpack.c.l.b16 %v750
      %v783 = vunpack.c.l.b16 %v751
      %v784 = vunpack.c.l.b16 %v752
      %v785 = vunpack.c.l.b16 %v753
      %v786 = vunpack.c.l.b16 %v754
      %v787 = vunpack.c.l.b16 %v755
      %v788 = vunpack.c.l.b16 %v756
      %v789 = vunpack.c.l.b16 %v757
      %v790 = vunpack.c.l.b16 %v758
      %v791 = vpack.c.b16 %v776, %v775
      %v792 = vpack.c.b16 %v778, %v777
      %v793 = vpack.c.b16 %v780, %v779
      %v794 = vpack.c.b16 %v782, %v781
      %v795 = vpack.c.b16 %v784, %v783
      %v796 = vpack.c.b16 %v786, %v785
      %v797 = vpack.c.b16 %v788, %v787
      %v798 = vpack.c.b16 %v790, %v789
      %807 = vmatprep.subr.bf16.mxu0 0
      %808 = vmatpush1.bf16.msra.mxu0 %v791
      %809 = vmatprep.subr.bf16.mxu0 0
      %810 = vmatpush1.bf16.msra.mxu0 %v792
      %811 = vmatprep.subr.bf16.mxu0 0
      %812 = vmatpush1.bf16.msra.mxu0 %v793
      %813 = vmatprep.subr.bf16.mxu0 0
      %814 = vmatpush1.bf16.msra.mxu0 %v794
      %815 = vmatprep.subr.bf16.mxu0 0
      %816 = vmatpush1.bf16.msra.mxu0 %v795
      %817 = vmatprep.subr.bf16.mxu0 0
      %818 = vmatpush1.bf16.msra.mxu0 %v796
      %819 = vmatprep.subr.bf16.mxu0 0
      %820 = vmatpush1.bf16.msra.mxu0 %v797
      %821 = vmatprep.subr.bf16.mxu0 0
      %822 = vmatpush1.bf16.msra.mxu0 %v798
      %823 = vmatprep.subr.bf16.mxu0 0
      %824 = vmatpush1.bf16.msra.mxu0 0
      %825 = vmatprep.subr.bf16.mxu0 0
      %826 = vmatpush1.bf16.msra.mxu0 0
      %827 = vmatprep.subr.bf16.mxu0 0
      %828 = vmatpush1.bf16.msra.mxu0 0
      %829 = vmatprep.subr.bf16.mxu0 0
      %830 = vmatpush1.bf16.msra.mxu0 0
      %831 = vmatprep.subr.bf16.mxu0 0
      %832 = vmatpush1.bf16.msra.mxu0 0
      %833 = vmatprep.subr.bf16.mxu0 0
      %834 = vmatpush1.bf16.msra.mxu0 0
      %835 = vmatprep.subr.bf16.mxu0 0
      %836 = vmatpush1.bf16.msra.mxu0 0
      %837 = vmatprep.subr.bf16.mxu0 0
      %838 = vmatpush1.bf16.msra.mxu0 0
      %839 = vmatprep.mubr.bf16.mxu0 0
      %840 = vmatmul.mubr.bf16.gmra.mrb[0].mxu0 %v726
      %v841 = vpop.f32.mrb[0].mxu0
      %v842 = vadd.f32 0.0, %v841
      %v843 = vpop.f32.mrb[0].mxu0
      %v844 = vpop.f32.mrb[0].mxu0
      %v845 = vadd.f32 0.0, %v844
      %v846 = vpop.f32.mrb[0].mxu0
      %847 = vmatprep.mubr.bf16.mxu0 0
      %848 = vmatmul.mubr.bf16.gmra.mrb[0].mxu0 %v727
      %v849 = vpop.f32.mrb[0].mxu0
      %v850 = vadd.f32 0.0, %v849
      %v851 = vpop.f32.mrb[0].mxu0
      %v852 = vpop.f32.mrb[0].mxu0
      %v853 = vadd.f32 0.0, %v852
      %v854 = vpop.f32.mrb[0].mxu0
      %855 = vmatprep.mubr.bf16.mxu0 0
      %856 = vmatmul.mubr.bf16.gmra.mrb[0].mxu0 %v728
      %v857 = vpop.f32.mrb[0].mxu0
      %v858 = vadd.f32 0.0, %v857
      %v859 = vpop.f32.mrb[0].mxu0
      %v860 = vpop.f32.mrb[0].mxu0
      %v861 = vadd.f32 0.0, %v860
      %v862 = vpop.f32.mrb[0].mxu0
      %863 = vmatprep.mubr.bf16.mxu0 0
      %864 = vmatmul.mubr.bf16.gmra.mrb[0].mxu0 %v729
      %v865 = vpop.f32.mrb[0].mxu0
      %v866 = vadd.f32 0.0, %v865
      %v867 = vpop.f32.mrb[0].mxu0
      %v868 = vpop.f32.mrb[0].mxu0
      %v869 = vadd.f32 0.0, %v868
      %v870 = vpop.f32.mrb[0].mxu0
      %871 = vmatprep.mubr.bf16.mxu0 0
      %872 = vmatmul.mubr.bf16.gmra.mrb[0].mxu0 %v730
      %v873 = vpop.f32.mrb[0].mxu0
      %v874 = vadd.f32 0.0, %v873
      %v875 = vpop.f32.mrb[0].mxu0
      %v876 = vpop.f32.mrb[0].mxu0
      %v877 = vadd.f32 0.0, %v876
      %v878 = vpop.f32.mrb[0].mxu0
      %879 = vmatprep.mubr.bf16.mxu0 0
      %880 = vmatmul.mubr.bf16.gmra.mrb[0].mxu0 %v731
      %v881 = vpop.f32.mrb[0].mxu0
      %v882 = vadd.f32 0.0, %v881
      %v883 = vpop.f32.mrb[0].mxu0
      %v884 = vpop.f32.mrb[0].mxu0
      %v885 = vadd.f32 0.0, %v884
      %v886 = vpop.f32.mrb[0].mxu0
      %887 = vmatprep.mubr.bf16.mxu0 0
      %888 = vmatmul.mubr.bf16.gmra.mrb[0].mxu0 %v732
      %v889 = vpop.f32.mrb[0].mxu0
      %v890 = vadd.f32 0.0, %v889
      %v891 = vpop.f32.mrb[0].mxu0
      %v892 = vpop.f32.mrb[0].mxu0
      %v893 = vadd.f32 0.0, %v892
      %v894 = vpop.f32.mrb[0].mxu0
      %895 = vmatprep.mubr.bf16.mxu0 0
      %896 = vmatmul.mubr.bf16.gmra.mrb[0].mxu0 %v733
      %v897 = vpop.f32.mrb[0].mxu0
      %v898 = vadd.f32 0.0, %v897
      %v899 = vpop.f32.mrb[0].mxu0
      %v900 = vpop.f32.mrb[0].mxu0
      %v901 = vadd.f32 0.0, %v900
      %v902 = vpop.f32.mrb[0].mxu0
      %903 = vmatprep.mubr.bf16.mxu0 0
      %904 = vmatmul.mubr.bf16.gmra.mrb[0].mxu0 %v734
      %v905 = vpop.f32.mrb[0].mxu0
      %v906 = vadd.f32 0.0, %v905
      %v907 = vpop.f32.mrb[0].mxu0
      %v908 = vpop.f32.mrb[0].mxu0
      %v909 = vadd.f32 0.0, %v908
      %v910 = vpop.f32.mrb[0].mxu0
      %911 = vmatprep.mubr.bf16.mxu0 0
      %912 = vmatmul.mubr.bf16.gmra.mrb[0].mxu0 %v735
      %v913 = vpop.f32.mrb[0].mxu0
      %v914 = vadd.f32 0.0, %v913
      %v915 = vpop.f32.mrb[0].mxu0
      %v916 = vpop.f32.mrb[0].mxu0
      %v917 = vadd.f32 0.0, %v916
      %v918 = vpop.f32.mrb[0].mxu0
      %919 = vmatprep.mubr.bf16.mxu0 0
      %920 = vmatmul.mubr.bf16.gmra.mrb[0].mxu0 %v736
      %v921 = vpop.f32.mrb[0].mxu0
      %v922 = vadd.f32 0.0, %v921
      %v923 = vpop.f32.mrb[0].mxu0
      %v924 = vpop.f32.mrb[0].mxu0
      %v925 = vadd.f32 0.0, %v924
      %v926 = vpop.f32.mrb[0].mxu0
      %927 = vmatprep.mubr.bf16.mxu0 0
      %928 = vmatmul.mubr.bf16.gmra.mrb[0].mxu0 %v737
      %v929 = vpop.f32.mrb[0].mxu0
      %v930 = vadd.f32 0.0, %v929
      %v931 = vpop.f32.mrb[0].mxu0
      %v932 = vpop.f32.mrb[0].mxu0
      %v933 = vadd.f32 0.0, %v932
      %v934 = vpop.f32.mrb[0].mxu0
      %935 = vmatprep.mubr.bf16.mxu0 0
      %936 = vmatmul.mubr.bf16.gmra.mrb[0].mxu0 %v738
      %v937 = vpop.f32.mrb[0].mxu0
      %v938 = vadd.f32 0.0, %v937
      %v939 = vpop.f32.mrb[0].mxu0
      %v940 = vpop.f32.mrb[0].mxu0
      %v941 = vadd.f32 0.0, %v940
      %v942 = vpop.f32.mrb[0].mxu0
      %943 = vmatprep.mubr.bf16.mxu0 0
      %944 = vmatmul.mubr.bf16.gmra.mrb[0].mxu0 %v739
      %v945 = vpop.f32.mrb[0].mxu0
      %v946 = vadd.f32 0.0, %v945
      %v947 = vpop.f32.mrb[0].mxu0
      %v948 = vpop.f32.mrb[0].mxu0
      %v949 = vadd.f32 0.0, %v948
      %v950 = vpop.f32.mrb[0].mxu0
      %951 = vmatprep.mubr.bf16.mxu0 0
      %952 = vmatmul.mubr.bf16.gmra.mrb[0].mxu0 %v740
      %v953 = vpop.f32.mrb[0].mxu0
      %v954 = vadd.f32 0.0, %v953
      %v955 = vpop.f32.mrb[0].mxu0
      %v956 = vpop.f32.mrb[0].mxu0
      %v957 = vadd.f32 0.0, %v956
      %v958 = vpop.f32.mrb[0].mxu0
      %959 = vmatprep.mubr.bf16.mxu0 0
      %960 = vmatmul.mubr.bf16.gmra.mrb[0].mxu0 %v741
      %v961 = vpop.f32.mrb[0].mxu0
      %v962 = vadd.f32 0.0, %v961
      %v963 = vpop.f32.mrb[0].mxu0
      %v964 = vpop.f32.mrb[0].mxu0
      %v965 = vadd.f32 0.0, %v964
      %v966 = vpop.f32.mrb[0].mxu0
      %967 = vdwg.mxu0
      %v968 = vld [vmem:[#allocation2] sm:$0xff]
      %v969 = vld [vmem:[#allocation2 + $0x8] sm:$0xff]
      %v970 = vld [vmem:[#allocation2 + $0x10] sm:$0xff]
      %v971 = vld [vmem:[#allocation2 + $0x18] sm:$0xff]
      %v972 = vld [vmem:[#allocation2 + $0x20] sm:$0xff]
      %v973 = vld [vmem:[#allocation2 + $0x28] sm:$0xff]
      %v974 = vld [vmem:[#allocation2 + $0x30] sm:$0xff]
      %v975 = vld [vmem:[#allocation2 + $0x38] sm:$0xff]
      %v976 = vld [vmem:[#allocation2 + $0x40] sm:$0xff]
      %v977 = vld [vmem:[#allocation2 + $0x48] sm:$0xff]
      %v978 = vld [vmem:[#allocation2 + $0x50] sm:$0xff]
      %v979 = vld [vmem:[#allocation2 + $0x58] sm:$0xff]
      %v980 = vld [vmem:[#allocation2 + $0x60] sm:$0xff]
      %v981 = vld [vmem:[#allocation2 + $0x68] sm:$0xff]
      %v982 = vld [vmem:[#allocation2 + $0x70] sm:$0xff]
      %v983 = vld [vmem:[#allocation2 + $0x78] sm:$0xff]
      %v984 = vld [vmem:[#allocation2 + $0x80] sm:$0xff]
      %v985 = vld [vmem:[#allocation2 + $0x88] sm:$0xff]
      %v986 = vld [vmem:[#allocation2 + $0x90] sm:$0xff]
      %v987 = vld [vmem:[#allocation2 + $0x98] sm:$0xff]
      %v988 = vld [vmem:[#allocation2 + $0xa0] sm:$0xff]
      %v989 = vld [vmem:[#allocation2 + $0xa8] sm:$0xff]
      %v990 = vld [vmem:[#allocation2 + $0xb0] sm:$0xff]
      %v991 = vld [vmem:[#allocation2 + $0xb8] sm:$0xff]
      %v992 = vld [vmem:[#allocation2 + $0xc0] sm:$0xff]
      %v993 = vld [vmem:[#allocation2 + $0xc8] sm:$0xff]
      %v994 = vld [vmem:[#allocation2 + $0xd0] sm:$0xff]
      %v995 = vld [vmem:[#allocation2 + $0xd8] sm:$0xff]
      %v996 = vld [vmem:[#allocation2 + $0xe0] sm:$0xff]
      %v997 = vld [vmem:[#allocation2 + $0xe8] sm:$0xff]
      %v998 = vld [vmem:[#allocation2 + $0xf0] sm:$0xff]
      %v999 = vld [vmem:[#allocation2 + $0xf8] sm:$0xff]
      %v1000 = vadd.f32 %v968, %v842
      %v1001 = vadd.f32 %v969, %v845
      %v1002 = vadd.f32 %v970, %v850
      %v1003 = vadd.f32 %v971, %v853
      %v1004 = vadd.f32 %v972, %v858
      %v1005 = vadd.f32 %v973, %v861
      %v1006 = vadd.f32 %v974, %v866
      %v1007 = vadd.f32 %v975, %v869
      %v1008 = vadd.f32 %v976, %v874
      %v1009 = vadd.f32 %v977, %v877
      %v1010 = vadd.f32 %v978, %v882
      %v1011 = vadd.f32 %v979, %v885
      %v1012 = vadd.f32 %v980, %v890
      %v1013 = vadd.f32 %v981, %v893
      %v1014 = vadd.f32 %v982, %v898
      %v1015 = vadd.f32 %v983, %v901
      %v1016 = vadd.f32 %v984, %v906
      %v1017 = vadd.f32 %v985, %v909
      %v1018 = vadd.f32 %v986, %v914
      %v1019 = vadd.f32 %v987, %v917
      %v1020 = vadd.f32 %v988, %v922
      %v1021 = vadd.f32 %v989, %v925
      %v1022 = vadd.f32 %v990, %v930
      %v1023 = vadd.f32 %v991, %v933
      %v1024 = vadd.f32 %v992, %v938
      %v1025 = vadd.f32 %v993, %v941
      %v1026 = vadd.f32 %v994, %v946
      %v1027 = vadd.f32 %v995, %v949
      %v1028 = vadd.f32 %v996, %v954
      %v1029 = vadd.f32 %v997, %v957
      %v1030 = vadd.f32 %v998, %v962
      %v1031 = vadd.f32 %v999, %v965
      %1032 = vst [vmem:[#allocation2] sm:$0xff] %v1000
      %1033 = vst [vmem:[#allocation2 + $0x8] sm:$0xff] %v1001
      %1034 = vst [vmem:[#allocation2 + $0x10] sm:$0xff] %v1002
      %1035 = vst [vmem:[#allocation2 + $0x18] sm:$0xff] %v1003
      %1036 = vst [vmem:[#allocation2 + $0x20] sm:$0xff] %v1004
      %1037 = vst [vmem:[#allocation2 + $0x28] sm:$0xff] %v1005
      %1038 = vst [vmem:[#allocation2 + $0x30] sm:$0xff] %v1006
      %1039 = vst [vmem:[#allocation2 + $0x38] sm:$0xff] %v1007
      %1040 = vst [vmem:[#allocation2 + $0x40] sm:$0xff] %v1008
      %1041 = vst [vmem:[#allocation2 + $0x48] sm:$0xff] %v1009
      %1042 = vst [vmem:[#allocation2 + $0x50] sm:$0xff] %v1010
      %1043 = vst [vmem:[#allocation2 + $0x58] sm:$0xff] %v1011
      %1044 = vst [vmem:[#allocation2 + $0x60] sm:$0xff] %v1012
      %1045 = vst [vmem:[#allocation2 + $0x68] sm:$0xff] %v1013
      %1046 = vst [vmem:[#allocation2 + $0x70] sm:$0xff] %v1014
      %1047 = vst [vmem:[#allocation2 + $0x78] sm:$0xff] %v1015
      %1048 = vst [vmem:[#allocation2 + $0x80] sm:$0xff] %v1016
      %1049 = vst [vmem:[#allocation2 + $0x88] sm:$0xff] %v1017
      %1050 = vst [vmem:[#allocation2 + $0x90] sm:$0xff] %v1018
      %1051 = vst [vmem:[#allocation2 + $0x98] sm:$0xff] %v1019
      %1052 = vst [vmem:[#allocation2 + $0xa0] sm:$0xff] %v1020
      %1053 = vst [vmem:[#allocation2 + $0xa8] sm:$0xff] %v1021
      %1054 = vst [vmem:[#allocation2 + $0xb0] sm:$0xff] %v1022
      %1055 = vst [vmem:[#allocation2 + $0xb8] sm:$0xff] %v1023
      %1056 = vst [vmem:[#allocation2 + $0xc0] sm:$0xff] %v1024
      %1057 = vst [vmem:[#allocation2 + $0xc8] sm:$0xff] %v1025
      %1058 = vst [vmem:[#allocation2 + $0xd0] sm:$0xff] %v1026
      %1059 = vst [vmem:[#allocation2 + $0xd8] sm:$0xff] %v1027
      %1060 = vst [vmem:[#allocation2 + $0xe0] sm:$0xff] %v1028
      %1061 = vst [vmem:[#allocation2 + $0xe8] sm:$0xff] %v1029
      %1062 = vst [vmem:[#allocation2 + $0xf0] sm:$0xff] %v1030
      %1063 = vst [vmem:[#allocation2 + $0xf8] sm:$0xff] %v1031
      %vm1064 = vcmask 1045504
      %v1065 = vrot.slane %v244, 2
      %v1066 = vrot.slane %v245, 2
      %v1067 = vsel %vm1064, %v1065, %v1066
      %v1068 = vrot.slane %v246, 2
      %v1069 = vsel %vm1064, %v1066, %v1068
      %v1070 = vrot.slane %v247, 2
      %v1071 = vrot.slane %v248, 2
      %v1072 = vsel %vm1064, %v1070, %v1071
      %v1073 = vrot.slane %v249, 2
      %v1074 = vsel %vm1064, %v1071, %v1073
      %v1075 = vrot.slane %v250, 2
      %v1076 = vrot.slane %v251, 2
      %v1077 = vsel %vm1064, %v1075, %v1076
      %v1078 = vrot.slane %v252, 2
      %v1079 = vsel %vm1064, %v1076, %v1078
      %v1080 = vrot.slane %v253, 2
      %v1081 = vrot.slane %v254, 2
      %v1082 = vsel %vm1064, %v1080, %v1081
      %v1083 = vrot.slane %v255, 2
      %v1084 = vsel %vm1064, %v1081, %v1083
      %v1085 = vrot.slane %v256, 2
      %v1086 = vrot.slane %v257, 2
      %v1087 = vsel %vm1064, %v1085, %v1086
      %v1088 = vrot.slane %v258, 2
      %v1089 = vsel %vm1064, %v1086, %v1088
      %v1090 = vrot.slane %v259, 2
      %v1091 = vrot.slane %v260, 2
      %v1092 = vsel %vm1064, %v1090, %v1091
      %v1093 = vrot.slane %v261, 2
      %v1094 = vsel %vm1064, %v1091, %v1093
      %v1095 = vrot.slane %v262, 2
      %v1096 = vrot.slane %v263, 2
      %v1097 = vsel %vm1064, %v1095, %v1096
      %v1098 = vrot.slane %v264, 2
      %v1099 = vsel %vm1064, %v1096, %v1098
      %v1100 = vrot.slane %v265, 2
      %v1101 = vrot.slane %v266, 2
      %v1102 = vsel %vm1064, %v1100, %v1101
      %v1103 = vrot.slane %v267, 2
      %v1104 = vsel %vm1064, %v1101, %v1103
      %v1105 = vrot.slane %v268, 2
      %v1106 = vrot.slane %v269, 2
      %v1107 = vsel %vm1064, %v1105, %v1106
      %v1108 = vrot.slane %v270, 2
      %v1109 = vsel %vm1064, %v1106, %v1108
      %v1110 = vrot.slane %v271, 2
      %v1111 = vrot.slane %v272, 2
      %v1112 = vsel %vm1064, %v1110, %v1111
      %v1113 = vrot.slane %v273, 2
      %v1114 = vsel %vm1064, %v1111, %v1113
      %v1115 = vrot.slane %v274, 2
      %v1116 = vrot.slane %v275, 2
      %v1117 = vsel %vm1064, %v1115, %v1116
      %v1118 = vrot.slane %v276, 2
      %v1119 = vsel %vm1064, %v1116, %v1118
      %v1120 = vrot.slane %v277, 2
      %v1121 = vrot.slane %v278, 2
      %v1122 = vsel %vm1064, %v1120, %v1121
      %v1123 = vrot.slane %v279, 2
      %v1124 = vsel %vm1064, %v1121, %v1123
      %v1125 = vrot.slane %v280, 2
      %v1126 = vrot.slane %v281, 2
      %v1127 = vsel %vm1064, %v1125, %v1126
      %v1128 = vrot.slane %v282, 2
      %v1129 = vsel %vm1064, %v1126, %v1128
      %v1130 = vrot.slane %v283, 2
      %v1131 = vrot.slane %v284, 2
      %v1132 = vsel %vm1064, %v1130, %v1131
      %v1133 = vrot.slane %v285, 2
      %v1134 = vsel %vm1064, %v1131, %v1133
      %v1135 = vrot.slane %v286, 2
      %v1136 = vrot.slane %v287, 2
      %v1137 = vsel %vm1064, %v1135, %v1136
      %v1138 = vrot.slane %v288, 2
      %v1139 = vsel %vm1064, %v1136, %v1138
      %v1140 = vrot.slane %v289, 2
      %v1141 = vrot.slane %v290, 2
      %v1142 = vsel %vm1064, %v1140, %v1141
      %v1143 = vrot.slane %v291, 2
      %v1144 = vsel %vm1064, %v1141, %v1143
      %v1177 = vpack.c.bf16 %v1069, %v1067
      %v1178 = vpack.c.bf16 %v1074, %v1072
      %v1179 = vpack.c.bf16 %v1079, %v1077
      %v1180 = vpack.c.bf16 %v1084, %v1082
      %v1181 = vpack.c.bf16 %v1089, %v1087
      %v1182 = vpack.c.bf16 %v1094, %v1092
      %v1183 = vpack.c.bf16 %v1099, %v1097
      %v1184 = vpack.c.bf16 %v1104, %v1102
      %v1185 = vpack.c.bf16 %v1109, %v1107
      %v1186 = vpack.c.bf16 %v1114, %v1112
      %v1187 = vpack.c.bf16 %v1119, %v1117
      %v1188 = vpack.c.bf16 %v1124, %v1122
      %v1189 = vpack.c.bf16 %v1129, %v1127
      %v1190 = vpack.c.bf16 %v1134, %v1132
      %v1191 = vpack.c.bf16 %v1139, %v1137
      %v1192 = vpack.c.bf16 %v1144, %v1142
      %s1193 = scalar_lea.vmem %s1, 128
      %v1194 = vld [vmem:[%s1193] sm:$0xf]
      %v1195 = vld [vmem:[%s1193 + $0x4] sm:$0xf]
      %v1196 = vld [vmem:[%s1193 + $0x8] sm:$0xf]
      %v1197 = vld [vmem:[%s1193 + $0xc] sm:$0xf]
      %v1198 = vld [vmem:[%s1193 + $0x10] sm:$0xf]
      %v1199 = vld [vmem:[%s1193 + $0x14] sm:$0xf]
      %v1200 = vld [vmem:[%s1193 + $0x18] sm:$0xf]
      %v1201 = vld [vmem:[%s1193 + $0x1c] sm:$0xf]
      %v1202 = vld [vmem:[%s1193 + $0x20] sm:$0xf]
      %v1203 = vld [vmem:[%s1193 + $0x24] sm:$0xf]
      %v1204 = vld [vmem:[%s1193 + $0x28] sm:$0xf]
      %v1205 = vld [vmem:[%s1193 + $0x2c] sm:$0xf]
      %v1206 = vld [vmem:[%s1193 + $0x30] sm:$0xf]
      %v1207 = vld [vmem:[%s1193 + $0x34] sm:$0xf]
      %v1208 = vld [vmem:[%s1193 + $0x38] sm:$0xf]
      %v1209 = vld [vmem:[%s1193 + $0x3c] sm:$0xf]
      %v1226 = vunpack.c.l.b16 %v1194
      %v1227 = vunpack.c.l.b16 %v1195
      %v1228 = vunpack.c.l.b16 %v1196
      %v1229 = vunpack.c.l.b16 %v1197
      %v1230 = vunpack.c.l.b16 %v1198
      %v1231 = vunpack.c.l.b16 %v1199
      %v1232 = vunpack.c.l.b16 %v1200
      %v1233 = vunpack.c.l.b16 %v1201
      %v1234 = vunpack.c.l.b16 %v1202
      %v1235 = vunpack.c.l.b16 %v1203
      %v1236 = vunpack.c.l.b16 %v1204
      %v1237 = vunpack.c.l.b16 %v1205
      %v1238 = vunpack.c.l.b16 %v1206
      %v1239 = vunpack.c.l.b16 %v1207
      %v1240 = vunpack.c.l.b16 %v1208
      %v1241 = vunpack.c.l.b16 %v1209
      %v1242 = vpack.c.b16 %v1227, %v1226
      %v1243 = vpack.c.b16 %v1229, %v1228
      %v1244 = vpack.c.b16 %v1231, %v1230
      %v1245 = vpack.c.b16 %v1233, %v1232
      %v1246 = vpack.c.b16 %v1235, %v1234
      %v1247 = vpack.c.b16 %v1237, %v1236
      %v1248 = vpack.c.b16 %v1239, %v1238
      %v1249 = vpack.c.b16 %v1241, %v1240
      %1258 = vmatprep.subr.bf16.mxu0 0
      %1259 = vmatpush1.bf16.msra.mxu0 %v1242
      %1260 = vmatprep.subr.bf16.mxu0 0
      %1261 = vmatpush1.bf16.msra.mxu0 %v1243
      %1262 = vmatprep.subr.bf16.mxu0 0
      %1263 = vmatpush1.bf16.msra.mxu0 %v1244
      %1264 = vmatprep.subr.bf16.mxu0 0
      %1265 = vmatpush1.bf16.msra.mxu0 %v1245
      %1266 = vmatprep.subr.bf16.mxu0 0
      %1267 = vmatpush1.bf16.msra.mxu0 %v1246
      %1268 = vmatprep.subr.bf16.mxu0 0
      %1269 = vmatpush1.bf16.msra.mxu0 %v1247
      %1270 = vmatprep.subr.bf16.mxu0 0
      %1271 = vmatpush1.bf16.msra.mxu0 %v1248
      %1272 = vmatprep.subr.bf16.mxu0 0
      %1273 = vmatpush1.bf16.msra.mxu0 %v1249
      %1274 = vmatprep.subr.bf16.mxu0 0
      %1275 = vmatpush1.bf16.msra.mxu0 0
      %1276 = vmatprep.subr.bf16.mxu0 0
      %1277 = vmatpush1.bf16.msra.mxu0 0
      %1278 = vmatprep.subr.bf16.mxu0 0
      %1279 = vmatpush1.bf16.msra.mxu0 0
      %1280 = vmatprep.subr.bf16.mxu0 0
      %1281 = vmatpush1.bf16.msra.mxu0 0
      %1282 = vmatprep.subr.bf16.mxu0 0
      %1283 = vmatpush1.bf16.msra.mxu0 0
      %1284 = vmatprep.subr.bf16.mxu0 0
      %1285 = vmatpush1.bf16.msra.mxu0 0
      %1286 = vmatprep.subr.bf16.mxu0 0
      %1287 = vmatpush1.bf16.msra.mxu0 0
      %1288 = vmatprep.subr.bf16.mxu0 0
      %1289 = vmatpush1.bf16.msra.mxu0 0
      %1290 = vmatprep.mubr.bf16.mxu0 0
      %1291 = vmatmul.mubr.bf16.gmra.mrb[0].mxu0 %v1177
      %v1292 = vpop.f32.mrb[0].mxu0
      %v1293 = vadd.f32 0.0, %v1292
      %v1294 = vpop.f32.mrb[0].mxu0
      %v1295 = vpop.f32.mrb[0].mxu0
      %v1296 = vadd.f32 0.0, %v1295
      %v1297 = vpop.f32.mrb[0].mxu0
      %1298 = vmatprep.mubr.bf16.mxu0 0
      %1299 = vmatmul.mubr.bf16.gmra.mrb[0].mxu0 %v1178
      %v1300 = vpop.f32.mrb[0].mxu0
      %v1301 = vadd.f32 0.0, %v1300
      %v1302 = vpop.f32.mrb[0].mxu0
      %v1303 = vpop.f32.mrb[0].mxu0
      %v1304 = vadd.f32 0.0, %v1303
      %v1305 = vpop.f32.mrb[0].mxu0
      %1306 = vmatprep.mubr.bf16.mxu0 0
      %1307 = vmatmul.mubr.bf16.gmra.mrb[0].mxu0 %v1179
      %v1308 = vpop.f32.mrb[0].mxu0
      %v1309 = vadd.f32 0.0, %v1308
      %v1310 = vpop.f32.mrb[0].mxu0
      %v1311 = vpop.f32.mrb[0].mxu0
      %v1312 = vadd.f32 0.0, %v1311
      %v1313 = vpop.f32.mrb[0].mxu0
      %1314 = vmatprep.mubr.bf16.mxu0 0
      %1315 = vmatmul.mubr.bf16.gmra.mrb[0].mxu0 %v1180
      %v1316 = vpop.f32.mrb[0].mxu0
      %v1317 = vadd.f32 0.0, %v1316
      %v1318 = vpop.f32.mrb[0].mxu0
      %v1319 = vpop.f32.mrb[0].mxu0
      %v1320 = vadd.f32 0.0, %v1319
      %v1321 = vpop.f32.mrb[0].mxu0
      %1322 = vmatprep.mubr.bf16.mxu0 0
      %1323 = vmatmul.mubr.bf16.gmra.mrb[0].mxu0 %v1181
      %v1324 = vpop.f32.mrb[0].mxu0
      %v1325 = vadd.f32 0.0, %v1324
      %v1326 = vpop.f32.mrb[0].mxu0
      %v1327 = vpop.f32.mrb[0].mxu0
      %v1328 = vadd.f32 0.0, %v1327
      %v1329 = vpop.f32.mrb[0].mxu0
      %1330 = vmatprep.mubr.bf16.mxu0 0
      %1331 = vmatmul.mubr.bf16.gmra.mrb[0].mxu0 %v1182
      %v1332 = vpop.f32.mrb[0].mxu0
      %v1333 = vadd.f32 0.0, %v1332
      %v1334 = vpop.f32.mrb[0].mxu0
      %v1335 = vpop.f32.mrb[0].mxu0
      %v1336 = vadd.f32 0.0, %v1335
      %v1337 = vpop.f32.mrb[0].mxu0
      %1338 = vmatprep.mubr.bf16.mxu0 0
      %1339 = vmatmul.mubr.bf16.gmra.mrb[0].mxu0 %v1183
      %v1340 = vpop.f32.mrb[0].mxu0
      %v1341 = vadd.f32 0.0, %v1340
      %v1342 = vpop.f32.mrb[0].mxu0
      %v1343 = vpop.f32.mrb[0].mxu0
      %v1344 = vadd.f32 0.0, %v1343
      %v1345 = vpop.f32.mrb[0].mxu0
      %1346 = vmatprep.mubr.bf16.mxu0 0
      %1347 = vmatmul.mubr.bf16.gmra.mrb[0].mxu0 %v1184
      %v1348 = vpop.f32.mrb[0].mxu0
      %v1349 = vadd.f32 0.0, %v1348
      %v1350 = vpop.f32.mrb[0].mxu0
      %v1351 = vpop.f32.mrb[0].mxu0
      %v1352 = vadd.f32 0.0, %v1351
      %v1353 = vpop.f32.mrb[0].mxu0
      %1354 = vmatprep.mubr.bf16.mxu0 0
      %1355 = vmatmul.mubr.bf16.gmra.mrb[0].mxu0 %v1185
      %v1356 = vpop.f32.mrb[0].mxu0
      %v1357 = vadd.f32 0.0, %v1356
      %v1358 = vpop.f32.mrb[0].mxu0
      %v1359 = vpop.f32.mrb[0].mxu0
      %v1360 = vadd.f32 0.0, %v1359
      %v1361 = vpop.f32.mrb[0].mxu0
      %1362 = vmatprep.mubr.bf16.mxu0 0
      %1363 = vmatmul.mubr.bf16.gmra.mrb[0].mxu0 %v1186
      %v1364 = vpop.f32.mrb[0].mxu0
      %v1365 = vadd.f32 0.0, %v1364
      %v1366 = vpop.f32.mrb[0].mxu0
      %v1367 = vpop.f32.mrb[0].mxu0
      %v1368 = vadd.f32 0.0, %v1367
      %v1369 = vpop.f32.mrb[0].mxu0
      %1370 = vmatprep.mubr.bf16.mxu0 0
      %1371 = vmatmul.mubr.bf16.gmra.mrb[0].mxu0 %v1187
      %v1372 = vpop.f32.mrb[0].mxu0
      %v1373 = vadd.f32 0.0, %v1372
      %v1374 = vpop.f32.mrb[0].mxu0
      %v1375 = vpop.f32.mrb[0].mxu0
      %v1376 = vadd.f32 0.0, %v1375
      %v1377 = vpop.f32.mrb[0].mxu0
      %1378 = vmatprep.mubr.bf16.mxu0 0
      %1379 = vmatmul.mubr.bf16.gmra.mrb[0].mxu0 %v1188
      %v1380 = vpop.f32.mrb[0].mxu0
      %v1381 = vadd.f32 0.0, %v1380
      %v1382 = vpop.f32.mrb[0].mxu0
      %v1383 = vpop.f32.mrb[0].mxu0
      %v1384 = vadd.f32 0.0, %v1383
      %v1385 = vpop.f32.mrb[0].mxu0
      %1386 = vmatprep.mubr.bf16.mxu0 0
      %1387 = vmatmul.mubr.bf16.gmra.mrb[0].mxu0 %v1189
      %v1388 = vpop.f32.mrb[0].mxu0
      %v1389 = vadd.f32 0.0, %v1388
      %v1390 = vpop.f32.mrb[0].mxu0
      %v1391 = vpop.f32.mrb[0].mxu0
      %v1392 = vadd.f32 0.0, %v1391
      %v1393 = vpop.f32.mrb[0].mxu0
      %1394 = vmatprep.mubr.bf16.mxu0 0
      %1395 = vmatmul.mubr.bf16.gmra.mrb[0].mxu0 %v1190
      %v1396 = vpop.f32.mrb[0].mxu0
      %v1397 = vadd.f32 0.0, %v1396
      %v1398 = vpop.f32.mrb[0].mxu0
      %v1399 = vpop.f32.mrb[0].mxu0
      %v1400 = vadd.f32 0.0, %v1399
      %v1401 = vpop.f32.mrb[0].mxu0
      %1402 = vmatprep.mubr.bf16.mxu0 0
      %1403 = vmatmul.mubr.bf16.gmra.mrb[0].mxu0 %v1191
      %v1404 = vpop.f32.mrb[0].mxu0
      %v1405 = vadd.f32 0.0, %v1404
      %v1406 = vpop.f32.mrb[0].mxu0
      %v1407 = vpop.f32.mrb[0].mxu0
      %v1408 = vadd.f32 0.0, %v1407
      %v1409 = vpop.f32.mrb[0].mxu0
      %1410 = vmatprep.mubr.bf16.mxu0 0
      %1411 = vmatmul.mubr.bf16.gmra.mrb[0].mxu0 %v1192
      %v1412 = vpop.f32.mrb[0].mxu0
      %v1413 = vadd.f32 0.0, %v1412
      %v1414 = vpop.f32.mrb[0].mxu0
      %v1415 = vpop.f32.mrb[0].mxu0
      %v1416 = vadd.f32 0.0, %v1415
      %v1417 = vpop.f32.mrb[0].mxu0
      %1418 = vdwg.mxu0
      %v1419 = vld [vmem:[#allocation2] sm:$0xff]
      %v1420 = vld [vmem:[#allocation2 + $0x8] sm:$0xff]
      %v1421 = vld [vmem:[#allocation2 + $0x10] sm:$0xff]
      %v1422 = vld [vmem:[#allocation2 + $0x18] sm:$0xff]
      %v1423 = vld [vmem:[#allocation2 + $0x20] sm:$0xff]
      %v1424 = vld [vmem:[#allocation2 + $0x28] sm:$0xff]
      %v1425 = vld [vmem:[#allocation2 + $0x30] sm:$0xff]
      %v1426 = vld [vmem:[#allocation2 + $0x38] sm:$0xff]
      %v1427 = vld [vmem:[#allocation2 + $0x40] sm:$0xff]
      %v1428 = vld [vmem:[#allocation2 + $0x48] sm:$0xff]
      %v1429 = vld [vmem:[#allocation2 + $0x50] sm:$0xff]
      %v1430 = vld [vmem:[#allocation2 + $0x58] sm:$0xff]
      %v1431 = vld [vmem:[#allocation2 + $0x60] sm:$0xff]
      %v1432 = vld [vmem:[#allocation2 + $0x68] sm:$0xff]
      %v1433 = vld [vmem:[#allocation2 + $0x70] sm:$0xff]
      %v1434 = vld [vmem:[#allocation2 + $0x78] sm:$0xff]
      %v1435 = vld [vmem:[#allocation2 + $0x80] sm:$0xff]
      %v1436 = vld [vmem:[#allocation2 + $0x88] sm:$0xff]
      %v1437 = vld [vmem:[#allocation2 + $0x90] sm:$0xff]
      %v1438 = vld [vmem:[#allocation2 + $0x98] sm:$0xff]
      %v1439 = vld [vmem:[#allocation2 + $0xa0] sm:$0xff]
      %v1440 = vld [vmem:[#allocation2 + $0xa8] sm:$0xff]
      %v1441 = vld [vmem:[#allocation2 + $0xb0] sm:$0xff]
      %v1442 = vld [vmem:[#allocation2 + $0xb8] sm:$0xff]
      %v1443 = vld [vmem:[#allocation2 + $0xc0] sm:$0xff]
      %v1444 = vld [vmem:[#allocation2 + $0xc8] sm:$0xff]
      %v1445 = vld [vmem:[#allocation2 + $0xd0] sm:$0xff]
      %v1446 = vld [vmem:[#allocation2 + $0xd8] sm:$0xff]
      %v1447 = vld [vmem:[#allocation2 + $0xe0] sm:$0xff]
      %v1448 = vld [vmem:[#allocation2 + $0xe8] sm:$0xff]
      %v1449 = vld [vmem:[#allocation2 + $0xf0] sm:$0xff]
      %v1450 = vld [vmem:[#allocation2 + $0xf8] sm:$0xff]
      %v1451 = vadd.f32 %v1419, %v1293
      %v1452 = vadd.f32 %v1420, %v1296
      %v1453 = vadd.f32 %v1421, %v1301
      %v1454 = vadd.f32 %v1422, %v1304
      %v1455 = vadd.f32 %v1423, %v1309
      %v1456 = vadd.f32 %v1424, %v1312
      %v1457 = vadd.f32 %v1425, %v1317
      %v1458 = vadd.f32 %v1426, %v1320
      %v1459 = vadd.f32 %v1427, %v1325
      %v1460 = vadd.f32 %v1428, %v1328
      %v1461 = vadd.f32 %v1429, %v1333
      %v1462 = vadd.f32 %v1430, %v1336
      %v1463 = vadd.f32 %v1431, %v1341
      %v1464 = vadd.f32 %v1432, %v1344
      %v1465 = vadd.f32 %v1433, %v1349
      %v1466 = vadd.f32 %v1434, %v1352
      %v1467 = vadd.f32 %v1435, %v1357
      %v1468 = vadd.f32 %v1436, %v1360
      %v1469 = vadd.f32 %v1437, %v1365
      %v1470 = vadd.f32 %v1438, %v1368
      %v1471 = vadd.f32 %v1439, %v1373
      %v1472 = vadd.f32 %v1440, %v1376
      %v1473 = vadd.f32 %v1441, %v1381
      %v1474 = vadd.f32 %v1442, %v1384
      %v1475 = vadd.f32 %v1443, %v1389
      %v1476 = vadd.f32 %v1444, %v1392
      %v1477 = vadd.f32 %v1445, %v1397
      %v1478 = vadd.f32 %v1446, %v1400
      %v1479 = vadd.f32 %v1447, %v1405
      %v1480 = vadd.f32 %v1448, %v1408
      %v1481 = vadd.f32 %v1449, %v1413
      %v1482 = vadd.f32 %v1450, %v1416
      %1483 = vst [vmem:[#allocation2] sm:$0xff] %v1451
      %1484 = vst [vmem:[#allocation2 + $0x8] sm:$0xff] %v1452
      %1485 = vst [vmem:[#allocation2 + $0x10] sm:$0xff] %v1453
      %1486 = vst [vmem:[#allocation2 + $0x18] sm:$0xff] %v1454
      %1487 = vst [vmem:[#allocation2 + $0x20] sm:$0xff] %v1455
      %1488 = vst [vmem:[#allocation2 + $0x28] sm:$0xff] %v1456
      %1489 = vst [vmem:[#allocation2 + $0x30] sm:$0xff] %v1457
      %1490 = vst [vmem:[#allocation2 + $0x38] sm:$0xff] %v1458
      %1491 = vst [vmem:[#allocation2 + $0x40] sm:$0xff] %v1459
      %1492 = vst [vmem:[#allocation2 + $0x48] sm:$0xff] %v1460
      %1493 = vst [vmem:[#allocation2 + $0x50] sm:$0xff] %v1461
      %1494 = vst [vmem:[#allocation2 + $0x58] sm:$0xff] %v1462
      %1495 = vst [vmem:[#allocation2 + $0x60] sm:$0xff] %v1463
      %1496 = vst [vmem:[#allocation2 + $0x68] sm:$0xff] %v1464
      %1497 = vst [vmem:[#allocation2 + $0x70] sm:$0xff] %v1465
      %1498 = vst [vmem:[#allocation2 + $0x78] sm:$0xff] %v1466
      %1499 = vst [vmem:[#allocation2 + $0x80] sm:$0xff] %v1467
      %1500 = vst [vmem:[#allocation2 + $0x88] sm:$0xff] %v1468
      %1501 = vst [vmem:[#allocation2 + $0x90] sm:$0xff] %v1469
      %1502 = vst [vmem:[#allocation2 + $0x98] sm:$0xff] %v1470
      %1503 = vst [vmem:[#allocation2 + $0xa0] sm:$0xff] %v1471
      %1504 = vst [vmem:[#allocation2 + $0xa8] sm:$0xff] %v1472
      %1505 = vst [vmem:[#allocation2 + $0xb0] sm:$0xff] %v1473
      %1506 = vst [vmem:[#allocation2 + $0xb8] sm:$0xff] %v1474
      %1507 = vst [vmem:[#allocation2 + $0xc0] sm:$0xff] %v1475
      %1508 = vst [vmem:[#allocation2 + $0xc8] sm:$0xff] %v1476
      %1509 = vst [vmem:[#allocation2 + $0xd0] sm:$0xff] %v1477
      %1510 = vst [vmem:[#allocation2 + $0xd8] sm:$0xff] %v1478
      %1511 = vst [vmem:[#allocation2 + $0xe0] sm:$0xff] %v1479
      %1512 = vst [vmem:[#allocation2 + $0xe8] sm:$0xff] %v1480
      %1513 = vst [vmem:[#allocation2 + $0xf0] sm:$0xff] %v1481
      %1514 = vst [vmem:[#allocation2 + $0xf8] sm:$0xff] %v1482
      %s1515 = sadd.s32 %s241, 1
      %s1516 = smul.u32 %s1515, 24
      %s1517 = scalar_lea.vmem %s222, %s1516
      %v1518 = vld [vmem:[%s1517] sm:$0xff]
      %v1519 = vld [vmem:[%s1517 + $0x8] sm:$0xff]
      %v1520 = vld [vmem:[%s1517 + $0x10] sm:$0x3]
      %v1521 = vld [vmem:[%s1517 + $0x18] sm:$0xff]
      %v1522 = vld [vmem:[%s1517 + $0x20] sm:$0xff]
      %v1523 = vld [vmem:[%s1517 + $0x28] sm:$0x3]
      %v1524 = vld [vmem:[%s1517 + $0x30] sm:$0xff]
      %v1525 = vld [vmem:[%s1517 + $0x38] sm:$0xff]
      %v1526 = vld [vmem:[%s1517 + $0x40] sm:$0x3]
      %v1527 = vld [vmem:[%s1517 + $0x48] sm:$0xff]
      %v1528 = vld [vmem:[%s1517 + $0x50] sm:$0xff]
      %v1529 = vld [vmem:[%s1517 + $0x58] sm:$0x3]
      %v1530 = vld [vmem:[%s1517 + $0x60] sm:$0xff]
      %v1531 = vld [vmem:[%s1517 + $0x68] sm:$0xff]
      %v1532 = vld [vmem:[%s1517 + $0x70] sm:$0x3]
      %v1533 = vld [vmem:[%s1517 + $0x78] sm:$0xff]
      %v1534 = vld [vmem:[%s1517 + $0x80] sm:$0xff]
      %v1535 = vld [vmem:[%s1517 + $0x88] sm:$0x3]
      %v1536 = vld [vmem:[%s1517 + $0x90] sm:$0xff]
      %v1537 = vld [vmem:[%s1517 + $0x98] sm:$0xff]
      %v1538 = vld [vmem:[%s1517 + $0xa0] sm:$0x3]
      %v1539 = vld [vmem:[%s1517 + $0xa8] sm:$0xff]
      %v1540 = vld [vmem:[%s1517 + $0xb0] sm:$0xff]
      %v1541 = vld [vmem:[%s1517 + $0xb8] sm:$0x3]
      %v1542 = vld [vmem:[%s1517 + $0xc0] sm:$0xff]
      %v1543 = vld [vmem:[%s1517 + $0xc8] sm:$0xff]
      %v1544 = vld [vmem:[%s1517 + $0xd0] sm:$0x3]
      %v1545 = vld [vmem:[%s1517 + $0xd8] sm:$0xff]
      %v1546 = vld [vmem:[%s1517 + $0xe0] sm:$0xff]
      %v1547 = vld [vmem:[%s1517 + $0xe8] sm:$0x3]
      %v1548 = vld [vmem:[%s1517 + $0xf0] sm:$0xff]
      %v1549 = vld [vmem:[%s1517 + $0xf8] sm:$0xff]
      %v1550 = vld [vmem:[%s1517 + $0x100] sm:$0x3]
      %v1551 = vld [vmem:[%s1517 + $0x108] sm:$0xff]
      %v1552 = vld [vmem:[%s1517 + $0x110] sm:$0xff]
      %v1553 = vld [vmem:[%s1517 + $0x118] sm:$0x3]
      %v1554 = vld [vmem:[%s1517 + $0x120] sm:$0xff]
      %v1555 = vld [vmem:[%s1517 + $0x128] sm:$0xff]
      %v1556 = vld [vmem:[%s1517 + $0x130] sm:$0x3]
      %v1557 = vld [vmem:[%s1517 + $0x138] sm:$0xff]
      %v1558 = vld [vmem:[%s1517 + $0x140] sm:$0xff]
      %v1559 = vld [vmem:[%s1517 + $0x148] sm:$0x3]
      %v1560 = vld [vmem:[%s1517 + $0x150] sm:$0xff]
      %v1561 = vld [vmem:[%s1517 + $0x158] sm:$0xff]
      %v1562 = vld [vmem:[%s1517 + $0x160] sm:$0x3]
      %v1563 = vld [vmem:[%s1517 + $0x168] sm:$0xff]
      %v1564 = vld [vmem:[%s1517 + $0x170] sm:$0xff]
      %v1565 = vld [vmem:[%s1517 + $0x178] sm:$0x3]
      %v1566 = vpack.c.bf16 %v1519, %v1518
      %v1567 = vpack.c.bf16 %v1522, %v1521
      %v1568 = vpack.c.bf16 %v1525, %v1524
      %v1569 = vpack.c.bf16 %v1528, %v1527
      %v1570 = vpack.c.bf16 %v1531, %v1530
      %v1571 = vpack.c.bf16 %v1534, %v1533
      %v1572 = vpack.c.bf16 %v1537, %v1536
      %v1573 = vpack.c.bf16 %v1540, %v1539
      %v1574 = vpack.c.bf16 %v1543, %v1542
      %v1575 = vpack.c.bf16 %v1546, %v1545
      %v1576 = vpack.c.bf16 %v1549, %v1548
      %v1577 = vpack.c.bf16 %v1552, %v1551
      %v1578 = vpack.c.bf16 %v1555, %v1554
      %v1579 = vpack.c.bf16 %v1558, %v1557
      %v1580 = vpack.c.bf16 %v1561, %v1560
      %v1581 = vpack.c.bf16 %v1564, %v1563
      %s1582 = scalar_lea.vmem %s1, 192
      %v1583 = vld [vmem:[%s1582] sm:$0xf]
      %v1584 = vld [vmem:[%s1582 + $0x4] sm:$0xf]
      %v1585 = vld [vmem:[%s1582 + $0x8] sm:$0xf]
      %v1586 = vld [vmem:[%s1582 + $0xc] sm:$0xf]
      %v1587 = vld [vmem:[%s1582 + $0x10] sm:$0xf]
      %v1588 = vld [vmem:[%s1582 + $0x14] sm:$0xf]
      %v1589 = vld [vmem:[%s1582 + $0x18] sm:$0xf]
      %v1590 = vld [vmem:[%s1582 + $0x1c] sm:$0xf]
      %v1591 = vld [vmem:[%s1582 + $0x20] sm:$0xf]
      %v1592 = vld [vmem:[%s1582 + $0x24] sm:$0xf]
      %v1593 = vld [vmem:[%s1582 + $0x28] sm:$0xf]
      %v1594 = vld [vmem:[%s1582 + $0x2c] sm:$0xf]
      %v1595 = vld [vmem:[%s1582 + $0x30] sm:$0xf]
      %v1596 = vld [vmem:[%s1582 + $0x34] sm:$0xf]
      %v1597 = vld [vmem:[%s1582 + $0x38] sm:$0xf]
      %v1598 = vld [vmem:[%s1582 + $0x3c] sm:$0xf]
      %v1615 = vunpack.c.l.b16 %v1583
      %v1616 = vunpack.c.l.b16 %v1584
      %v1617 = vunpack.c.l.b16 %v1585
      %v1618 = vunpack.c.l.b16 %v1586
      %v1619 = vunpack.c.l.b16 %v1587
      %v1620 = vunpack.c.l.b16 %v1588
      %v1621 = vunpack.c.l.b16 %v1589
      %v1622 = vunpack.c.l.b16 %v1590
      %v1623 = vunpack.c.l.b16 %v1591
      %v1624 = vunpack.c.l.b16 %v1592
      %v1625 = vunpack.c.l.b16 %v1593
      %v1626 = vunpack.c.l.b16 %v1594
      %v1627 = vunpack.c.l.b16 %v1595
      %v1628 = vunpack.c.l.b16 %v1596
      %v1629 = vunpack.c.l.b16 %v1597
      %v1630 = vunpack.c.l.b16 %v1598
      %v1631 = vpack.c.b16 %v1616, %v1615
      %v1632 = vpack.c.b16 %v1618, %v1617
      %v1633 = vpack.c.b16 %v1620, %v1619
      %v1634 = vpack.c.b16 %v1622, %v1621
      %v1635 = vpack.c.b16 %v1624, %v1623
      %v1636 = vpack.c.b16 %v1626, %v1625
      %v1637 = vpack.c.b16 %v1628, %v1627
      %v1638 = vpack.c.b16 %v1630, %v1629
      %1647 = vmatprep.subr.bf16.mxu0 0
      %1648 = vmatpush1.bf16.msra.mxu0 %v1631
      %1649 = vmatprep.subr.bf16.mxu0 0
      %1650 = vmatpush1.bf16.msra.mxu0 %v1632
      %1651 = vmatprep.subr.bf16.mxu0 0
      %1652 = vmatpush1.bf16.msra.mxu0 %v1633
      %1653 = vmatprep.subr.bf16.mxu0 0
      %1654 = vmatpush1.bf16.msra.mxu0 %v1634
      %1655 = vmatprep.subr.bf16.mxu0 0
      %1656 = vmatpush1.bf16.msra.mxu0 %v1635
      %1657 = vmatprep.subr.bf16.mxu0 0
      %1658 = vmatpush1.bf16.msra.mxu0 %v1636
      %1659 = vmatprep.subr.bf16.mxu0 0
      %1660 = vmatpush1.bf16.msra.mxu0 %v1637
      %1661 = vmatprep.subr.bf16.mxu0 0
      %1662 = vmatpush1.bf16.msra.mxu0 %v1638
      %1663 = vmatprep.subr.bf16.mxu0 0
      %1664 = vmatpush1.bf16.msra.mxu0 0
      %1665 = vmatprep.subr.bf16.mxu0 0
      %1666 = vmatpush1.bf16.msra.mxu0 0
      %1667 = vmatprep.subr.bf16.mxu0 0
      %1668 = vmatpush1.bf16.msra.mxu0 0
      %1669 = vmatprep.subr.bf16.mxu0 0
      %1670 = vmatpush1.bf16.msra.mxu0 0
      %1671 = vmatprep.subr.bf16.mxu0 0
      %1672 = vmatpush1.bf16.msra.mxu0 0
      %1673 = vmatprep.subr.bf16.mxu0 0
      %1674 = vmatpush1.bf16.msra.mxu0 0
      %1675 = vmatprep.subr.bf16.mxu0 0
      %1676 = vmatpush1.bf16.msra.mxu0 0
      %1677 = vmatprep.subr.bf16.mxu0 0
      %1678 = vmatpush1.bf16.msra.mxu0 0
      %1679 = vmatprep.mubr.bf16.mxu0 0
      %1680 = vmatmul.mubr.bf16.gmra.mrb[0].mxu0 %v1566
      %v1681 = vpop.f32.mrb[0].mxu0
      %v1682 = vadd.f32 0.0, %v1681
      %v1683 = vpop.f32.mrb[0].mxu0
      %v1684 = vpop.f32.mrb[0].mxu0
      %v1685 = vadd.f32 0.0, %v1684
      %v1686 = vpop.f32.mrb[0].mxu0
      %1687 = vmatprep.mubr.bf16.mxu0 0
      %1688 = vmatmul.mubr.bf16.gmra.mrb[0].mxu0 %v1567
      %v1689 = vpop.f32.mrb[0].mxu0
      %v1690 = vadd.f32 0.0, %v1689
      %v1691 = vpop.f32.mrb[0].mxu0
      %v1692 = vpop.f32.mrb[0].mxu0
      %v1693 = vadd.f32 0.0, %v1692
      %v1694 = vpop.f32.mrb[0].mxu0
      %1695 = vmatprep.mubr.bf16.mxu0 0
      %1696 = vmatmul.mubr.bf16.gmra.mrb[0].mxu0 %v1568
      %v1697 = vpop.f32.mrb[0].mxu0
      %v1698 = vadd.f32 0.0, %v1697
      %v1699 = vpop.f32.mrb[0].mxu0
      %v1700 = vpop.f32.mrb[0].mxu0
      %v1701 = vadd.f32 0.0, %v1700
      %v1702 = vpop.f32.mrb[0].mxu0
      %1703 = vmatprep.mubr.bf16.mxu0 0
      %1704 = vmatmul.mubr.bf16.gmra.mrb[0].mxu0 %v1569
      %v1705 = vpop.f32.mrb[0].mxu0
      %v1706 = vadd.f32 0.0, %v1705
      %v1707 = vpop.f32.mrb[0].mxu0
      %v1708 = vpop.f32.mrb[0].mxu0
      %v1709 = vadd.f32 0.0, %v1708
      %v1710 = vpop.f32.mrb[0].mxu0
      %1711 = vmatprep.mubr.bf16.mxu0 0
      %1712 = vmatmul.mubr.bf16.gmra.mrb[0].mxu0 %v1570
      %v1713 = vpop.f32.mrb[0].mxu0
      %v1714 = vadd.f32 0.0, %v1713
      %v1715 = vpop.f32.mrb[0].mxu0
      %v1716 = vpop.f32.mrb[0].mxu0
      %v1717 = vadd.f32 0.0, %v1716
      %v1718 = vpop.f32.mrb[0].mxu0
      %1719 = vmatprep.mubr.bf16.mxu0 0
      %1720 = vmatmul.mubr.bf16.gmra.mrb[0].mxu0 %v1571
      %v1721 = vpop.f32.mrb[0].mxu0
      %v1722 = vadd.f32 0.0, %v1721
      %v1723 = vpop.f32.mrb[0].mxu0
      %v1724 = vpop.f32.mrb[0].mxu0
      %v1725 = vadd.f32 0.0, %v1724
      %v1726 = vpop.f32.mrb[0].mxu0
      %1727 = vmatprep.mubr.bf16.mxu0 0
      %1728 = vmatmul.mubr.bf16.gmra.mrb[0].mxu0 %v1572
      %v1729 = vpop.f32.mrb[0].mxu0
      %v1730 = vadd.f32 0.0, %v1729
      %v1731 = vpop.f32.mrb[0].mxu0
      %v1732 = vpop.f32.mrb[0].mxu0
      %v1733 = vadd.f32 0.0, %v1732
      %v1734 = vpop.f32.mrb[0].mxu0
      %1735 = vmatprep.mubr.bf16.mxu0 0
      %1736 = vmatmul.mubr.bf16.gmra.mrb[0].mxu0 %v1573
      %v1737 = vpop.f32.mrb[0].mxu0
      %v1738 = vadd.f32 0.0, %v1737
      %v1739 = vpop.f32.mrb[0].mxu0
      %v1740 = vpop.f32.mrb[0].mxu0
      %v1741 = vadd.f32 0.0, %v1740
      %v1742 = vpop.f32.mrb[0].mxu0
      %1743 = vmatprep.mubr.bf16.mxu0 0
      %1744 = vmatmul.mubr.bf16.gmra.mrb[0].mxu0 %v1574
      %v1745 = vpop.f32.mrb[0].mxu0
      %v1746 = vadd.f32 0.0, %v1745
      %v1747 = vpop.f32.mrb[0].mxu0
      %v1748 = vpop.f32.mrb[0].mxu0
      %v1749 = vadd.f32 0.0, %v1748
      %v1750 = vpop.f32.mrb[0].mxu0
      %1751 = vmatprep.mubr.bf16.mxu0 0
      %1752 = vmatmul.mubr.bf16.gmra.mrb[0].mxu0 %v1575
      %v1753 = vpop.f32.mrb[0].mxu0
      %v1754 = vadd.f32 0.0, %v1753
      %v1755 = vpop.f32.mrb[0].mxu0
      %v1756 = vpop.f32.mrb[0].mxu0
      %v1757 = vadd.f32 0.0, %v1756
      %v1758 = vpop.f32.mrb[0].mxu0
      %1759 = vmatprep.mubr.bf16.mxu0 0
      %1760 = vmatmul.mubr.bf16.gmra.mrb[0].mxu0 %v1576
      %v1761 = vpop.f32.mrb[0].mxu0
      %v1762 = vadd.f32 0.0, %v1761
      %v1763 = vpop.f32.mrb[0].mxu0
      %v1764 = vpop.f32.mrb[0].mxu0
      %v1765 = vadd.f32 0.0, %v1764
      %v1766 = vpop.f32.mrb[0].mxu0
      %1767 = vmatprep.mubr.bf16.mxu0 0
      %1768 = vmatmul.mubr.bf16.gmra.mrb[0].mxu0 %v1577
      %v1769 = vpop.f32.mrb[0].mxu0
      %v1770 = vadd.f32 0.0, %v1769
      %v1771 = vpop.f32.mrb[0].mxu0
      %v1772 = vpop.f32.mrb[0].mxu0
      %v1773 = vadd.f32 0.0, %v1772
      %v1774 = vpop.f32.mrb[0].mxu0
      %1775 = vmatprep.mubr.bf16.mxu0 0
      %1776 = vmatmul.mubr.bf16.gmra.mrb[0].mxu0 %v1578
      %v1777 = vpop.f32.mrb[0].mxu0
      %v1778 = vadd.f32 0.0, %v1777
      %v1779 = vpop.f32.mrb[0].mxu0
      %v1780 = vpop.f32.mrb[0].mxu0
      %v1781 = vadd.f32 0.0, %v1780
      %v1782 = vpop.f32.mrb[0].mxu0
      %1783 = vmatprep.mubr.bf16.mxu0 0
      %1784 = vmatmul.mubr.bf16.gmra.mrb[0].mxu0 %v1579
      %v1785 = vpop.f32.mrb[0].mxu0
      %v1786 = vadd.f32 0.0, %v1785
      %v1787 = vpop.f32.mrb[0].mxu0
      %v1788 = vpop.f32.mrb[0].mxu0
      %v1789 = vadd.f32 0.0, %v1788
      %v1790 = vpop.f32.mrb[0].mxu0
      %1791 = vmatprep.mubr.bf16.mxu0 0
      %1792 = vmatmul.mubr.bf16.gmra.mrb[0].mxu0 %v1580
      %v1793 = vpop.f32.mrb[0].mxu0
      %v1794 = vadd.f32 0.0, %v1793
      %v1795 = vpop.f32.mrb[0].mxu0
      %v1796 = vpop.f32.mrb[0].mxu0
      %v1797 = vadd.f32 0.0, %v1796
      %v1798 = vpop.f32.mrb[0].mxu0
      %1799 = vmatprep.mubr.bf16.mxu0 0
      %1800 = vmatmul.mubr.bf16.gmra.mrb[0].mxu0 %v1581
      %v1801 = vpop.f32.mrb[0].mxu0
      %v1802 = vadd.f32 0.0, %v1801
      %v1803 = vpop.f32.mrb[0].mxu0
      %v1804 = vpop.f32.mrb[0].mxu0
      %v1805 = vadd.f32 0.0, %v1804
      %v1806 = vpop.f32.mrb[0].mxu0
      %1807 = vdwg.mxu0
      %v1808 = vld [vmem:[#allocation2] sm:$0xff]
      %v1809 = vld [vmem:[#allocation2 + $0x8] sm:$0xff]
      %v1810 = vld [vmem:[#allocation2 + $0x10] sm:$0xff]
      %v1811 = vld [vmem:[#allocation2 + $0x18] sm:$0xff]
      %v1812 = vld [vmem:[#allocation2 + $0x20] sm:$0xff]
      %v1813 = vld [vmem:[#allocation2 + $0x28] sm:$0xff]
      %v1814 = vld [vmem:[#allocation2 + $0x30] sm:$0xff]
      %v1815 = vld [vmem:[#allocation2 + $0x38] sm:$0xff]
      %v1816 = vld [vmem:[#allocation2 + $0x40] sm:$0xff]
      %v1817 = vld [vmem:[#allocation2 + $0x48] sm:$0xff]
      %v1818 = vld [vmem:[#allocation2 + $0x50] sm:$0xff]
      %v1819 = vld [vmem:[#allocation2 + $0x58] sm:$0xff]
      %v1820 = vld [vmem:[#allocation2 + $0x60] sm:$0xff]
      %v1821 = vld [vmem:[#allocation2 + $0x68] sm:$0xff]
      %v1822 = vld [vmem:[#allocation2 + $0x70] sm:$0xff]
      %v1823 = vld [vmem:[#allocation2 + $0x78] sm:$0xff]
      %v1824 = vld [vmem:[#allocation2 + $0x80] sm:$0xff]
      %v1825 = vld [vmem:[#allocation2 + $0x88] sm:$0xff]
      %v1826 = vld [vmem:[#allocation2 + $0x90] sm:$0xff]
      %v1827 = vld [vmem:[#allocation2 + $0x98] sm:$0xff]
      %v1828 = vld [vmem:[#allocation2 + $0xa0] sm:$0xff]
      %v1829 = vld [vmem:[#allocation2 + $0xa8] sm:$0xff]
      %v1830 = vld [vmem:[#allocation2 + $0xb0] sm:$0xff]
      %v1831 = vld [vmem:[#allocation2 + $0xb8] sm:$0xff]
      %v1832 = vld [vmem:[#allocation2 + $0xc0] sm:$0xff]
      %v1833 = vld [vmem:[#allocation2 + $0xc8] sm:$0xff]
      %v1834 = vld [vmem:[#allocation2 + $0xd0] sm:$0xff]
      %v1835 = vld [vmem:[#allocation2 + $0xd8] sm:$0xff]
      %v1836 = vld [vmem:[#allocation2 + $0xe0] sm:$0xff]
      %v1837 = vld [vmem:[#allocation2 + $0xe8] sm:$0xff]
      %v1838 = vld [vmem:[#allocation2 + $0xf0] sm:$0xff]
      %v1839 = vld [vmem:[#allocation2 + $0xf8] sm:$0xff]
      %v1840 = vadd.f32 %v1808, %v1682
      %v1841 = vadd.f32 %v1809, %v1685
      %v1842 = vadd.f32 %v1810, %v1690
      %v1843 = vadd.f32 %v1811, %v1693
      %v1844 = vadd.f32 %v1812, %v1698
      %v1845 = vadd.f32 %v1813, %v1701
      %v1846 = vadd.f32 %v1814, %v1706
      %v1847 = vadd.f32 %v1815, %v1709
      %v1848 = vadd.f32 %v1816, %v1714
      %v1849 = vadd.f32 %v1817, %v1717
      %v1850 = vadd.f32 %v1818, %v1722
      %v1851 = vadd.f32 %v1819, %v1725
      %v1852 = vadd.f32 %v1820, %v1730
      %v1853 = vadd.f32 %v1821, %v1733
      %v1854 = vadd.f32 %v1822, %v1738
      %v1855 = vadd.f32 %v1823, %v1741
      %v1856 = vadd.f32 %v1824, %v1746
      %v1857 = vadd.f32 %v1825, %v1749
      %v1858 = vadd.f32 %v1826, %v1754
      %v1859 = vadd.f32 %v1827, %v1757
      %v1860 = vadd.f32 %v1828, %v1762
      %v1861 = vadd.f32 %v1829, %v1765
      %v1862 = vadd.f32 %v1830, %v1770
      %v1863 = vadd.f32 %v1831, %v1773
      %v1864 = vadd.f32 %v1832, %v1778
      %v1865 = vadd.f32 %v1833, %v1781
      %v1866 = vadd.f32 %v1834, %v1786
      %v1867 = vadd.f32 %v1835, %v1789
      %v1868 = vadd.f32 %v1836, %v1794
      %v1869 = vadd.f32 %v1837, %v1797
      %v1870 = vadd.f32 %v1838, %v1802
      %v1871 = vadd.f32 %v1839, %v1805
      %1872 = vst [vmem:[#allocation2] sm:$0xff] %v1840
      %1873 = vst [vmem:[#allocation2 + $0x8] sm:$0xff] %v1841
      %1874 = vst [vmem:[#allocation2 + $0x10] sm:$0xff] %v1842
      %1875 = vst [vmem:[#allocation2 + $0x18] sm:$0xff] %v1843
      %1876 = vst [vmem:[#allocation2 + $0x20] sm:$0xff] %v1844
      %1877 = vst [vmem:[#allocation2 + $0x28] sm:$0xff] %v1845
      %1878 = vst [vmem:[#allocation2 + $0x30] sm:$0xff] %v1846
      %1879 = vst [vmem:[#allocation2 + $0x38] sm:$0xff] %v1847
      %1880 = vst [vmem:[#allocation2 + $0x40] sm:$0xff] %v1848
      %1881 = vst [vmem:[#allocation2 + $0x48] sm:$0xff] %v1849
      %1882 = vst [vmem:[#allocation2 + $0x50] sm:$0xff] %v1850
      %1883 = vst [vmem:[#allocation2 + $0x58] sm:$0xff] %v1851
      %1884 = vst [vmem:[#allocation2 + $0x60] sm:$0xff] %v1852
      %1885 = vst [vmem:[#allocation2 + $0x68] sm:$0xff] %v1853
      %1886 = vst [vmem:[#allocation2 + $0x70] sm:$0xff] %v1854
      %1887 = vst [vmem:[#allocation2 + $0x78] sm:$0xff] %v1855
      %1888 = vst [vmem:[#allocation2 + $0x80] sm:$0xff] %v1856
      %1889 = vst [vmem:[#allocation2 + $0x88] sm:$0xff] %v1857
      %1890 = vst [vmem:[#allocation2 + $0x90] sm:$0xff] %v1858
      %1891 = vst [vmem:[#allocation2 + $0x98] sm:$0xff] %v1859
      %1892 = vst [vmem:[#allocation2 + $0xa0] sm:$0xff] %v1860
      %1893 = vst [vmem:[#allocation2 + $0xa8] sm:$0xff] %v1861
      %1894 = vst [vmem:[#allocation2 + $0xb0] sm:$0xff] %v1862
      %1895 = vst [vmem:[#allocation2 + $0xb8] sm:$0xff] %v1863
      %1896 = vst [vmem:[#allocation2 + $0xc0] sm:$0xff] %v1864
      %1897 = vst [vmem:[#allocation2 + $0xc8] sm:$0xff] %v1865
      %1898 = vst [vmem:[#allocation2 + $0xd0] sm:$0xff] %v1866
      %1899 = vst [vmem:[#allocation2 + $0xd8] sm:$0xff] %v1867
      %1900 = vst [vmem:[#allocation2 + $0xe0] sm:$0xff] %v1868
      %1901 = vst [vmem:[#allocation2 + $0xe8] sm:$0xff] %v1869
      %1902 = vst [vmem:[#allocation2 + $0xf0] sm:$0xff] %v1870
      %1903 = vst [vmem:[#allocation2 + $0xf8] sm:$0xff] %v1871
      %v1952 = vrot.slane %v1518, 1
      %v1953 = vrot.slane %v1519, 1
      %v1954 = vsel %vm613, %v1952, %v1953
      %v1955 = vrot.slane %v1520, 1
      %v1956 = vsel %vm613, %v1953, %v1955
      %v1957 = vrot.slane %v1521, 1
      %v1958 = vrot.slane %v1522, 1
      %v1959 = vsel %vm613, %v1957, %v1958
      %v1960 = vrot.slane %v1523, 1
      %v1961 = vsel %vm613, %v1958, %v1960
      %v1962 = vrot.slane %v1524, 1
      %v1963 = vrot.slane %v1525, 1
      %v1964 = vsel %vm613, %v1962, %v1963
      %v1965 = vrot.slane %v1526, 1
      %v1966 = vsel %vm613, %v1963, %v1965
      %v1967 = vrot.slane %v1527, 1
      %v1968 = vrot.slane %v1528, 1
      %v1969 = vsel %vm613, %v1967, %v1968
      %v1970 = vrot.slane %v1529, 1
      %v1971 = vsel %vm613, %v1968, %v1970
      %v1972 = vrot.slane %v1530, 1
      %v1973 = vrot.slane %v1531, 1
      %v1974 = vsel %vm613, %v1972, %v1973
      %v1975 = vrot.slane %v1532, 1
      %v1976 = vsel %vm613, %v1973, %v1975
      %v1977 = vrot.slane %v1533, 1
      %v1978 = vrot.slane %v1534, 1
      %v1979 = vsel %vm613, %v1977, %v1978
      %v1980 = vrot.slane %v1535, 1
      %v1981 = vsel %vm613, %v1978, %v1980
      %v1982 = vrot.slane %v1536, 1
      %v1983 = vrot.slane %v1537, 1
      %v1984 = vsel %vm613, %v1982, %v1983
      %v1985 = vrot.slane %v1538, 1
      %v1986 = vsel %vm613, %v1983, %v1985
      %v1987 = vrot.slane %v1539, 1
      %v1988 = vrot.slane %v1540, 1
      %v1989 = vsel %vm613, %v1987, %v1988
      %v1990 = vrot.slane %v1541, 1
      %v1991 = vsel %vm613, %v1988, %v1990
      %v1992 = vrot.slane %v1542, 1
      %v1993 = vrot.slane %v1543, 1
      %v1994 = vsel %vm613, %v1992, %v1993
      %v1995 = vrot.slane %v1544, 1
      %v1996 = vsel %vm613, %v1993, %v1995
      %v1997 = vrot.slane %v1545, 1
      %v1998 = vrot.slane %v1546, 1
      %v1999 = vsel %vm613, %v1997, %v1998
      %v2000 = vrot.slane %v1547, 1
      %v2001 = vsel %vm613, %v1998, %v2000
      %v2002 = vrot.slane %v1548, 1
      %v2003 = vrot.slane %v1549, 1
      %v2004 = vsel %vm613, %v2002, %v2003
      %v2005 = vrot.slane %v1550, 1
      %v2006 = vsel %vm613, %v2003, %v2005
      %v2007 = vrot.slane %v1551, 1
      %v2008 = vrot.slane %v1552, 1
      %v2009 = vsel %vm613, %v2007, %v2008
      %v2010 = vrot.slane %v1553, 1
      %v2011 = vsel %vm613, %v2008, %v2010
      %v2012 = vrot.slane %v1554, 1
      %v2013 = vrot.slane %v1555, 1
      %v2014 = vsel %vm613, %v2012, %v2013
      %v2015 = vrot.slane %v1556, 1
      %v2016 = vsel %vm613, %v2013, %v2015
      %v2017 = vrot.slane %v1557, 1
      %v2018 = vrot.slane %v1558, 1
      %v2019 = vsel %vm613, %v2017, %v2018
      %v2020 = vrot.slane %v1559, 1
      %v2021 = vsel %vm613, %v2018, %v2020
      %v2022 = vrot.slane %v1560, 1
      %v2023 = vrot.slane %v1561, 1
      %v2024 = vsel %vm613, %v2022, %v2023
      %v2025 = vrot.slane %v1562, 1
      %v2026 = vsel %vm613, %v2023, %v2025
      %v2027 = vrot.slane %v1563, 1
      %v2028 = vrot.slane %v1564, 1
      %v2029 = vsel %vm613, %v2027, %v2028
      %v2030 = vrot.slane %v1565, 1
      %v2031 = vsel %vm613, %v2028, %v2030
      %v2064 = vpack.c.bf16 %v1956, %v1954
      %v2065 = vpack.c.bf16 %v1961, %v1959
      %v2066 = vpack.c.bf16 %v1966, %v1964
      %v2067 = vpack.c.bf16 %v1971, %v1969
      %v2068 = vpack.c.bf16 %v1976, %v1974
      %v2069 = vpack.c.bf16 %v1981, %v1979
      %v2070 = vpack.c.bf16 %v1986, %v1984
      %v2071 = vpack.c.bf16 %v1991, %v1989
      %v2072 = vpack.c.bf16 %v1996, %v1994
      %v2073 = vpack.c.bf16 %v2001, %v1999
      %v2074 = vpack.c.bf16 %v2006, %v2004
      %v2075 = vpack.c.bf16 %v2011, %v2009
      %v2076 = vpack.c.bf16 %v2016, %v2014
      %v2077 = vpack.c.bf16 %v2021, %v2019
      %v2078 = vpack.c.bf16 %v2026, %v2024
      %v2079 = vpack.c.bf16 %v2031, %v2029
      %s2080 = scalar_lea.vmem %s1, 256
      %v2081 = vld [vmem:[%s2080] sm:$0xf]
      %v2082 = vld [vmem:[%s2080 + $0x4] sm:$0xf]
      %v2083 = vld [vmem:[%s2080 + $0x8] sm:$0xf]
      %v2084 = vld [vmem:[%s2080 + $0xc] sm:$0xf]
      %v2085 = vld [vmem:[%s2080 + $0x10] sm:$0xf]
      %v2086 = vld [vmem:[%s2080 + $0x14] sm:$0xf]
      %v2087 = vld [vmem:[%s2080 + $0x18] sm:$0xf]
      %v2088 = vld [vmem:[%s2080 + $0x1c] sm:$0xf]
      %v2089 = vld [vmem:[%s2080 + $0x20] sm:$0xf]
      %v2090 = vld [vmem:[%s2080 + $0x24] sm:$0xf]
      %v2091 = vld [vmem:[%s2080 + $0x28] sm:$0xf]
      %v2092 = vld [vmem:[%s2080 + $0x2c] sm:$0xf]
      %v2093 = vld [vmem:[%s2080 + $0x30] sm:$0xf]
      %v2094 = vld [vmem:[%s2080 + $0x34] sm:$0xf]
      %v2095 = vld [vmem:[%s2080 + $0x38] sm:$0xf]
      %v2096 = vld [vmem:[%s2080 + $0x3c] sm:$0xf]
      %v2113 = vunpack.c.l.b16 %v2081
      %v2114 = vunpack.c.l.b16 %v2082
      %v2115 = vunpack.c.l.b16 %v2083
      %v2116 = vunpack.c.l.b16 %v2084
      %v2117 = vunpack.c.l.b16 %v2085
      %v2118 = vunpack.c.l.b16 %v2086
      %v2119 = vunpack.c.l.b16 %v2087
      %v2120 = vunpack.c.l.b16 %v2088
      %v2121 = vunpack.c.l.b16 %v2089
      %v2122 = vunpack.c.l.b16 %v2090
      %v2123 = vunpack.c.l.b16 %v2091
      %v2124 = vunpack.c.l.b16 %v2092
      %v2125 = vunpack.c.l.b16 %v2093
      %v2126 = vunpack.c.l.b16 %v2094
      %v2127 = vunpack.c.l.b16 %v2095
      %v2128 = vunpack.c.l.b16 %v2096
      %v2129 = vpack.c.b16 %v2114, %v2113
      %v2130 = vpack.c.b16 %v2116, %v2115
      %v2131 = vpack.c.b16 %v2118, %v2117
      %v2132 = vpack.c.b16 %v2120, %v2119
      %v2133 = vpack.c.b16 %v2122, %v2121
      %v2134 = vpack.c.b16 %v2124, %v2123
      %v2135 = vpack.c.b16 %v2126, %v2125
      %v2136 = vpack.c.b16 %v2128, %v2127
      %2145 = vmatprep.subr.bf16.mxu0 0
      %2146 = vmatpush1.bf16.msra.mxu0 %v2129
      %2147 = vmatprep.subr.bf16.mxu0 0
      %2148 = vmatpush1.bf16.msra.mxu0 %v2130
      %2149 = vmatprep.subr.bf16.mxu0 0
      %2150 = vmatpush1.bf16.msra.mxu0 %v2131
      %2151 = vmatprep.subr.bf16.mxu0 0
      %2152 = vmatpush1.bf16.msra.mxu0 %v2132
      %2153 = vmatprep.subr.bf16.mxu0 0
      %2154 = vmatpush1.bf16.msra.mxu0 %v2133
      %2155 = vmatprep.subr.bf16.mxu0 0
      %2156 = vmatpush1.bf16.msra.mxu0 %v2134
      %2157 = vmatprep.subr.bf16.mxu0 0
      %2158 = vmatpush1.bf16.msra.mxu0 %v2135
      %2159 = vmatprep.subr.bf16.mxu0 0
      %2160 = vmatpush1.bf16.msra.mxu0 %v2136
      %2161 = vmatprep.subr.bf16.mxu0 0
      %2162 = vmatpush1.bf16.msra.mxu0 0
      %2163 = vmatprep.subr.bf16.mxu0 0
      %2164 = vmatpush1.bf16.msra.mxu0 0
      %2165 = vmatprep.subr.bf16.mxu0 0
      %2166 = vmatpush1.bf16.msra.mxu0 0
      %2167 = vmatprep.subr.bf16.mxu0 0
      %2168 = vmatpush1.bf16.msra.mxu0 0
      %2169 = vmatprep.subr.bf16.mxu0 0
      %2170 = vmatpush1.bf16.msra.mxu0 0
      %2171 = vmatprep.subr.bf16.mxu0 0
      %2172 = vmatpush1.bf16.msra.mxu0 0
      %2173 = vmatprep.subr.bf16.mxu0 0
      %2174 = vmatpush1.bf16.msra.mxu0 0
      %2175 = vmatprep.subr.bf16.mxu0 0
      %2176 = vmatpush1.bf16.msra.mxu0 0
      %2177 = vmatprep.mubr.bf16.mxu0 0
      %2178 = vmatmul.mubr.bf16.gmra.mrb[0].mxu0 %v2064
      %v2179 = vpop.f32.mrb[0].mxu0
      %v2180 = vadd.f32 0.0, %v2179
      %v2181 = vpop.f32.mrb[0].mxu0
      %v2182 = vpop.f32.mrb[0].mxu0
      %v2183 = vadd.f32 0.0, %v2182
      %v2184 = vpop.f32.mrb[0].mxu0
      %2185 = vmatprep.mubr.bf16.mxu0 0
      %2186 = vmatmul.mubr.bf16.gmra.mrb[0].mxu0 %v2065
      %v2187 = vpop.f32.mrb[0].mxu0
      %v2188 = vadd.f32 0.0, %v2187
      %v2189 = vpop.f32.mrb[0].mxu0
      %v2190 = vpop.f32.mrb[0].mxu0
      %v2191 = vadd.f32 0.0, %v2190
      %v2192 = vpop.f32.mrb[0].mxu0
      %2193 = vmatprep.mubr.bf16.mxu0 0
      %2194 = vmatmul.mubr.bf16.gmra.mrb[0].mxu0 %v2066
      %v2195 = vpop.f32.mrb[0].mxu0
      %v2196 = vadd.f32 0.0, %v2195
      %v2197 = vpop.f32.mrb[0].mxu0
      %v2198 = vpop.f32.mrb[0].mxu0
      %v2199 = vadd.f32 0.0, %v2198
      %v2200 = vpop.f32.mrb[0].mxu0
      %2201 = vmatprep.mubr.bf16.mxu0 0
      %2202 = vmatmul.mubr.bf16.gmra.mrb[0].mxu0 %v2067
      %v2203 = vpop.f32.mrb[0].mxu0
      %v2204 = vadd.f32 0.0, %v2203
      %v2205 = vpop.f32.mrb[0].mxu0
      %v2206 = vpop.f32.mrb[0].mxu0
      %v2207 = vadd.f32 0.0, %v2206
      %v2208 = vpop.f32.mrb[0].mxu0
      %2209 = vmatprep.mubr.bf16.mxu0 0
      %2210 = vmatmul.mubr.bf16.gmra.mrb[0].mxu0 %v2068
      %v2211 = vpop.f32.mrb[0].mxu0
      %v2212 = vadd.f32 0.0, %v2211
      %v2213 = vpop.f32.mrb[0].mxu0
      %v2214 = vpop.f32.mrb[0].mxu0
      %v2215 = vadd.f32 0.0, %v2214
      %v2216 = vpop.f32.mrb[0].mxu0
      %2217 = vmatprep.mubr.bf16.mxu0 0
      %2218 = vmatmul.mubr.bf16.gmra.mrb[0].mxu0 %v2069
      %v2219 = vpop.f32.mrb[0].mxu0
      %v2220 = vadd.f32 0.0, %v2219
      %v2221 = vpop.f32.mrb[0].mxu0
      %v2222 = vpop.f32.mrb[0].mxu0
      %v2223 = vadd.f32 0.0, %v2222
      %v2224 = vpop.f32.mrb[0].mxu0
      %2225 = vmatprep.mubr.bf16.mxu0 0
      %2226 = vmatmul.mubr.bf16.gmra.mrb[0].mxu0 %v2070
      %v2227 = vpop.f32.mrb[0].mxu0
      %v2228 = vadd.f32 0.0, %v2227
      %v2229 = vpop.f32.mrb[0].mxu0
      %v2230 = vpop.f32.mrb[0].mxu0
      %v2231 = vadd.f32 0.0, %v2230
      %v2232 = vpop.f32.mrb[0].mxu0
      %2233 = vmatprep.mubr.bf16.mxu0 0
      %2234 = vmatmul.mubr.bf16.gmra.mrb[0].mxu0 %v2071
      %v2235 = vpop.f32.mrb[0].mxu0
      %v2236 = vadd.f32 0.0, %v2235
      %v2237 = vpop.f32.mrb[0].mxu0
      %v2238 = vpop.f32.mrb[0].mxu0
      %v2239 = vadd.f32 0.0, %v2238
      %v2240 = vpop.f32.mrb[0].mxu0
      %2241 = vmatprep.mubr.bf16.mxu0 0
      %2242 = vmatmul.mubr.bf16.gmra.mrb[0].mxu0 %v2072
      %v2243 = vpop.f32.mrb[0].mxu0
      %v2244 = vadd.f32 0.0, %v2243
      %v2245 = vpop.f32.mrb[0].mxu0
      %v2246 = vpop.f32.mrb[0].mxu0
      %v2247 = vadd.f32 0.0, %v2246
      %v2248 = vpop.f32.mrb[0].mxu0
      %2249 = vmatprep.mubr.bf16.mxu0 0
      %2250 = vmatmul.mubr.bf16.gmra.mrb[0].mxu0 %v2073
      %v2251 = vpop.f32.mrb[0].mxu0
      %v2252 = vadd.f32 0.0, %v2251
      %v2253 = vpop.f32.mrb[0].mxu0
      %v2254 = vpop.f32.mrb[0].mxu0
      %v2255 = vadd.f32 0.0, %v2254
      %v2256 = vpop.f32.mrb[0].mxu0
      %2257 = vmatprep.mubr.bf16.mxu0 0
      %2258 = vmatmul.mubr.bf16.gmra.mrb[0].mxu0 %v2074
      %v2259 = vpop.f32.mrb[0].mxu0
      %v2260 = vadd.f32 0.0, %v2259
      %v2261 = vpop.f32.mrb[0].mxu0
      %v2262 = vpop.f32.mrb[0].mxu0
      %v2263 = vadd.f32 0.0, %v2262
      %v2264 = vpop.f32.mrb[0].mxu0
      %2265 = vmatprep.mubr.bf16.mxu0 0
      %2266 = vmatmul.mubr.bf16.gmra.mrb[0].mxu0 %v2075
      %v2267 = vpop.f32.mrb[0].mxu0
      %v2268 = vadd.f32 0.0, %v2267
      %v2269 = vpop.f32.mrb[0].mxu0
      %v2270 = vpop.f32.mrb[0].mxu0
      %v2271 = vadd.f32 0.0, %v2270
      %v2272 = vpop.f32.mrb[0].mxu0
      %2273 = vmatprep.mubr.bf16.mxu0 0
      %2274 = vmatmul.mubr.bf16.gmra.mrb[0].mxu0 %v2076
      %v2275 = vpop.f32.mrb[0].mxu0
      %v2276 = vadd.f32 0.0, %v2275
      %v2277 = vpop.f32.mrb[0].mxu0
      %v2278 = vpop.f32.mrb[0].mxu0
      %v2279 = vadd.f32 0.0, %v2278
      %v2280 = vpop.f32.mrb[0].mxu0
      %2281 = vmatprep.mubr.bf16.mxu0 0
      %2282 = vmatmul.mubr.bf16.gmra.mrb[0].mxu0 %v2077
      %v2283 = vpop.f32.mrb[0].mxu0
      %v2284 = vadd.f32 0.0, %v2283
      %v2285 = vpop.f32.mrb[0].mxu0
      %v2286 = vpop.f32.mrb[0].mxu0
      %v2287 = vadd.f32 0.0, %v2286
      %v2288 = vpop.f32.mrb[0].mxu0
      %2289 = vmatprep.mubr.bf16.mxu0 0
      %2290 = vmatmul.mubr.bf16.gmra.mrb[0].mxu0 %v2078
      %v2291 = vpop.f32.mrb[0].mxu0
      %v2292 = vadd.f32 0.0, %v2291
      %v2293 = vpop.f32.mrb[0].mxu0
      %v2294 = vpop.f32.mrb[0].mxu0
      %v2295 = vadd.f32 0.0, %v2294
      %v2296 = vpop.f32.mrb[0].mxu0
      %2297 = vmatprep.mubr.bf16.mxu0 0
      %2298 = vmatmul.mubr.bf16.gmra.mrb[0].mxu0 %v2079
      %v2299 = vpop.f32.mrb[0].mxu0
      %v2300 = vadd.f32 0.0, %v2299
      %v2301 = vpop.f32.mrb[0].mxu0
      %v2302 = vpop.f32.mrb[0].mxu0
      %v2303 = vadd.f32 0.0, %v2302
      %v2304 = vpop.f32.mrb[0].mxu0
      %2305 = vdwg.mxu0
      %v2306 = vld [vmem:[#allocation2] sm:$0xff]
      %v2307 = vld [vmem:[#allocation2 + $0x8] sm:$0xff]
      %v2308 = vld [vmem:[#allocation2 + $0x10] sm:$0xff]
      %v2309 = vld [vmem:[#allocation2 + $0x18] sm:$0xff]
      %v2310 = vld [vmem:[#allocation2 + $0x20] sm:$0xff]
      %v2311 = vld [vmem:[#allocation2 + $0x28] sm:$0xff]
      %v2312 = vld [vmem:[#allocation2 + $0x30] sm:$0xff]
      %v2313 = vld [vmem:[#allocation2 + $0x38] sm:$0xff]
      %v2314 = vld [vmem:[#allocation2 + $0x40] sm:$0xff]
      %v2315 = vld [vmem:[#allocation2 + $0x48] sm:$0xff]
      %v2316 = vld [vmem:[#allocation2 + $0x50] sm:$0xff]
      %v2317 = vld [vmem:[#allocation2 + $0x58] sm:$0xff]
      %v2318 = vld [vmem:[#allocation2 + $0x60] sm:$0xff]
      %v2319 = vld [vmem:[#allocation2 + $0x68] sm:$0xff]
      %v2320 = vld [vmem:[#allocation2 + $0x70] sm:$0xff]
      %v2321 = vld [vmem:[#allocation2 + $0x78] sm:$0xff]
      %v2322 = vld [vmem:[#allocation2 + $0x80] sm:$0xff]
      %v2323 = vld [vmem:[#allocation2 + $0x88] sm:$0xff]
      %v2324 = vld [vmem:[#allocation2 + $0x90] sm:$0xff]
      %v2325 = vld [vmem:[#allocation2 + $0x98] sm:$0xff]
      %v2326 = vld [vmem:[#allocation2 + $0xa0] sm:$0xff]
      %v2327 = vld [vmem:[#allocation2 + $0xa8] sm:$0xff]
      %v2328 = vld [vmem:[#allocation2 + $0xb0] sm:$0xff]
      %v2329 = vld [vmem:[#allocation2 + $0xb8] sm:$0xff]
      %v2330 = vld [vmem:[#allocation2 + $0xc0] sm:$0xff]
      %v2331 = vld [vmem:[#allocation2 + $0xc8] sm:$0xff]
      %v2332 = vld [vmem:[#allocation2 + $0xd0] sm:$0xff]
      %v2333 = vld [vmem:[#allocation2 + $0xd8] sm:$0xff]
      %v2334 = vld [vmem:[#allocation2 + $0xe0] sm:$0xff]
      %v2335 = vld [vmem:[#allocation2 + $0xe8] sm:$0xff]
      %v2336 = vld [vmem:[#allocation2 + $0xf0] sm:$0xff]
      %v2337 = vld [vmem:[#allocation2 + $0xf8] sm:$0xff]
      %v2338 = vadd.f32 %v2306, %v2180
      %v2339 = vadd.f32 %v2307, %v2183
      %v2340 = vadd.f32 %v2308, %v2188
      %v2341 = vadd.f32 %v2309, %v2191
      %v2342 = vadd.f32 %v2310, %v2196
      %v2343 = vadd.f32 %v2311, %v2199
      %v2344 = vadd.f32 %v2312, %v2204
      %v2345 = vadd.f32 %v2313, %v2207
      %v2346 = vadd.f32 %v2314, %v2212
      %v2347 = vadd.f32 %v2315, %v2215
      %v2348 = vadd.f32 %v2316, %v2220
      %v2349 = vadd.f32 %v2317, %v2223
      %v2350 = vadd.f32 %v2318, %v2228
      %v2351 = vadd.f32 %v2319, %v2231
      %v2352 = vadd.f32 %v2320, %v2236
      %v2353 = vadd.f32 %v2321, %v2239
      %v2354 = vadd.f32 %v2322, %v2244
      %v2355 = vadd.f32 %v2323, %v2247
      %v2356 = vadd.f32 %v2324, %v2252
      %v2357 = vadd.f32 %v2325, %v2255
      %v2358 = vadd.f32 %v2326, %v2260
      %v2359 = vadd.f32 %v2327, %v2263
      %v2360 = vadd.f32 %v2328, %v2268
      %v2361 = vadd.f32 %v2329, %v2271
      %v2362 = vadd.f32 %v2330, %v2276
      %v2363 = vadd.f32 %v2331, %v2279
      %v2364 = vadd.f32 %v2332, %v2284
      %v2365 = vadd.f32 %v2333, %v2287
      %v2366 = vadd.f32 %v2334, %v2292
      %v2367 = vadd.f32 %v2335, %v2295
      %v2368 = vadd.f32 %v2336, %v2300
      %v2369 = vadd.f32 %v2337, %v2303
      %2370 = vst [vmem:[#allocation2] sm:$0xff] %v2338
      %2371 = vst [vmem:[#allocation2 + $0x8] sm:$0xff] %v2339
      %2372 = vst [vmem:[#allocation2 + $0x10] sm:$0xff] %v2340
      %2373 = vst [vmem:[#allocation2 + $0x18] sm:$0xff] %v2341
      %2374 = vst [vmem:[#allocation2 + $0x20] sm:$0xff] %v2342
      %2375 = vst [vmem:[#allocation2 + $0x28] sm:$0xff] %v2343
      %2376 = vst [vmem:[#allocation2 + $0x30] sm:$0xff] %v2344
      %2377 = vst [vmem:[#allocation2 + $0x38] sm:$0xff] %v2345
      %2378 = vst [vmem:[#allocation2 + $0x40] sm:$0xff] %v2346
      %2379 = vst [vmem:[#allocation2 + $0x48] sm:$0xff] %v2347
      %2380 = vst [vmem:[#allocation2 + $0x50] sm:$0xff] %v2348
      %2381 = vst [vmem:[#allocation2 + $0x58] sm:$0xff] %v2349
      %2382 = vst [vmem:[#allocation2 + $0x60] sm:$0xff] %v2350
      %2383 = vst [vmem:[#allocation2 + $0x68] sm:$0xff] %v2351
      %2384 = vst [vmem:[#allocation2 + $0x70] sm:$0xff] %v2352
      %2385 = vst [vmem:[#allocation2 + $0x78] sm:$0xff] %v2353
      %2386 = vst [vmem:[#allocation2 + $0x80] sm:$0xff] %v2354
      %2387 = vst [vmem:[#allocation2 + $0x88] sm:$0xff] %v2355
      %2388 = vst [vmem:[#allocation2 + $0x90] sm:$0xff] %v2356
      %2389 = vst [vmem:[#allocation2 + $0x98] sm:$0xff] %v2357
      %2390 = vst [vmem:[#allocation2 + $0xa0] sm:$0xff] %v2358
      %2391 = vst [vmem:[#allocation2 + $0xa8] sm:$0xff] %v2359
      %2392 = vst [vmem:[#allocation2 + $0xb0] sm:$0xff] %v2360
      %2393 = vst [vmem:[#allocation2 + $0xb8] sm:$0xff] %v2361
      %2394 = vst [vmem:[#allocation2 + $0xc0] sm:$0xff] %v2362
      %2395 = vst [vmem:[#allocation2 + $0xc8] sm:$0xff] %v2363
      %2396 = vst [vmem:[#allocation2 + $0xd0] sm:$0xff] %v2364
      %2397 = vst [vmem:[#allocation2 + $0xd8] sm:$0xff] %v2365
      %2398 = vst [vmem:[#allocation2 + $0xe0] sm:$0xff] %v2366
      %2399 = vst [vmem:[#allocation2 + $0xe8] sm:$0xff] %v2367
      %2400 = vst [vmem:[#allocation2 + $0xf0] sm:$0xff] %v2368
      %2401 = vst [vmem:[#allocation2 + $0xf8] sm:$0xff] %v2369
      %v2402 = vrot.slane %v1518, 2
      %v2403 = vrot.slane %v1519, 2
      %v2404 = vsel %vm1064, %v2402, %v2403
      %v2405 = vrot.slane %v1520, 2
      %v2406 = vsel %vm1064, %v2403, %v2405
      %v2407 = vrot.slane %v1521, 2
      %v2408 = vrot.slane %v1522, 2
      %v2409 = vsel %vm1064, %v2407, %v2408
      %v2410 = vrot.slane %v1523, 2
      %v2411 = vsel %vm1064, %v2408, %v2410
      %v2412 = vrot.slane %v1524, 2
      %v2413 = vrot.slane %v1525, 2
      %v2414 = vsel %vm1064, %v2412, %v2413
      %v2415 = vrot.slane %v1526, 2
      %v2416 = vsel %vm1064, %v2413, %v2415
      %v2417 = vrot.slane %v1527, 2
      %v2418 = vrot.slane %v1528, 2
      %v2419 = vsel %vm1064, %v2417, %v2418
      %v2420 = vrot.slane %v1529, 2
      %v2421 = vsel %vm1064, %v2418, %v2420
      %v2422 = vrot.slane %v1530, 2
      %v2423 = vrot.slane %v1531, 2
      %v2424 = vsel %vm1064, %v2422, %v2423
      %v2425 = vrot.slane %v1532, 2
      %v2426 = vsel %vm1064, %v2423, %v2425
      %v2427 = vrot.slane %v1533, 2
      %v2428 = vrot.slane %v1534, 2
      %v2429 = vsel %vm1064, %v2427, %v2428
      %v2430 = vrot.slane %v1535, 2
      %v2431 = vsel %vm1064, %v2428, %v2430
      %v2432 = vrot.slane %v1536, 2
      %v2433 = vrot.slane %v1537, 2
      %v2434 = vsel %vm1064, %v2432, %v2433
      %v2435 = vrot.slane %v1538, 2
      %v2436 = vsel %vm1064, %v2433, %v2435
      %v2437 = vrot.slane %v1539, 2
      %v2438 = vrot.slane %v1540, 2
      %v2439 = vsel %vm1064, %v2437, %v2438
      %v2440 = vrot.slane %v1541, 2
      %v2441 = vsel %vm1064, %v2438, %v2440
      %v2442 = vrot.slane %v1542, 2
      %v2443 = vrot.slane %v1543, 2
      %v2444 = vsel %vm1064, %v2442, %v2443
      %v2445 = vrot.slane %v1544, 2
      %v2446 = vsel %vm1064, %v2443, %v2445
      %v2447 = vrot.slane %v1545, 2
      %v2448 = vrot.slane %v1546, 2
      %v2449 = vsel %vm1064, %v2447, %v2448
      %v2450 = vrot.slane %v1547, 2
      %v2451 = vsel %vm1064, %v2448, %v2450
      %v2452 = vrot.slane %v1548, 2
      %v2453 = vrot.slane %v1549, 2
      %v2454 = vsel %vm1064, %v2452, %v2453
      %v2455 = vrot.slane %v1550, 2
      %v2456 = vsel %vm1064, %v2453, %v2455
      %v2457 = vrot.slane %v1551, 2
      %v2458 = vrot.slane %v1552, 2
      %v2459 = vsel %vm1064, %v2457, %v2458
      %v2460 = vrot.slane %v1553, 2
      %v2461 = vsel %vm1064, %v2458, %v2460
      %v2462 = vrot.slane %v1554, 2
      %v2463 = vrot.slane %v1555, 2
      %v2464 = vsel %vm1064, %v2462, %v2463
      %v2465 = vrot.slane %v1556, 2
      %v2466 = vsel %vm1064, %v2463, %v2465
      %v2467 = vrot.slane %v1557, 2
      %v2468 = vrot.slane %v1558, 2
      %v2469 = vsel %vm1064, %v2467, %v2468
      %v2470 = vrot.slane %v1559, 2
      %v2471 = vsel %vm1064, %v2468, %v2470
      %v2472 = vrot.slane %v1560, 2
      %v2473 = vrot.slane %v1561, 2
      %v2474 = vsel %vm1064, %v2472, %v2473
      %v2475 = vrot.slane %v1562, 2
      %v2476 = vsel %vm1064, %v2473, %v2475
      %v2477 = vrot.slane %v1563, 2
      %v2478 = vrot.slane %v1564, 2
      %v2479 = vsel %vm1064, %v2477, %v2478
      %v2480 = vrot.slane %v1565, 2
      %v2481 = vsel %vm1064, %v2478, %v2480
      %v2514 = vpack.c.bf16 %v2406, %v2404
      %v2515 = vpack.c.bf16 %v2411, %v2409
      %v2516 = vpack.c.bf16 %v2416, %v2414
      %v2517 = vpack.c.bf16 %v2421, %v2419
      %v2518 = vpack.c.bf16 %v2426, %v2424
      %v2519 = vpack.c.bf16 %v2431, %v2429
      %v2520 = vpack.c.bf16 %v2436, %v2434
      %v2521 = vpack.c.bf16 %v2441, %v2439
      %v2522 = vpack.c.bf16 %v2446, %v2444
      %v2523 = vpack.c.bf16 %v2451, %v2449
      %v2524 = vpack.c.bf16 %v2456, %v2454
      %v2525 = vpack.c.bf16 %v2461, %v2459
      %v2526 = vpack.c.bf16 %v2466, %v2464
      %v2527 = vpack.c.bf16 %v2471, %v2469
      %v2528 = vpack.c.bf16 %v2476, %v2474
      %v2529 = vpack.c.bf16 %v2481, %v2479
      %s2530 = scalar_lea.vmem %s1, 320
      %v2531 = vld [vmem:[%s2530] sm:$0xf]
      %v2532 = vld [vmem:[%s2530 + $0x4] sm:$0xf]
      %v2533 = vld [vmem:[%s2530 + $0x8] sm:$0xf]
      %v2534 = vld [vmem:[%s2530 + $0xc] sm:$0xf]
      %v2535 = vld [vmem:[%s2530 + $0x10] sm:$0xf]
      %v2536 = vld [vmem:[%s2530 + $0x14] sm:$0xf]
      %v2537 = vld [vmem:[%s2530 + $0x18] sm:$0xf]
      %v2538 = vld [vmem:[%s2530 + $0x1c] sm:$0xf]
      %v2539 = vld [vmem:[%s2530 + $0x20] sm:$0xf]
      %v2540 = vld [vmem:[%s2530 + $0x24] sm:$0xf]
      %v2541 = vld [vmem:[%s2530 + $0x28] sm:$0xf]
      %v2542 = vld [vmem:[%s2530 + $0x2c] sm:$0xf]
      %v2543 = vld [vmem:[%s2530 + $0x30] sm:$0xf]
      %v2544 = vld [vmem:[%s2530 + $0x34] sm:$0xf]
      %v2545 = vld [vmem:[%s2530 + $0x38] sm:$0xf]
      %v2546 = vld [vmem:[%s2530 + $0x3c] sm:$0xf]
      %v2563 = vunpack.c.l.b16 %v2531
      %v2564 = vunpack.c.l.b16 %v2532
      %v2565 = vunpack.c.l.b16 %v2533
      %v2566 = vunpack.c.l.b16 %v2534
      %v2567 = vunpack.c.l.b16 %v2535
      %v2568 = vunpack.c.l.b16 %v2536
      %v2569 = vunpack.c.l.b16 %v2537
      %v2570 = vunpack.c.l.b16 %v2538
      %v2571 = vunpack.c.l.b16 %v2539
      %v2572 = vunpack.c.l.b16 %v2540
      %v2573 = vunpack.c.l.b16 %v2541
      %v2574 = vunpack.c.l.b16 %v2542
      %v2575 = vunpack.c.l.b16 %v2543
      %v2576 = vunpack.c.l.b16 %v2544
      %v2577 = vunpack.c.l.b16 %v2545
      %v2578 = vunpack.c.l.b16 %v2546
      %v2579 = vpack.c.b16 %v2564, %v2563
      %v2580 = vpack.c.b16 %v2566, %v2565
      %v2581 = vpack.c.b16 %v2568, %v2567
      %v2582 = vpack.c.b16 %v2570, %v2569
      %v2583 = vpack.c.b16 %v2572, %v2571
      %v2584 = vpack.c.b16 %v2574, %v2573
      %v2585 = vpack.c.b16 %v2576, %v2575
      %v2586 = vpack.c.b16 %v2578, %v2577
      %2595 = vmatprep.subr.bf16.mxu0 0
      %2596 = vmatpush1.bf16.msra.mxu0 %v2579
      %2597 = vmatprep.subr.bf16.mxu0 0
      %2598 = vmatpush1.bf16.msra.mxu0 %v2580
      %2599 = vmatprep.subr.bf16.mxu0 0
      %2600 = vmatpush1.bf16.msra.mxu0 %v2581
      %2601 = vmatprep.subr.bf16.mxu0 0
      %2602 = vmatpush1.bf16.msra.mxu0 %v2582
      %2603 = vmatprep.subr.bf16.mxu0 0
      %2604 = vmatpush1.bf16.msra.mxu0 %v2583
      %2605 = vmatprep.subr.bf16.mxu0 0
      %2606 = vmatpush1.bf16.msra.mxu0 %v2584
      %2607 = vmatprep.subr.bf16.mxu0 0
      %2608 = vmatpush1.bf16.msra.mxu0 %v2585
      %2609 = vmatprep.subr.bf16.mxu0 0
      %2610 = vmatpush1.bf16.msra.mxu0 %v2586
      %2611 = vmatprep.subr.bf16.mxu0 0
      %2612 = vmatpush1.bf16.msra.mxu0 0
      %2613 = vmatprep.subr.bf16.mxu0 0
      %2614 = vmatpush1.bf16.msra.mxu0 0
      %2615 = vmatprep.subr.bf16.mxu0 0
      %2616 = vmatpush1.bf16.msra.mxu0 0
      %2617 = vmatprep.subr.bf16.mxu0 0
      %2618 = vmatpush1.bf16.msra.mxu0 0
      %2619 = vmatprep.subr.bf16.mxu0 0
      %2620 = vmatpush1.bf16.msra.mxu0 0
      %2621 = vmatprep.subr.bf16.mxu0 0
      %2622 = vmatpush1.bf16.msra.mxu0 0
      %2623 = vmatprep.subr.bf16.mxu0 0
      %2624 = vmatpush1.bf16.msra.mxu0 0
      %2625 = vmatprep.subr.bf16.mxu0 0
      %2626 = vmatpush1.bf16.msra.mxu0 0
      %2627 = vmatprep.mubr.bf16.mxu0 0
      %2628 = vmatmul.mubr.bf16.gmra.mrb[0].mxu0 %v2514
      %v2629 = vpop.f32.mrb[0].mxu0
      %v2630 = vadd.f32 0.0, %v2629
      %v2631 = vpop.f32.mrb[0].mxu0
      %v2632 = vpop.f32.mrb[0].mxu0
      %v2633 = vadd.f32 0.0, %v2632
      %v2634 = vpop.f32.mrb[0].mxu0
      %2635 = vmatprep.mubr.bf16.mxu0 0
      %2636 = vmatmul.mubr.bf16.gmra.mrb[0].mxu0 %v2515
      %v2637 = vpop.f32.mrb[0].mxu0
      %v2638 = vadd.f32 0.0, %v2637
      %v2639 = vpop.f32.mrb[0].mxu0
      %v2640 = vpop.f32.mrb[0].mxu0
      %v2641 = vadd.f32 0.0, %v2640
      %v2642 = vpop.f32.mrb[0].mxu0
      %2643 = vmatprep.mubr.bf16.mxu0 0
      %2644 = vmatmul.mubr.bf16.gmra.mrb[0].mxu0 %v2516
      %v2645 = vpop.f32.mrb[0].mxu0
      %v2646 = vadd.f32 0.0, %v2645
      %v2647 = vpop.f32.mrb[0].mxu0
      %v2648 = vpop.f32.mrb[0].mxu0
      %v2649 = vadd.f32 0.0, %v2648
      %v2650 = vpop.f32.mrb[0].mxu0
      %2651 = vmatprep.mubr.bf16.mxu0 0
      %2652 = vmatmul.mubr.bf16.gmra.mrb[0].mxu0 %v2517
      %v2653 = vpop.f32.mrb[0].mxu0
      %v2654 = vadd.f32 0.0, %v2653
      %v2655 = vpop.f32.mrb[0].mxu0
      %v2656 = vpop.f32.mrb[0].mxu0
      %v2657 = vadd.f32 0.0, %v2656
      %v2658 = vpop.f32.mrb[0].mxu0
      %2659 = vmatprep.mubr.bf16.mxu0 0
      %2660 = vmatmul.mubr.bf16.gmra.mrb[0].mxu0 %v2518
      %v2661 = vpop.f32.mrb[0].mxu0
      %v2662 = vadd.f32 0.0, %v2661
      %v2663 = vpop.f32.mrb[0].mxu0
      %v2664 = vpop.f32.mrb[0].mxu0
      %v2665 = vadd.f32 0.0, %v2664
      %v2666 = vpop.f32.mrb[0].mxu0
      %2667 = vmatprep.mubr.bf16.mxu0 0
      %2668 = vmatmul.mubr.bf16.gmra.mrb[0].mxu0 %v2519
      %v2669 = vpop.f32.mrb[0].mxu0
      %v2670 = vadd.f32 0.0, %v2669
      %v2671 = vpop.f32.mrb[0].mxu0
      %v2672 = vpop.f32.mrb[0].mxu0
      %v2673 = vadd.f32 0.0, %v2672
      %v2674 = vpop.f32.mrb[0].mxu0
      %2675 = vmatprep.mubr.bf16.mxu0 0
      %2676 = vmatmul.mubr.bf16.gmra.mrb[0].mxu0 %v2520
      %v2677 = vpop.f32.mrb[0].mxu0
      %v2678 = vadd.f32 0.0, %v2677
      %v2679 = vpop.f32.mrb[0].mxu0
      %v2680 = vpop.f32.mrb[0].mxu0
      %v2681 = vadd.f32 0.0, %v2680
      %v2682 = vpop.f32.mrb[0].mxu0
      %2683 = vmatprep.mubr.bf16.mxu0 0
      %2684 = vmatmul.mubr.bf16.gmra.mrb[0].mxu0 %v2521
      %v2685 = vpop.f32.mrb[0].mxu0
      %v2686 = vadd.f32 0.0, %v2685
      %v2687 = vpop.f32.mrb[0].mxu0
      %v2688 = vpop.f32.mrb[0].mxu0
      %v2689 = vadd.f32 0.0, %v2688
      %v2690 = vpop.f32.mrb[0].mxu0
      %2691 = vmatprep.mubr.bf16.mxu0 0
      %2692 = vmatmul.mubr.bf16.gmra.mrb[0].mxu0 %v2522
      %v2693 = vpop.f32.mrb[0].mxu0
      %v2694 = vadd.f32 0.0, %v2693
      %v2695 = vpop.f32.mrb[0].mxu0
      %v2696 = vpop.f32.mrb[0].mxu0
      %v2697 = vadd.f32 0.0, %v2696
      %v2698 = vpop.f32.mrb[0].mxu0
      %2699 = vmatprep.mubr.bf16.mxu0 0
      %2700 = vmatmul.mubr.bf16.gmra.mrb[0].mxu0 %v2523
      %v2701 = vpop.f32.mrb[0].mxu0
      %v2702 = vadd.f32 0.0, %v2701
      %v2703 = vpop.f32.mrb[0].mxu0
      %v2704 = vpop.f32.mrb[0].mxu0
      %v2705 = vadd.f32 0.0, %v2704
      %v2706 = vpop.f32.mrb[0].mxu0
      %2707 = vmatprep.mubr.bf16.mxu0 0
      %2708 = vmatmul.mubr.bf16.gmra.mrb[0].mxu0 %v2524
      %v2709 = vpop.f32.mrb[0].mxu0
      %v2710 = vadd.f32 0.0, %v2709
      %v2711 = vpop.f32.mrb[0].mxu0
      %v2712 = vpop.f32.mrb[0].mxu0
      %v2713 = vadd.f32 0.0, %v2712
      %v2714 = vpop.f32.mrb[0].mxu0
      %2715 = vmatprep.mubr.bf16.mxu0 0
      %2716 = vmatmul.mubr.bf16.gmra.mrb[0].mxu0 %v2525
      %v2717 = vpop.f32.mrb[0].mxu0
      %v2718 = vadd.f32 0.0, %v2717
      %v2719 = vpop.f32.mrb[0].mxu0
      %v2720 = vpop.f32.mrb[0].mxu0
      %v2721 = vadd.f32 0.0, %v2720
      %v2722 = vpop.f32.mrb[0].mxu0
      %2723 = vmatprep.mubr.bf16.mxu0 0
      %2724 = vmatmul.mubr.bf16.gmra.mrb[0].mxu0 %v2526
      %v2725 = vpop.f32.mrb[0].mxu0
      %v2726 = vadd.f32 0.0, %v2725
      %v2727 = vpop.f32.mrb[0].mxu0
      %v2728 = vpop.f32.mrb[0].mxu0
      %v2729 = vadd.f32 0.0, %v2728
      %v2730 = vpop.f32.mrb[0].mxu0
      %2731 = vmatprep.mubr.bf16.mxu0 0
      %2732 = vmatmul.mubr.bf16.gmra.mrb[0].mxu0 %v2527
      %v2733 = vpop.f32.mrb[0].mxu0
      %v2734 = vadd.f32 0.0, %v2733
      %v2735 = vpop.f32.mrb[0].mxu0
      %v2736 = vpop.f32.mrb[0].mxu0
      %v2737 = vadd.f32 0.0, %v2736
      %v2738 = vpop.f32.mrb[0].mxu0
      %2739 = vmatprep.mubr.bf16.mxu0 0
      %2740 = vmatmul.mubr.bf16.gmra.mrb[0].mxu0 %v2528
      %v2741 = vpop.f32.mrb[0].mxu0
      %v2742 = vadd.f32 0.0, %v2741
      %v2743 = vpop.f32.mrb[0].mxu0
      %v2744 = vpop.f32.mrb[0].mxu0
      %v2745 = vadd.f32 0.0, %v2744
      %v2746 = vpop.f32.mrb[0].mxu0
      %2747 = vmatprep.mubr.bf16.mxu0 0
      %2748 = vmatmul.mubr.bf16.gmra.mrb[0].mxu0 %v2529
      %v2749 = vpop.f32.mrb[0].mxu0
      %v2750 = vadd.f32 0.0, %v2749
      %v2751 = vpop.f32.mrb[0].mxu0
      %v2752 = vpop.f32.mrb[0].mxu0
      %v2753 = vadd.f32 0.0, %v2752
      %v2754 = vpop.f32.mrb[0].mxu0
      %2755 = vdwg.mxu0
      %v2756 = vld [vmem:[#allocation2] sm:$0xff]
      %v2757 = vld [vmem:[#allocation2 + $0x8] sm:$0xff]
      %v2758 = vld [vmem:[#allocation2 + $0x10] sm:$0xff]
      %v2759 = vld [vmem:[#allocation2 + $0x18] sm:$0xff]
      %v2760 = vld [vmem:[#allocation2 + $0x20] sm:$0xff]
      %v2761 = vld [vmem:[#allocation2 + $0x28] sm:$0xff]
      %v2762 = vld [vmem:[#allocation2 + $0x30] sm:$0xff]
      %v2763 = vld [vmem:[#allocation2 + $0x38] sm:$0xff]
      %v2764 = vld [vmem:[#allocation2 + $0x40] sm:$0xff]
      %v2765 = vld [vmem:[#allocation2 + $0x48] sm:$0xff]
      %v2766 = vld [vmem:[#allocation2 + $0x50] sm:$0xff]
      %v2767 = vld [vmem:[#allocation2 + $0x58] sm:$0xff]
      %v2768 = vld [vmem:[#allocation2 + $0x60] sm:$0xff]
      %v2769 = vld [vmem:[#allocation2 + $0x68] sm:$0xff]
      %v2770 = vld [vmem:[#allocation2 + $0x70] sm:$0xff]
      %v2771 = vld [vmem:[#allocation2 + $0x78] sm:$0xff]
      %v2772 = vld [vmem:[#allocation2 + $0x80] sm:$0xff]
      %v2773 = vld [vmem:[#allocation2 + $0x88] sm:$0xff]
      %v2774 = vld [vmem:[#allocation2 + $0x90] sm:$0xff]
      %v2775 = vld [vmem:[#allocation2 + $0x98] sm:$0xff]
      %v2776 = vld [vmem:[#allocation2 + $0xa0] sm:$0xff]
      %v2777 = vld [vmem:[#allocation2 + $0xa8] sm:$0xff]
      %v2778 = vld [vmem:[#allocation2 + $0xb0] sm:$0xff]
      %v2779 = vld [vmem:[#allocation2 + $0xb8] sm:$0xff]
      %v2780 = vld [vmem:[#allocation2 + $0xc0] sm:$0xff]
      %v2781 = vld [vmem:[#allocation2 + $0xc8] sm:$0xff]
      %v2782 = vld [vmem:[#allocation2 + $0xd0] sm:$0xff]
      %v2783 = vld [vmem:[#allocation2 + $0xd8] sm:$0xff]
      %v2784 = vld [vmem:[#allocation2 + $0xe0] sm:$0xff]
      %v2785 = vld [vmem:[#allocation2 + $0xe8] sm:$0xff]
      %v2786 = vld [vmem:[#allocation2 + $0xf0] sm:$0xff]
      %v2787 = vld [vmem:[#allocation2 + $0xf8] sm:$0xff]
      %v2788 = vadd.f32 %v2756, %v2630
      %v2789 = vadd.f32 %v2757, %v2633
      %v2790 = vadd.f32 %v2758, %v2638
      %v2791 = vadd.f32 %v2759, %v2641
      %v2792 = vadd.f32 %v2760, %v2646
      %v2793 = vadd.f32 %v2761, %v2649
      %v2794 = vadd.f32 %v2762, %v2654
      %v2795 = vadd.f32 %v2763, %v2657
      %v2796 = vadd.f32 %v2764, %v2662
      %v2797 = vadd.f32 %v2765, %v2665
      %v2798 = vadd.f32 %v2766, %v2670
      %v2799 = vadd.f32 %v2767, %v2673
      %v2800 = vadd.f32 %v2768, %v2678
      %v2801 = vadd.f32 %v2769, %v2681
      %v2802 = vadd.f32 %v2770, %v2686
      %v2803 = vadd.f32 %v2771, %v2689
      %v2804 = vadd.f32 %v2772, %v2694
      %v2805 = vadd.f32 %v2773, %v2697
      %v2806 = vadd.f32 %v2774, %v2702
      %v2807 = vadd.f32 %v2775, %v2705
      %v2808 = vadd.f32 %v2776, %v2710
      %v2809 = vadd.f32 %v2777, %v2713
      %v2810 = vadd.f32 %v2778, %v2718
      %v2811 = vadd.f32 %v2779, %v2721
      %v2812 = vadd.f32 %v2780, %v2726
      %v2813 = vadd.f32 %v2781, %v2729
      %v2814 = vadd.f32 %v2782, %v2734
      %v2815 = vadd.f32 %v2783, %v2737
      %v2816 = vadd.f32 %v2784, %v2742
      %v2817 = vadd.f32 %v2785, %v2745
      %v2818 = vadd.f32 %v2786, %v2750
      %v2819 = vadd.f32 %v2787, %v2753
      %2820 = vst [vmem:[#allocation2] sm:$0xff] %v2788
      %2821 = vst [vmem:[#allocation2 + $0x8] sm:$0xff] %v2789
      %2822 = vst [vmem:[#allocation2 + $0x10] sm:$0xff] %v2790
      %2823 = vst [vmem:[#allocation2 + $0x18] sm:$0xff] %v2791
      %2824 = vst [vmem:[#allocation2 + $0x20] sm:$0xff] %v2792
      %2825 = vst [vmem:[#allocation2 + $0x28] sm:$0xff] %v2793
      %2826 = vst [vmem:[#allocation2 + $0x30] sm:$0xff] %v2794
      %2827 = vst [vmem:[#allocation2 + $0x38] sm:$0xff] %v2795
      %2828 = vst [vmem:[#allocation2 + $0x40] sm:$0xff] %v2796
      %2829 = vst [vmem:[#allocation2 + $0x48] sm:$0xff] %v2797
      %2830 = vst [vmem:[#allocation2 + $0x50] sm:$0xff] %v2798
      %2831 = vst [vmem:[#allocation2 + $0x58] sm:$0xff] %v2799
      %2832 = vst [vmem:[#allocation2 + $0x60] sm:$0xff] %v2800
      %2833 = vst [vmem:[#allocation2 + $0x68] sm:$0xff] %v2801
      %2834 = vst [vmem:[#allocation2 + $0x70] sm:$0xff] %v2802
      %2835 = vst [vmem:[#allocation2 + $0x78] sm:$0xff] %v2803
      %2836 = vst [vmem:[#allocation2 + $0x80] sm:$0xff] %v2804
      %2837 = vst [vmem:[#allocation2 + $0x88] sm:$0xff] %v2805
      %2838 = vst [vmem:[#allocation2 + $0x90] sm:$0xff] %v2806
      %2839 = vst [vmem:[#allocation2 + $0x98] sm:$0xff] %v2807
      %2840 = vst [vmem:[#allocation2 + $0xa0] sm:$0xff] %v2808
      %2841 = vst [vmem:[#allocation2 + $0xa8] sm:$0xff] %v2809
      %2842 = vst [vmem:[#allocation2 + $0xb0] sm:$0xff] %v2810
      %2843 = vst [vmem:[#allocation2 + $0xb8] sm:$0xff] %v2811
      %2844 = vst [vmem:[#allocation2 + $0xc0] sm:$0xff] %v2812
      %2845 = vst [vmem:[#allocation2 + $0xc8] sm:$0xff] %v2813
      %2846 = vst [vmem:[#allocation2 + $0xd0] sm:$0xff] %v2814
      %2847 = vst [vmem:[#allocation2 + $0xd8] sm:$0xff] %v2815
      %2848 = vst [vmem:[#allocation2 + $0xe0] sm:$0xff] %v2816
      %2849 = vst [vmem:[#allocation2 + $0xe8] sm:$0xff] %v2817
      %2850 = vst [vmem:[#allocation2 + $0xf0] sm:$0xff] %v2818
      %2851 = vst [vmem:[#allocation2 + $0xf8] sm:$0xff] %v2819
      %s2852 = sadd.s32 %s241, 2
      %s2853 = smul.u32 %s2852, 24
      %s2854 = scalar_lea.vmem %s222, %s2853
      %v2855 = vld [vmem:[%s2854] sm:$0xff]
      %v2856 = vld [vmem:[%s2854 + $0x8] sm:$0xff]
      %v2857 = vld [vmem:[%s2854 + $0x10] sm:$0x3]
      %v2858 = vld [vmem:[%s2854 + $0x18] sm:$0xff]
      %v2859 = vld [vmem:[%s2854 + $0x20] sm:$0xff]
      %v2860 = vld [vmem:[%s2854 + $0x28] sm:$0x3]
      %v2861 = vld [vmem:[%s2854 + $0x30] sm:$0xff]
      %v2862 = vld [vmem:[%s2854 + $0x38] sm:$0xff]
      %v2863 = vld [vmem:[%s2854 + $0x40] sm:$0x3]
      %v2864 = vld [vmem:[%s2854 + $0x48] sm:$0xff]
      %v2865 = vld [vmem:[%s2854 + $0x50] sm:$0xff]
      %v2866 = vld [vmem:[%s2854 + $0x58] sm:$0x3]
      %v2867 = vld [vmem:[%s2854 + $0x60] sm:$0xff]
      %v2868 = vld [vmem:[%s2854 + $0x68] sm:$0xff]
      %v2869 = vld [vmem:[%s2854 + $0x70] sm:$0x3]
      %v2870 = vld [vmem:[%s2854 + $0x78] sm:$0xff]
      %v2871 = vld [vmem:[%s2854 + $0x80] sm:$0xff]
      %v2872 = vld [vmem:[%s2854 + $0x88] sm:$0x3]
      %v2873 = vld [vmem:[%s2854 + $0x90] sm:$0xff]
      %v2874 = vld [vmem:[%s2854 + $0x98] sm:$0xff]
      %v2875 = vld [vmem:[%s2854 + $0xa0] sm:$0x3]
      %v2876 = vld [vmem:[%s2854 + $0xa8] sm:$0xff]
      %v2877 = vld [vmem:[%s2854 + $0xb0] sm:$0xff]
      %v2878 = vld [vmem:[%s2854 + $0xb8] sm:$0x3]
      %v2879 = vld [vmem:[%s2854 + $0xc0] sm:$0xff]
      %v2880 = vld [vmem:[%s2854 + $0xc8] sm:$0xff]
      %v2881 = vld [vmem:[%s2854 + $0xd0] sm:$0x3]
      %v2882 = vld [vmem:[%s2854 + $0xd8] sm:$0xff]
      %v2883 = vld [vmem:[%s2854 + $0xe0] sm:$0xff]
      %v2884 = vld [vmem:[%s2854 + $0xe8] sm:$0x3]
      %v2885 = vld [vmem:[%s2854 + $0xf0] sm:$0xff]
      %v2886 = vld [vmem:[%s2854 + $0xf8] sm:$0xff]
      %v2887 = vld [vmem:[%s2854 + $0x100] sm:$0x3]
      %v2888 = vld [vmem:[%s2854 + $0x108] sm:$0xff]
      %v2889 = vld [vmem:[%s2854 + $0x110] sm:$0xff]
      %v2890 = vld [vmem:[%s2854 + $0x118] sm:$0x3]
      %v2891 = vld [vmem:[%s2854 + $0x120] sm:$0xff]
      %v2892 = vld [vmem:[%s2854 + $0x128] sm:$0xff]
      %v2893 = vld [vmem:[%s2854 + $0x130] sm:$0x3]
      %v2894 = vld [vmem:[%s2854 + $0x138] sm:$0xff]
      %v2895 = vld [vmem:[%s2854 + $0x140] sm:$0xff]
      %v2896 = vld [vmem:[%s2854 + $0x148] sm:$0x3]
      %v2897 = vld [vmem:[%s2854 + $0x150] sm:$0xff]
      %v2898 = vld [vmem:[%s2854 + $0x158] sm:$0xff]
      %v2899 = vld [vmem:[%s2854 + $0x160] sm:$0x3]
      %v2900 = vld [vmem:[%s2854 + $0x168] sm:$0xff]
      %v2901 = vld [vmem:[%s2854 + $0x170] sm:$0xff]
      %v2902 = vld [vmem:[%s2854 + $0x178] sm:$0x3]
      %v2903 = vpack.c.bf16 %v2856, %v2855
      %v2904 = vpack.c.bf16 %v2859, %v2858
      %v2905 = vpack.c.bf16 %v2862, %v2861
      %v2906 = vpack.c.bf16 %v2865, %v2864
      %v2907 = vpack.c.bf16 %v2868, %v2867
      %v2908 = vpack.c.bf16 %v2871, %v2870
      %v2909 = vpack.c.bf16 %v2874, %v2873
      %v2910 = vpack.c.bf16 %v2877, %v2876
      %v2911 = vpack.c.bf16 %v2880, %v2879
      %v2912 = vpack.c.bf16 %v2883, %v2882
      %v2913 = vpack.c.bf16 %v2886, %v2885
      %v2914 = vpack.c.bf16 %v2889, %v2888
      %v2915 = vpack.c.bf16 %v2892, %v2891
      %v2916 = vpack.c.bf16 %v2895, %v2894
      %v2917 = vpack.c.bf16 %v2898, %v2897
      %v2918 = vpack.c.bf16 %v2901, %v2900
      %s2919 = scalar_lea.vmem %s1, 384
      %v2920 = vld [vmem:[%s2919] sm:$0xf]
      %v2921 = vld [vmem:[%s2919 + $0x4] sm:$0xf]
      %v2922 = vld [vmem:[%s2919 + $0x8] sm:$0xf]
      %v2923 = vld [vmem:[%s2919 + $0xc] sm:$0xf]
      %v2924 = vld [vmem:[%s2919 + $0x10] sm:$0xf]
      %v2925 = vld [vmem:[%s2919 + $0x14] sm:$0xf]
      %v2926 = vld [vmem:[%s2919 + $0x18] sm:$0xf]
      %v2927 = vld [vmem:[%s2919 + $0x1c] sm:$0xf]
      %v2928 = vld [vmem:[%s2919 + $0x20] sm:$0xf]
      %v2929 = vld [vmem:[%s2919 + $0x24] sm:$0xf]
      %v2930 = vld [vmem:[%s2919 + $0x28] sm:$0xf]
      %v2931 = vld [vmem:[%s2919 + $0x2c] sm:$0xf]
      %v2932 = vld [vmem:[%s2919 + $0x30] sm:$0xf]
      %v2933 = vld [vmem:[%s2919 + $0x34] sm:$0xf]
      %v2934 = vld [vmem:[%s2919 + $0x38] sm:$0xf]
      %v2935 = vld [vmem:[%s2919 + $0x3c] sm:$0xf]
      %v2952 = vunpack.c.l.b16 %v2920
      %v2953 = vunpack.c.l.b16 %v2921
      %v2954 = vunpack.c.l.b16 %v2922
      %v2955 = vunpack.c.l.b16 %v2923
      %v2956 = vunpack.c.l.b16 %v2924
      %v2957 = vunpack.c.l.b16 %v2925
      %v2958 = vunpack.c.l.b16 %v2926
      %v2959 = vunpack.c.l.b16 %v2927
      %v2960 = vunpack.c.l.b16 %v2928
      %v2961 = vunpack.c.l.b16 %v2929
      %v2962 = vunpack.c.l.b16 %v2930
      %v2963 = vunpack.c.l.b16 %v2931
      %v2964 = vunpack.c.l.b16 %v2932
      %v2965 = vunpack.c.l.b16 %v2933
      %v2966 = vunpack.c.l.b16 %v2934
      %v2967 = vunpack.c.l.b16 %v2935
      %v2968 = vpack.c.b16 %v2953, %v2952
      %v2969 = vpack.c.b16 %v2955, %v2954
      %v2970 = vpack.c.b16 %v2957, %v2956
      %v2971 = vpack.c.b16 %v2959, %v2958
      %v2972 = vpack.c.b16 %v2961, %v2960
      %v2973 = vpack.c.b16 %v2963, %v2962
      %v2974 = vpack.c.b16 %v2965, %v2964
      %v2975 = vpack.c.b16 %v2967, %v2966
      %2984 = vmatprep.subr.bf16.mxu0 0
      %2985 = vmatpush1.bf16.msra.mxu0 %v2968
      %2986 = vmatprep.subr.bf16.mxu0 0
      %2987 = vmatpush1.bf16.msra.mxu0 %v2969
      %2988 = vmatprep.subr.bf16.mxu0 0
      %2989 = vmatpush1.bf16.msra.mxu0 %v2970
      %2990 = vmatprep.subr.bf16.mxu0 0
      %2991 = vmatpush1.bf16.msra.mxu0 %v2971
      %2992 = vmatprep.subr.bf16.mxu0 0
      %2993 = vmatpush1.bf16.msra.mxu0 %v2972
      %2994 = vmatprep.subr.bf16.mxu0 0
      %2995 = vmatpush1.bf16.msra.mxu0 %v2973
      %2996 = vmatprep.subr.bf16.mxu0 0
      %2997 = vmatpush1.bf16.msra.mxu0 %v2974
      %2998 = vmatprep.subr.bf16.mxu0 0
      %2999 = vmatpush1.bf16.msra.mxu0 %v2975
      %3000 = vmatprep.subr.bf16.mxu0 0
      %3001 = vmatpush1.bf16.msra.mxu0 0
      %3002 = vmatprep.subr.bf16.mxu0 0
      %3003 = vmatpush1.bf16.msra.mxu0 0
      %3004 = vmatprep.subr.bf16.mxu0 0
      %3005 = vmatpush1.bf16.msra.mxu0 0
      %3006 = vmatprep.subr.bf16.mxu0 0
      %3007 = vmatpush1.bf16.msra.mxu0 0
      %3008 = vmatprep.subr.bf16.mxu0 0
      %3009 = vmatpush1.bf16.msra.mxu0 0
      %3010 = vmatprep.subr.bf16.mxu0 0
      %3011 = vmatpush1.bf16.msra.mxu0 0
      %3012 = vmatprep.subr.bf16.mxu0 0
      %3013 = vmatpush1.bf16.msra.mxu0 0
      %3014 = vmatprep.subr.bf16.mxu0 0
      %3015 = vmatpush1.bf16.msra.mxu0 0
      %3016 = vmatprep.mubr.bf16.mxu0 0
      %3017 = vmatmul.mubr.bf16.gmra.mrb[0].mxu0 %v2903
      %v3018 = vpop.f32.mrb[0].mxu0
      %v3019 = vadd.f32 0.0, %v3018
      %v3020 = vpop.f32.mrb[0].mxu0
      %v3021 = vpop.f32.mrb[0].mxu0
      %v3022 = vadd.f32 0.0, %v3021
      %v3023 = vpop.f32.mrb[0].mxu0
      %3024 = vmatprep.mubr.bf16.mxu0 0
      %3025 = vmatmul.mubr.bf16.gmra.mrb[0].mxu0 %v2904
      %v3026 = vpop.f32.mrb[0].mxu0
      %v3027 = vadd.f32 0.0, %v3026
      %v3028 = vpop.f32.mrb[0].mxu0
      %v3029 = vpop.f32.mrb[0].mxu0
      %v3030 = vadd.f32 0.0, %v3029
      %v3031 = vpop.f32.mrb[0].mxu0
      %3032 = vmatprep.mubr.bf16.mxu0 0
      %3033 = vmatmul.mubr.bf16.gmra.mrb[0].mxu0 %v2905
      %v3034 = vpop.f32.mrb[0].mxu0
      %v3035 = vadd.f32 0.0, %v3034
      %v3036 = vpop.f32.mrb[0].mxu0
      %v3037 = vpop.f32.mrb[0].mxu0
      %v3038 = vadd.f32 0.0, %v3037
      %v3039 = vpop.f32.mrb[0].mxu0
      %3040 = vmatprep.mubr.bf16.mxu0 0
      %3041 = vmatmul.mubr.bf16.gmra.mrb[0].mxu0 %v2906
      %v3042 = vpop.f32.mrb[0].mxu0
      %v3043 = vadd.f32 0.0, %v3042
      %v3044 = vpop.f32.mrb[0].mxu0
      %v3045 = vpop.f32.mrb[0].mxu0
      %v3046 = vadd.f32 0.0, %v3045
      %v3047 = vpop.f32.mrb[0].mxu0
      %3048 = vmatprep.mubr.bf16.mxu0 0
      %3049 = vmatmul.mubr.bf16.gmra.mrb[0].mxu0 %v2907
      %v3050 = vpop.f32.mrb[0].mxu0
      %v3051 = vadd.f32 0.0, %v3050
      %v3052 = vpop.f32.mrb[0].mxu0
      %v3053 = vpop.f32.mrb[0].mxu0
      %v3054 = vadd.f32 0.0, %v3053
      %v3055 = vpop.f32.mrb[0].mxu0
      %3056 = vmatprep.mubr.bf16.mxu0 0
      %3057 = vmatmul.mubr.bf16.gmra.mrb[0].mxu0 %v2908
      %v3058 = vpop.f32.mrb[0].mxu0
      %v3059 = vadd.f32 0.0, %v3058
      %v3060 = vpop.f32.mrb[0].mxu0
      %v3061 = vpop.f32.mrb[0].mxu0
      %v3062 = vadd.f32 0.0, %v3061
      %v3063 = vpop.f32.mrb[0].mxu0
      %3064 = vmatprep.mubr.bf16.mxu0 0
      %3065 = vmatmul.mubr.bf16.gmra.mrb[0].mxu0 %v2909
      %v3066 = vpop.f32.mrb[0].mxu0
      %v3067 = vadd.f32 0.0, %v3066
      %v3068 = vpop.f32.mrb[0].mxu0
      %v3069 = vpop.f32.mrb[0].mxu0
      %v3070 = vadd.f32 0.0, %v3069
      %v3071 = vpop.f32.mrb[0].mxu0
      %3072 = vmatprep.mubr.bf16.mxu0 0
      %3073 = vmatmul.mubr.bf16.gmra.mrb[0].mxu0 %v2910
      %v3074 = vpop.f32.mrb[0].mxu0
      %v3075 = vadd.f32 0.0, %v3074
      %v3076 = vpop.f32.mrb[0].mxu0
      %v3077 = vpop.f32.mrb[0].mxu0
      %v3078 = vadd.f32 0.0, %v3077
      %v3079 = vpop.f32.mrb[0].mxu0
      %3080 = vmatprep.mubr.bf16.mxu0 0
      %3081 = vmatmul.mubr.bf16.gmra.mrb[0].mxu0 %v2911
      %v3082 = vpop.f32.mrb[0].mxu0
      %v3083 = vadd.f32 0.0, %v3082
      %v3084 = vpop.f32.mrb[0].mxu0
      %v3085 = vpop.f32.mrb[0].mxu0
      %v3086 = vadd.f32 0.0, %v3085
      %v3087 = vpop.f32.mrb[0].mxu0
      %3088 = vmatprep.mubr.bf16.mxu0 0
      %3089 = vmatmul.mubr.bf16.gmra.mrb[0].mxu0 %v2912
      %v3090 = vpop.f32.mrb[0].mxu0
      %v3091 = vadd.f32 0.0, %v3090
      %v3092 = vpop.f32.mrb[0].mxu0
      %v3093 = vpop.f32.mrb[0].mxu0
      %v3094 = vadd.f32 0.0, %v3093
      %v3095 = vpop.f32.mrb[0].mxu0
      %3096 = vmatprep.mubr.bf16.mxu0 0
      %3097 = vmatmul.mubr.bf16.gmra.mrb[0].mxu0 %v2913
      %v3098 = vpop.f32.mrb[0].mxu0
      %v3099 = vadd.f32 0.0, %v3098
      %v3100 = vpop.f32.mrb[0].mxu0
      %v3101 = vpop.f32.mrb[0].mxu0
      %v3102 = vadd.f32 0.0, %v3101
      %v3103 = vpop.f32.mrb[0].mxu0
      %3104 = vmatprep.mubr.bf16.mxu0 0
      %3105 = vmatmul.mubr.bf16.gmra.mrb[0].mxu0 %v2914
      %v3106 = vpop.f32.mrb[0].mxu0
      %v3107 = vadd.f32 0.0, %v3106
      %v3108 = vpop.f32.mrb[0].mxu0
      %v3109 = vpop.f32.mrb[0].mxu0
      %v3110 = vadd.f32 0.0, %v3109
      %v3111 = vpop.f32.mrb[0].mxu0
      %3112 = vmatprep.mubr.bf16.mxu0 0
      %3113 = vmatmul.mubr.bf16.gmra.mrb[0].mxu0 %v2915
      %v3114 = vpop.f32.mrb[0].mxu0
      %v3115 = vadd.f32 0.0, %v3114
      %v3116 = vpop.f32.mrb[0].mxu0
      %v3117 = vpop.f32.mrb[0].mxu0
      %v3118 = vadd.f32 0.0, %v3117
      %v3119 = vpop.f32.mrb[0].mxu0
      %3120 = vmatprep.mubr.bf16.mxu0 0
      %3121 = vmatmul.mubr.bf16.gmra.mrb[0].mxu0 %v2916
      %v3122 = vpop.f32.mrb[0].mxu0
      %v3123 = vadd.f32 0.0, %v3122
      %v3124 = vpop.f32.mrb[0].mxu0
      %v3125 = vpop.f32.mrb[0].mxu0
      %v3126 = vadd.f32 0.0, %v3125
      %v3127 = vpop.f32.mrb[0].mxu0
      %3128 = vmatprep.mubr.bf16.mxu0 0
      %3129 = vmatmul.mubr.bf16.gmra.mrb[0].mxu0 %v2917
      %v3130 = vpop.f32.mrb[0].mxu0
      %v3131 = vadd.f32 0.0, %v3130
      %v3132 = vpop.f32.mrb[0].mxu0
      %v3133 = vpop.f32.mrb[0].mxu0
      %v3134 = vadd.f32 0.0, %v3133
      %v3135 = vpop.f32.mrb[0].mxu0
      %3136 = vmatprep.mubr.bf16.mxu0 0
      %3137 = vmatmul.mubr.bf16.gmra.mrb[0].mxu0 %v2918
      %v3138 = vpop.f32.mrb[0].mxu0
      %v3139 = vadd.f32 0.0, %v3138
      %v3140 = vpop.f32.mrb[0].mxu0
      %v3141 = vpop.f32.mrb[0].mxu0
      %v3142 = vadd.f32 0.0, %v3141
      %v3143 = vpop.f32.mrb[0].mxu0
      %3144 = vdwg.mxu0
      %v3145 = vld [vmem:[#allocation2] sm:$0xff]
      %v3146 = vld [vmem:[#allocation2 + $0x8] sm:$0xff]
      %v3147 = vld [vmem:[#allocation2 + $0x10] sm:$0xff]
      %v3148 = vld [vmem:[#allocation2 + $0x18] sm:$0xff]
      %v3149 = vld [vmem:[#allocation2 + $0x20] sm:$0xff]
      %v3150 = vld [vmem:[#allocation2 + $0x28] sm:$0xff]
      %v3151 = vld [vmem:[#allocation2 + $0x30] sm:$0xff]
      %v3152 = vld [vmem:[#allocation2 + $0x38] sm:$0xff]
      %v3153 = vld [vmem:[#allocation2 + $0x40] sm:$0xff]
      %v3154 = vld [vmem:[#allocation2 + $0x48] sm:$0xff]
      %v3155 = vld [vmem:[#allocation2 + $0x50] sm:$0xff]
      %v3156 = vld [vmem:[#allocation2 + $0x58] sm:$0xff]
      %v3157 = vld [vmem:[#allocation2 + $0x60] sm:$0xff]
      %v3158 = vld [vmem:[#allocation2 + $0x68] sm:$0xff]
      %v3159 = vld [vmem:[#allocation2 + $0x70] sm:$0xff]
      %v3160 = vld [vmem:[#allocation2 + $0x78] sm:$0xff]
      %v3161 = vld [vmem:[#allocation2 + $0x80] sm:$0xff]
      %v3162 = vld [vmem:[#allocation2 + $0x88] sm:$0xff]
      %v3163 = vld [vmem:[#allocation2 + $0x90] sm:$0xff]
      %v3164 = vld [vmem:[#allocation2 + $0x98] sm:$0xff]
      %v3165 = vld [vmem:[#allocation2 + $0xa0] sm:$0xff]
      %v3166 = vld [vmem:[#allocation2 + $0xa8] sm:$0xff]
      %v3167 = vld [vmem:[#allocation2 + $0xb0] sm:$0xff]
      %v3168 = vld [vmem:[#allocation2 + $0xb8] sm:$0xff]
      %v3169 = vld [vmem:[#allocation2 + $0xc0] sm:$0xff]
      %v3170 = vld [vmem:[#allocation2 + $0xc8] sm:$0xff]
      %v3171 = vld [vmem:[#allocation2 + $0xd0] sm:$0xff]
      %v3172 = vld [vmem:[#allocation2 + $0xd8] sm:$0xff]
      %v3173 = vld [vmem:[#allocation2 + $0xe0] sm:$0xff]
      %v3174 = vld [vmem:[#allocation2 + $0xe8] sm:$0xff]
      %v3175 = vld [vmem:[#allocation2 + $0xf0] sm:$0xff]
      %v3176 = vld [vmem:[#allocation2 + $0xf8] sm:$0xff]
      %v3177 = vadd.f32 %v3145, %v3019
      %v3178 = vadd.f32 %v3146, %v3022
      %v3179 = vadd.f32 %v3147, %v3027
      %v3180 = vadd.f32 %v3148, %v3030
      %v3181 = vadd.f32 %v3149, %v3035
      %v3182 = vadd.f32 %v3150, %v3038
      %v3183 = vadd.f32 %v3151, %v3043
      %v3184 = vadd.f32 %v3152, %v3046
      %v3185 = vadd.f32 %v3153, %v3051
      %v3186 = vadd.f32 %v3154, %v3054
      %v3187 = vadd.f32 %v3155, %v3059
      %v3188 = vadd.f32 %v3156, %v3062
      %v3189 = vadd.f32 %v3157, %v3067
      %v3190 = vadd.f32 %v3158, %v3070
      %v3191 = vadd.f32 %v3159, %v3075
      %v3192 = vadd.f32 %v3160, %v3078
      %v3193 = vadd.f32 %v3161, %v3083
      %v3194 = vadd.f32 %v3162, %v3086
      %v3195 = vadd.f32 %v3163, %v3091
      %v3196 = vadd.f32 %v3164, %v3094
      %v3197 = vadd.f32 %v3165, %v3099
      %v3198 = vadd.f32 %v3166, %v3102
      %v3199 = vadd.f32 %v3167, %v3107
      %v3200 = vadd.f32 %v3168, %v3110
      %v3201 = vadd.f32 %v3169, %v3115
      %v3202 = vadd.f32 %v3170, %v3118
      %v3203 = vadd.f32 %v3171, %v3123
      %v3204 = vadd.f32 %v3172, %v3126
      %v3205 = vadd.f32 %v3173, %v3131
      %v3206 = vadd.f32 %v3174, %v3134
      %v3207 = vadd.f32 %v3175, %v3139
      %v3208 = vadd.f32 %v3176, %v3142
      %3209 = vst [vmem:[#allocation2] sm:$0xff] %v3177
      %3210 = vst [vmem:[#allocation2 + $0x8] sm:$0xff] %v3178
      %3211 = vst [vmem:[#allocation2 + $0x10] sm:$0xff] %v3179
      %3212 = vst [vmem:[#allocation2 + $0x18] sm:$0xff] %v3180
      %3213 = vst [vmem:[#allocation2 + $0x20] sm:$0xff] %v3181
      %3214 = vst [vmem:[#allocation2 + $0x28] sm:$0xff] %v3182
      %3215 = vst [vmem:[#allocation2 + $0x30] sm:$0xff] %v3183
      %3216 = vst [vmem:[#allocation2 + $0x38] sm:$0xff] %v3184
      %3217 = vst [vmem:[#allocation2 + $0x40] sm:$0xff] %v3185
      %3218 = vst [vmem:[#allocation2 + $0x48] sm:$0xff] %v3186
      %3219 = vst [vmem:[#allocation2 + $0x50] sm:$0xff] %v3187
      %3220 = vst [vmem:[#allocation2 + $0x58] sm:$0xff] %v3188
      %3221 = vst [vmem:[#allocation2 + $0x60] sm:$0xff] %v3189
      %3222 = vst [vmem:[#allocation2 + $0x68] sm:$0xff] %v3190
      %3223 = vst [vmem:[#allocation2 + $0x70] sm:$0xff] %v3191
      %3224 = vst [vmem:[#allocation2 + $0x78] sm:$0xff] %v3192
      %3225 = vst [vmem:[#allocation2 + $0x80] sm:$0xff] %v3193
      %3226 = vst [vmem:[#allocation2 + $0x88] sm:$0xff] %v3194
      %3227 = vst [vmem:[#allocation2 + $0x90] sm:$0xff] %v3195
      %3228 = vst [vmem:[#allocation2 + $0x98] sm:$0xff] %v3196
      %3229 = vst [vmem:[#allocation2 + $0xa0] sm:$0xff] %v3197
      %3230 = vst [vmem:[#allocation2 + $0xa8] sm:$0xff] %v3198
      %3231 = vst [vmem:[#allocation2 + $0xb0] sm:$0xff] %v3199
      %3232 = vst [vmem:[#allocation2 + $0xb8] sm:$0xff] %v3200
      %3233 = vst [vmem:[#allocation2 + $0xc0] sm:$0xff] %v3201
      %3234 = vst [vmem:[#allocation2 + $0xc8] sm:$0xff] %v3202
      %3235 = vst [vmem:[#allocation2 + $0xd0] sm:$0xff] %v3203
      %3236 = vst [vmem:[#allocation2 + $0xd8] sm:$0xff] %v3204
      %3237 = vst [vmem:[#allocation2 + $0xe0] sm:$0xff] %v3205
      %3238 = vst [vmem:[#allocation2 + $0xe8] sm:$0xff] %v3206
      %3239 = vst [vmem:[#allocation2 + $0xf0] sm:$0xff] %v3207
      %3240 = vst [vmem:[#allocation2 + $0xf8] sm:$0xff] %v3208
      %v3289 = vrot.slane %v2855, 1
      %v3290 = vrot.slane %v2856, 1
      %v3291 = vsel %vm613, %v3289, %v3290
      %v3292 = vrot.slane %v2857, 1
      %v3293 = vsel %vm613, %v3290, %v3292
      %v3294 = vrot.slane %v2858, 1
      %v3295 = vrot.slane %v2859, 1
      %v3296 = vsel %vm613, %v3294, %v3295
      %v3297 = vrot.slane %v2860, 1
      %v3298 = vsel %vm613, %v3295, %v3297
      %v3299 = vrot.slane %v2861, 1
      %v3300 = vrot.slane %v2862, 1
      %v3301 = vsel %vm613, %v3299, %v3300
      %v3302 = vrot.slane %v2863, 1
      %v3303 = vsel %vm613, %v3300, %v3302
      %v3304 = vrot.slane %v2864, 1
      %v3305 = vrot.slane %v2865, 1
      %v3306 = vsel %vm613, %v3304, %v3305
      %v3307 = vrot.slane %v2866, 1
      %v3308 = vsel %vm613, %v3305, %v3307
      %v3309 = vrot.slane %v2867, 1
      %v3310 = vrot.slane %v2868, 1
      %v3311 = vsel %vm613, %v3309, %v3310
      %v3312 = vrot.slane %v2869, 1
      %v3313 = vsel %vm613, %v3310, %v3312
      %v3314 = vrot.slane %v2870, 1
      %v3315 = vrot.slane %v2871, 1
      %v3316 = vsel %vm613, %v3314, %v3315
      %v3317 = vrot.slane %v2872, 1
      %v3318 = vsel %vm613, %v3315, %v3317
      %v3319 = vrot.slane %v2873, 1
      %v3320 = vrot.slane %v2874, 1
      %v3321 = vsel %vm613, %v3319, %v3320
      %v3322 = vrot.slane %v2875, 1
      %v3323 = vsel %vm613, %v3320, %v3322
      %v3324 = vrot.slane %v2876, 1
      %v3325 = vrot.slane %v2877, 1
      %v3326 = vsel %vm613, %v3324, %v3325
      %v3327 = vrot.slane %v2878, 1
      %v3328 = vsel %vm613, %v3325, %v3327
      %v3329 = vrot.slane %v2879, 1
      %v3330 = vrot.slane %v2880, 1
      %v3331 = vsel %vm613, %v3329, %v3330
      %v3332 = vrot.slane %v2881, 1
      %v3333 = vsel %vm613, %v3330, %v3332
      %v3334 = vrot.slane %v2882, 1
      %v3335 = vrot.slane %v2883, 1
      %v3336 = vsel %vm613, %v3334, %v3335
      %v3337 = vrot.slane %v2884, 1
      %v3338 = vsel %vm613, %v3335, %v3337
      %v3339 = vrot.slane %v2885, 1
      %v3340 = vrot.slane %v2886, 1
      %v3341 = vsel %vm613, %v3339, %v3340
      %v3342 = vrot.slane %v2887, 1
      %v3343 = vsel %vm613, %v3340, %v3342
      %v3344 = vrot.slane %v2888, 1
      %v3345 = vrot.slane %v2889, 1
      %v3346 = vsel %vm613, %v3344, %v3345
      %v3347 = vrot.slane %v2890, 1
      %v3348 = vsel %vm613, %v3345, %v3347
      %v3349 = vrot.slane %v2891, 1
      %v3350 = vrot.slane %v2892, 1
      %v3351 = vsel %vm613, %v3349, %v3350
      %v3352 = vrot.slane %v2893, 1
      %v3353 = vsel %vm613, %v3350, %v3352
      %v3354 = vrot.slane %v2894, 1
      %v3355 = vrot.slane %v2895, 1
      %v3356 = vsel %vm613, %v3354, %v3355
      %v3357 = vrot.slane %v2896, 1
      %v3358 = vsel %vm613, %v3355, %v3357
      %v3359 = vrot.slane %v2897, 1
      %v3360 = vrot.slane %v2898, 1
      %v3361 = vsel %vm613, %v3359, %v3360
      %v3362 = vrot.slane %v2899, 1
      %v3363 = vsel %vm613, %v3360, %v3362
      %v3364 = vrot.slane %v2900, 1
      %v3365 = vrot.slane %v2901, 1
      %v3366 = vsel %vm613, %v3364, %v3365
      %v3367 = vrot.slane %v2902, 1
      %v3368 = vsel %vm613, %v3365, %v3367
      %v3401 = vpack.c.bf16 %v3293, %v3291
      %v3402 = vpack.c.bf16 %v3298, %v3296
      %v3403 = vpack.c.bf16 %v3303, %v3301
      %v3404 = vpack.c.bf16 %v3308, %v3306
      %v3405 = vpack.c.bf16 %v3313, %v3311
      %v3406 = vpack.c.bf16 %v3318, %v3316
      %v3407 = vpack.c.bf16 %v3323, %v3321
      %v3408 = vpack.c.bf16 %v3328, %v3326
      %v3409 = vpack.c.bf16 %v3333, %v3331
      %v3410 = vpack.c.bf16 %v3338, %v3336
      %v3411 = vpack.c.bf16 %v3343, %v3341
      %v3412 = vpack.c.bf16 %v3348, %v3346
      %v3413 = vpack.c.bf16 %v3353, %v3351
      %v3414 = vpack.c.bf16 %v3358, %v3356
      %v3415 = vpack.c.bf16 %v3363, %v3361
      %v3416 = vpack.c.bf16 %v3368, %v3366
      %s3417 = scalar_lea.vmem %s1, 448
      %v3418 = vld [vmem:[%s3417] sm:$0xf]
      %v3419 = vld [vmem:[%s3417 + $0x4] sm:$0xf]
      %v3420 = vld [vmem:[%s3417 + $0x8] sm:$0xf]
      %v3421 = vld [vmem:[%s3417 + $0xc] sm:$0xf]
      %v3422 = vld [vmem:[%s3417 + $0x10] sm:$0xf]
      %v3423 = vld [vmem:[%s3417 + $0x14] sm:$0xf]
      %v3424 = vld [vmem:[%s3417 + $0x18] sm:$0xf]
      %v3425 = vld [vmem:[%s3417 + $0x1c] sm:$0xf]
      %v3426 = vld [vmem:[%s3417 + $0x20] sm:$0xf]
      %v3427 = vld [vmem:[%s3417 + $0x24] sm:$0xf]
      %v3428 = vld [vmem:[%s3417 + $0x28] sm:$0xf]
      %v3429 = vld [vmem:[%s3417 + $0x2c] sm:$0xf]
      %v3430 = vld [vmem:[%s3417 + $0x30] sm:$0xf]
      %v3431 = vld [vmem:[%s3417 + $0x34] sm:$0xf]
      %v3432 = vld [vmem:[%s3417 + $0x38] sm:$0xf]
      %v3433 = vld [vmem:[%s3417 + $0x3c] sm:$0xf]
      %v3450 = vunpack.c.l.b16 %v3418
      %v3451 = vunpack.c.l.b16 %v3419
      %v3452 = vunpack.c.l.b16 %v3420
      %v3453 = vunpack.c.l.b16 %v3421
      %v3454 = vunpack.c.l.b16 %v3422
      %v3455 = vunpack.c.l.b16 %v3423
      %v3456 = vunpack.c.l.b16 %v3424
      %v3457 = vunpack.c.l.b16 %v3425
      %v3458 = vunpack.c.l.b16 %v3426
      %v3459 = vunpack.c.l.b16 %v3427
      %v3460 = vunpack.c.l.b16 %v3428
      %v3461 = vunpack.c.l.b16 %v3429
      %v3462 = vunpack.c.l.b16 %v3430
      %v3463 = vunpack.c.l.b16 %v3431
      %v3464 = vunpack.c.l.b16 %v3432
      %v3465 = vunpack.c.l.b16 %v3433
      %v3466 = vpack.c.b16 %v3451, %v3450
      %v3467 = vpack.c.b16 %v3453, %v3452
      %v3468 = vpack.c.b16 %v3455, %v3454
      %v3469 = vpack.c.b16 %v3457, %v3456
      %v3470 = vpack.c.b16 %v3459, %v3458
      %v3471 = vpack.c.b16 %v3461, %v3460
      %v3472 = vpack.c.b16 %v3463, %v3462
      %v3473 = vpack.c.b16 %v3465, %v3464
      %3482 = vmatprep.subr.bf16.mxu0 0
      %3483 = vmatpush1.bf16.msra.mxu0 %v3466
      %3484 = vmatprep.subr.bf16.mxu0 0
      %3485 = vmatpush1.bf16.msra.mxu0 %v3467
      %3486 = vmatprep.subr.bf16.mxu0 0
      %3487 = vmatpush1.bf16.msra.mxu0 %v3468
      %3488 = vmatprep.subr.bf16.mxu0 0
      %3489 = vmatpush1.bf16.msra.mxu0 %v3469
      %3490 = vmatprep.subr.bf16.mxu0 0
      %3491 = vmatpush1.bf16.msra.mxu0 %v3470
      %3492 = vmatprep.subr.bf16.mxu0 0
      %3493 = vmatpush1.bf16.msra.mxu0 %v3471
      %3494 = vmatprep.subr.bf16.mxu0 0
      %3495 = vmatpush1.bf16.msra.mxu0 %v3472
      %3496 = vmatprep.subr.bf16.mxu0 0
      %3497 = vmatpush1.bf16.msra.mxu0 %v3473
      %3498 = vmatprep.subr.bf16.mxu0 0
      %3499 = vmatpush1.bf16.msra.mxu0 0
      %3500 = vmatprep.subr.bf16.mxu0 0
      %3501 = vmatpush1.bf16.msra.mxu0 0
      %3502 = vmatprep.subr.bf16.mxu0 0
      %3503 = vmatpush1.bf16.msra.mxu0 0
      %3504 = vmatprep.subr.bf16.mxu0 0
      %3505 = vmatpush1.bf16.msra.mxu0 0
      %3506 = vmatprep.subr.bf16.mxu0 0
      %3507 = vmatpush1.bf16.msra.mxu0 0
      %3508 = vmatprep.subr.bf16.mxu0 0
      %3509 = vmatpush1.bf16.msra.mxu0 0
      %3510 = vmatprep.subr.bf16.mxu0 0
      %3511 = vmatpush1.bf16.msra.mxu0 0
      %3512 = vmatprep.subr.bf16.mxu0 0
      %3513 = vmatpush1.bf16.msra.mxu0 0
      %3514 = vmatprep.mubr.bf16.mxu0 0
      %3515 = vmatmul.mubr.bf16.gmra.mrb[0].mxu0 %v3401
      %v3516 = vpop.f32.mrb[0].mxu0
      %v3517 = vadd.f32 0.0, %v3516
      %v3518 = vpop.f32.mrb[0].mxu0
      %v3519 = vpop.f32.mrb[0].mxu0
      %v3520 = vadd.f32 0.0, %v3519
      %v3521 = vpop.f32.mrb[0].mxu0
      %3522 = vmatprep.mubr.bf16.mxu0 0
      %3523 = vmatmul.mubr.bf16.gmra.mrb[0].mxu0 %v3402
      %v3524 = vpop.f32.mrb[0].mxu0
      %v3525 = vadd.f32 0.0, %v3524
      %v3526 = vpop.f32.mrb[0].mxu0
      %v3527 = vpop.f32.mrb[0].mxu0
      %v3528 = vadd.f32 0.0, %v3527
      %v3529 = vpop.f32.mrb[0].mxu0
      %3530 = vmatprep.mubr.bf16.mxu0 0
      %3531 = vmatmul.mubr.bf16.gmra.mrb[0].mxu0 %v3403
      %v3532 = vpop.f32.mrb[0].mxu0
      %v3533 = vadd.f32 0.0, %v3532
      %v3534 = vpop.f32.mrb[0].mxu0
      %v3535 = vpop.f32.mrb[0].mxu0
      %v3536 = vadd.f32 0.0, %v3535
      %v3537 = vpop.f32.mrb[0].mxu0
      %3538 = vmatprep.mubr.bf16.mxu0 0
      %3539 = vmatmul.mubr.bf16.gmra.mrb[0].mxu0 %v3404
      %v3540 = vpop.f32.mrb[0].mxu0
      %v3541 = vadd.f32 0.0, %v3540
      %v3542 = vpop.f32.mrb[0].mxu0
      %v3543 = vpop.f32.mrb[0].mxu0
      %v3544 = vadd.f32 0.0, %v3543
      %v3545 = vpop.f32.mrb[0].mxu0
      %3546 = vmatprep.mubr.bf16.mxu0 0
      %3547 = vmatmul.mubr.bf16.gmra.mrb[0].mxu0 %v3405
      %v3548 = vpop.f32.mrb[0].mxu0
      %v3549 = vadd.f32 0.0, %v3548
      %v3550 = vpop.f32.mrb[0].mxu0
      %v3551 = vpop.f32.mrb[0].mxu0
      %v3552 = vadd.f32 0.0, %v3551
      %v3553 = vpop.f32.mrb[0].mxu0
      %3554 = vmatprep.mubr.bf16.mxu0 0
      %3555 = vmatmul.mubr.bf16.gmra.mrb[0].mxu0 %v3406
      %v3556 = vpop.f32.mrb[0].mxu0
      %v3557 = vadd.f32 0.0, %v3556
      %v3558 = vpop.f32.mrb[0].mxu0
      %v3559 = vpop.f32.mrb[0].mxu0
      %v3560 = vadd.f32 0.0, %v3559
      %v3561 = vpop.f32.mrb[0].mxu0
      %3562 = vmatprep.mubr.bf16.mxu0 0
      %3563 = vmatmul.mubr.bf16.gmra.mrb[0].mxu0 %v3407
      %v3564 = vpop.f32.mrb[0].mxu0
      %v3565 = vadd.f32 0.0, %v3564
      %v3566 = vpop.f32.mrb[0].mxu0
      %v3567 = vpop.f32.mrb[0].mxu0
      %v3568 = vadd.f32 0.0, %v3567
      %v3569 = vpop.f32.mrb[0].mxu0
      %3570 = vmatprep.mubr.bf16.mxu0 0
      %3571 = vmatmul.mubr.bf16.gmra.mrb[0].mxu0 %v3408
      %v3572 = vpop.f32.mrb[0].mxu0
      %v3573 = vadd.f32 0.0, %v3572
      %v3574 = vpop.f32.mrb[0].mxu0
      %v3575 = vpop.f32.mrb[0].mxu0
      %v3576 = vadd.f32 0.0, %v3575
      %v3577 = vpop.f32.mrb[0].mxu0
      %3578 = vmatprep.mubr.bf16.mxu0 0
      %3579 = vmatmul.mubr.bf16.gmra.mrb[0].mxu0 %v3409
      %v3580 = vpop.f32.mrb[0].mxu0
      %v3581 = vadd.f32 0.0, %v3580
      %v3582 = vpop.f32.mrb[0].mxu0
      %v3583 = vpop.f32.mrb[0].mxu0
      %v3584 = vadd.f32 0.0, %v3583
      %v3585 = vpop.f32.mrb[0].mxu0
      %3586 = vmatprep.mubr.bf16.mxu0 0
      %3587 = vmatmul.mubr.bf16.gmra.mrb[0].mxu0 %v3410
      %v3588 = vpop.f32.mrb[0].mxu0
      %v3589 = vadd.f32 0.0, %v3588
      %v3590 = vpop.f32.mrb[0].mxu0
      %v3591 = vpop.f32.mrb[0].mxu0
      %v3592 = vadd.f32 0.0, %v3591
      %v3593 = vpop.f32.mrb[0].mxu0
      %3594 = vmatprep.mubr.bf16.mxu0 0
      %3595 = vmatmul.mubr.bf16.gmra.mrb[0].mxu0 %v3411
      %v3596 = vpop.f32.mrb[0].mxu0
      %v3597 = vadd.f32 0.0, %v3596
      %v3598 = vpop.f32.mrb[0].mxu0
      %v3599 = vpop.f32.mrb[0].mxu0
      %v3600 = vadd.f32 0.0, %v3599
      %v3601 = vpop.f32.mrb[0].mxu0
      %3602 = vmatprep.mubr.bf16.mxu0 0
      %3603 = vmatmul.mubr.bf16.gmra.mrb[0].mxu0 %v3412
      %v3604 = vpop.f32.mrb[0].mxu0
      %v3605 = vadd.f32 0.0, %v3604
      %v3606 = vpop.f32.mrb[0].mxu0
      %v3607 = vpop.f32.mrb[0].mxu0
      %v3608 = vadd.f32 0.0, %v3607
      %v3609 = vpop.f32.mrb[0].mxu0
      %3610 = vmatprep.mubr.bf16.mxu0 0
      %3611 = vmatmul.mubr.bf16.gmra.mrb[0].mxu0 %v3413
      %v3612 = vpop.f32.mrb[0].mxu0
      %v3613 = vadd.f32 0.0, %v3612
      %v3614 = vpop.f32.mrb[0].mxu0
      %v3615 = vpop.f32.mrb[0].mxu0
      %v3616 = vadd.f32 0.0, %v3615
      %v3617 = vpop.f32.mrb[0].mxu0
      %3618 = vmatprep.mubr.bf16.mxu0 0
      %3619 = vmatmul.mubr.bf16.gmra.mrb[0].mxu0 %v3414
      %v3620 = vpop.f32.mrb[0].mxu0
      %v3621 = vadd.f32 0.0, %v3620
      %v3622 = vpop.f32.mrb[0].mxu0
      %v3623 = vpop.f32.mrb[0].mxu0
      %v3624 = vadd.f32 0.0, %v3623
      %v3625 = vpop.f32.mrb[0].mxu0
      %3626 = vmatprep.mubr.bf16.mxu0 0
      %3627 = vmatmul.mubr.bf16.gmra.mrb[0].mxu0 %v3415
      %v3628 = vpop.f32.mrb[0].mxu0
      %v3629 = vadd.f32 0.0, %v3628
      %v3630 = vpop.f32.mrb[0].mxu0
      %v3631 = vpop.f32.mrb[0].mxu0
      %v3632 = vadd.f32 0.0, %v3631
      %v3633 = vpop.f32.mrb[0].mxu0
      %3634 = vmatprep.mubr.bf16.mxu0 0
      %3635 = vmatmul.mubr.bf16.gmra.mrb[0].mxu0 %v3416
      %v3636 = vpop.f32.mrb[0].mxu0
      %v3637 = vadd.f32 0.0, %v3636
      %v3638 = vpop.f32.mrb[0].mxu0
      %v3639 = vpop.f32.mrb[0].mxu0
      %v3640 = vadd.f32 0.0, %v3639
      %v3641 = vpop.f32.mrb[0].mxu0
      %3642 = vdwg.mxu0
      %v3643 = vld [vmem:[#allocation2] sm:$0xff]
      %v3644 = vld [vmem:[#allocation2 + $0x8] sm:$0xff]
      %v3645 = vld [vmem:[#allocation2 + $0x10] sm:$0xff]
      %v3646 = vld [vmem:[#allocation2 + $0x18] sm:$0xff]
      %v3647 = vld [vmem:[#allocation2 + $0x20] sm:$0xff]
      %v3648 = vld [vmem:[#allocation2 + $0x28] sm:$0xff]
      %v3649 = vld [vmem:[#allocation2 + $0x30] sm:$0xff]
      %v3650 = vld [vmem:[#allocation2 + $0x38] sm:$0xff]
      %v3651 = vld [vmem:[#allocation2 + $0x40] sm:$0xff]
      %v3652 = vld [vmem:[#allocation2 + $0x48] sm:$0xff]
      %v3653 = vld [vmem:[#allocation2 + $0x50] sm:$0xff]
      %v3654 = vld [vmem:[#allocation2 + $0x58] sm:$0xff]
      %v3655 = vld [vmem:[#allocation2 + $0x60] sm:$0xff]
      %v3656 = vld [vmem:[#allocation2 + $0x68] sm:$0xff]
      %v3657 = vld [vmem:[#allocation2 + $0x70] sm:$0xff]
      %v3658 = vld [vmem:[#allocation2 + $0x78] sm:$0xff]
      %v3659 = vld [vmem:[#allocation2 + $0x80] sm:$0xff]
      %v3660 = vld [vmem:[#allocation2 + $0x88] sm:$0xff]
      %v3661 = vld [vmem:[#allocation2 + $0x90] sm:$0xff]
      %v3662 = vld [vmem:[#allocation2 + $0x98] sm:$0xff]
      %v3663 = vld [vmem:[#allocation2 + $0xa0] sm:$0xff]
      %v3664 = vld [vmem:[#allocation2 + $0xa8] sm:$0xff]
      %v3665 = vld [vmem:[#allocation2 + $0xb0] sm:$0xff]
      %v3666 = vld [vmem:[#allocation2 + $0xb8] sm:$0xff]
      %v3667 = vld [vmem:[#allocation2 + $0xc0] sm:$0xff]
      %v3668 = vld [vmem:[#allocation2 + $0xc8] sm:$0xff]
      %v3669 = vld [vmem:[#allocation2 + $0xd0] sm:$0xff]
      %v3670 = vld [vmem:[#allocation2 + $0xd8] sm:$0xff]
      %v3671 = vld [vmem:[#allocation2 + $0xe0] sm:$0xff]
      %v3672 = vld [vmem:[#allocation2 + $0xe8] sm:$0xff]
      %v3673 = vld [vmem:[#allocation2 + $0xf0] sm:$0xff]
      %v3674 = vld [vmem:[#allocation2 + $0xf8] sm:$0xff]
      %v3675 = vadd.f32 %v3643, %v3517
      %v3676 = vadd.f32 %v3644, %v3520
      %v3677 = vadd.f32 %v3645, %v3525
      %v3678 = vadd.f32 %v3646, %v3528
      %v3679 = vadd.f32 %v3647, %v3533
      %v3680 = vadd.f32 %v3648, %v3536
      %v3681 = vadd.f32 %v3649, %v3541
      %v3682 = vadd.f32 %v3650, %v3544
      %v3683 = vadd.f32 %v3651, %v3549
      %v3684 = vadd.f32 %v3652, %v3552
      %v3685 = vadd.f32 %v3653, %v3557
      %v3686 = vadd.f32 %v3654, %v3560
      %v3687 = vadd.f32 %v3655, %v3565
      %v3688 = vadd.f32 %v3656, %v3568
      %v3689 = vadd.f32 %v3657, %v3573
      %v3690 = vadd.f32 %v3658, %v3576
      %v3691 = vadd.f32 %v3659, %v3581
      %v3692 = vadd.f32 %v3660, %v3584
      %v3693 = vadd.f32 %v3661, %v3589
      %v3694 = vadd.f32 %v3662, %v3592
      %v3695 = vadd.f32 %v3663, %v3597
      %v3696 = vadd.f32 %v3664, %v3600
      %v3697 = vadd.f32 %v3665, %v3605
      %v3698 = vadd.f32 %v3666, %v3608
      %v3699 = vadd.f32 %v3667, %v3613
      %v3700 = vadd.f32 %v3668, %v3616
      %v3701 = vadd.f32 %v3669, %v3621
      %v3702 = vadd.f32 %v3670, %v3624
      %v3703 = vadd.f32 %v3671, %v3629
      %v3704 = vadd.f32 %v3672, %v3632
      %v3705 = vadd.f32 %v3673, %v3637
      %v3706 = vadd.f32 %v3674, %v3640
      %3707 = vst [vmem:[#allocation2] sm:$0xff] %v3675
      %3708 = vst [vmem:[#allocation2 + $0x8] sm:$0xff] %v3676
      %3709 = vst [vmem:[#allocation2 + $0x10] sm:$0xff] %v3677
      %3710 = vst [vmem:[#allocation2 + $0x18] sm:$0xff] %v3678
      %3711 = vst [vmem:[#allocation2 + $0x20] sm:$0xff] %v3679
      %3712 = vst [vmem:[#allocation2 + $0x28] sm:$0xff] %v3680
      %3713 = vst [vmem:[#allocation2 + $0x30] sm:$0xff] %v3681
      %3714 = vst [vmem:[#allocation2 + $0x38] sm:$0xff] %v3682
      %3715 = vst [vmem:[#allocation2 + $0x40] sm:$0xff] %v3683
      %3716 = vst [vmem:[#allocation2 + $0x48] sm:$0xff] %v3684
      %3717 = vst [vmem:[#allocation2 + $0x50] sm:$0xff] %v3685
      %3718 = vst [vmem:[#allocation2 + $0x58] sm:$0xff] %v3686
      %3719 = vst [vmem:[#allocation2 + $0x60] sm:$0xff] %v3687
      %3720 = vst [vmem:[#allocation2 + $0x68] sm:$0xff] %v3688
      %3721 = vst [vmem:[#allocation2 + $0x70] sm:$0xff] %v3689
      %3722 = vst [vmem:[#allocation2 + $0x78] sm:$0xff] %v3690
      %3723 = vst [vmem:[#allocation2 + $0x80] sm:$0xff] %v3691
      %3724 = vst [vmem:[#allocation2 + $0x88] sm:$0xff] %v3692
      %3725 = vst [vmem:[#allocation2 + $0x90] sm:$0xff] %v3693
      %3726 = vst [vmem:[#allocation2 + $0x98] sm:$0xff] %v3694
      %3727 = vst [vmem:[#allocation2 + $0xa0] sm:$0xff] %v3695
      %3728 = vst [vmem:[#allocation2 + $0xa8] sm:$0xff] %v3696
      %3729 = vst [vmem:[#allocation2 + $0xb0] sm:$0xff] %v3697
      %3730 = vst [vmem:[#allocation2 + $0xb8] sm:$0xff] %v3698
      %3731 = vst [vmem:[#allocation2 + $0xc0] sm:$0xff] %v3699
      %3732 = vst [vmem:[#allocation2 + $0xc8] sm:$0xff] %v3700
      %3733 = vst [vmem:[#allocation2 + $0xd0] sm:$0xff] %v3701
      %3734 = vst [vmem:[#allocation2 + $0xd8] sm:$0xff] %v3702
      %3735 = vst [vmem:[#allocation2 + $0xe0] sm:$0xff] %v3703
      %3736 = vst [vmem:[#allocation2 + $0xe8] sm:$0xff] %v3704
      %3737 = vst [vmem:[#allocation2 + $0xf0] sm:$0xff] %v3705
      %3738 = vst [vmem:[#allocation2 + $0xf8] sm:$0xff] %v3706
      %v3739 = vrot.slane %v2855, 2
      %v3740 = vrot.slane %v2856, 2
      %v3741 = vsel %vm1064, %v3739, %v3740
      %v3742 = vrot.slane %v2857, 2
      %v3743 = vsel %vm1064, %v3740, %v3742
      %v3744 = vrot.slane %v2858, 2
      %v3745 = vrot.slane %v2859, 2
      %v3746 = vsel %vm1064, %v3744, %v3745
      %v3747 = vrot.slane %v2860, 2
      %v3748 = vsel %vm1064, %v3745, %v3747
      %v3749 = vrot.slane %v2861, 2
      %v3750 = vrot.slane %v2862, 2
      %v3751 = vsel %vm1064, %v3749, %v3750
      %v3752 = vrot.slane %v2863, 2
      %v3753 = vsel %vm1064, %v3750, %v3752
      %v3754 = vrot.slane %v2864, 2
      %v3755 = vrot.slane %v2865, 2
      %v3756 = vsel %vm1064, %v3754, %v3755
      %v3757 = vrot.slane %v2866, 2
      %v3758 = vsel %vm1064, %v3755, %v3757
      %v3759 = vrot.slane %v2867, 2
      %v3760 = vrot.slane %v2868, 2
      %v3761 = vsel %vm1064, %v3759, %v3760
      %v3762 = vrot.slane %v2869, 2
      %v3763 = vsel %vm1064, %v3760, %v3762
      %v3764 = vrot.slane %v2870, 2
      %v3765 = vrot.slane %v2871, 2
      %v3766 = vsel %vm1064, %v3764, %v3765
      %v3767 = vrot.slane %v2872, 2
      %v3768 = vsel %vm1064, %v3765, %v3767
      %v3769 = vrot.slane %v2873, 2
      %v3770 = vrot.slane %v2874, 2
      %v3771 = vsel %vm1064, %v3769, %v3770
      %v3772 = vrot.slane %v2875, 2
      %v3773 = vsel %vm1064, %v3770, %v3772
      %v3774 = vrot.slane %v2876, 2
      %v3775 = vrot.slane %v2877, 2
      %v3776 = vsel %vm1064, %v3774, %v3775
      %v3777 = vrot.slane %v2878, 2
      %v3778 = vsel %vm1064, %v3775, %v3777
      %v3779 = vrot.slane %v2879, 2
      %v3780 = vrot.slane %v2880, 2
      %v3781 = vsel %vm1064, %v3779, %v3780
      %v3782 = vrot.slane %v2881, 2
      %v3783 = vsel %vm1064, %v3780, %v3782
      %v3784 = vrot.slane %v2882, 2
      %v3785 = vrot.slane %v2883, 2
      %v3786 = vsel %vm1064, %v3784, %v3785
      %v3787 = vrot.slane %v2884, 2
      %v3788 = vsel %vm1064, %v3785, %v3787
      %v3789 = vrot.slane %v2885, 2
      %v3790 = vrot.slane %v2886, 2
      %v3791 = vsel %vm1064, %v3789, %v3790
      %v3792 = vrot.slane %v2887, 2
      %v3793 = vsel %vm1064, %v3790, %v3792
      %v3794 = vrot.slane %v2888, 2
      %v3795 = vrot.slane %v2889, 2
      %v3796 = vsel %vm1064, %v3794, %v3795
      %v3797 = vrot.slane %v2890, 2
      %v3798 = vsel %vm1064, %v3795, %v3797
      %v3799 = vrot.slane %v2891, 2
      %v3800 = vrot.slane %v2892, 2
      %v3801 = vsel %vm1064, %v3799, %v3800
      %v3802 = vrot.slane %v2893, 2
      %v3803 = vsel %vm1064, %v3800, %v3802
      %v3804 = vrot.slane %v2894, 2
      %v3805 = vrot.slane %v2895, 2
      %v3806 = vsel %vm1064, %v3804, %v3805
      %v3807 = vrot.slane %v2896, 2
      %v3808 = vsel %vm1064, %v3805, %v3807
      %v3809 = vrot.slane %v2897, 2
      %v3810 = vrot.slane %v2898, 2
      %v3811 = vsel %vm1064, %v3809, %v3810
      %v3812 = vrot.slane %v2899, 2
      %v3813 = vsel %vm1064, %v3810, %v3812
      %v3814 = vrot.slane %v2900, 2
      %v3815 = vrot.slane %v2901, 2
      %v3816 = vsel %vm1064, %v3814, %v3815
      %v3817 = vrot.slane %v2902, 2
      %v3818 = vsel %vm1064, %v3815, %v3817
      %v3851 = vpack.c.bf16 %v3743, %v3741
      %v3852 = vpack.c.bf16 %v3748, %v3746
      %v3853 = vpack.c.bf16 %v3753, %v3751
      %v3854 = vpack.c.bf16 %v3758, %v3756
      %v3855 = vpack.c.bf16 %v3763, %v3761
      %v3856 = vpack.c.bf16 %v3768, %v3766
      %v3857 = vpack.c.bf16 %v3773, %v3771
      %v3858 = vpack.c.bf16 %v3778, %v3776
      %v3859 = vpack.c.bf16 %v3783, %v3781
      %v3860 = vpack.c.bf16 %v3788, %v3786
      %v3861 = vpack.c.bf16 %v3793, %v3791
      %v3862 = vpack.c.bf16 %v3798, %v3796
      %v3863 = vpack.c.bf16 %v3803, %v3801
      %v3864 = vpack.c.bf16 %v3808, %v3806
      %v3865 = vpack.c.bf16 %v3813, %v3811
      %v3866 = vpack.c.bf16 %v3818, %v3816
      %s3867 = scalar_lea.vmem %s1, 512
      %v3868 = vld [vmem:[%s3867] sm:$0xf]
      %v3869 = vld [vmem:[%s3867 + $0x4] sm:$0xf]
      %v3870 = vld [vmem:[%s3867 + $0x8] sm:$0xf]
      %v3871 = vld [vmem:[%s3867 + $0xc] sm:$0xf]
      %v3872 = vld [vmem:[%s3867 + $0x10] sm:$0xf]
      %v3873 = vld [vmem:[%s3867 + $0x14] sm:$0xf]
      %v3874 = vld [vmem:[%s3867 + $0x18] sm:$0xf]
      %v3875 = vld [vmem:[%s3867 + $0x1c] sm:$0xf]
      %v3876 = vld [vmem:[%s3867 + $0x20] sm:$0xf]
      %v3877 = vld [vmem:[%s3867 + $0x24] sm:$0xf]
      %v3878 = vld [vmem:[%s3867 + $0x28] sm:$0xf]
      %v3879 = vld [vmem:[%s3867 + $0x2c] sm:$0xf]
      %v3880 = vld [vmem:[%s3867 + $0x30] sm:$0xf]
      %v3881 = vld [vmem:[%s3867 + $0x34] sm:$0xf]
      %v3882 = vld [vmem:[%s3867 + $0x38] sm:$0xf]
      %v3883 = vld [vmem:[%s3867 + $0x3c] sm:$0xf]
      %v3900 = vunpack.c.l.b16 %v3868
      %v3901 = vunpack.c.l.b16 %v3869
      %v3902 = vunpack.c.l.b16 %v3870
      %v3903 = vunpack.c.l.b16 %v3871
      %v3904 = vunpack.c.l.b16 %v3872
      %v3905 = vunpack.c.l.b16 %v3873
      %v3906 = vunpack.c.l.b16 %v3874
      %v3907 = vunpack.c.l.b16 %v3875
      %v3908 = vunpack.c.l.b16 %v3876
      %v3909 = vunpack.c.l.b16 %v3877
      %v3910 = vunpack.c.l.b16 %v3878
      %v3911 = vunpack.c.l.b16 %v3879
      %v3912 = vunpack.c.l.b16 %v3880
      %v3913 = vunpack.c.l.b16 %v3881
      %v3914 = vunpack.c.l.b16 %v3882
      %v3915 = vunpack.c.l.b16 %v3883
      %v3916 = vpack.c.b16 %v3901, %v3900
      %v3917 = vpack.c.b16 %v3903, %v3902
      %v3918 = vpack.c.b16 %v3905, %v3904
      %v3919 = vpack.c.b16 %v3907, %v3906
      %v3920 = vpack.c.b16 %v3909, %v3908
      %v3921 = vpack.c.b16 %v3911, %v3910
      %v3922 = vpack.c.b16 %v3913, %v3912
      %v3923 = vpack.c.b16 %v3915, %v3914
      %3932 = vmatprep.subr.bf16.mxu0 0
      %3933 = vmatpush1.bf16.msra.mxu0 %v3916
      %3934 = vmatprep.subr.bf16.mxu0 0
      %3935 = vmatpush1.bf16.msra.mxu0 %v3917
      %3936 = vmatprep.subr.bf16.mxu0 0
      %3937 = vmatpush1.bf16.msra.mxu0 %v3918
      %3938 = vmatprep.subr.bf16.mxu0 0
      %3939 = vmatpush1.bf16.msra.mxu0 %v3919
      %3940 = vmatprep.subr.bf16.mxu0 0
      %3941 = vmatpush1.bf16.msra.mxu0 %v3920
      %3942 = vmatprep.subr.bf16.mxu0 0
      %3943 = vmatpush1.bf16.msra.mxu0 %v3921
      %3944 = vmatprep.subr.bf16.mxu0 0
      %3945 = vmatpush1.bf16.msra.mxu0 %v3922
      %3946 = vmatprep.subr.bf16.mxu0 0
      %3947 = vmatpush1.bf16.msra.mxu0 %v3923
      %3948 = vmatprep.subr.bf16.mxu0 0
      %3949 = vmatpush1.bf16.msra.mxu0 0
      %3950 = vmatprep.subr.bf16.mxu0 0
      %3951 = vmatpush1.bf16.msra.mxu0 0
      %3952 = vmatprep.subr.bf16.mxu0 0
      %3953 = vmatpush1.bf16.msra.mxu0 0
      %3954 = vmatprep.subr.bf16.mxu0 0
      %3955 = vmatpush1.bf16.msra.mxu0 0
      %3956 = vmatprep.subr.bf16.mxu0 0
      %3957 = vmatpush1.bf16.msra.mxu0 0
      %3958 = vmatprep.subr.bf16.mxu0 0
      %3959 = vmatpush1.bf16.msra.mxu0 0
      %3960 = vmatprep.subr.bf16.mxu0 0
      %3961 = vmatpush1.bf16.msra.mxu0 0
      %3962 = vmatprep.subr.bf16.mxu0 0
      %3963 = vmatpush1.bf16.msra.mxu0 0
      %3964 = vmatprep.mubr.bf16.mxu0 0
      %3965 = vmatmul.mubr.bf16.gmra.mrb[0].mxu0 %v3851
      %v3966 = vpop.f32.mrb[0].mxu0
      %v3967 = vadd.f32 0.0, %v3966
      %v3968 = vpop.f32.mrb[0].mxu0
      %v3969 = vpop.f32.mrb[0].mxu0
      %v3970 = vadd.f32 0.0, %v3969
      %v3971 = vpop.f32.mrb[0].mxu0
      %3972 = vmatprep.mubr.bf16.mxu0 0
      %3973 = vmatmul.mubr.bf16.gmra.mrb[0].mxu0 %v3852
      %v3974 = vpop.f32.mrb[0].mxu0
      %v3975 = vadd.f32 0.0, %v3974
      %v3976 = vpop.f32.mrb[0].mxu0
      %v3977 = vpop.f32.mrb[0].mxu0
      %v3978 = vadd.f32 0.0, %v3977
      %v3979 = vpop.f32.mrb[0].mxu0
      %3980 = vmatprep.mubr.bf16.mxu0 0
      %3981 = vmatmul.mubr.bf16.gmra.mrb[0].mxu0 %v3853
      %v3982 = vpop.f32.mrb[0].mxu0
      %v3983 = vadd.f32 0.0, %v3982
      %v3984 = vpop.f32.mrb[0].mxu0
      %v3985 = vpop.f32.mrb[0].mxu0
      %v3986 = vadd.f32 0.0, %v3985
      %v3987 = vpop.f32.mrb[0].mxu0
      %3988 = vmatprep.mubr.bf16.mxu0 0
      %3989 = vmatmul.mubr.bf16.gmra.mrb[0].mxu0 %v3854
      %v3990 = vpop.f32.mrb[0].mxu0
      %v3991 = vadd.f32 0.0, %v3990
      %v3992 = vpop.f32.mrb[0].mxu0
      %v3993 = vpop.f32.mrb[0].mxu0
      %v3994 = vadd.f32 0.0, %v3993
      %v3995 = vpop.f32.mrb[0].mxu0
      %3996 = vmatprep.mubr.bf16.mxu0 0
      %3997 = vmatmul.mubr.bf16.gmra.mrb[0].mxu0 %v3855
      %v3998 = vpop.f32.mrb[0].mxu0
      %v3999 = vadd.f32 0.0, %v3998
      %v4000 = vpop.f32.mrb[0].mxu0
      %v4001 = vpop.f32.mrb[0].mxu0
      %v4002 = vadd.f32 0.0, %v4001
      %v4003 = vpop.f32.mrb[0].mxu0
      %4004 = vmatprep.mubr.bf16.mxu0 0
      %4005 = vmatmul.mubr.bf16.gmra.mrb[0].mxu0 %v3856
      %v4006 = vpop.f32.mrb[0].mxu0
      %v4007 = vadd.f32 0.0, %v4006
      %v4008 = vpop.f32.mrb[0].mxu0
      %v4009 = vpop.f32.mrb[0].mxu0
      %v4010 = vadd.f32 0.0, %v4009
      %v4011 = vpop.f32.mrb[0].mxu0
      %4012 = vmatprep.mubr.bf16.mxu0 0
      %4013 = vmatmul.mubr.bf16.gmra.mrb[0].mxu0 %v3857
      %v4014 = vpop.f32.mrb[0].mxu0
      %v4015 = vadd.f32 0.0, %v4014
      %v4016 = vpop.f32.mrb[0].mxu0
      %v4017 = vpop.f32.mrb[0].mxu0
      %v4018 = vadd.f32 0.0, %v4017
      %v4019 = vpop.f32.mrb[0].mxu0
      %4020 = vmatprep.mubr.bf16.mxu0 0
      %4021 = vmatmul.mubr.bf16.gmra.mrb[0].mxu0 %v3858
      %v4022 = vpop.f32.mrb[0].mxu0
      %v4023 = vadd.f32 0.0, %v4022
      %v4024 = vpop.f32.mrb[0].mxu0
      %v4025 = vpop.f32.mrb[0].mxu0
      %v4026 = vadd.f32 0.0, %v4025
      %v4027 = vpop.f32.mrb[0].mxu0
      %4028 = vmatprep.mubr.bf16.mxu0 0
      %4029 = vmatmul.mubr.bf16.gmra.mrb[0].mxu0 %v3859
      %v4030 = vpop.f32.mrb[0].mxu0
      %v4031 = vadd.f32 0.0, %v4030
      %v4032 = vpop.f32.mrb[0].mxu0
      %v4033 = vpop.f32.mrb[0].mxu0
      %v4034 = vadd.f32 0.0, %v4033
      %v4035 = vpop.f32.mrb[0].mxu0
      %4036 = vmatprep.mubr.bf16.mxu0 0
      %4037 = vmatmul.mubr.bf16.gmra.mrb[0].mxu0 %v3860
      %v4038 = vpop.f32.mrb[0].mxu0
      %v4039 = vadd.f32 0.0, %v4038
      %v4040 = vpop.f32.mrb[0].mxu0
      %v4041 = vpop.f32.mrb[0].mxu0
      %v4042 = vadd.f32 0.0, %v4041
      %v4043 = vpop.f32.mrb[0].mxu0
      %4044 = vmatprep.mubr.bf16.mxu0 0
      %4045 = vmatmul.mubr.bf16.gmra.mrb[0].mxu0 %v3861
      %v4046 = vpop.f32.mrb[0].mxu0
      %v4047 = vadd.f32 0.0, %v4046
      %v4048 = vpop.f32.mrb[0].mxu0
      %v4049 = vpop.f32.mrb[0].mxu0
      %v4050 = vadd.f32 0.0, %v4049
      %v4051 = vpop.f32.mrb[0].mxu0
      %4052 = vmatprep.mubr.bf16.mxu0 0
      %4053 = vmatmul.mubr.bf16.gmra.mrb[0].mxu0 %v3862
      %v4054 = vpop.f32.mrb[0].mxu0
      %v4055 = vadd.f32 0.0, %v4054
      %v4056 = vpop.f32.mrb[0].mxu0
      %v4057 = vpop.f32.mrb[0].mxu0
      %v4058 = vadd.f32 0.0, %v4057
      %v4059 = vpop.f32.mrb[0].mxu0
      %4060 = vmatprep.mubr.bf16.mxu0 0
      %4061 = vmatmul.mubr.bf16.gmra.mrb[0].mxu0 %v3863
      %v4062 = vpop.f32.mrb[0].mxu0
      %v4063 = vadd.f32 0.0, %v4062
      %v4064 = vpop.f32.mrb[0].mxu0
      %v4065 = vpop.f32.mrb[0].mxu0
      %v4066 = vadd.f32 0.0, %v4065
      %v4067 = vpop.f32.mrb[0].mxu0
      %4068 = vmatprep.mubr.bf16.mxu0 0
      %4069 = vmatmul.mubr.bf16.gmra.mrb[0].mxu0 %v3864
      %v4070 = vpop.f32.mrb[0].mxu0
      %v4071 = vadd.f32 0.0, %v4070
      %v4072 = vpop.f32.mrb[0].mxu0
      %v4073 = vpop.f32.mrb[0].mxu0
      %v4074 = vadd.f32 0.0, %v4073
      %v4075 = vpop.f32.mrb[0].mxu0
      %4076 = vmatprep.mubr.bf16.mxu0 0
      %4077 = vmatmul.mubr.bf16.gmra.mrb[0].mxu0 %v3865
      %v4078 = vpop.f32.mrb[0].mxu0
      %v4079 = vadd.f32 0.0, %v4078
      %v4080 = vpop.f32.mrb[0].mxu0
      %v4081 = vpop.f32.mrb[0].mxu0
      %v4082 = vadd.f32 0.0, %v4081
      %v4083 = vpop.f32.mrb[0].mxu0
      %4084 = vmatprep.mubr.bf16.mxu0 0
      %4085 = vmatmul.mubr.bf16.gmra.mrb[0].mxu0 %v3866
      %v4086 = vpop.f32.mrb[0].mxu0
      %v4087 = vadd.f32 0.0, %v4086
      %v4088 = vpop.f32.mrb[0].mxu0
      %v4089 = vpop.f32.mrb[0].mxu0
      %v4090 = vadd.f32 0.0, %v4089
      %v4091 = vpop.f32.mrb[0].mxu0
      %4092 = vdwg.mxu0
      %v4093 = vld [vmem:[#allocation2] sm:$0xff]
      %v4094 = vld [vmem:[#allocation2 + $0x8] sm:$0xff]
      %v4095 = vld [vmem:[#allocation2 + $0x10] sm:$0xff]
      %v4096 = vld [vmem:[#allocation2 + $0x18] sm:$0xff]
      %v4097 = vld [vmem:[#allocation2 + $0x20] sm:$0xff]
      %v4098 = vld [vmem:[#allocation2 + $0x28] sm:$0xff]
      %v4099 = vld [vmem:[#allocation2 + $0x30] sm:$0xff]
      %v4100 = vld [vmem:[#allocation2 + $0x38] sm:$0xff]
      %v4101 = vld [vmem:[#allocation2 + $0x40] sm:$0xff]
      %v4102 = vld [vmem:[#allocation2 + $0x48] sm:$0xff]
      %v4103 = vld [vmem:[#allocation2 + $0x50] sm:$0xff]
      %v4104 = vld [vmem:[#allocation2 + $0x58] sm:$0xff]
      %v4105 = vld [vmem:[#allocation2 + $0x60] sm:$0xff]
      %v4106 = vld [vmem:[#allocation2 + $0x68] sm:$0xff]
      %v4107 = vld [vmem:[#allocation2 + $0x70] sm:$0xff]
      %v4108 = vld [vmem:[#allocation2 + $0x78] sm:$0xff]
      %v4109 = vld [vmem:[#allocation2 + $0x80] sm:$0xff]
      %v4110 = vld [vmem:[#allocation2 + $0x88] sm:$0xff]
      %v4111 = vld [vmem:[#allocation2 + $0x90] sm:$0xff]
      %v4112 = vld [vmem:[#allocation2 + $0x98] sm:$0xff]
      %v4113 = vld [vmem:[#allocation2 + $0xa0] sm:$0xff]
      %v4114 = vld [vmem:[#allocation2 + $0xa8] sm:$0xff]
      %v4115 = vld [vmem:[#allocation2 + $0xb0] sm:$0xff]
      %v4116 = vld [vmem:[#allocation2 + $0xb8] sm:$0xff]
      %v4117 = vld [vmem:[#allocation2 + $0xc0] sm:$0xff]
      %v4118 = vld [vmem:[#allocation2 + $0xc8] sm:$0xff]
      %v4119 = vld [vmem:[#allocation2 + $0xd0] sm:$0xff]
      %v4120 = vld [vmem:[#allocation2 + $0xd8] sm:$0xff]
      %v4121 = vld [vmem:[#allocation2 + $0xe0] sm:$0xff]
      %v4122 = vld [vmem:[#allocation2 + $0xe8] sm:$0xff]
      %v4123 = vld [vmem:[#allocation2 + $0xf0] sm:$0xff]
      %v4124 = vld [vmem:[#allocation2 + $0xf8] sm:$0xff]
      %v4125 = vadd.f32 %v4093, %v3967
      %v4126 = vadd.f32 %v4094, %v3970
      %v4127 = vadd.f32 %v4095, %v3975
      %v4128 = vadd.f32 %v4096, %v3978
      %v4129 = vadd.f32 %v4097, %v3983
      %v4130 = vadd.f32 %v4098, %v3986
      %v4131 = vadd.f32 %v4099, %v3991
      %v4132 = vadd.f32 %v4100, %v3994
      %v4133 = vadd.f32 %v4101, %v3999
      %v4134 = vadd.f32 %v4102, %v4002
      %v4135 = vadd.f32 %v4103, %v4007
      %v4136 = vadd.f32 %v4104, %v4010
      %v4137 = vadd.f32 %v4105, %v4015
      %v4138 = vadd.f32 %v4106, %v4018
      %v4139 = vadd.f32 %v4107, %v4023
      %v4140 = vadd.f32 %v4108, %v4026
      %v4141 = vadd.f32 %v4109, %v4031
      %v4142 = vadd.f32 %v4110, %v4034
      %v4143 = vadd.f32 %v4111, %v4039
      %v4144 = vadd.f32 %v4112, %v4042
      %v4145 = vadd.f32 %v4113, %v4047
      %v4146 = vadd.f32 %v4114, %v4050
      %v4147 = vadd.f32 %v4115, %v4055
      %v4148 = vadd.f32 %v4116, %v4058
      %v4149 = vadd.f32 %v4117, %v4063
      %v4150 = vadd.f32 %v4118, %v4066
      %v4151 = vadd.f32 %v4119, %v4071
      %v4152 = vadd.f32 %v4120, %v4074
      %v4153 = vadd.f32 %v4121, %v4079
      %v4154 = vadd.f32 %v4122, %v4082
      %v4155 = vadd.f32 %v4123, %v4087
      %v4156 = vadd.f32 %v4124, %v4090
      %4157 = vst [vmem:[#allocation2] sm:$0xff] %v4125
      %4158 = vst [vmem:[#allocation2 + $0x8] sm:$0xff] %v4126
      %4159 = vst [vmem:[#allocation2 + $0x10] sm:$0xff] %v4127
      %4160 = vst [vmem:[#allocation2 + $0x18] sm:$0xff] %v4128
      %4161 = vst [vmem:[#allocation2 + $0x20] sm:$0xff] %v4129
      %4162 = vst [vmem:[#allocation2 + $0x28] sm:$0xff] %v4130
      %4163 = vst [vmem:[#allocation2 + $0x30] sm:$0xff] %v4131
      %4164 = vst [vmem:[#allocation2 + $0x38] sm:$0xff] %v4132
      %4165 = vst [vmem:[#allocation2 + $0x40] sm:$0xff] %v4133
      %4166 = vst [vmem:[#allocation2 + $0x48] sm:$0xff] %v4134
      %4167 = vst [vmem:[#allocation2 + $0x50] sm:$0xff] %v4135
      %4168 = vst [vmem:[#allocation2 + $0x58] sm:$0xff] %v4136
      %4169 = vst [vmem:[#allocation2 + $0x60] sm:$0xff] %v4137
      %4170 = vst [vmem:[#allocation2 + $0x68] sm:$0xff] %v4138
      %4171 = vst [vmem:[#allocation2 + $0x70] sm:$0xff] %v4139
      %4172 = vst [vmem:[#allocation2 + $0x78] sm:$0xff] %v4140
      %4173 = vst [vmem:[#allocation2 + $0x80] sm:$0xff] %v4141
      %4174 = vst [vmem:[#allocation2 + $0x88] sm:$0xff] %v4142
      %4175 = vst [vmem:[#allocation2 + $0x90] sm:$0xff] %v4143
      %4176 = vst [vmem:[#allocation2 + $0x98] sm:$0xff] %v4144
      %4177 = vst [vmem:[#allocation2 + $0xa0] sm:$0xff] %v4145
      %4178 = vst [vmem:[#allocation2 + $0xa8] sm:$0xff] %v4146
      %4179 = vst [vmem:[#allocation2 + $0xb0] sm:$0xff] %v4147
      %4180 = vst [vmem:[#allocation2 + $0xb8] sm:$0xff] %v4148
      %4181 = vst [vmem:[#allocation2 + $0xc0] sm:$0xff] %v4149
      %4182 = vst [vmem:[#allocation2 + $0xc8] sm:$0xff] %v4150
      %4183 = vst [vmem:[#allocation2 + $0xd0] sm:$0xff] %v4151
      %4184 = vst [vmem:[#allocation2 + $0xd8] sm:$0xff] %v4152
      %4185 = vst [vmem:[#allocation2 + $0xe0] sm:$0xff] %v4153
      %4186 = vst [vmem:[#allocation2 + $0xe8] sm:$0xff] %v4154
      %4187 = vst [vmem:[#allocation2 + $0xf0] sm:$0xff] %v4155
      %4188 = vst [vmem:[#allocation2 + $0xf8] sm:$0xff] %v4156
      %v4189 = vld [vmem:[#allocation2] sm:$0xff]
      %v4190 = vld [vmem:[#allocation2 + $0x8] sm:$0xff]
      %v4191 = vld [vmem:[#allocation2 + $0x10] sm:$0xff]
      %v4192 = vld [vmem:[#allocation2 + $0x18] sm:$0xff]
      %v4193 = vld [vmem:[#allocation2 + $0x20] sm:$0xff]
      %v4194 = vld [vmem:[#allocation2 + $0x28] sm:$0xff]
      %v4195 = vld [vmem:[#allocation2 + $0x30] sm:$0xff]
      %v4196 = vld [vmem:[#allocation2 + $0x38] sm:$0xff]
      %v4197 = vld [vmem:[#allocation2 + $0x40] sm:$0xff]
      %v4198 = vld [vmem:[#allocation2 + $0x48] sm:$0xff]
      %v4199 = vld [vmem:[#allocation2 + $0x50] sm:$0xff]
      %v4200 = vld [vmem:[#allocation2 + $0x58] sm:$0xff]
      %v4201 = vld [vmem:[#allocation2 + $0x60] sm:$0xff]
      %v4202 = vld [vmem:[#allocation2 + $0x68] sm:$0xff]
      %v4203 = vld [vmem:[#allocation2 + $0x70] sm:$0xff]
      %v4204 = vld [vmem:[#allocation2 + $0x78] sm:$0xff]
      %v4205 = vld [vmem:[#allocation2 + $0x80] sm:$0xff]
      %v4206 = vld [vmem:[#allocation2 + $0x88] sm:$0xff]
      %v4207 = vld [vmem:[#allocation2 + $0x90] sm:$0xff]
      %v4208 = vld [vmem:[#allocation2 + $0x98] sm:$0xff]
      %v4209 = vld [vmem:[#allocation2 + $0xa0] sm:$0xff]
      %v4210 = vld [vmem:[#allocation2 + $0xa8] sm:$0xff]
      %v4211 = vld [vmem:[#allocation2 + $0xb0] sm:$0xff]
      %v4212 = vld [vmem:[#allocation2 + $0xb8] sm:$0xff]
      %v4213 = vld [vmem:[#allocation2 + $0xc0] sm:$0xff]
      %v4214 = vld [vmem:[#allocation2 + $0xc8] sm:$0xff]
      %v4215 = vld [vmem:[#allocation2 + $0xd0] sm:$0xff]
      %v4216 = vld [vmem:[#allocation2 + $0xd8] sm:$0xff]
      %v4217 = vld [vmem:[#allocation2 + $0xe0] sm:$0xff]
      %v4218 = vld [vmem:[#allocation2 + $0xe8] sm:$0xff]
      %v4219 = vld [vmem:[#allocation2 + $0xf0] sm:$0xff]
      %v4220 = vld [vmem:[#allocation2 + $0xf8] sm:$0xff]
      %v4221 = vld [vmem:[%s2] sm:$0x1]
      %v4223 = vlaneseq
      %v4224 = vshrl.u32 %v4223, 7
      %v4225 = vsub.s32 0, %v4224
      %v4226 = vrot.slane %v4221, %v4225
      %v4228 = vadd.f32 %v4189, %v4226
      %v4229 = vadd.f32 %v4190, %v4226
      %v4230 = vadd.f32 %v4191, %v4226
      %v4231 = vadd.f32 %v4192, %v4226
      %v4232 = vadd.f32 %v4193, %v4226
      %v4233 = vadd.f32 %v4194, %v4226
      %v4234 = vadd.f32 %v4195, %v4226
      %v4235 = vadd.f32 %v4196, %v4226
      %v4236 = vadd.f32 %v4197, %v4226
      %v4237 = vadd.f32 %v4198, %v4226
      %v4238 = vadd.f32 %v4199, %v4226
      %v4239 = vadd.f32 %v4200, %v4226
      %v4240 = vadd.f32 %v4201, %v4226
      %v4241 = vadd.f32 %v4202, %v4226
      %v4242 = vadd.f32 %v4203, %v4226
      %v4243 = vadd.f32 %v4204, %v4226
      %v4244 = vadd.f32 %v4205, %v4226
      %v4245 = vadd.f32 %v4206, %v4226
      %v4246 = vadd.f32 %v4207, %v4226
      %v4247 = vadd.f32 %v4208, %v4226
      %v4248 = vadd.f32 %v4209, %v4226
      %v4249 = vadd.f32 %v4210, %v4226
      %v4250 = vadd.f32 %v4211, %v4226
      %v4251 = vadd.f32 %v4212, %v4226
      %v4252 = vadd.f32 %v4213, %v4226
      %v4253 = vadd.f32 %v4214, %v4226
      %v4254 = vadd.f32 %v4215, %v4226
      %v4255 = vadd.f32 %v4216, %v4226
      %v4256 = vadd.f32 %v4217, %v4226
      %v4257 = vadd.f32 %v4218, %v4226
      %v4258 = vadd.f32 %v4219, %v4226
      %v4259 = vadd.f32 %v4220, %v4226
      %4260 = vst [vmem:[%s231] sm:$0xff] %v4228
      %4261 = vst [vmem:[%s231 + $0x8] sm:$0xff] %v4229
      %4262 = vst [vmem:[%s231 + $0x10] sm:$0xff] %v4230
      %4263 = vst [vmem:[%s231 + $0x18] sm:$0xff] %v4231
      %4264 = vst [vmem:[%s231 + $0x20] sm:$0xff] %v4232
      %4265 = vst [vmem:[%s231 + $0x28] sm:$0xff] %v4233
      %4266 = vst [vmem:[%s231 + $0x30] sm:$0xff] %v4234
      %4267 = vst [vmem:[%s231 + $0x38] sm:$0xff] %v4235
      %4268 = vst [vmem:[%s231 + $0x40] sm:$0xff] %v4236
      %4269 = vst [vmem:[%s231 + $0x48] sm:$0xff] %v4237
      %4270 = vst [vmem:[%s231 + $0x50] sm:$0xff] %v4238
      %4271 = vst [vmem:[%s231 + $0x58] sm:$0xff] %v4239
      %4272 = vst [vmem:[%s231 + $0x60] sm:$0xff] %v4240
      %4273 = vst [vmem:[%s231 + $0x68] sm:$0xff] %v4241
      %4274 = vst [vmem:[%s231 + $0x70] sm:$0xff] %v4242
      %4275 = vst [vmem:[%s231 + $0x78] sm:$0xff] %v4243
      %4276 = vst [vmem:[%s231 + $0x80] sm:$0xff] %v4244
      %4277 = vst [vmem:[%s231 + $0x88] sm:$0xff] %v4245
      %4278 = vst [vmem:[%s231 + $0x90] sm:$0xff] %v4246
      %4279 = vst [vmem:[%s231 + $0x98] sm:$0xff] %v4247
      %4280 = vst [vmem:[%s231 + $0xa0] sm:$0xff] %v4248
      %4281 = vst [vmem:[%s231 + $0xa8] sm:$0xff] %v4249
      %4282 = vst [vmem:[%s231 + $0xb0] sm:$0xff] %v4250
      %4283 = vst [vmem:[%s231 + $0xb8] sm:$0xff] %v4251
      %4284 = vst [vmem:[%s231 + $0xc0] sm:$0xff] %v4252
      %4285 = vst [vmem:[%s231 + $0xc8] sm:$0xff] %v4253
      %4286 = vst [vmem:[%s231 + $0xd0] sm:$0xff] %v4254
      %4287 = vst [vmem:[%s231 + $0xd8] sm:$0xff] %v4255
      %4288 = vst [vmem:[%s231 + $0xe0] sm:$0xff] %v4256
      %4289 = vst [vmem:[%s231 + $0xe8] sm:$0xff] %v4257
      %4290 = vst [vmem:[%s231 + $0xf0] sm:$0xff] %v4258
      %4291 = vst [vmem:[%s231 + $0xf8] sm:$0xff] %v4259
      %v4292 = vadd.f32 %v4228, %v4229
      %v4293 = vadd.f32 %v4292, %v4230
      %v4294 = vadd.f32 %v4293, %v4231
      %v4295 = vadd.f32 %v4294, %v4232
      %v4296 = vadd.f32 %v4295, %v4233
      %v4297 = vadd.f32 %v4296, %v4234
      %v4298 = vadd.f32 %v4297, %v4235
      %v4299 = vadd.f32 %v4298, %v4236
      %v4300 = vadd.f32 %v4299, %v4237
      %v4301 = vadd.f32 %v4300, %v4238
      %v4302 = vadd.f32 %v4301, %v4239
      %v4303 = vadd.f32 %v4302, %v4240
      %v4304 = vadd.f32 %v4303, %v4241
      %v4305 = vadd.f32 %v4304, %v4242
      %v4306 = vadd.f32 %v4305, %v4243
      %v4307 = vadd.f32 %v4306, %v4244
      %v4308 = vadd.f32 %v4307, %v4245
      %v4309 = vadd.f32 %v4308, %v4246
      %v4310 = vadd.f32 %v4309, %v4247
      %v4311 = vadd.f32 %v4310, %v4248
      %v4312 = vadd.f32 %v4311, %v4249
      %v4313 = vadd.f32 %v4312, %v4250
      %v4314 = vadd.f32 %v4313, %v4251
      %v4315 = vadd.f32 %v4314, %v4252
      %v4316 = vadd.f32 %v4315, %v4253
      %v4317 = vadd.f32 %v4316, %v4254
      %v4318 = vadd.f32 %v4317, %v4255
      %v4319 = vadd.f32 %v4318, %v4256
      %v4320 = vadd.f32 %v4319, %v4257
      %v4321 = vadd.f32 %v4320, %v4258
      %v4322 = vadd.f32 %v4321, %v4259
      %v4323 = vrot.slane %v4322, 4
      %v4324 = vadd.f32 %v4322, %v4323
      %v4325 = vrot.slane %v4324, 2
      %v4326 = vadd.f32 %v4324, %v4325
      %v4327 = vrot.slane %v4326, 1
      %v4328 = vadd.f32 %v4326, %v4327
      %4329 = vst [vmem:[%s239] sm:$0x1] %v4328
      %v4330 = vmul.f32 %v4228, %v4228
      %v4331 = vmul.f32 %v4229, %v4229
      %v4332 = vmul.f32 %v4230, %v4230
      %v4333 = vmul.f32 %v4231, %v4231
      %v4334 = vmul.f32 %v4232, %v4232
      %v4335 = vmul.f32 %v4233, %v4233
      %v4336 = vmul.f32 %v4234, %v4234
      %v4337 = vmul.f32 %v4235, %v4235
      %v4338 = vmul.f32 %v4236, %v4236
      %v4339 = vmul.f32 %v4237, %v4237
      %v4340 = vmul.f32 %v4238, %v4238
      %v4341 = vmul.f32 %v4239, %v4239
      %v4342 = vmul.f32 %v4240, %v4240
      %v4343 = vmul.f32 %v4241, %v4241
      %v4344 = vmul.f32 %v4242, %v4242
      %v4345 = vmul.f32 %v4243, %v4243
      %v4346 = vmul.f32 %v4244, %v4244
      %v4347 = vmul.f32 %v4245, %v4245
      %v4348 = vmul.f32 %v4246, %v4246
      %v4349 = vmul.f32 %v4247, %v4247
      %v4350 = vmul.f32 %v4248, %v4248
      %v4351 = vmul.f32 %v4249, %v4249
      %v4352 = vmul.f32 %v4250, %v4250
      %v4353 = vmul.f32 %v4251, %v4251
      %v4354 = vmul.f32 %v4252, %v4252
      %v4355 = vmul.f32 %v4253, %v4253
      %v4356 = vmul.f32 %v4254, %v4254
      %v4357 = vmul.f32 %v4255, %v4255
      %v4358 = vmul.f32 %v4256, %v4256
      %v4359 = vmul.f32 %v4257, %v4257
      %v4360 = vmul.f32 %v4258, %v4258
      %v4361 = vmul.f32 %v4259, %v4259
      %v4362 = vadd.f32 %v4330, %v4331
      %v4363 = vadd.f32 %v4362, %v4332
      %v4364 = vadd.f32 %v4363, %v4333
      %v4365 = vadd.f32 %v4364, %v4334
      %v4366 = vadd.f32 %v4365, %v4335
      %v4367 = vadd.f32 %v4366, %v4336
      %v4368 = vadd.f32 %v4367, %v4337
      %v4369 = vadd.f32 %v4368, %v4338
      %v4370 = vadd.f32 %v4369, %v4339
      %v4371 = vadd.f32 %v4370, %v4340
      %v4372 = vadd.f32 %v4371, %v4341
      %v4373 = vadd.f32 %v4372, %v4342
      %v4374 = vadd.f32 %v4373, %v4343
      %v4375 = vadd.f32 %v4374, %v4344
      %v4376 = vadd.f32 %v4375, %v4345
      %v4377 = vadd.f32 %v4376, %v4346
      %v4378 = vadd.f32 %v4377, %v4347
      %v4379 = vadd.f32 %v4378, %v4348
      %v4380 = vadd.f32 %v4379, %v4349
      %v4381 = vadd.f32 %v4380, %v4350
      %v4382 = vadd.f32 %v4381, %v4351
      %v4383 = vadd.f32 %v4382, %v4352
      %v4384 = vadd.f32 %v4383, %v4353
      %v4385 = vadd.f32 %v4384, %v4354
      %v4386 = vadd.f32 %v4385, %v4355
      %v4387 = vadd.f32 %v4386, %v4356
      %v4388 = vadd.f32 %v4387, %v4357
      %v4389 = vadd.f32 %v4388, %v4358
      %v4390 = vadd.f32 %v4389, %v4359
      %v4391 = vadd.f32 %v4390, %v4360
      %v4392 = vadd.f32 %v4391, %v4361
      %v4393 = vrot.slane %v4392, 4
      %v4394 = vadd.f32 %v4392, %v4393
      %v4395 = vrot.slane %v4394, 2
      %v4396 = vadd.f32 %v4394, %v4395
      %v4397 = vrot.slane %v4396, 1
      %v4398 = vadd.f32 %v4396, %v4397
      %4399 = vst [vmem:[%s239 + $0x1] sm:$0x1] %v4398
      %s4400 = smul.u32 32, %s21
      %p4401 = scmp.lt.s32.totalorder %s20, 1
      %s4402 = scalar_select %p4401, %s20, 1
      %p4403 = scmp.lt.s32.totalorder %s4400, 31
      %s4404 = scalar_select %p4403, %s4400, 31
      %s4405 = smul.addr %s4402, 32
      %s4406 = sadd.s32 %s4404, %s4405
      %s4407 = smul.addr %s4406, 8
      %s4408 = scalar_lea.vmem %s3, %s4407
      %p4409 = scmp.lt.s32.totalorder %s20, 1
      %s4410 = scalar_select %p4409, %s20, 1
      %p4411 = scmp.lt.s32.totalorder %s21, 0
      %s4412 = scalar_select %p4411, %s21, 0
      %s4413 = sadd.s32 %s4412, %s4410
      %s4414 = smul.addr %s4413, 2
      %s4415 = scalar_lea.vmem %s4, %s4414
      // Predicated region
      $region33: #{inception_v3a_forward.14} parent=31 // pred_check
        %p4416 = pneg %p116
      $region34: #{inception_v3a_forward.14} parent=31 // pred_check_branch
        %4418 = sbr.rel (%p4416) target = $region36
      $region35: #{inception_v3a_forward.14} parent=31 // pred_region
        %s4419 = smul.u32 32, %s21
      $region36: #{inception_v3a_forward.14} parent=31 // pred_fallthru
        _
      // Predicated region
      $region37: #{inception_v3a_forward.14} parent=31 // pred_check
        %p4420 = pneg %p144
      $region38: #{inception_v3a_forward.14} parent=31 // pred_check_branch
        %4422 = sbr.rel (%p4420) target = $region40
      $region39: #{inception_v3a_forward.14} parent=31 // pred_region
        _
      $region40: #{inception_v3a_forward.14} parent=31 // pred_fallthru
        _
    $region32: #{inception_v3a_forward.14} parent=5 // pred_fallthru
      _
    %p4423 = scmp.le.s32.totalorder 2, %s11
    // Predicated region
    $region41: #{inception_v3a_forward.14} parent=5 // pred_check
      %p4424 = pneg %p4423
    $region42: #{inception_v3a_forward.14} parent=5 // pred_check_branch
      %4426 = sbr.rel (%p4424) target = $region44
    $region43: #{inception_v3a_forward.14} parent=5 // pred_region
      %s4427 = ssub.s32 %s11, 2
      // Predicated region
      $region45: #{inception_v3a_forward.14} parent=43 // pred_check
        %p4428 = pneg %p122
      $region46: #{inception_v3a_forward.14} parent=43 // pred_check_branch
        %4430 = sbr.rel (%p4428) target = $region48
      $region47: #{inception_v3a_forward.14} parent=43 // pred_region
        %s4431 = smul.u32 32, %s23
        %p4432 = scmp.lt.s32.totalorder %s22, 1
        %s4433 = scalar_select %p4432, %s22, 1
        %p4434 = scmp.lt.s32.totalorder %s4431, 31
        %s4435 = scalar_select %p4434, %s4431, 31
        %s4436 = smul.addr %s4433, 32
        %s4437 = sadd.s32 %s4435, %s4436
        %s4438 = smul.addr %s4437, 8
        %s4439 = scalar_lea.vmem %s3, %s4438
      $region48: #{inception_v3a_forward.14} parent=43 // pred_fallthru
        _
      // Predicated region
      $region49: #{inception_v3a_forward.14} parent=43 // pred_check
        %p4440 = pneg %p150
      $region50: #{inception_v3a_forward.14} parent=43 // pred_check_branch
        %4442 = sbr.rel (%p4440) target = $region52
      $region51: #{inception_v3a_forward.14} parent=43 // pred_region
        %p4443 = scmp.lt.s32.totalorder %s22, 1
        %s4444 = scalar_select %p4443, %s22, 1
        %p4445 = scmp.lt.s32.totalorder %s23, 0
        %s4446 = scalar_select %p4445, %s23, 0
        %s4447 = sadd.s32 %s4446, %s4444
        %s4448 = smul.addr %s4447, 2
        %s4449 = scalar_lea.vmem %s4, %s4448
      $region52: #{inception_v3a_forward.14} parent=43 // pred_fallthru
        _
    $region44: #{inception_v3a_forward.14} parent=5 // pred_fallthru
      _
  $region6: #{inception_v3a_forward.14} parent=0 // loop_footer
    %s15 = sadd.s32 1, %s11
  $region7: #{inception_v3a_forward.14} parent=0 // loop_footer_branch
    %10 = sbr.rel target = $region3
  $region8: #{inception_v3a_forward.14} parent=0 // loop_exit
    _

</llo_original>
